<compile_context>
chip_gen: v5e
topology: v5e:2x2
jax: 0.10.0
libtpu: 0.0.40
codegen_flags: <defaults>
</compile_context>

<pallas_src>
import jax
import jax.numpy as jnp
import numpy as np
from jax.experimental import pallas as pl
from jax.experimental.pallas import tpu as pltpu

# ---- small-but-consistent problem sizes ----
LENS_Z = 64                      # hardcoded in ConvolutionalGLU1.forward
IN_FEATURES = 48
HID = int(2 * IN_FEATURES / 3)   # 32
OUT_FEATURES = IN_FEATURES
HZ = WZ = 8                      # template patch grid (64 tokens)
HS = WS = 16                     # search patch grid
N_X = HS * WS                    # 256 search tokens
N = LENS_Z + N_X                 # 320 tokens total
B = 2
EPS = 1e-5                       # nn.LayerNorm default
SQRT_2_OVER_PI = 0.7978845608028654


def _col_masks(H, W):
    """Float column-edge masks for the flattened (H*W,) token axis."""
    n = H * W
    col = jax.lax.broadcasted_iota(jnp.int32, (n, 1), 0) % W
    m_left = (col >= 1).astype(jnp.float32)        # reading column c-1 is valid
    m_right = (col <= W - 2).astype(jnp.float32)   # reading column c+1 is valid
    return m_left, m_right


def _dwconv3x3_flat(tok, H, W, wdw, bdw, m_left, m_right):
    """Depthwise 3x3 (stride 1, pad 1) on flattened (H*W, HID) tokens.

    No reshape to (H, W, HID) and no materialized 2-D pad: each of the 9 taps
    is a static sublane slice of a flat zero-padded buffer; horizontal edges
    are handled with the precomputed column masks (vertical edges fall into
    the zero padding, corner cases are caught by the column masks).
    """
    n = H * W
    pad = W + 1
    zpad = jnp.zeros((pad, HID), jnp.float32)
    xp = jnp.concatenate([zpad, tok, zpad], axis=0)   # (n + 2*(W+1), HID)

    out = jnp.zeros((n, HID), jnp.float32)
    for dh in range(3):
        for dwi in range(3):
            off = (dh - 1) * W + (dwi - 1)
            tap = xp[pad + off: pad + off + n, :]
            if dwi == 0:
                tap = tap * m_left
            elif dwi == 2:
                tap = tap * m_right
            out = out + tap * wdw[3 * dh + dwi: 3 * dh + dwi + 1, :]
    return out + bdw


def cglu_kernel(x_ref, w1_ref, b1_ref, wdwb_ref, w2_ref, b2_ref, o_ref):
    x = x_ref[...]                                   # (B*N, C) f32, all batches

    # ---- LayerNorm statistics only (gamma/beta folded into fc1 on host) ----
    mean = jnp.mean(x, axis=-1, keepdims=True)
    xc = x - mean
    var = jnp.mean(xc * xc, axis=-1, keepdims=True)
    xn = xc * jax.lax.rsqrt(var + EPS)

    # ---- fused fc1 (single MXU dot), then static chunk(2, -1) split ----
    h = jnp.dot(xn, w1_ref[...], preferred_element_type=jnp.float32) + b1_ref[...]
    xt = h[:, :HID]
    v = h[:, HID:]

    # ---- DWConv (faithful to the reference slicing quirk) ----
    wdw = wdwb_ref[:9, :]                            # (9, HID) taps, (dh, dw) row-major
    bdw = wdwb_ref[9:10, :]                          # (1, HID)
    ms_l, ms_r = _col_masks(HS, WS)                  # hoisted: one iota per region size
    mz_l, mz_r = _col_masks(HZ, WZ)

    nb = x.shape[0] // N                             # static (== B)
    dw_parts = []
    for b in range(nb):
        base = b * N
        xs = xt[base + LENS_Z: base + N, :]          # search tokens   (N_X, HID)
        zt = xs[:LENS_Z, :]                          # "template" per ref code (64, HID)
        dw_parts.append(_dwconv3x3_flat(zt, HZ, WZ, wdw, bdw, mz_l, mz_r))
        dw_parts.append(_dwconv3x3_flat(xs, HS, WS, wdw, bdw, ms_l, ms_r))
    dw = jnp.concatenate(dw_parts, axis=0)           # (B*N, HID)

    # ---- tanh-form GELU gate (EUP tanh; ~1e-3 from exact-erf nn.GELU) ----
    g = 0.5 * dw * (1.0 + jnp.tanh(SQRT_2_OVER_PI * (dw + 0.044715 * dw * dw * dw)))
    a = g * v

    # ---- fc2 + residual (dropout p=0.0 is identity) ----
    y = jnp.dot(a, w2_ref[...], preferred_element_type=jnp.float32) + b2_ref[...]
    o_ref[...] = (x + y).astype(o_ref.dtype)


def convolutional_glu1(x, params):
    gamma, beta, w1x, b1x, w1v, b1v, wdw, bdw, w2, b2 = params
    Bn, Nn, C = x.shape
    BN = Bn * Nn

    # ---- host-side parameter fusion (free; outside the kernel) ----
    w1 = jnp.concatenate([w1x, w1v], axis=1)                 # (C, 2*HID)
    b1 = jnp.concatenate([b1x, b1v], axis=1)                 # (1, 2*HID)
    # fold LayerNorm affine:  (xhat*g + b) @ W1 = xhat @ (g[:,None]*W1) + (b @ W1)
    w1f = gamma[0][:, None] * w1                             # (C, 2*HID)
    b1f = beta @ w1 + b1                                     # (1, 2*HID)
    wdwb = jnp.concatenate([wdw.reshape(9, HID), bdw], axis=0)  # (10, HID)

    xf = x.reshape(BN, C)                                    # collapse batch -> one slab

    def full(arr):
        nd = arr.ndim
        return pl.BlockSpec(arr.shape, lambda i, nd=nd: (0,) * nd)

    grid_spec = pltpu.PrefetchScalarGridSpec(
        num_scalar_prefetch=0,
        grid=(1,),                                           # single step on v5e/v6e
        in_specs=[pl.BlockSpec((BN, C), lambda i: (0, 0)),
                  full(w1f), full(b1f), full(wdwb), full(w2), full(b2)],
        out_specs=pl.BlockSpec((BN, C), lambda i: (0, 0)),
    )
    out = pl.pallas_call(
        cglu_kernel,
        out_shape=jax.ShapeDtypeStruct((BN, C), x.dtype),
        grid_spec=grid_spec,
        compiler_params=pltpu.CompilerParams(
            dimension_semantics=("arbitrary",)),
    )(xf, w1f, b1f, wdwb, w2, b2)
    return out.reshape(Bn, Nn, C)


def reference(x, params):
    """Plain-JAX mirror of the PyTorch forward (exact erf GELU) for checking."""
    gamma, beta, w1x, b1x, w1v, b1v, wdw, bdw, w2, b2 = params
    mean = x.mean(-1, keepdims=True)
    var = ((x - mean) ** 2).mean(-1, keepdims=True)
    xn = (x - mean) / jnp.sqrt(var + EPS) * gamma[0] + beta[0]
    xt = xn @ w1x + b1x[0]
    v = xn @ w1v + b1v[0]

    def dw2d(tok, H, W):
        m = tok.reshape(-1, H, W, HID)
        pad = jnp.pad(m, ((0, 0), (1, 1), (1, 1), (0, 0)))
        out = jnp.zeros_like(m)
        for dh in range(3):
            for dwi in range(3):
                out = out + pad[:, dh:dh + H, dwi:dwi + W, :] * wdw[dh, dwi, :]
        return (out + bdw[0]).reshape(-1, H * W, HID)

    xs = xt[:, LENS_Z:, :]
    zt = xs[:, :LENS_Z, :]
    dw = jnp.concatenate([dw2d(zt, HZ, WZ), dw2d(xs, HS, WS)], axis=1)
    g = 0.5 * dw * (1.0 + jax.lax.erf(dw / jnp.sqrt(2.0)))
    return x + (g * v) @ w2 + b2[0]


if __name__ == "__main__":
    key = jax.random.PRNGKey(0)
    ks = jax.random.split(key, 11)
    x = jax.random.normal(ks[0], (B, N, IN_FEATURES), jnp.float32)

    # Deterministic synthetic parameters (shapes from the module __init__).
    gamma = 1.0 + 0.05 * jax.random.normal(ks[1], (1, IN_FEATURES), jnp.float32)
    beta = 0.05 * jax.random.normal(ks[2], (1, IN_FEATURES), jnp.float32)
    w1x = 0.10 * jax.random.normal(ks[3], (IN_FEATURES, HID), jnp.float32)
    b1x = 0.05 * jax.random.normal(ks[4], (1, HID), jnp.float32)
    w1v = 0.10 * jax.random.normal(ks[5], (IN_FEATURES, HID), jnp.float32)
    b1v = 0.05 * jax.random.normal(ks[6], (1, HID), jnp.float32)
    wdw = 0.20 * jax.random.normal(ks[7], (3, 3, HID), jnp.float32)   # torch (HID,1,3,3) permuted
    bdw = 0.05 * jax.random.normal(ks[8], (1, HID), jnp.float32)
    w2 = 0.10 * jax.random.normal(ks[9], (HID, OUT_FEATURES), jnp.float32)
    b2 = 0.05 * jax.random.normal(ks[10], (1, OUT_FEATURES), jnp.float32)
    params = (gamma, beta, w1x, b1x, w1v, b1v, wdw, bdw, w2, b2)

    out = jax.block_until_ready(convolutional_glu1(x, params))

    ref = reference(x, params)
    np.testing.assert_allclose(np.asarray(out), np.asarray(ref), rtol=2e-2, atol=2e-2)
    print("KERNEL_OK")
</pallas_src>

<mosaic_0001>
module attributes {stable_mosaic.version = 11 : i64} {
  func.func @cglu_kernel(%arg0: i32, %arg1: memref<640x48xf32, #tpu.memory_space<vmem>>, %arg2: memref<48x64xf32, #tpu.memory_space<vmem>>, %arg3: memref<1x64xf32, #tpu.memory_space<vmem>>, %arg4: memref<10x32xf32, #tpu.memory_space<vmem>>, %arg5: memref<32x48xf32, #tpu.memory_space<vmem>>, %arg6: memref<1x48xf32, #tpu.memory_space<vmem>>, %arg7: memref<640x48xf32, #tpu.memory_space<vmem>>) attributes {dimension_semantics = [#tpu.dimension_semantics<arbitrary>], iteration_bounds = array<i64: 1>, scalar_prefetch = 0 : i64, scratch_operands = 0 : i64, tpu.core_type = #tpu.core_type<tc>, window_params = [{pipeline_mode = #tpu.pipeline_mode<synchronous>, transform_indices = @transform_0, window_bounds = array<i64: 640, 48>}, {pipeline_mode = #tpu.pipeline_mode<synchronous>, transform_indices = @transform_1, window_bounds = array<i64: 48, 64>}, {pipeline_mode = #tpu.pipeline_mode<synchronous>, transform_indices = @transform_2, window_bounds = array<i64: 1, 64>}, {pipeline_mode = #tpu.pipeline_mode<synchronous>, transform_indices = @transform_3, window_bounds = array<i64: 10, 32>}, {pipeline_mode = #tpu.pipeline_mode<synchronous>, transform_indices = @transform_4, window_bounds = array<i64: 32, 48>}, {pipeline_mode = #tpu.pipeline_mode<synchronous>, transform_indices = @transform_5, window_bounds = array<i64: 1, 48>}, {pipeline_mode = #tpu.pipeline_mode<synchronous>, transform_indices = @transform_6, window_bounds = array<i64: 640, 48>}]} {
    %c0 = arith.constant 0 : index
    %c0_0 = arith.constant 0 : index
    %0 = vector.load %arg1[%c0, %c0_0] : memref<640x48xf32, #tpu.memory_space<vmem>>, vector<640x48xf32>
    %cst = arith.constant dense<0.000000e+00> : vector<640xf32>
    %1 = vector.multi_reduction <add>, %0, %cst [1] : vector<640x48xf32> to vector<640xf32>
    %2 = vector.shape_cast %1 : vector<640xf32> to vector<640x1xf32>
    %cst_1 = arith.constant 4.800000e+01 : f32
    %3 = vector.broadcast %cst_1 : f32 to vector<640x1xf32>
    %4 = arith.divf %2, %3 : vector<640x1xf32>
    %5 = vector.broadcast %4 : vector<640x1xf32> to vector<640x48xf32>
    %6 = arith.subf %0, %5 : vector<640x48xf32>
    %7 = arith.mulf %6, %6 : vector<640x48xf32>
    %cst_2 = arith.constant dense<0.000000e+00> : vector<640xf32>
    %8 = vector.multi_reduction <add>, %7, %cst_2 [1] : vector<640x48xf32> to vector<640xf32>
    %9 = vector.shape_cast %8 : vector<640xf32> to vector<640x1xf32>
    %cst_3 = arith.constant 4.800000e+01 : f32
    %10 = vector.broadcast %cst_3 : f32 to vector<640x1xf32>
    %11 = arith.divf %9, %10 : vector<640x1xf32>
    %cst_4 = arith.constant 9.99999974E-6 : f32
    %12 = vector.broadcast %cst_4 : f32 to vector<640x1xf32>
    %13 = arith.addf %11, %12 : vector<640x1xf32>
    %14 = math.rsqrt %13 : vector<640x1xf32>
    %15 = vector.broadcast %14 : vector<640x1xf32> to vector<640x48xf32>
    %16 = arith.mulf %6, %15 : vector<640x48xf32>
    %c0_5 = arith.constant 0 : index
    %c0_6 = arith.constant 0 : index
    %17 = vector.load %arg2[%c0_5, %c0_6] : memref<48x64xf32, #tpu.memory_space<vmem>>, vector<48x64xf32>
    %cst_7 = arith.constant dense<0.000000e+00> : vector<640x64xf32>
    %18 = tpu.matmul %16, %17, %cst_7 {dimension_numbers = #tpu.dot_dimension_numbers<[1], [0], [0], [1], [0, 0, 1, 1], [], []>} : vector<640x48xf32>, vector<48x64xf32>, vector<640x64xf32> -> vector<640x64xf32>
    %c0_8 = arith.constant 0 : index
    %c0_9 = arith.constant 0 : index
    %19 = vector.load %arg3[%c0_8, %c0_9] : memref<1x64xf32, #tpu.memory_space<vmem>>, vector<1x64xf32>
    %20 = vector.broadcast %19 : vector<1x64xf32> to vector<640x64xf32>
    %21 = arith.addf %18, %20 : vector<640x64xf32>
    %22 = vector.extract_strided_slice %21 {offsets = [0, 0], sizes = [640, 32], strides = [1, 1]} : vector<640x64xf32> to vector<640x32xf32>
    %23 = vector.extract_strided_slice %21 {offsets = [0, 32], sizes = [640, 32], strides = [1, 1]} : vector<640x64xf32> to vector<640x32xf32>
    %c0_10 = arith.constant 0 : index
    %c0_11 = arith.constant 0 : index
    %24 = vector.load %arg4[%c0_10, %c0_11] : memref<10x32xf32, #tpu.memory_space<vmem>>, vector<9x32xf32>
    %c9 = arith.constant 9 : index
    %c0_12 = arith.constant 0 : index
    %25 = vector.load %arg4[%c9, %c0_12] : memref<10x32xf32, #tpu.memory_space<vmem>>, vector<1x32xf32>
    %26 = tpu.iota {dimensions = array<i32: 0>} : vector<256x1xi32>
    %c16_i32 = arith.constant 16 : i32
    %c0_i32 = arith.constant 0 : i32
    %27 = arith.cmpi eq, %c16_i32, %c0_i32 : i32
    %c1_i32 = arith.constant 1 : i32
    %28 = arith.select %27, %c1_i32, %c16_i32 : i32
    %29 = vector.broadcast %28 : i32 to vector<256x1xi32>
    %30 = arith.remsi %26, %29 : vector<256x1xi32>
    %c0_i32_13 = arith.constant 0 : i32
    %31 = vector.broadcast %c0_i32_13 : i32 to vector<256x1xi32>
    %32 = arith.cmpi ne, %30, %31 : vector<256x1xi32>
    %c0_i32_14 = arith.constant 0 : i32
    %33 = vector.broadcast %c0_i32_14 : i32 to vector<256x1xi32>
    %34 = arith.cmpi slt, %30, %33 : vector<256x1xi32>
    %c0_i32_15 = arith.constant 0 : i32
    %35 = arith.cmpi slt, %28, %c0_i32_15 : i32
    %36 = vector.broadcast %35 : i1 to vector<256x1xi1>
    %37 = vector.broadcast %36 : vector<256x1xi1> to vector<256x1xi1>
    %38 = arith.xori %34, %37 : vector<256x1xi1>
    %39 = arith.andi %38, %32 : vector<256x1xi1>
    %40 = vector.broadcast %28 : i32 to vector<256x1xi32>
    %41 = arith.addi %30, %40 : vector<256x1xi32>
    %42 = arith.select %39, %41, %30 : vector<256x1xi1>, vector<256x1xi32>
    %c1_i32_16 = arith.constant 1 : i32
    %43 = vector.broadcast %c1_i32_16 : i32 to vector<256x1xi32>
    %44 = arith.cmpi sge, %42, %43 : vector<256x1xi32>
    %45 = arith.extui %44 : vector<256x1xi1> to vector<256x1xi32>
    %46 = arith.sitofp %45 : vector<256x1xi32> to vector<256x1xf32>
    %c14_i32 = arith.constant 14 : i32
    %47 = vector.broadcast %c14_i32 : i32 to vector<256x1xi32>
    %48 = arith.cmpi sle, %42, %47 : vector<256x1xi32>
    %49 = arith.extui %48 : vector<256x1xi1> to vector<256x1xi32>
    %50 = arith.sitofp %49 : vector<256x1xi32> to vector<256x1xf32>
    %51 = tpu.iota {dimensions = array<i32: 0>} : vector<64x1xi32>
    %c8_i32 = arith.constant 8 : i32
    %c0_i32_17 = arith.constant 0 : i32
    %52 = arith.cmpi eq, %c8_i32, %c0_i32_17 : i32
    %c1_i32_18 = arith.constant 1 : i32
    %53 = arith.select %52, %c1_i32_18, %c8_i32 : i32
    %54 = vector.broadcast %53 : i32 to vector<64x1xi32>
    %55 = arith.remsi %51, %54 : vector<64x1xi32>
    %c0_i32_19 = arith.constant 0 : i32
    %56 = vector.broadcast %c0_i32_19 : i32 to vector<64x1xi32>
    %57 = arith.cmpi ne, %55, %56 : vector<64x1xi32>
    %c0_i32_20 = arith.constant 0 : i32
    %58 = vector.broadcast %c0_i32_20 : i32 to vector<64x1xi32>
    %59 = arith.cmpi slt, %55, %58 : vector<64x1xi32>
    %c0_i32_21 = arith.constant 0 : i32
    %60 = arith.cmpi slt, %53, %c0_i32_21 : i32
    %61 = vector.broadcast %60 : i1 to vector<64x1xi1>
    %62 = vector.broadcast %61 : vector<64x1xi1> to vector<64x1xi1>
    %63 = arith.xori %59, %62 : vector<64x1xi1>
    %64 = arith.andi %63, %57 : vector<64x1xi1>
    %65 = vector.broadcast %53 : i32 to vector<64x1xi32>
    %66 = arith.addi %55, %65 : vector<64x1xi32>
    %67 = arith.select %64, %66, %55 : vector<64x1xi1>, vector<64x1xi32>
    %c1_i32_22 = arith.constant 1 : i32
    %68 = vector.broadcast %c1_i32_22 : i32 to vector<64x1xi32>
    %69 = arith.cmpi sge, %67, %68 : vector<64x1xi32>
    %70 = arith.extui %69 : vector<64x1xi1> to vector<64x1xi32>
    %71 = arith.sitofp %70 : vector<64x1xi32> to vector<64x1xf32>
    %c6_i32 = arith.constant 6 : i32
    %72 = vector.broadcast %c6_i32 : i32 to vector<64x1xi32>
    %73 = arith.cmpi sle, %67, %72 : vector<64x1xi32>
    %74 = arith.extui %73 : vector<64x1xi1> to vector<64x1xi32>
    %75 = arith.sitofp %74 : vector<64x1xi32> to vector<64x1xf32>
    %76 = vector.extract_strided_slice %22 {offsets = [64, 0], sizes = [256, 32], strides = [1, 1]} : vector<640x32xf32> to vector<256x32xf32>
    %77 = vector.extract_strided_slice %76 {offsets = [0, 0], sizes = [64, 32], strides = [1, 1]} : vector<256x32xf32> to vector<64x32xf32>
    %cst_23 = arith.constant 0.000000e+00 : f32
    %78 = vector.broadcast %cst_23 : f32 to vector<9x32xf32>
    %79 = tpu.concatenate %78, %77, %78 in 0 : vector<9x32xf32>, vector<64x32xf32>, vector<9x32xf32> -> vector<82x32xf32>
    %cst_24 = arith.constant 0.000000e+00 : f32
    %80 = vector.broadcast %cst_24 : f32 to vector<64x32xf32>
    %81 = vector.extract_strided_slice %79 {offsets = [0, 0], sizes = [64, 32], strides = [1, 1]} : vector<82x32xf32> to vector<64x32xf32>
    %82 = vector.broadcast %71 : vector<64x1xf32> to vector<64x32xf32>
    %83 = arith.mulf %81, %82 : vector<64x32xf32>
    %84 = vector.extract_strided_slice %24 {offsets = [0, 0], sizes = [1, 32], strides = [1, 1]} : vector<9x32xf32> to vector<1x32xf32>
    %85 = vector.broadcast %84 : vector<1x32xf32> to vector<64x32xf32>
    %86 = arith.mulf %83, %85 : vector<64x32xf32>
    %87 = arith.addf %80, %86 : vector<64x32xf32>
    %88 = vector.extract_strided_slice %79 {offsets = [1, 0], sizes = [64, 32], strides = [1, 1]} : vector<82x32xf32> to vector<64x32xf32>
    %89 = vector.extract_strided_slice %24 {offsets = [1, 0], sizes = [1, 32], strides = [1, 1]} : vector<9x32xf32> to vector<1x32xf32>
    %90 = vector.broadcast %89 : vector<1x32xf32> to vector<64x32xf32>
    %91 = arith.mulf %88, %90 : vector<64x32xf32>
    %92 = arith.addf %87, %91 : vector<64x32xf32>
    %93 = vector.extract_strided_slice %79 {offsets = [2, 0], sizes = [64, 32], strides = [1, 1]} : vector<82x32xf32> to vector<64x32xf32>
    %94 = vector.broadcast %75 : vector<64x1xf32> to vector<64x32xf32>
    %95 = arith.mulf %93, %94 : vector<64x32xf32>
    %96 = vector.extract_strided_slice %24 {offsets = [2, 0], sizes = [1, 32], strides = [1, 1]} : vector<9x32xf32> to vector<1x32xf32>
    %97 = vector.broadcast %96 : vector<1x32xf32> to vector<64x32xf32>
    %98 = arith.mulf %95, %97 : vector<64x32xf32>
    %99 = arith.addf %92, %98 : vector<64x32xf32>
    %100 = vector.extract_strided_slice %79 {offsets = [8, 0], sizes = [64, 32], strides = [1, 1]} : vector<82x32xf32> to vector<64x32xf32>
    %101 = vector.broadcast %71 : vector<64x1xf32> to vector<64x32xf32>
    %102 = arith.mulf %100, %101 : vector<64x32xf32>
    %103 = vector.extract_strided_slice %24 {offsets = [3, 0], sizes = [1, 32], strides = [1, 1]} : vector<9x32xf32> to vector<1x32xf32>
    %104 = vector.broadcast %103 : vector<1x32xf32> to vector<64x32xf32>
    %105 = arith.mulf %102, %104 : vector<64x32xf32>
    %106 = arith.addf %99, %105 : vector<64x32xf32>
    %107 = vector.extract_strided_slice %79 {offsets = [9, 0], sizes = [64, 32], strides = [1, 1]} : vector<82x32xf32> to vector<64x32xf32>
    %108 = vector.extract_strided_slice %24 {offsets = [4, 0], sizes = [1, 32], strides = [1, 1]} : vector<9x32xf32> to vector<1x32xf32>
    %109 = vector.broadcast %108 : vector<1x32xf32> to vector<64x32xf32>
    %110 = arith.mulf %107, %109 : vector<64x32xf32>
    %111 = arith.addf %106, %110 : vector<64x32xf32>
    %112 = vector.extract_strided_slice %79 {offsets = [10, 0], sizes = [64, 32], strides = [1, 1]} : vector<82x32xf32> to vector<64x32xf32>
    %113 = vector.broadcast %75 : vector<64x1xf32> to vector<64x32xf32>
    %114 = arith.mulf %112, %113 : vector<64x32xf32>
    %115 = vector.extract_strided_slice %24 {offsets = [5, 0], sizes = [1, 32], strides = [1, 1]} : vector<9x32xf32> to vector<1x32xf32>
    %116 = vector.broadcast %115 : vector<1x32xf32> to vector<64x32xf32>
    %117 = arith.mulf %114, %116 : vector<64x32xf32>
    %118 = arith.addf %111, %117 : vector<64x32xf32>
    %119 = vector.extract_strided_slice %79 {offsets = [16, 0], sizes = [64, 32], strides = [1, 1]} : vector<82x32xf32> to vector<64x32xf32>
    %120 = vector.broadcast %71 : vector<64x1xf32> to vector<64x32xf32>
    %121 = arith.mulf %119, %120 : vector<64x32xf32>
    %122 = vector.extract_strided_slice %24 {offsets = [6, 0], sizes = [1, 32], strides = [1, 1]} : vector<9x32xf32> to vector<1x32xf32>
    %123 = vector.broadcast %122 : vector<1x32xf32> to vector<64x32xf32>
    %124 = arith.mulf %121, %123 : vector<64x32xf32>
    %125 = arith.addf %118, %124 : vector<64x32xf32>
    %126 = vector.extract_strided_slice %79 {offsets = [17, 0], sizes = [64, 32], strides = [1, 1]} : vector<82x32xf32> to vector<64x32xf32>
    %127 = vector.extract_strided_slice %24 {offsets = [7, 0], sizes = [1, 32], strides = [1, 1]} : vector<9x32xf32> to vector<1x32xf32>
    %128 = vector.broadcast %127 : vector<1x32xf32> to vector<64x32xf32>
    %129 = arith.mulf %126, %128 : vector<64x32xf32>
    %130 = arith.addf %125, %129 : vector<64x32xf32>
    %131 = vector.extract_strided_slice %79 {offsets = [18, 0], sizes = [64, 32], strides = [1, 1]} : vector<82x32xf32> to vector<64x32xf32>
    %132 = vector.broadcast %75 : vector<64x1xf32> to vector<64x32xf32>
    %133 = arith.mulf %131, %132 : vector<64x32xf32>
    %134 = vector.extract_strided_slice %24 {offsets = [8, 0], sizes = [1, 32], strides = [1, 1]} : vector<9x32xf32> to vector<1x32xf32>
    %135 = vector.broadcast %134 : vector<1x32xf32> to vector<64x32xf32>
    %136 = arith.mulf %133, %135 : vector<64x32xf32>
    %137 = arith.addf %130, %136 : vector<64x32xf32>
    %138 = vector.broadcast %25 : vector<1x32xf32> to vector<64x32xf32>
    %139 = arith.addf %137, %138 : vector<64x32xf32>
    %cst_25 = arith.constant 0.000000e+00 : f32
    %140 = vector.broadcast %cst_25 : f32 to vector<17x32xf32>
    %141 = tpu.concatenate %140, %76, %140 in 0 : vector<17x32xf32>, vector<256x32xf32>, vector<17x32xf32> -> vector<290x32xf32>
    %cst_26 = arith.constant 0.000000e+00 : f32
    %142 = vector.broadcast %cst_26 : f32 to vector<256x32xf32>
    %143 = vector.extract_strided_slice %141 {offsets = [0, 0], sizes = [256, 32], strides = [1, 1]} : vector<290x32xf32> to vector<256x32xf32>
    %144 = vector.broadcast %46 : vector<256x1xf32> to vector<256x32xf32>
    %145 = arith.mulf %143, %144 : vector<256x32xf32>
    %146 = vector.extract_strided_slice %24 {offsets = [0, 0], sizes = [1, 32], strides = [1, 1]} : vector<9x32xf32> to vector<1x32xf32>
    %147 = vector.broadcast %146 : vector<1x32xf32> to vector<256x32xf32>
    %148 = arith.mulf %145, %147 : vector<256x32xf32>
    %149 = arith.addf %142, %148 : vector<256x32xf32>
    %150 = vector.extract_strided_slice %141 {offsets = [1, 0], sizes = [256, 32], strides = [1, 1]} : vector<290x32xf32> to vector<256x32xf32>
    %151 = vector.extract_strided_slice %24 {offsets = [1, 0], sizes = [1, 32], strides = [1, 1]} : vector<9x32xf32> to vector<1x32xf32>
    %152 = vector.broadcast %151 : vector<1x32xf32> to vector<256x32xf32>
    %153 = arith.mulf %150, %152 : vector<256x32xf32>
    %154 = arith.addf %149, %153 : vector<256x32xf32>
    %155 = vector.extract_strided_slice %141 {offsets = [2, 0], sizes = [256, 32], strides = [1, 1]} : vector<290x32xf32> to vector<256x32xf32>
    %156 = vector.broadcast %50 : vector<256x1xf32> to vector<256x32xf32>
    %157 = arith.mulf %155, %156 : vector<256x32xf32>
    %158 = vector.extract_strided_slice %24 {offsets = [2, 0], sizes = [1, 32], strides = [1, 1]} : vector<9x32xf32> to vector<1x32xf32>
    %159 = vector.broadcast %158 : vector<1x32xf32> to vector<256x32xf32>
    %160 = arith.mulf %157, %159 : vector<256x32xf32>
    %161 = arith.addf %154, %160 : vector<256x32xf32>
    %162 = vector.extract_strided_slice %141 {offsets = [16, 0], sizes = [256, 32], strides = [1, 1]} : vector<290x32xf32> to vector<256x32xf32>
    %163 = vector.broadcast %46 : vector<256x1xf32> to vector<256x32xf32>
    %164 = arith.mulf %162, %163 : vector<256x32xf32>
    %165 = vector.extract_strided_slice %24 {offsets = [3, 0], sizes = [1, 32], strides = [1, 1]} : vector<9x32xf32> to vector<1x32xf32>
    %166 = vector.broadcast %165 : vector<1x32xf32> to vector<256x32xf32>
    %167 = arith.mulf %164, %166 : vector<256x32xf32>
    %168 = arith.addf %161, %167 : vector<256x32xf32>
    %169 = vector.extract_strided_slice %141 {offsets = [17, 0], sizes = [256, 32], strides = [1, 1]} : vector<290x32xf32> to vector<256x32xf32>
    %170 = vector.extract_strided_slice %24 {offsets = [4, 0], sizes = [1, 32], strides = [1, 1]} : vector<9x32xf32> to vector<1x32xf32>
    %171 = vector.broadcast %170 : vector<1x32xf32> to vector<256x32xf32>
    %172 = arith.mulf %169, %171 : vector<256x32xf32>
    %173 = arith.addf %168, %172 : vector<256x32xf32>
    %174 = vector.extract_strided_slice %141 {offsets = [18, 0], sizes = [256, 32], strides = [1, 1]} : vector<290x32xf32> to vector<256x32xf32>
    %175 = vector.broadcast %50 : vector<256x1xf32> to vector<256x32xf32>
    %176 = arith.mulf %174, %175 : vector<256x32xf32>
    %177 = vector.extract_strided_slice %24 {offsets = [5, 0], sizes = [1, 32], strides = [1, 1]} : vector<9x32xf32> to vector<1x32xf32>
    %178 = vector.broadcast %177 : vector<1x32xf32> to vector<256x32xf32>
    %179 = arith.mulf %176, %178 : vector<256x32xf32>
    %180 = arith.addf %173, %179 : vector<256x32xf32>
    %181 = vector.extract_strided_slice %141 {offsets = [32, 0], sizes = [256, 32], strides = [1, 1]} : vector<290x32xf32> to vector<256x32xf32>
    %182 = vector.broadcast %46 : vector<256x1xf32> to vector<256x32xf32>
    %183 = arith.mulf %181, %182 : vector<256x32xf32>
    %184 = vector.extract_strided_slice %24 {offsets = [6, 0], sizes = [1, 32], strides = [1, 1]} : vector<9x32xf32> to vector<1x32xf32>
    %185 = vector.broadcast %184 : vector<1x32xf32> to vector<256x32xf32>
    %186 = arith.mulf %183, %185 : vector<256x32xf32>
    %187 = arith.addf %180, %186 : vector<256x32xf32>
    %188 = vector.extract_strided_slice %141 {offsets = [33, 0], sizes = [256, 32], strides = [1, 1]} : vector<290x32xf32> to vector<256x32xf32>
    %189 = vector.extract_strided_slice %24 {offsets = [7, 0], sizes = [1, 32], strides = [1, 1]} : vector<9x32xf32> to vector<1x32xf32>
    %190 = vector.broadcast %189 : vector<1x32xf32> to vector<256x32xf32>
    %191 = arith.mulf %188, %190 : vector<256x32xf32>
    %192 = arith.addf %187, %191 : vector<256x32xf32>
    %193 = vector.extract_strided_slice %141 {offsets = [34, 0], sizes = [256, 32], strides = [1, 1]} : vector<290x32xf32> to vector<256x32xf32>
    %194 = vector.broadcast %50 : vector<256x1xf32> to vector<256x32xf32>
    %195 = arith.mulf %193, %194 : vector<256x32xf32>
    %196 = vector.extract_strided_slice %24 {offsets = [8, 0], sizes = [1, 32], strides = [1, 1]} : vector<9x32xf32> to vector<1x32xf32>
    %197 = vector.broadcast %196 : vector<1x32xf32> to vector<256x32xf32>
    %198 = arith.mulf %195, %197 : vector<256x32xf32>
    %199 = arith.addf %192, %198 : vector<256x32xf32>
    %200 = vector.broadcast %25 : vector<1x32xf32> to vector<256x32xf32>
    %201 = arith.addf %199, %200 : vector<256x32xf32>
    %202 = vector.extract_strided_slice %22 {offsets = [384, 0], sizes = [256, 32], strides = [1, 1]} : vector<640x32xf32> to vector<256x32xf32>
    %203 = vector.extract_strided_slice %202 {offsets = [0, 0], sizes = [64, 32], strides = [1, 1]} : vector<256x32xf32> to vector<64x32xf32>
    %cst_27 = arith.constant 0.000000e+00 : f32
    %204 = vector.broadcast %cst_27 : f32 to vector<9x32xf32>
    %205 = tpu.concatenate %204, %203, %204 in 0 : vector<9x32xf32>, vector<64x32xf32>, vector<9x32xf32> -> vector<82x32xf32>
    %cst_28 = arith.constant 0.000000e+00 : f32
    %206 = vector.broadcast %cst_28 : f32 to vector<64x32xf32>
    %207 = vector.extract_strided_slice %205 {offsets = [0, 0], sizes = [64, 32], strides = [1, 1]} : vector<82x32xf32> to vector<64x32xf32>
    %208 = vector.broadcast %71 : vector<64x1xf32> to vector<64x32xf32>
    %209 = arith.mulf %207, %208 : vector<64x32xf32>
    %210 = vector.extract_strided_slice %24 {offsets = [0, 0], sizes = [1, 32], strides = [1, 1]} : vector<9x32xf32> to vector<1x32xf32>
    %211 = vector.broadcast %210 : vector<1x32xf32> to vector<64x32xf32>
    %212 = arith.mulf %209, %211 : vector<64x32xf32>
    %213 = arith.addf %206, %212 : vector<64x32xf32>
    %214 = vector.extract_strided_slice %205 {offsets = [1, 0], sizes = [64, 32], strides = [1, 1]} : vector<82x32xf32> to vector<64x32xf32>
    %215 = vector.extract_strided_slice %24 {offsets = [1, 0], sizes = [1, 32], strides = [1, 1]} : vector<9x32xf32> to vector<1x32xf32>
    %216 = vector.broadcast %215 : vector<1x32xf32> to vector<64x32xf32>
    %217 = arith.mulf %214, %216 : vector<64x32xf32>
    %218 = arith.addf %213, %217 : vector<64x32xf32>
    %219 = vector.extract_strided_slice %205 {offsets = [2, 0], sizes = [64, 32], strides = [1, 1]} : vector<82x32xf32> to vector<64x32xf32>
    %220 = vector.broadcast %75 : vector<64x1xf32> to vector<64x32xf32>
    %221 = arith.mulf %219, %220 : vector<64x32xf32>
    %222 = vector.extract_strided_slice %24 {offsets = [2, 0], sizes = [1, 32], strides = [1, 1]} : vector<9x32xf32> to vector<1x32xf32>
    %223 = vector.broadcast %222 : vector<1x32xf32> to vector<64x32xf32>
    %224 = arith.mulf %221, %223 : vector<64x32xf32>
    %225 = arith.addf %218, %224 : vector<64x32xf32>
    %226 = vector.extract_strided_slice %205 {offsets = [8, 0], sizes = [64, 32], strides = [1, 1]} : vector<82x32xf32> to vector<64x32xf32>
    %227 = vector.broadcast %71 : vector<64x1xf32> to vector<64x32xf32>
    %228 = arith.mulf %226, %227 : vector<64x32xf32>
    %229 = vector.extract_strided_slice %24 {offsets = [3, 0], sizes = [1, 32], strides = [1, 1]} : vector<9x32xf32> to vector<1x32xf32>
    %230 = vector.broadcast %229 : vector<1x32xf32> to vector<64x32xf32>
    %231 = arith.mulf %228, %230 : vector<64x32xf32>
    %232 = arith.addf %225, %231 : vector<64x32xf32>
    %233 = vector.extract_strided_slice %205 {offsets = [9, 0], sizes = [64, 32], strides = [1, 1]} : vector<82x32xf32> to vector<64x32xf32>
    %234 = vector.extract_strided_slice %24 {offsets = [4, 0], sizes = [1, 32], strides = [1, 1]} : vector<9x32xf32> to vector<1x32xf32>
    %235 = vector.broadcast %234 : vector<1x32xf32> to vector<64x32xf32>
    %236 = arith.mulf %233, %235 : vector<64x32xf32>
    %237 = arith.addf %232, %236 : vector<64x32xf32>
    %238 = vector.extract_strided_slice %205 {offsets = [10, 0], sizes = [64, 32], strides = [1, 1]} : vector<82x32xf32> to vector<64x32xf32>
    %239 = vector.broadcast %75 : vector<64x1xf32> to vector<64x32xf32>
    %240 = arith.mulf %238, %239 : vector<64x32xf32>
    %241 = vector.extract_strided_slice %24 {offsets = [5, 0], sizes = [1, 32], strides = [1, 1]} : vector<9x32xf32> to vector<1x32xf32>
    %242 = vector.broadcast %241 : vector<1x32xf32> to vector<64x32xf32>
    %243 = arith.mulf %240, %242 : vector<64x32xf32>
    %244 = arith.addf %237, %243 : vector<64x32xf32>
    %245 = vector.extract_strided_slice %205 {offsets = [16, 0], sizes = [64, 32], strides = [1, 1]} : vector<82x32xf32> to vector<64x32xf32>
    %246 = vector.broadcast %71 : vector<64x1xf32> to vector<64x32xf32>
    %247 = arith.mulf %245, %246 : vector<64x32xf32>
    %248 = vector.extract_strided_slice %24 {offsets = [6, 0], sizes = [1, 32], strides = [1, 1]} : vector<9x32xf32> to vector<1x32xf32>
    %249 = vector.broadcast %248 : vector<1x32xf32> to vector<64x32xf32>
    %250 = arith.mulf %247, %249 : vector<64x32xf32>
    %251 = arith.addf %244, %250 : vector<64x32xf32>
    %252 = vector.extract_strided_slice %205 {offsets = [17, 0], sizes = [64, 32], strides = [1, 1]} : vector<82x32xf32> to vector<64x32xf32>
    %253 = vector.extract_strided_slice %24 {offsets = [7, 0], sizes = [1, 32], strides = [1, 1]} : vector<9x32xf32> to vector<1x32xf32>
    %254 = vector.broadcast %253 : vector<1x32xf32> to vector<64x32xf32>
    %255 = arith.mulf %252, %254 : vector<64x32xf32>
    %256 = arith.addf %251, %255 : vector<64x32xf32>
    %257 = vector.extract_strided_slice %205 {offsets = [18, 0], sizes = [64, 32], strides = [1, 1]} : vector<82x32xf32> to vector<64x32xf32>
    %258 = vector.broadcast %75 : vector<64x1xf32> to vector<64x32xf32>
    %259 = arith.mulf %257, %258 : vector<64x32xf32>
    %260 = vector.extract_strided_slice %24 {offsets = [8, 0], sizes = [1, 32], strides = [1, 1]} : vector<9x32xf32> to vector<1x32xf32>
    %261 = vector.broadcast %260 : vector<1x32xf32> to vector<64x32xf32>
    %262 = arith.mulf %259, %261 : vector<64x32xf32>
    %263 = arith.addf %256, %262 : vector<64x32xf32>
    %264 = vector.broadcast %25 : vector<1x32xf32> to vector<64x32xf32>
    %265 = arith.addf %263, %264 : vector<64x32xf32>
    %cst_29 = arith.constant 0.000000e+00 : f32
    %266 = vector.broadcast %cst_29 : f32 to vector<17x32xf32>
    %267 = tpu.concatenate %266, %202, %266 in 0 : vector<17x32xf32>, vector<256x32xf32>, vector<17x32xf32> -> vector<290x32xf32>
    %cst_30 = arith.constant 0.000000e+00 : f32
    %268 = vector.broadcast %cst_30 : f32 to vector<256x32xf32>
    %269 = vector.extract_strided_slice %267 {offsets = [0, 0], sizes = [256, 32], strides = [1, 1]} : vector<290x32xf32> to vector<256x32xf32>
    %270 = vector.broadcast %46 : vector<256x1xf32> to vector<256x32xf32>
    %271 = arith.mulf %269, %270 : vector<256x32xf32>
    %272 = vector.extract_strided_slice %24 {offsets = [0, 0], sizes = [1, 32], strides = [1, 1]} : vector<9x32xf32> to vector<1x32xf32>
    %273 = vector.broadcast %272 : vector<1x32xf32> to vector<256x32xf32>
    %274 = arith.mulf %271, %273 : vector<256x32xf32>
    %275 = arith.addf %268, %274 : vector<256x32xf32>
    %276 = vector.extract_strided_slice %267 {offsets = [1, 0], sizes = [256, 32], strides = [1, 1]} : vector<290x32xf32> to vector<256x32xf32>
    %277 = vector.extract_strided_slice %24 {offsets = [1, 0], sizes = [1, 32], strides = [1, 1]} : vector<9x32xf32> to vector<1x32xf32>
    %278 = vector.broadcast %277 : vector<1x32xf32> to vector<256x32xf32>
    %279 = arith.mulf %276, %278 : vector<256x32xf32>
    %280 = arith.addf %275, %279 : vector<256x32xf32>
    %281 = vector.extract_strided_slice %267 {offsets = [2, 0], sizes = [256, 32], strides = [1, 1]} : vector<290x32xf32> to vector<256x32xf32>
    %282 = vector.broadcast %50 : vector<256x1xf32> to vector<256x32xf32>
    %283 = arith.mulf %281, %282 : vector<256x32xf32>
    %284 = vector.extract_strided_slice %24 {offsets = [2, 0], sizes = [1, 32], strides = [1, 1]} : vector<9x32xf32> to vector<1x32xf32>
    %285 = vector.broadcast %284 : vector<1x32xf32> to vector<256x32xf32>
    %286 = arith.mulf %283, %285 : vector<256x32xf32>
    %287 = arith.addf %280, %286 : vector<256x32xf32>
    %288 = vector.extract_strided_slice %267 {offsets = [16, 0], sizes = [256, 32], strides = [1, 1]} : vector<290x32xf32> to vector<256x32xf32>
    %289 = vector.broadcast %46 : vector<256x1xf32> to vector<256x32xf32>
    %290 = arith.mulf %288, %289 : vector<256x32xf32>
    %291 = vector.extract_strided_slice %24 {offsets = [3, 0], sizes = [1, 32], strides = [1, 1]} : vector<9x32xf32> to vector<1x32xf32>
    %292 = vector.broadcast %291 : vector<1x32xf32> to vector<256x32xf32>
    %293 = arith.mulf %290, %292 : vector<256x32xf32>
    %294 = arith.addf %287, %293 : vector<256x32xf32>
    %295 = vector.extract_strided_slice %267 {offsets = [17, 0], sizes = [256, 32], strides = [1, 1]} : vector<290x32xf32> to vector<256x32xf32>
    %296 = vector.extract_strided_slice %24 {offsets = [4, 0], sizes = [1, 32], strides = [1, 1]} : vector<9x32xf32> to vector<1x32xf32>
    %297 = vector.broadcast %296 : vector<1x32xf32> to vector<256x32xf32>
    %298 = arith.mulf %295, %297 : vector<256x32xf32>
    %299 = arith.addf %294, %298 : vector<256x32xf32>
    %300 = vector.extract_strided_slice %267 {offsets = [18, 0], sizes = [256, 32], strides = [1, 1]} : vector<290x32xf32> to vector<256x32xf32>
    %301 = vector.broadcast %50 : vector<256x1xf32> to vector<256x32xf32>
    %302 = arith.mulf %300, %301 : vector<256x32xf32>
    %303 = vector.extract_strided_slice %24 {offsets = [5, 0], sizes = [1, 32], strides = [1, 1]} : vector<9x32xf32> to vector<1x32xf32>
    %304 = vector.broadcast %303 : vector<1x32xf32> to vector<256x32xf32>
    %305 = arith.mulf %302, %304 : vector<256x32xf32>
    %306 = arith.addf %299, %305 : vector<256x32xf32>
    %307 = vector.extract_strided_slice %267 {offsets = [32, 0], sizes = [256, 32], strides = [1, 1]} : vector<290x32xf32> to vector<256x32xf32>
    %308 = vector.broadcast %46 : vector<256x1xf32> to vector<256x32xf32>
    %309 = arith.mulf %307, %308 : vector<256x32xf32>
    %310 = vector.extract_strided_slice %24 {offsets = [6, 0], sizes = [1, 32], strides = [1, 1]} : vector<9x32xf32> to vector<1x32xf32>
    %311 = vector.broadcast %310 : vector<1x32xf32> to vector<256x32xf32>
    %312 = arith.mulf %309, %311 : vector<256x32xf32>
    %313 = arith.addf %306, %312 : vector<256x32xf32>
    %314 = vector.extract_strided_slice %267 {offsets = [33, 0], sizes = [256, 32], strides = [1, 1]} : vector<290x32xf32> to vector<256x32xf32>
    %315 = vector.extract_strided_slice %24 {offsets = [7, 0], sizes = [1, 32], strides = [1, 1]} : vector<9x32xf32> to vector<1x32xf32>
    %316 = vector.broadcast %315 : vector<1x32xf32> to vector<256x32xf32>
    %317 = arith.mulf %314, %316 : vector<256x32xf32>
    %318 = arith.addf %313, %317 : vector<256x32xf32>
    %319 = vector.extract_strided_slice %267 {offsets = [34, 0], sizes = [256, 32], strides = [1, 1]} : vector<290x32xf32> to vector<256x32xf32>
    %320 = vector.broadcast %50 : vector<256x1xf32> to vector<256x32xf32>
    %321 = arith.mulf %319, %320 : vector<256x32xf32>
    %322 = vector.extract_strided_slice %24 {offsets = [8, 0], sizes = [1, 32], strides = [1, 1]} : vector<9x32xf32> to vector<1x32xf32>
    %323 = vector.broadcast %322 : vector<1x32xf32> to vector<256x32xf32>
    %324 = arith.mulf %321, %323 : vector<256x32xf32>
    %325 = arith.addf %318, %324 : vector<256x32xf32>
    %326 = vector.broadcast %25 : vector<1x32xf32> to vector<256x32xf32>
    %327 = arith.addf %325, %326 : vector<256x32xf32>
    %328 = tpu.concatenate %139, %201, %265, %327 in 0 : vector<64x32xf32>, vector<256x32xf32>, vector<64x32xf32>, vector<256x32xf32> -> vector<640x32xf32>
    %cst_31 = arith.constant 5.000000e-01 : f32
    %329 = vector.broadcast %cst_31 : f32 to vector<640x32xf32>
    %330 = arith.mulf %329, %328 : vector<640x32xf32>
    %cst_32 = arith.constant 4.471500e-02 : f32
    %331 = vector.broadcast %cst_32 : f32 to vector<640x32xf32>
    %332 = arith.mulf %331, %328 : vector<640x32xf32>
    %333 = arith.mulf %332, %328 : vector<640x32xf32>
    %334 = arith.mulf %333, %328 : vector<640x32xf32>
    %335 = arith.addf %328, %334 : vector<640x32xf32>
    %cst_33 = arith.constant 0.797884583 : f32
    %336 = vector.broadcast %cst_33 : f32 to vector<640x32xf32>
    %337 = arith.mulf %336, %335 : vector<640x32xf32>
    %338 = math.tanh %337 : vector<640x32xf32>
    %cst_34 = arith.constant 1.000000e+00 : f32
    %339 = vector.broadcast %cst_34 : f32 to vector<640x32xf32>
    %340 = arith.addf %339, %338 : vector<640x32xf32>
    %341 = arith.mulf %330, %340 : vector<640x32xf32>
    %342 = arith.mulf %341, %23 : vector<640x32xf32>
    %c0_35 = arith.constant 0 : index
    %c0_36 = arith.constant 0 : index
    %343 = vector.load %arg5[%c0_35, %c0_36] : memref<32x48xf32, #tpu.memory_space<vmem>>, vector<32x48xf32>
    %cst_37 = arith.constant dense<0.000000e+00> : vector<640x48xf32>
    %344 = tpu.matmul %342, %343, %cst_37 {dimension_numbers = #tpu.dot_dimension_numbers<[1], [0], [0], [1], [0, 0, 1, 1], [], []>} : vector<640x32xf32>, vector<32x48xf32>, vector<640x48xf32> -> vector<640x48xf32>
    %c0_38 = arith.constant 0 : index
    %c0_39 = arith.constant 0 : index
    %345 = vector.load %arg6[%c0_38, %c0_39] : memref<1x48xf32, #tpu.memory_space<vmem>>, vector<1x48xf32>
    %346 = vector.broadcast %345 : vector<1x48xf32> to vector<640x48xf32>
    %347 = arith.addf %344, %346 : vector<640x48xf32>
    %348 = arith.addf %0, %347 : vector<640x48xf32>
    %c0_40 = arith.constant 0 : index
    %c0_41 = arith.constant 0 : index
    %349 = vector.load %arg7[%c0_40, %c0_41] : memref<640x48xf32, #tpu.memory_space<vmem>>, vector<640x48xf32>
    tpu.vector_store %arg7[%c0_40, %c0_41], %348 {strides = array<i32>} : memref<640x48xf32, #tpu.memory_space<vmem>>, vector<640x48xf32>,
    return
  }
  func.func @transform_0(%arg0: i32) -> (i32, i32) {
    %c0_i32 = arith.constant 0 : i32
    %c0_i32_0 = arith.constant 0 : i32
    %c0_i32_1 = arith.constant 0 : i32
    return %c0_i32, %c0_i32_0 : i32, i32
  }
  func.func @transform_1(%arg0: i32) -> (i32, i32) {
    %c0_i32 = arith.constant 0 : i32
    %c0_i32_0 = arith.constant 0 : i32
    %c0_i32_1 = arith.constant 0 : i32
    return %c0_i32, %c0_i32_0 : i32, i32
  }
  func.func @transform_2(%arg0: i32) -> (i32, i32) {
    %c0_i32 = arith.constant 0 : i32
    %c0_i32_0 = arith.constant 0 : i32
    %c0_i32_1 = arith.constant 0 : i32
    return %c0_i32, %c0_i32_0 : i32, i32
  }
  func.func @transform_3(%arg0: i32) -> (i32, i32) {
    %c0_i32 = arith.constant 0 : i32
    %c0_i32_0 = arith.constant 0 : i32
    %c0_i32_1 = arith.constant 0 : i32
    return %c0_i32, %c0_i32_0 : i32, i32
  }
  func.func @transform_4(%arg0: i32) -> (i32, i32) {
    %c0_i32 = arith.constant 0 : i32
    %c0_i32_0 = arith.constant 0 : i32
    %c0_i32_1 = arith.constant 0 : i32
    return %c0_i32, %c0_i32_0 : i32, i32
  }
  func.func @transform_5(%arg0: i32) -> (i32, i32) {
    %c0_i32 = arith.constant 0 : i32
    %c0_i32_0 = arith.constant 0 : i32
    %c0_i32_1 = arith.constant 0 : i32
    return %c0_i32, %c0_i32_0 : i32, i32
  }
  func.func @transform_6(%arg0: i32) -> (i32, i32) {
    %c0_i32 = arith.constant 0 : i32
    %c0_i32_0 = arith.constant 0 : i32
    %c0_i32_1 = arith.constant 0 : i32
    return %c0_i32, %c0_i32_0 : i32, i32
  }
}

</mosaic_0001>

<llo_original>
// kernel: tpu_custom_call.1
$region0: #{tpu_custom_call.1}
  #allocation0 [shape = 'u32[]', space=smem, size = 0x4, offset = 0x4, fixed_abs, tag = 'smem constant byte address 0x4 - core index']
  #allocation1 [shape = 'u32[72,128]{1,0:T(1,128)}', space=vmem, size = 0x9000, scoped, tag = 'internal scratch']
  %s0 = inlined_call_operand.vmem [shape: f32[640,48], index: 0, kind: input, shape index: {}]
  %s1 = inlined_call_operand.vmem [shape: f32[48,64], index: 1, kind: input, shape index: {}]
  %s2 = inlined_call_operand.vmem [shape: f32[1,64], index: 2, kind: input, shape index: {}]
  %s3 = inlined_call_operand.vmem [shape: f32[10,32], index: 3, kind: input, shape index: {}]
  %s4 = inlined_call_operand.vmem [shape: f32[32,48], index: 4, kind: input, shape index: {}]
  %s5 = inlined_call_operand.vmem [shape: f32[1,48], index: 5, kind: input, shape index: {}]
  %s6 = inlined_call_operand.vmem [shape: f32[640,48], index: 6, kind: output, shape index: {}]
  %s7 = sld [smem:[#allocation0]]
  $region34: #{tpu_custom_call.1} parent=0
    _
  %s9 = ssub.s32 1, %s7
  %s10 = scalar_select 0, %s9, %s7
  // Predicated region
  $region2: #{tpu_custom_call.1} parent=0 // pred_check
    _
  $region3: #{tpu_custom_call.1} parent=0 // pred_check_branch
    %12 = sbr.rel (0) target = $region5
  $region4: #{tpu_custom_call.1} parent=0 // pred_region
    _
  $region5: #{tpu_custom_call.1} parent=0 // pred_fallthru
    _
  // Predicated region
  $region6: #{tpu_custom_call.1} parent=0 // pred_check
    _
  $region7: #{tpu_custom_call.1} parent=0 // pred_check_branch
    %14 = sbr.rel (0) target = $region9
  $region8: #{tpu_custom_call.1} parent=0 // pred_region
    _
  $region9: #{tpu_custom_call.1} parent=0 // pred_fallthru
    _
  // Predicated region
  $region10: #{tpu_custom_call.1} parent=0 // pred_check
    _
  $region11: #{tpu_custom_call.1} parent=0 // pred_check_branch
    %16 = sbr.rel (0) target = $region13
  $region12: #{tpu_custom_call.1} parent=0 // pred_region
    _
  $region13: #{tpu_custom_call.1} parent=0 // pred_fallthru
    _
  // Predicated region
  $region14: #{tpu_custom_call.1} parent=0 // pred_check
    _
  $region15: #{tpu_custom_call.1} parent=0 // pred_check_branch
    %18 = sbr.rel (0) target = $region17
  $region16: #{tpu_custom_call.1} parent=0 // pred_region
    _
  $region17: #{tpu_custom_call.1} parent=0 // pred_fallthru
    _
  // Predicated region
  $region18: #{tpu_custom_call.1} parent=0 // pred_check
    _
  $region19: #{tpu_custom_call.1} parent=0 // pred_check_branch
    %20 = sbr.rel (0) target = $region21
  $region20: #{tpu_custom_call.1} parent=0 // pred_region
    _
  $region21: #{tpu_custom_call.1} parent=0 // pred_fallthru
    _
  // Predicated region
  $region22: #{tpu_custom_call.1} parent=0 // pred_check
    _
  $region23: #{tpu_custom_call.1} parent=0 // pred_check_branch
    %22 = sbr.rel (0) target = $region25
  $region24: #{tpu_custom_call.1} parent=0 // pred_region
    _
  $region25: #{tpu_custom_call.1} parent=0 // pred_fallthru
    _
  %v23 = vld [vmem:[%s0] sm:$0xff]
  %v24 = vld [vmem:[%s0 + $0x8] sm:$0xff]
  %v25 = vld [vmem:[%s0 + $0x10] sm:$0xff]
  %v26 = vld [vmem:[%s0 + $0x18] sm:$0xff]
  %v27 = vld [vmem:[%s0 + $0x20] sm:$0xff]
  %v28 = vld [vmem:[%s0 + $0x28] sm:$0xff]
  %v29 = vld [vmem:[%s0 + $0x30] sm:$0xff]
  %v30 = vld [vmem:[%s0 + $0x38] sm:$0xff]
  %v31 = vld [vmem:[%s0 + $0x40] sm:$0xff]
  %v32 = vld [vmem:[%s0 + $0x48] sm:$0xff]
  %v33 = vld [vmem:[%s0 + $0x50] sm:$0xff]
  %v34 = vld [vmem:[%s0 + $0x58] sm:$0xff]
  %v35 = vld [vmem:[%s0 + $0x60] sm:$0xff]
  %v36 = vld [vmem:[%s0 + $0x68] sm:$0xff]
  %v37 = vld [vmem:[%s0 + $0x70] sm:$0xff]
  %v38 = vld [vmem:[%s0 + $0x78] sm:$0xff]
  %v39 = vld [vmem:[%s0 + $0x80] sm:$0xff]
  %v40 = vld [vmem:[%s0 + $0x88] sm:$0xff]
  %v41 = vld [vmem:[%s0 + $0x90] sm:$0xff]
  %v42 = vld [vmem:[%s0 + $0x98] sm:$0xff]
  %v43 = vld [vmem:[%s0 + $0xa0] sm:$0xff]
  %v44 = vld [vmem:[%s0 + $0xa8] sm:$0xff]
  %v45 = vld [vmem:[%s0 + $0xb0] sm:$0xff]
  %v46 = vld [vmem:[%s0 + $0xb8] sm:$0xff]
  %v47 = vld [vmem:[%s0 + $0xc0] sm:$0xff]
  %v48 = vld [vmem:[%s0 + $0xc8] sm:$0xff]
  %v49 = vld [vmem:[%s0 + $0xd0] sm:$0xff]
  %v50 = vld [vmem:[%s0 + $0xd8] sm:$0xff]
  %v51 = vld [vmem:[%s0 + $0xe0] sm:$0xff]
  %v52 = vld [vmem:[%s0 + $0xe8] sm:$0xff]
  %v53 = vld [vmem:[%s0 + $0xf0] sm:$0xff]
  %v54 = vld [vmem:[%s0 + $0xf8] sm:$0xff]
  %v55 = vld [vmem:[%s0 + $0x100] sm:$0xff]
  %v56 = vld [vmem:[%s0 + $0x108] sm:$0xff]
  %v57 = vld [vmem:[%s0 + $0x110] sm:$0xff]
  %v58 = vld [vmem:[%s0 + $0x118] sm:$0xff]
  %v59 = vld [vmem:[%s0 + $0x120] sm:$0xff]
  %v60 = vld [vmem:[%s0 + $0x128] sm:$0xff]
  %v61 = vld [vmem:[%s0 + $0x130] sm:$0xff]
  %v62 = vld [vmem:[%s0 + $0x138] sm:$0xff]
  %v63 = vld [vmem:[%s0 + $0x140] sm:$0xff]
  %v64 = vld [vmem:[%s0 + $0x148] sm:$0xff]
  %v65 = vld [vmem:[%s0 + $0x150] sm:$0xff]
  %v66 = vld [vmem:[%s0 + $0x158] sm:$0xff]
  %v67 = vld [vmem:[%s0 + $0x160] sm:$0xff]
  %v68 = vld [vmem:[%s0 + $0x168] sm:$0xff]
  %v69 = vld [vmem:[%s0 + $0x170] sm:$0xff]
  %v70 = vld [vmem:[%s0 + $0x178] sm:$0xff]
  %v71 = vld [vmem:[%s0 + $0x180] sm:$0xff]
  %v72 = vld [vmem:[%s0 + $0x188] sm:$0xff]
  %v73 = vld [vmem:[%s0 + $0x190] sm:$0xff]
  %v74 = vld [vmem:[%s0 + $0x198] sm:$0xff]
  %v75 = vld [vmem:[%s0 + $0x1a0] sm:$0xff]
  %v76 = vld [vmem:[%s0 + $0x1a8] sm:$0xff]
  %v77 = vld [vmem:[%s0 + $0x1b0] sm:$0xff]
  %v78 = vld [vmem:[%s0 + $0x1b8] sm:$0xff]
  %v79 = vld [vmem:[%s0 + $0x1c0] sm:$0xff]
  %v80 = vld [vmem:[%s0 + $0x1c8] sm:$0xff]
  %v81 = vld [vmem:[%s0 + $0x1d0] sm:$0xff]
  %v82 = vld [vmem:[%s0 + $0x1d8] sm:$0xff]
  %v83 = vld [vmem:[%s0 + $0x1e0] sm:$0xff]
  %v84 = vld [vmem:[%s0 + $0x1e8] sm:$0xff]
  %v85 = vld [vmem:[%s0 + $0x1f0] sm:$0xff]
  %v86 = vld [vmem:[%s0 + $0x1f8] sm:$0xff]
  %v87 = vld [vmem:[%s0 + $0x200] sm:$0xff]
  %v88 = vld [vmem:[%s0 + $0x208] sm:$0xff]
  %v89 = vld [vmem:[%s0 + $0x210] sm:$0xff]
  %v90 = vld [vmem:[%s0 + $0x218] sm:$0xff]
  %v91 = vld [vmem:[%s0 + $0x220] sm:$0xff]
  %v92 = vld [vmem:[%s0 + $0x228] sm:$0xff]
  %v93 = vld [vmem:[%s0 + $0x230] sm:$0xff]
  %v94 = vld [vmem:[%s0 + $0x238] sm:$0xff]
  %v95 = vld [vmem:[%s0 + $0x240] sm:$0xff]
  %v96 = vld [vmem:[%s0 + $0x248] sm:$0xff]
  %v97 = vld [vmem:[%s0 + $0x250] sm:$0xff]
  %v98 = vld [vmem:[%s0 + $0x258] sm:$0xff]
  %v99 = vld [vmem:[%s0 + $0x260] sm:$0xff]
  %v100 = vld [vmem:[%s0 + $0x268] sm:$0xff]
  %v101 = vld [vmem:[%s0 + $0x270] sm:$0xff]
  %v102 = vld [vmem:[%s0 + $0x278] sm:$0xff]
  %vm103 = vcmask 392192
  %v104 = vsel %vm103, %v23, 0.0
  %105 = vadd.xlane.f32.xlu0 %v104
  %v106 = vpop.xlane.xlu0 %105
  %v107 = vsel %vm103, %v24, 0.0
  %108 = vadd.xlane.f32.xlu0 %v107
  %v109 = vpop.xlane.xlu0 %108
  %v110 = vsel %vm103, %v25, 0.0
  %111 = vadd.xlane.f32.xlu0 %v110
  %v112 = vpop.xlane.xlu0 %111
  %v113 = vsel %vm103, %v26, 0.0
  %114 = vadd.xlane.f32.xlu0 %v113
  %v115 = vpop.xlane.xlu0 %114
  %v116 = vsel %vm103, %v27, 0.0
  %117 = vadd.xlane.f32.xlu0 %v116
  %v118 = vpop.xlane.xlu0 %117
  %v119 = vsel %vm103, %v28, 0.0
  %120 = vadd.xlane.f32.xlu0 %v119
  %v121 = vpop.xlane.xlu0 %120
  %v122 = vsel %vm103, %v29, 0.0
  %123 = vadd.xlane.f32.xlu0 %v122
  %v124 = vpop.xlane.xlu0 %123
  %v125 = vsel %vm103, %v30, 0.0
  %126 = vadd.xlane.f32.xlu0 %v125
  %v127 = vpop.xlane.xlu0 %126
  %v128 = vsel %vm103, %v31, 0.0
  %129 = vadd.xlane.f32.xlu0 %v128
  %v130 = vpop.xlane.xlu0 %129
  %v131 = vsel %vm103, %v32, 0.0
  %132 = vadd.xlane.f32.xlu0 %v131
  %v133 = vpop.xlane.xlu0 %132
  %v134 = vsel %vm103, %v33, 0.0
  %135 = vadd.xlane.f32.xlu0 %v134
  %v136 = vpop.xlane.xlu0 %135
  %v137 = vsel %vm103, %v34, 0.0
  %138 = vadd.xlane.f32.xlu0 %v137
  %v139 = vpop.xlane.xlu0 %138
  %v140 = vsel %vm103, %v35, 0.0
  %141 = vadd.xlane.f32.xlu0 %v140
  %v142 = vpop.xlane.xlu0 %141
  %v143 = vsel %vm103, %v36, 0.0
  %144 = vadd.xlane.f32.xlu0 %v143
  %v145 = vpop.xlane.xlu0 %144
  %v146 = vsel %vm103, %v37, 0.0
  %147 = vadd.xlane.f32.xlu0 %v146
  %v148 = vpop.xlane.xlu0 %147
  %v149 = vsel %vm103, %v38, 0.0
  %150 = vadd.xlane.f32.xlu0 %v149
  %v151 = vpop.xlane.xlu0 %150
  %v152 = vsel %vm103, %v39, 0.0
  %153 = vadd.xlane.f32.xlu0 %v152
  %v154 = vpop.xlane.xlu0 %153
  %v155 = vsel %vm103, %v40, 0.0
  %156 = vadd.xlane.f32.xlu0 %v155
  %v157 = vpop.xlane.xlu0 %156
  %v158 = vsel %vm103, %v41, 0.0
  %159 = vadd.xlane.f32.xlu0 %v158
  %v160 = vpop.xlane.xlu0 %159
  %v161 = vsel %vm103, %v42, 0.0
  %162 = vadd.xlane.f32.xlu0 %v161
  %v163 = vpop.xlane.xlu0 %162
  %v164 = vsel %vm103, %v43, 0.0
  %165 = vadd.xlane.f32.xlu0 %v164
  %v166 = vpop.xlane.xlu0 %165
  %v167 = vsel %vm103, %v44, 0.0
  %168 = vadd.xlane.f32.xlu0 %v167
  %v169 = vpop.xlane.xlu0 %168
  %v170 = vsel %vm103, %v45, 0.0
  %171 = vadd.xlane.f32.xlu0 %v170
  %v172 = vpop.xlane.xlu0 %171
  %v173 = vsel %vm103, %v46, 0.0
  %174 = vadd.xlane.f32.xlu0 %v173
  %v175 = vpop.xlane.xlu0 %174
  %v176 = vsel %vm103, %v47, 0.0
  %177 = vadd.xlane.f32.xlu0 %v176
  %v178 = vpop.xlane.xlu0 %177
  %v179 = vsel %vm103, %v48, 0.0
  %180 = vadd.xlane.f32.xlu0 %v179
  %v181 = vpop.xlane.xlu0 %180
  %v182 = vsel %vm103, %v49, 0.0
  %183 = vadd.xlane.f32.xlu0 %v182
  %v184 = vpop.xlane.xlu0 %183
  %v185 = vsel %vm103, %v50, 0.0
  %186 = vadd.xlane.f32.xlu0 %v185
  %v187 = vpop.xlane.xlu0 %186
  %v188 = vsel %vm103, %v51, 0.0
  %189 = vadd.xlane.f32.xlu0 %v188
  %v190 = vpop.xlane.xlu0 %189
  %v191 = vsel %vm103, %v52, 0.0
  %192 = vadd.xlane.f32.xlu0 %v191
  %v193 = vpop.xlane.xlu0 %192
  %v194 = vsel %vm103, %v53, 0.0
  %195 = vadd.xlane.f32.xlu0 %v194
  %v196 = vpop.xlane.xlu0 %195
  %v197 = vsel %vm103, %v54, 0.0
  %198 = vadd.xlane.f32.xlu0 %v197
  %v199 = vpop.xlane.xlu0 %198
  %v200 = vsel %vm103, %v55, 0.0
  %201 = vadd.xlane.f32.xlu0 %v200
  %v202 = vpop.xlane.xlu0 %201
  %v203 = vsel %vm103, %v56, 0.0
  %204 = vadd.xlane.f32.xlu0 %v203
  %v205 = vpop.xlane.xlu0 %204
  %v206 = vsel %vm103, %v57, 0.0
  %207 = vadd.xlane.f32.xlu0 %v206
  %v208 = vpop.xlane.xlu0 %207
  %v209 = vsel %vm103, %v58, 0.0
  %210 = vadd.xlane.f32.xlu0 %v209
  %v211 = vpop.xlane.xlu0 %210
  %v212 = vsel %vm103, %v59, 0.0
  %213 = vadd.xlane.f32.xlu0 %v212
  %v214 = vpop.xlane.xlu0 %213
  %v215 = vsel %vm103, %v60, 0.0
  %216 = vadd.xlane.f32.xlu0 %v215
  %v217 = vpop.xlane.xlu0 %216
  %v218 = vsel %vm103, %v61, 0.0
  %219 = vadd.xlane.f32.xlu0 %v218
  %v220 = vpop.xlane.xlu0 %219
  %v221 = vsel %vm103, %v62, 0.0
  %222 = vadd.xlane.f32.xlu0 %v221
  %v223 = vpop.xlane.xlu0 %222
  %v224 = vsel %vm103, %v63, 0.0
  %225 = vadd.xlane.f32.xlu0 %v224
  %v226 = vpop.xlane.xlu0 %225
  %v227 = vsel %vm103, %v64, 0.0
  %228 = vadd.xlane.f32.xlu0 %v227
  %v229 = vpop.xlane.xlu0 %228
  %v230 = vsel %vm103, %v65, 0.0
  %231 = vadd.xlane.f32.xlu0 %v230
  %v232 = vpop.xlane.xlu0 %231
  %v233 = vsel %vm103, %v66, 0.0
  %234 = vadd.xlane.f32.xlu0 %v233
  %v235 = vpop.xlane.xlu0 %234
  %v236 = vsel %vm103, %v67, 0.0
  %237 = vadd.xlane.f32.xlu0 %v236
  %v238 = vpop.xlane.xlu0 %237
  %v239 = vsel %vm103, %v68, 0.0
  %240 = vadd.xlane.f32.xlu0 %v239
  %v241 = vpop.xlane.xlu0 %240
  %v242 = vsel %vm103, %v69, 0.0
  %243 = vadd.xlane.f32.xlu0 %v242
  %v244 = vpop.xlane.xlu0 %243
  %v245 = vsel %vm103, %v70, 0.0
  %246 = vadd.xlane.f32.xlu0 %v245
  %v247 = vpop.xlane.xlu0 %246
  %v248 = vsel %vm103, %v71, 0.0
  %249 = vadd.xlane.f32.xlu0 %v248
  %v250 = vpop.xlane.xlu0 %249
  %v251 = vsel %vm103, %v72, 0.0
  %252 = vadd.xlane.f32.xlu0 %v251
  %v253 = vpop.xlane.xlu0 %252
  %v254 = vsel %vm103, %v73, 0.0
  %255 = vadd.xlane.f32.xlu0 %v254
  %v256 = vpop.xlane.xlu0 %255
  %v257 = vsel %vm103, %v74, 0.0
  %258 = vadd.xlane.f32.xlu0 %v257
  %v259 = vpop.xlane.xlu0 %258
  %v260 = vsel %vm103, %v75, 0.0
  %261 = vadd.xlane.f32.xlu0 %v260
  %v262 = vpop.xlane.xlu0 %261
  %v263 = vsel %vm103, %v76, 0.0
  %264 = vadd.xlane.f32.xlu0 %v263
  %v265 = vpop.xlane.xlu0 %264
  %v266 = vsel %vm103, %v77, 0.0
  %267 = vadd.xlane.f32.xlu0 %v266
  %v268 = vpop.xlane.xlu0 %267
  %v269 = vsel %vm103, %v78, 0.0
  %270 = vadd.xlane.f32.xlu0 %v269
  %v271 = vpop.xlane.xlu0 %270
  %v272 = vsel %vm103, %v79, 0.0
  %273 = vadd.xlane.f32.xlu0 %v272
  %v274 = vpop.xlane.xlu0 %273
  %v275 = vsel %vm103, %v80, 0.0
  %276 = vadd.xlane.f32.xlu0 %v275
  %v277 = vpop.xlane.xlu0 %276
  %v278 = vsel %vm103, %v81, 0.0
  %279 = vadd.xlane.f32.xlu0 %v278
  %v280 = vpop.xlane.xlu0 %279
  %v281 = vsel %vm103, %v82, 0.0
  %282 = vadd.xlane.f32.xlu0 %v281
  %v283 = vpop.xlane.xlu0 %282
  %v284 = vsel %vm103, %v83, 0.0
  %285 = vadd.xlane.f32.xlu0 %v284
  %v286 = vpop.xlane.xlu0 %285
  %v287 = vsel %vm103, %v84, 0.0
  %288 = vadd.xlane.f32.xlu0 %v287
  %v289 = vpop.xlane.xlu0 %288
  %v290 = vsel %vm103, %v85, 0.0
  %291 = vadd.xlane.f32.xlu0 %v290
  %v292 = vpop.xlane.xlu0 %291
  %v293 = vsel %vm103, %v86, 0.0
  %294 = vadd.xlane.f32.xlu0 %v293
  %v295 = vpop.xlane.xlu0 %294
  %v296 = vsel %vm103, %v87, 0.0
  %297 = vadd.xlane.f32.xlu0 %v296
  %v298 = vpop.xlane.xlu0 %297
  %v299 = vsel %vm103, %v88, 0.0
  %300 = vadd.xlane.f32.xlu0 %v299
  %v301 = vpop.xlane.xlu0 %300
  %v302 = vsel %vm103, %v89, 0.0
  %303 = vadd.xlane.f32.xlu0 %v302
  %v304 = vpop.xlane.xlu0 %303
  %v305 = vsel %vm103, %v90, 0.0
  %306 = vadd.xlane.f32.xlu0 %v305
  %v307 = vpop.xlane.xlu0 %306
  %v308 = vsel %vm103, %v91, 0.0
  %309 = vadd.xlane.f32.xlu0 %v308
  %v310 = vpop.xlane.xlu0 %309
  %v311 = vsel %vm103, %v92, 0.0
  %312 = vadd.xlane.f32.xlu0 %v311
  %v313 = vpop.xlane.xlu0 %312
  %v314 = vsel %vm103, %v93, 0.0
  %315 = vadd.xlane.f32.xlu0 %v314
  %v316 = vpop.xlane.xlu0 %315
  %v317 = vsel %vm103, %v94, 0.0
  %318 = vadd.xlane.f32.xlu0 %v317
  %v319 = vpop.xlane.xlu0 %318
  %v320 = vsel %vm103, %v95, 0.0
  %321 = vadd.xlane.f32.xlu0 %v320
  %v322 = vpop.xlane.xlu0 %321
  %v323 = vsel %vm103, %v96, 0.0
  %324 = vadd.xlane.f32.xlu0 %v323
  %v325 = vpop.xlane.xlu0 %324
  %v326 = vsel %vm103, %v97, 0.0
  %327 = vadd.xlane.f32.xlu0 %v326
  %v328 = vpop.xlane.xlu0 %327
  %v329 = vsel %vm103, %v98, 0.0
  %330 = vadd.xlane.f32.xlu0 %v329
  %v331 = vpop.xlane.xlu0 %330
  %v332 = vsel %vm103, %v99, 0.0
  %333 = vadd.xlane.f32.xlu0 %v332
  %v334 = vpop.xlane.xlu0 %333
  %v335 = vsel %vm103, %v100, 0.0
  %336 = vadd.xlane.f32.xlu0 %v335
  %v337 = vpop.xlane.xlu0 %336
  %v338 = vsel %vm103, %v101, 0.0
  %339 = vadd.xlane.f32.xlu0 %v338
  %v340 = vpop.xlane.xlu0 %339
  %v341 = vsel %vm103, %v102, 0.0
  %342 = vadd.xlane.f32.xlu0 %v341
  %v343 = vpop.xlane.xlu0 %342
  %v344 = vrcp.pop 48.0
  %v345 = vmul.f32 48.0, %v344
  %v346 = vsub.f32 1.0, %v345
  %v347 = vmul.f32 %v344, %v346
  %v348 = vadd.f32 %v344, %v347
  %vm349 = vweird.f32 %v344
  %v350 = vsel %vm349, %v344, %v348
  %v351 = vmul.f32 %v106, %v350
  %v352 = vmul.f32 %v109, %v350
  %v353 = vmul.f32 %v112, %v350
  %v354 = vmul.f32 %v115, %v350
  %v355 = vmul.f32 %v118, %v350
  %v356 = vmul.f32 %v121, %v350
  %v357 = vmul.f32 %v124, %v350
  %v358 = vmul.f32 %v127, %v350
  %v359 = vmul.f32 %v130, %v350
  %v360 = vmul.f32 %v133, %v350
  %v361 = vmul.f32 %v136, %v350
  %v362 = vmul.f32 %v139, %v350
  %v363 = vmul.f32 %v142, %v350
  %v364 = vmul.f32 %v145, %v350
  %v365 = vmul.f32 %v148, %v350
  %v366 = vmul.f32 %v151, %v350
  %v367 = vmul.f32 %v154, %v350
  %v368 = vmul.f32 %v157, %v350
  %v369 = vmul.f32 %v160, %v350
  %v370 = vmul.f32 %v163, %v350
  %v371 = vmul.f32 %v166, %v350
  %v372 = vmul.f32 %v169, %v350
  %v373 = vmul.f32 %v172, %v350
  %v374 = vmul.f32 %v175, %v350
  %v375 = vmul.f32 %v178, %v350
  %v376 = vmul.f32 %v181, %v350
  %v377 = vmul.f32 %v184, %v350
  %v378 = vmul.f32 %v187, %v350
  %v379 = vmul.f32 %v190, %v350
  %v380 = vmul.f32 %v193, %v350
  %v381 = vmul.f32 %v196, %v350
  %v382 = vmul.f32 %v199, %v350
  %v383 = vmul.f32 %v202, %v350
  %v384 = vmul.f32 %v205, %v350
  %v385 = vmul.f32 %v208, %v350
  %v386 = vmul.f32 %v211, %v350
  %v387 = vmul.f32 %v214, %v350
  %v388 = vmul.f32 %v217, %v350
  %v389 = vmul.f32 %v220, %v350
  %v390 = vmul.f32 %v223, %v350
  %v391 = vmul.f32 %v226, %v350
  %v392 = vmul.f32 %v229, %v350
  %v393 = vmul.f32 %v232, %v350
  %v394 = vmul.f32 %v235, %v350
  %v395 = vmul.f32 %v238, %v350
  %v396 = vmul.f32 %v241, %v350
  %v397 = vmul.f32 %v244, %v350
  %v398 = vmul.f32 %v247, %v350
  %v399 = vmul.f32 %v250, %v350
  %v400 = vmul.f32 %v253, %v350
  %v401 = vmul.f32 %v256, %v350
  %v402 = vmul.f32 %v259, %v350
  %v403 = vmul.f32 %v262, %v350
  %v404 = vmul.f32 %v265, %v350
  %v405 = vmul.f32 %v268, %v350
  %v406 = vmul.f32 %v271, %v350
  %v407 = vmul.f32 %v274, %v350
  %v408 = vmul.f32 %v277, %v350
  %v409 = vmul.f32 %v280, %v350
  %v410 = vmul.f32 %v283, %v350
  %v411 = vmul.f32 %v286, %v350
  %v412 = vmul.f32 %v289, %v350
  %v413 = vmul.f32 %v292, %v350
  %v414 = vmul.f32 %v295, %v350
  %v415 = vmul.f32 %v298, %v350
  %v416 = vmul.f32 %v301, %v350
  %v417 = vmul.f32 %v304, %v350
  %v418 = vmul.f32 %v307, %v350
  %v419 = vmul.f32 %v310, %v350
  %v420 = vmul.f32 %v313, %v350
  %v421 = vmul.f32 %v316, %v350
  %v422 = vmul.f32 %v319, %v350
  %v423 = vmul.f32 %v322, %v350
  %v424 = vmul.f32 %v325, %v350
  %v425 = vmul.f32 %v328, %v350
  %v426 = vmul.f32 %v331, %v350
  %v427 = vmul.f32 %v334, %v350
  %v428 = vmul.f32 %v337, %v350
  %v429 = vmul.f32 %v340, %v350
  %v430 = vmul.f32 %v343, %v350
  %v431 = vsub.f32 %v23, %v351
  %v432 = vsub.f32 %v24, %v352
  %v433 = vsub.f32 %v25, %v353
  %v434 = vsub.f32 %v26, %v354
  %v435 = vsub.f32 %v27, %v355
  %v436 = vsub.f32 %v28, %v356
  %v437 = vsub.f32 %v29, %v357
  %v438 = vsub.f32 %v30, %v358
  %v439 = vsub.f32 %v31, %v359
  %v440 = vsub.f32 %v32, %v360
  %v441 = vsub.f32 %v33, %v361
  %v442 = vsub.f32 %v34, %v362
  %v443 = vsub.f32 %v35, %v363
  %v444 = vsub.f32 %v36, %v364
  %v445 = vsub.f32 %v37, %v365
  %v446 = vsub.f32 %v38, %v366
  %v447 = vsub.f32 %v39, %v367
  %v448 = vsub.f32 %v40, %v368
  %v449 = vsub.f32 %v41, %v369
  %v450 = vsub.f32 %v42, %v370
  %v451 = vsub.f32 %v43, %v371
  %v452 = vsub.f32 %v44, %v372
  %v453 = vsub.f32 %v45, %v373
  %v454 = vsub.f32 %v46, %v374
  %v455 = vsub.f32 %v47, %v375
  %v456 = vsub.f32 %v48, %v376
  %v457 = vsub.f32 %v49, %v377
  %v458 = vsub.f32 %v50, %v378
  %v459 = vsub.f32 %v51, %v379
  %v460 = vsub.f32 %v52, %v380
  %v461 = vsub.f32 %v53, %v381
  %v462 = vsub.f32 %v54, %v382
  %v463 = vsub.f32 %v55, %v383
  %v464 = vsub.f32 %v56, %v384
  %v465 = vsub.f32 %v57, %v385
  %v466 = vsub.f32 %v58, %v386
  %v467 = vsub.f32 %v59, %v387
  %v468 = vsub.f32 %v60, %v388
  %v469 = vsub.f32 %v61, %v389
  %v470 = vsub.f32 %v62, %v390
  %v471 = vsub.f32 %v63, %v391
  %v472 = vsub.f32 %v64, %v392
  %v473 = vsub.f32 %v65, %v393
  %v474 = vsub.f32 %v66, %v394
  %v475 = vsub.f32 %v67, %v395
  %v476 = vsub.f32 %v68, %v396
  %v477 = vsub.f32 %v69, %v397
  %v478 = vsub.f32 %v70, %v398
  %v479 = vsub.f32 %v71, %v399
  %v480 = vsub.f32 %v72, %v400
  %v481 = vsub.f32 %v73, %v401
  %v482 = vsub.f32 %v74, %v402
  %v483 = vsub.f32 %v75, %v403
  %v484 = vsub.f32 %v76, %v404
  %v485 = vsub.f32 %v77, %v405
  %v486 = vsub.f32 %v78, %v406
  %v487 = vsub.f32 %v79, %v407
  %v488 = vsub.f32 %v80, %v408
  %v489 = vsub.f32 %v81, %v409
  %v490 = vsub.f32 %v82, %v410
  %v491 = vsub.f32 %v83, %v411
  %v492 = vsub.f32 %v84, %v412
  %v493 = vsub.f32 %v85, %v413
  %v494 = vsub.f32 %v86, %v414
  %v495 = vsub.f32 %v87, %v415
  %v496 = vsub.f32 %v88, %v416
  %v497 = vsub.f32 %v89, %v417
  %v498 = vsub.f32 %v90, %v418
  %v499 = vsub.f32 %v91, %v419
  %v500 = vsub.f32 %v92, %v420
  %v501 = vsub.f32 %v93, %v421
  %v502 = vsub.f32 %v94, %v422
  %v503 = vsub.f32 %v95, %v423
  %v504 = vsub.f32 %v96, %v424
  %v505 = vsub.f32 %v97, %v425
  %v506 = vsub.f32 %v98, %v426
  %v507 = vsub.f32 %v99, %v427
  %v508 = vsub.f32 %v100, %v428
  %v509 = vsub.f32 %v101, %v429
  %v510 = vsub.f32 %v102, %v430
  %v511 = vmul.f32 %v431, %v431
  %v512 = vmul.f32 %v432, %v432
  %v513 = vmul.f32 %v433, %v433
  %v514 = vmul.f32 %v434, %v434
  %v515 = vmul.f32 %v435, %v435
  %v516 = vmul.f32 %v436, %v436
  %v517 = vmul.f32 %v437, %v437
  %v518 = vmul.f32 %v438, %v438
  %v519 = vmul.f32 %v439, %v439
  %v520 = vmul.f32 %v440, %v440
  %v521 = vmul.f32 %v441, %v441
  %v522 = vmul.f32 %v442, %v442
  %v523 = vmul.f32 %v443, %v443
  %v524 = vmul.f32 %v444, %v444
  %v525 = vmul.f32 %v445, %v445
  %v526 = vmul.f32 %v446, %v446
  %v527 = vmul.f32 %v447, %v447
  %v528 = vmul.f32 %v448, %v448
  %v529 = vmul.f32 %v449, %v449
  %v530 = vmul.f32 %v450, %v450
  %v531 = vmul.f32 %v451, %v451
  %v532 = vmul.f32 %v452, %v452
  %v533 = vmul.f32 %v453, %v453
  %v534 = vmul.f32 %v454, %v454
  %v535 = vmul.f32 %v455, %v455
  %v536 = vmul.f32 %v456, %v456
  %v537 = vmul.f32 %v457, %v457
  %v538 = vmul.f32 %v458, %v458
  %v539 = vmul.f32 %v459, %v459
  %v540 = vmul.f32 %v460, %v460
  %v541 = vmul.f32 %v461, %v461
  %v542 = vmul.f32 %v462, %v462
  %v543 = vmul.f32 %v463, %v463
  %v544 = vmul.f32 %v464, %v464
  %v545 = vmul.f32 %v465, %v465
  %v546 = vmul.f32 %v466, %v466
  %v547 = vmul.f32 %v467, %v467
  %v548 = vmul.f32 %v468, %v468
  %v549 = vmul.f32 %v469, %v469
  %v550 = vmul.f32 %v470, %v470
  %v551 = vmul.f32 %v471, %v471
  %v552 = vmul.f32 %v472, %v472
  %v553 = vmul.f32 %v473, %v473
  %v554 = vmul.f32 %v474, %v474
  %v555 = vmul.f32 %v475, %v475
  %v556 = vmul.f32 %v476, %v476
  %v557 = vmul.f32 %v477, %v477
  %v558 = vmul.f32 %v478, %v478
  %v559 = vmul.f32 %v479, %v479
  %v560 = vmul.f32 %v480, %v480
  %v561 = vmul.f32 %v481, %v481
  %v562 = vmul.f32 %v482, %v482
  %v563 = vmul.f32 %v483, %v483
  %v564 = vmul.f32 %v484, %v484
  %v565 = vmul.f32 %v485, %v485
  %v566 = vmul.f32 %v486, %v486
  %v567 = vmul.f32 %v487, %v487
  %v568 = vmul.f32 %v488, %v488
  %v569 = vmul.f32 %v489, %v489
  %v570 = vmul.f32 %v490, %v490
  %v571 = vmul.f32 %v491, %v491
  %v572 = vmul.f32 %v492, %v492
  %v573 = vmul.f32 %v493, %v493
  %v574 = vmul.f32 %v494, %v494
  %v575 = vmul.f32 %v495, %v495
  %v576 = vmul.f32 %v496, %v496
  %v577 = vmul.f32 %v497, %v497
  %v578 = vmul.f32 %v498, %v498
  %v579 = vmul.f32 %v499, %v499
  %v580 = vmul.f32 %v500, %v500
  %v581 = vmul.f32 %v501, %v501
  %v582 = vmul.f32 %v502, %v502
  %v583 = vmul.f32 %v503, %v503
  %v584 = vmul.f32 %v504, %v504
  %v585 = vmul.f32 %v505, %v505
  %v586 = vmul.f32 %v506, %v506
  %v587 = vmul.f32 %v507, %v507
  %v588 = vmul.f32 %v508, %v508
  %v589 = vmul.f32 %v509, %v509
  %v590 = vmul.f32 %v510, %v510
  %v591 = vsel %vm103, %v511, 0.0
  %592 = vadd.xlane.f32.xlu0 %v591
  %v593 = vpop.xlane.xlu0 %592
  %v594 = vsel %vm103, %v512, 0.0
  %595 = vadd.xlane.f32.xlu0 %v594
  %v596 = vpop.xlane.xlu0 %595
  %v597 = vsel %vm103, %v513, 0.0
  %598 = vadd.xlane.f32.xlu0 %v597
  %v599 = vpop.xlane.xlu0 %598
  %v600 = vsel %vm103, %v514, 0.0
  %601 = vadd.xlane.f32.xlu0 %v600
  %v602 = vpop.xlane.xlu0 %601
  %v603 = vsel %vm103, %v515, 0.0
  %604 = vadd.xlane.f32.xlu0 %v603
  %v605 = vpop.xlane.xlu0 %604
  %v606 = vsel %vm103, %v516, 0.0
  %607 = vadd.xlane.f32.xlu0 %v606
  %v608 = vpop.xlane.xlu0 %607
  %v609 = vsel %vm103, %v517, 0.0
  %610 = vadd.xlane.f32.xlu0 %v609
  %v611 = vpop.xlane.xlu0 %610
  %v612 = vsel %vm103, %v518, 0.0
  %613 = vadd.xlane.f32.xlu0 %v612
  %v614 = vpop.xlane.xlu0 %613
  %v615 = vsel %vm103, %v519, 0.0
  %616 = vadd.xlane.f32.xlu0 %v615
  %v617 = vpop.xlane.xlu0 %616
  %v618 = vsel %vm103, %v520, 0.0
  %619 = vadd.xlane.f32.xlu0 %v618
  %v620 = vpop.xlane.xlu0 %619
  %v621 = vsel %vm103, %v521, 0.0
  %622 = vadd.xlane.f32.xlu0 %v621
  %v623 = vpop.xlane.xlu0 %622
  %v624 = vsel %vm103, %v522, 0.0
  %625 = vadd.xlane.f32.xlu0 %v624
  %v626 = vpop.xlane.xlu0 %625
  %v627 = vsel %vm103, %v523, 0.0
  %628 = vadd.xlane.f32.xlu0 %v627
  %v629 = vpop.xlane.xlu0 %628
  %v630 = vsel %vm103, %v524, 0.0
  %631 = vadd.xlane.f32.xlu0 %v630
  %v632 = vpop.xlane.xlu0 %631
  %v633 = vsel %vm103, %v525, 0.0
  %634 = vadd.xlane.f32.xlu0 %v633
  %v635 = vpop.xlane.xlu0 %634
  %v636 = vsel %vm103, %v526, 0.0
  %637 = vadd.xlane.f32.xlu0 %v636
  %v638 = vpop.xlane.xlu0 %637
  %v639 = vsel %vm103, %v527, 0.0
  %640 = vadd.xlane.f32.xlu0 %v639
  %v641 = vpop.xlane.xlu0 %640
  %v642 = vsel %vm103, %v528, 0.0
  %643 = vadd.xlane.f32.xlu0 %v642
  %v644 = vpop.xlane.xlu0 %643
  %v645 = vsel %vm103, %v529, 0.0
  %646 = vadd.xlane.f32.xlu0 %v645
  %v647 = vpop.xlane.xlu0 %646
  %v648 = vsel %vm103, %v530, 0.0
  %649 = vadd.xlane.f32.xlu0 %v648
  %v650 = vpop.xlane.xlu0 %649
  %v651 = vsel %vm103, %v531, 0.0
  %652 = vadd.xlane.f32.xlu0 %v651
  %v653 = vpop.xlane.xlu0 %652
  %v654 = vsel %vm103, %v532, 0.0
  %655 = vadd.xlane.f32.xlu0 %v654
  %v656 = vpop.xlane.xlu0 %655
  %v657 = vsel %vm103, %v533, 0.0
  %658 = vadd.xlane.f32.xlu0 %v657
  %v659 = vpop.xlane.xlu0 %658
  %v660 = vsel %vm103, %v534, 0.0
  %661 = vadd.xlane.f32.xlu0 %v660
  %v662 = vpop.xlane.xlu0 %661
  %v663 = vsel %vm103, %v535, 0.0
  %664 = vadd.xlane.f32.xlu0 %v663
  %v665 = vpop.xlane.xlu0 %664
  %v666 = vsel %vm103, %v536, 0.0
  %667 = vadd.xlane.f32.xlu0 %v666
  %v668 = vpop.xlane.xlu0 %667
  %v669 = vsel %vm103, %v537, 0.0
  %670 = vadd.xlane.f32.xlu0 %v669
  %v671 = vpop.xlane.xlu0 %670
  %v672 = vsel %vm103, %v538, 0.0
  %673 = vadd.xlane.f32.xlu0 %v672
  %v674 = vpop.xlane.xlu0 %673
  %v675 = vsel %vm103, %v539, 0.0
  %676 = vadd.xlane.f32.xlu0 %v675
  %v677 = vpop.xlane.xlu0 %676
  %v678 = vsel %vm103, %v540, 0.0
  %679 = vadd.xlane.f32.xlu0 %v678
  %v680 = vpop.xlane.xlu0 %679
  %v681 = vsel %vm103, %v541, 0.0
  %682 = vadd.xlane.f32.xlu0 %v681
  %v683 = vpop.xlane.xlu0 %682
  %v684 = vsel %vm103, %v542, 0.0
  %685 = vadd.xlane.f32.xlu0 %v684
  %v686 = vpop.xlane.xlu0 %685
  %v687 = vsel %vm103, %v543, 0.0
  %688 = vadd.xlane.f32.xlu0 %v687
  %v689 = vpop.xlane.xlu0 %688
  %v690 = vsel %vm103, %v544, 0.0
  %691 = vadd.xlane.f32.xlu0 %v690
  %v692 = vpop.xlane.xlu0 %691
  %v693 = vsel %vm103, %v545, 0.0
  %694 = vadd.xlane.f32.xlu0 %v693
  %v695 = vpop.xlane.xlu0 %694
  %v696 = vsel %vm103, %v546, 0.0
  %697 = vadd.xlane.f32.xlu0 %v696
  %v698 = vpop.xlane.xlu0 %697
  %v699 = vsel %vm103, %v547, 0.0
  %700 = vadd.xlane.f32.xlu0 %v699
  %v701 = vpop.xlane.xlu0 %700
  %v702 = vsel %vm103, %v548, 0.0
  %703 = vadd.xlane.f32.xlu0 %v702
  %v704 = vpop.xlane.xlu0 %703
  %v705 = vsel %vm103, %v549, 0.0
  %706 = vadd.xlane.f32.xlu0 %v705
  %v707 = vpop.xlane.xlu0 %706
  %v708 = vsel %vm103, %v550, 0.0
  %709 = vadd.xlane.f32.xlu0 %v708
  %v710 = vpop.xlane.xlu0 %709
  %v711 = vsel %vm103, %v551, 0.0
  %712 = vadd.xlane.f32.xlu0 %v711
  %v713 = vpop.xlane.xlu0 %712
  %v714 = vsel %vm103, %v552, 0.0
  %715 = vadd.xlane.f32.xlu0 %v714
  %v716 = vpop.xlane.xlu0 %715
  %v717 = vsel %vm103, %v553, 0.0
  %718 = vadd.xlane.f32.xlu0 %v717
  %v719 = vpop.xlane.xlu0 %718
  %v720 = vsel %vm103, %v554, 0.0
  %721 = vadd.xlane.f32.xlu0 %v720
  %v722 = vpop.xlane.xlu0 %721
  %v723 = vsel %vm103, %v555, 0.0
  %724 = vadd.xlane.f32.xlu0 %v723
  %v725 = vpop.xlane.xlu0 %724
  %v726 = vsel %vm103, %v556, 0.0
  %727 = vadd.xlane.f32.xlu0 %v726
  %v728 = vpop.xlane.xlu0 %727
  %v729 = vsel %vm103, %v557, 0.0
  %730 = vadd.xlane.f32.xlu0 %v729
  %v731 = vpop.xlane.xlu0 %730
  %v732 = vsel %vm103, %v558, 0.0
  %733 = vadd.xlane.f32.xlu0 %v732
  %v734 = vpop.xlane.xlu0 %733
  %v735 = vsel %vm103, %v559, 0.0
  %736 = vadd.xlane.f32.xlu0 %v735
  %v737 = vpop.xlane.xlu0 %736
  %v738 = vsel %vm103, %v560, 0.0
  %739 = vadd.xlane.f32.xlu0 %v738
  %v740 = vpop.xlane.xlu0 %739
  %v741 = vsel %vm103, %v561, 0.0
  %742 = vadd.xlane.f32.xlu0 %v741
  %v743 = vpop.xlane.xlu0 %742
  %v744 = vsel %vm103, %v562, 0.0
  %745 = vadd.xlane.f32.xlu0 %v744
  %v746 = vpop.xlane.xlu0 %745
  %v747 = vsel %vm103, %v563, 0.0
  %748 = vadd.xlane.f32.xlu0 %v747
  %v749 = vpop.xlane.xlu0 %748
  %v750 = vsel %vm103, %v564, 0.0
  %751 = vadd.xlane.f32.xlu0 %v750
  %v752 = vpop.xlane.xlu0 %751
  %v753 = vsel %vm103, %v565, 0.0
  %754 = vadd.xlane.f32.xlu0 %v753
  %v755 = vpop.xlane.xlu0 %754
  %v756 = vsel %vm103, %v566, 0.0
  %757 = vadd.xlane.f32.xlu0 %v756
  %v758 = vpop.xlane.xlu0 %757
  %v759 = vsel %vm103, %v567, 0.0
  %760 = vadd.xlane.f32.xlu0 %v759
  %v761 = vpop.xlane.xlu0 %760
  %v762 = vsel %vm103, %v568, 0.0
  %763 = vadd.xlane.f32.xlu0 %v762
  %v764 = vpop.xlane.xlu0 %763
  %v765 = vsel %vm103, %v569, 0.0
  %766 = vadd.xlane.f32.xlu0 %v765
  %v767 = vpop.xlane.xlu0 %766
  %v768 = vsel %vm103, %v570, 0.0
  %769 = vadd.xlane.f32.xlu0 %v768
  %v770 = vpop.xlane.xlu0 %769
  %v771 = vsel %vm103, %v571, 0.0
  %772 = vadd.xlane.f32.xlu0 %v771
  %v773 = vpop.xlane.xlu0 %772
  %v774 = vsel %vm103, %v572, 0.0
  %775 = vadd.xlane.f32.xlu0 %v774
  %v776 = vpop.xlane.xlu0 %775
  %v777 = vsel %vm103, %v573, 0.0
  %778 = vadd.xlane.f32.xlu0 %v777
  %v779 = vpop.xlane.xlu0 %778
  %v780 = vsel %vm103, %v574, 0.0
  %781 = vadd.xlane.f32.xlu0 %v780
  %v782 = vpop.xlane.xlu0 %781
  %v783 = vsel %vm103, %v575, 0.0
  %784 = vadd.xlane.f32.xlu0 %v783
  %v785 = vpop.xlane.xlu0 %784
  %v786 = vsel %vm103, %v576, 0.0
  %787 = vadd.xlane.f32.xlu0 %v786
  %v788 = vpop.xlane.xlu0 %787
  %v789 = vsel %vm103, %v577, 0.0
  %790 = vadd.xlane.f32.xlu0 %v789
  %v791 = vpop.xlane.xlu0 %790
  %v792 = vsel %vm103, %v578, 0.0
  %793 = vadd.xlane.f32.xlu0 %v792
  %v794 = vpop.xlane.xlu0 %793
  %v795 = vsel %vm103, %v579, 0.0
  %796 = vadd.xlane.f32.xlu0 %v795
  %v797 = vpop.xlane.xlu0 %796
  %v798 = vsel %vm103, %v580, 0.0
  %799 = vadd.xlane.f32.xlu0 %v798
  %v800 = vpop.xlane.xlu0 %799
  %v801 = vsel %vm103, %v581, 0.0
  %802 = vadd.xlane.f32.xlu0 %v801
  %v803 = vpop.xlane.xlu0 %802
  %v804 = vsel %vm103, %v582, 0.0
  %805 = vadd.xlane.f32.xlu0 %v804
  %v806 = vpop.xlane.xlu0 %805
  %v807 = vsel %vm103, %v583, 0.0
  %808 = vadd.xlane.f32.xlu0 %v807
  %v809 = vpop.xlane.xlu0 %808
  %v810 = vsel %vm103, %v584, 0.0
  %811 = vadd.xlane.f32.xlu0 %v810
  %v812 = vpop.xlane.xlu0 %811
  %v813 = vsel %vm103, %v585, 0.0
  %814 = vadd.xlane.f32.xlu0 %v813
  %v815 = vpop.xlane.xlu0 %814
  %v816 = vsel %vm103, %v586, 0.0
  %817 = vadd.xlane.f32.xlu0 %v816
  %v818 = vpop.xlane.xlu0 %817
  %v819 = vsel %vm103, %v587, 0.0
  %820 = vadd.xlane.f32.xlu0 %v819
  %v821 = vpop.xlane.xlu0 %820
  %v822 = vsel %vm103, %v588, 0.0
  %823 = vadd.xlane.f32.xlu0 %v822
  %v824 = vpop.xlane.xlu0 %823
  %v825 = vsel %vm103, %v589, 0.0
  %826 = vadd.xlane.f32.xlu0 %v825
  %v827 = vpop.xlane.xlu0 %826
  %v828 = vsel %vm103, %v590, 0.0
  %829 = vadd.xlane.f32.xlu0 %v828
  %v830 = vpop.xlane.xlu0 %829
  %v831 = vmul.f32 %v593, %v350
  %v832 = vmul.f32 %v596, %v350
  %v833 = vmul.f32 %v599, %v350
  %v834 = vmul.f32 %v602, %v350
  %v835 = vmul.f32 %v605, %v350
  %v836 = vmul.f32 %v608, %v350
  %v837 = vmul.f32 %v611, %v350
  %v838 = vmul.f32 %v614, %v350
  %v839 = vmul.f32 %v617, %v350
  %v840 = vmul.f32 %v620, %v350
  %v841 = vmul.f32 %v623, %v350
  %v842 = vmul.f32 %v626, %v350
  %v843 = vmul.f32 %v629, %v350
  %v844 = vmul.f32 %v632, %v350
  %v845 = vmul.f32 %v635, %v350
  %v846 = vmul.f32 %v638, %v350
  %v847 = vmul.f32 %v641, %v350
  %v848 = vmul.f32 %v644, %v350
  %v849 = vmul.f32 %v647, %v350
  %v850 = vmul.f32 %v650, %v350
  %v851 = vmul.f32 %v653, %v350
  %v852 = vmul.f32 %v656, %v350
  %v853 = vmul.f32 %v659, %v350
  %v854 = vmul.f32 %v662, %v350
  %v855 = vmul.f32 %v665, %v350
  %v856 = vmul.f32 %v668, %v350
  %v857 = vmul.f32 %v671, %v350
  %v858 = vmul.f32 %v674, %v350
  %v859 = vmul.f32 %v677, %v350
  %v860 = vmul.f32 %v680, %v350
  %v861 = vmul.f32 %v683, %v350
  %v862 = vmul.f32 %v686, %v350
  %v863 = vmul.f32 %v689, %v350
  %v864 = vmul.f32 %v692, %v350
  %v865 = vmul.f32 %v695, %v350
  %v866 = vmul.f32 %v698, %v350
  %v867 = vmul.f32 %v701, %v350
  %v868 = vmul.f32 %v704, %v350
  %v869 = vmul.f32 %v707, %v350
  %v870 = vmul.f32 %v710, %v350
  %v871 = vmul.f32 %v713, %v350
  %v872 = vmul.f32 %v716, %v350
  %v873 = vmul.f32 %v719, %v350
  %v874 = vmul.f32 %v722, %v350
  %v875 = vmul.f32 %v725, %v350
  %v876 = vmul.f32 %v728, %v350
  %v877 = vmul.f32 %v731, %v350
  %v878 = vmul.f32 %v734, %v350
  %v879 = vmul.f32 %v737, %v350
  %v880 = vmul.f32 %v740, %v350
  %v881 = vmul.f32 %v743, %v350
  %v882 = vmul.f32 %v746, %v350
  %v883 = vmul.f32 %v749, %v350
  %v884 = vmul.f32 %v752, %v350
  %v885 = vmul.f32 %v755, %v350
  %v886 = vmul.f32 %v758, %v350
  %v887 = vmul.f32 %v761, %v350
  %v888 = vmul.f32 %v764, %v350
  %v889 = vmul.f32 %v767, %v350
  %v890 = vmul.f32 %v770, %v350
  %v891 = vmul.f32 %v773, %v350
  %v892 = vmul.f32 %v776, %v350
  %v893 = vmul.f32 %v779, %v350
  %v894 = vmul.f32 %v782, %v350
  %v895 = vmul.f32 %v785, %v350
  %v896 = vmul.f32 %v788, %v350
  %v897 = vmul.f32 %v791, %v350
  %v898 = vmul.f32 %v794, %v350
  %v899 = vmul.f32 %v797, %v350
  %v900 = vmul.f32 %v800, %v350
  %v901 = vmul.f32 %v803, %v350
  %v902 = vmul.f32 %v806, %v350
  %v903 = vmul.f32 %v809, %v350
  %v904 = vmul.f32 %v812, %v350
  %v905 = vmul.f32 %v815, %v350
  %v906 = vmul.f32 %v818, %v350
  %v907 = vmul.f32 %v821, %v350
  %v908 = vmul.f32 %v824, %v350
  %v909 = vmul.f32 %v827, %v350
  %v910 = vmul.f32 %v830, %v350
  %v911 = vadd.f32 %v831, 1e-05
  %v912 = vadd.f32 %v832, 1e-05
  %v913 = vadd.f32 %v833, 1e-05
  %v914 = vadd.f32 %v834, 1e-05
  %v915 = vadd.f32 %v835, 1e-05
  %v916 = vadd.f32 %v836, 1e-05
  %v917 = vadd.f32 %v837, 1e-05
  %v918 = vadd.f32 %v838, 1e-05
  %v919 = vadd.f32 %v839, 1e-05
  %v920 = vadd.f32 %v840, 1e-05
  %v921 = vadd.f32 %v841, 1e-05
  %v922 = vadd.f32 %v842, 1e-05
  %v923 = vadd.f32 %v843, 1e-05
  %v924 = vadd.f32 %v844, 1e-05
  %v925 = vadd.f32 %v845, 1e-05
  %v926 = vadd.f32 %v846, 1e-05
  %v927 = vadd.f32 %v847, 1e-05
  %v928 = vadd.f32 %v848, 1e-05
  %v929 = vadd.f32 %v849, 1e-05
  %v930 = vadd.f32 %v850, 1e-05
  %v931 = vadd.f32 %v851, 1e-05
  %v932 = vadd.f32 %v852, 1e-05
  %v933 = vadd.f32 %v853, 1e-05
  %v934 = vadd.f32 %v854, 1e-05
  %v935 = vadd.f32 %v855, 1e-05
  %v936 = vadd.f32 %v856, 1e-05
  %v937 = vadd.f32 %v857, 1e-05
  %v938 = vadd.f32 %v858, 1e-05
  %v939 = vadd.f32 %v859, 1e-05
  %v940 = vadd.f32 %v860, 1e-05
  %v941 = vadd.f32 %v861, 1e-05
  %v942 = vadd.f32 %v862, 1e-05
  %v943 = vadd.f32 %v863, 1e-05
  %v944 = vadd.f32 %v864, 1e-05
  %v945 = vadd.f32 %v865, 1e-05
  %v946 = vadd.f32 %v866, 1e-05
  %v947 = vadd.f32 %v867, 1e-05
  %v948 = vadd.f32 %v868, 1e-05
  %v949 = vadd.f32 %v869, 1e-05
  %v950 = vadd.f32 %v870, 1e-05
  %v951 = vadd.f32 %v871, 1e-05
  %v952 = vadd.f32 %v872, 1e-05
  %v953 = vadd.f32 %v873, 1e-05
  %v954 = vadd.f32 %v874, 1e-05
  %v955 = vadd.f32 %v875, 1e-05
  %v956 = vadd.f32 %v876, 1e-05
  %v957 = vadd.f32 %v877, 1e-05
  %v958 = vadd.f32 %v878, 1e-05
  %v959 = vadd.f32 %v879, 1e-05
  %v960 = vadd.f32 %v880, 1e-05
  %v961 = vadd.f32 %v881, 1e-05
  %v962 = vadd.f32 %v882, 1e-05
  %v963 = vadd.f32 %v883, 1e-05
  %v964 = vadd.f32 %v884, 1e-05
  %v965 = vadd.f32 %v885, 1e-05
  %v966 = vadd.f32 %v886, 1e-05
  %v967 = vadd.f32 %v887, 1e-05
  %v968 = vadd.f32 %v888, 1e-05
  %v969 = vadd.f32 %v889, 1e-05
  %v970 = vadd.f32 %v890, 1e-05
  %v971 = vadd.f32 %v891, 1e-05
  %v972 = vadd.f32 %v892, 1e-05
  %v973 = vadd.f32 %v893, 1e-05
  %v974 = vadd.f32 %v894, 1e-05
  %v975 = vadd.f32 %v895, 1e-05
  %v976 = vadd.f32 %v896, 1e-05
  %v977 = vadd.f32 %v897, 1e-05
  %v978 = vadd.f32 %v898, 1e-05
  %v979 = vadd.f32 %v899, 1e-05
  %v980 = vadd.f32 %v900, 1e-05
  %v981 = vadd.f32 %v901, 1e-05
  %v982 = vadd.f32 %v902, 1e-05
  %v983 = vadd.f32 %v903, 1e-05
  %v984 = vadd.f32 %v904, 1e-05
  %v985 = vadd.f32 %v905, 1e-05
  %v986 = vadd.f32 %v906, 1e-05
  %v987 = vadd.f32 %v907, 1e-05
  %v988 = vadd.f32 %v908, 1e-05
  %v989 = vadd.f32 %v909, 1e-05
  %v990 = vadd.f32 %v910, 1e-05
  %v991 = vrsqrt.pop %v911
  %v992 = vmul.f32 %v991, %v911
  %v993 = vmul.f32 %v992, %v991
  %v994 = vmul.f32 0.5, %v993
  %v995 = vsub.f32 1.5, %v994
  %v996 = vmul.f32 %v991, %v995
  %vm997 = vweird.f32 %v911
  %vm998 = vweird.f32 %v991
  %vm999 = vmor %vm997, %vm998
  %v1000 = vsel %vm999, %v991, %v996
  %v1001 = vrsqrt.pop %v912
  %v1002 = vmul.f32 %v1001, %v912
  %v1003 = vmul.f32 %v1002, %v1001
  %v1004 = vmul.f32 0.5, %v1003
  %v1005 = vsub.f32 1.5, %v1004
  %v1006 = vmul.f32 %v1001, %v1005
  %vm1007 = vweird.f32 %v912
  %vm1008 = vweird.f32 %v1001
  %vm1009 = vmor %vm1007, %vm1008
  %v1010 = vsel %vm1009, %v1001, %v1006
  %v1011 = vrsqrt.pop %v913
  %v1012 = vmul.f32 %v1011, %v913
  %v1013 = vmul.f32 %v1012, %v1011
  %v1014 = vmul.f32 0.5, %v1013
  %v1015 = vsub.f32 1.5, %v1014
  %v1016 = vmul.f32 %v1011, %v1015
  %vm1017 = vweird.f32 %v913
  %vm1018 = vweird.f32 %v1011
  %vm1019 = vmor %vm1017, %vm1018
  %v1020 = vsel %vm1019, %v1011, %v1016
  %v1021 = vrsqrt.pop %v914
  %v1022 = vmul.f32 %v1021, %v914
  %v1023 = vmul.f32 %v1022, %v1021
  %v1024 = vmul.f32 0.5, %v1023
  %v1025 = vsub.f32 1.5, %v1024
  %v1026 = vmul.f32 %v1021, %v1025
  %vm1027 = vweird.f32 %v914
  %vm1028 = vweird.f32 %v1021
  %vm1029 = vmor %vm1027, %vm1028
  %v1030 = vsel %vm1029, %v1021, %v1026
  %v1031 = vrsqrt.pop %v915
  %v1032 = vmul.f32 %v1031, %v915
  %v1033 = vmul.f32 %v1032, %v1031
  %v1034 = vmul.f32 0.5, %v1033
  %v1035 = vsub.f32 1.5, %v1034
  %v1036 = vmul.f32 %v1031, %v1035
  %vm1037 = vweird.f32 %v915
  %vm1038 = vweird.f32 %v1031
  %vm1039 = vmor %vm1037, %vm1038
  %v1040 = vsel %vm1039, %v1031, %v1036
  %v1041 = vrsqrt.pop %v916
  %v1042 = vmul.f32 %v1041, %v916
  %v1043 = vmul.f32 %v1042, %v1041
  %v1044 = vmul.f32 0.5, %v1043
  %v1045 = vsub.f32 1.5, %v1044
  %v1046 = vmul.f32 %v1041, %v1045
  %vm1047 = vweird.f32 %v916
  %vm1048 = vweird.f32 %v1041
  %vm1049 = vmor %vm1047, %vm1048
  %v1050 = vsel %vm1049, %v1041, %v1046
  %v1051 = vrsqrt.pop %v917
  %v1052 = vmul.f32 %v1051, %v917
  %v1053 = vmul.f32 %v1052, %v1051
  %v1054 = vmul.f32 0.5, %v1053
  %v1055 = vsub.f32 1.5, %v1054
  %v1056 = vmul.f32 %v1051, %v1055
  %vm1057 = vweird.f32 %v917
  %vm1058 = vweird.f32 %v1051
  %vm1059 = vmor %vm1057, %vm1058
  %v1060 = vsel %vm1059, %v1051, %v1056
  %v1061 = vrsqrt.pop %v918
  %v1062 = vmul.f32 %v1061, %v918
  %v1063 = vmul.f32 %v1062, %v1061
  %v1064 = vmul.f32 0.5, %v1063
  %v1065 = vsub.f32 1.5, %v1064
  %v1066 = vmul.f32 %v1061, %v1065
  %vm1067 = vweird.f32 %v918
  %vm1068 = vweird.f32 %v1061
  %vm1069 = vmor %vm1067, %vm1068
  %v1070 = vsel %vm1069, %v1061, %v1066
  %v1071 = vrsqrt.pop %v919
  %v1072 = vmul.f32 %v1071, %v919
  %v1073 = vmul.f32 %v1072, %v1071
  %v1074 = vmul.f32 0.5, %v1073
  %v1075 = vsub.f32 1.5, %v1074
  %v1076 = vmul.f32 %v1071, %v1075
  %vm1077 = vweird.f32 %v919
  %vm1078 = vweird.f32 %v1071
  %vm1079 = vmor %vm1077, %vm1078
  %v1080 = vsel %vm1079, %v1071, %v1076
  %v1081 = vrsqrt.pop %v920
  %v1082 = vmul.f32 %v1081, %v920
  %v1083 = vmul.f32 %v1082, %v1081
  %v1084 = vmul.f32 0.5, %v1083
  %v1085 = vsub.f32 1.5, %v1084
  %v1086 = vmul.f32 %v1081, %v1085
  %vm1087 = vweird.f32 %v920
  %vm1088 = vweird.f32 %v1081
  %vm1089 = vmor %vm1087, %vm1088
  %v1090 = vsel %vm1089, %v1081, %v1086
  %v1091 = vrsqrt.pop %v921
  %v1092 = vmul.f32 %v1091, %v921
  %v1093 = vmul.f32 %v1092, %v1091
  %v1094 = vmul.f32 0.5, %v1093
  %v1095 = vsub.f32 1.5, %v1094
  %v1096 = vmul.f32 %v1091, %v1095
  %vm1097 = vweird.f32 %v921
  %vm1098 = vweird.f32 %v1091
  %vm1099 = vmor %vm1097, %vm1098
  %v1100 = vsel %vm1099, %v1091, %v1096
  %v1101 = vrsqrt.pop %v922
  %v1102 = vmul.f32 %v1101, %v922
  %v1103 = vmul.f32 %v1102, %v1101
  %v1104 = vmul.f32 0.5, %v1103
  %v1105 = vsub.f32 1.5, %v1104
  %v1106 = vmul.f32 %v1101, %v1105
  %vm1107 = vweird.f32 %v922
  %vm1108 = vweird.f32 %v1101
  %vm1109 = vmor %vm1107, %vm1108
  %v1110 = vsel %vm1109, %v1101, %v1106
  %v1111 = vrsqrt.pop %v923
  %v1112 = vmul.f32 %v1111, %v923
  %v1113 = vmul.f32 %v1112, %v1111
  %v1114 = vmul.f32 0.5, %v1113
  %v1115 = vsub.f32 1.5, %v1114
  %v1116 = vmul.f32 %v1111, %v1115
  %vm1117 = vweird.f32 %v923
  %vm1118 = vweird.f32 %v1111
  %vm1119 = vmor %vm1117, %vm1118
  %v1120 = vsel %vm1119, %v1111, %v1116
  %v1121 = vrsqrt.pop %v924
  %v1122 = vmul.f32 %v1121, %v924
  %v1123 = vmul.f32 %v1122, %v1121
  %v1124 = vmul.f32 0.5, %v1123
  %v1125 = vsub.f32 1.5, %v1124
  %v1126 = vmul.f32 %v1121, %v1125
  %vm1127 = vweird.f32 %v924
  %vm1128 = vweird.f32 %v1121
  %vm1129 = vmor %vm1127, %vm1128
  %v1130 = vsel %vm1129, %v1121, %v1126
  %v1131 = vrsqrt.pop %v925
  %v1132 = vmul.f32 %v1131, %v925
  %v1133 = vmul.f32 %v1132, %v1131
  %v1134 = vmul.f32 0.5, %v1133
  %v1135 = vsub.f32 1.5, %v1134
  %v1136 = vmul.f32 %v1131, %v1135
  %vm1137 = vweird.f32 %v925
  %vm1138 = vweird.f32 %v1131
  %vm1139 = vmor %vm1137, %vm1138
  %v1140 = vsel %vm1139, %v1131, %v1136
  %v1141 = vrsqrt.pop %v926
  %v1142 = vmul.f32 %v1141, %v926
  %v1143 = vmul.f32 %v1142, %v1141
  %v1144 = vmul.f32 0.5, %v1143
  %v1145 = vsub.f32 1.5, %v1144
  %v1146 = vmul.f32 %v1141, %v1145
  %vm1147 = vweird.f32 %v926
  %vm1148 = vweird.f32 %v1141
  %vm1149 = vmor %vm1147, %vm1148
  %v1150 = vsel %vm1149, %v1141, %v1146
  %v1151 = vrsqrt.pop %v927
  %v1152 = vmul.f32 %v1151, %v927
  %v1153 = vmul.f32 %v1152, %v1151
  %v1154 = vmul.f32 0.5, %v1153
  %v1155 = vsub.f32 1.5, %v1154
  %v1156 = vmul.f32 %v1151, %v1155
  %vm1157 = vweird.f32 %v927
  %vm1158 = vweird.f32 %v1151
  %vm1159 = vmor %vm1157, %vm1158
  %v1160 = vsel %vm1159, %v1151, %v1156
  %v1161 = vrsqrt.pop %v928
  %v1162 = vmul.f32 %v1161, %v928
  %v1163 = vmul.f32 %v1162, %v1161
  %v1164 = vmul.f32 0.5, %v1163
  %v1165 = vsub.f32 1.5, %v1164
  %v1166 = vmul.f32 %v1161, %v1165
  %vm1167 = vweird.f32 %v928
  %vm1168 = vweird.f32 %v1161
  %vm1169 = vmor %vm1167, %vm1168
  %v1170 = vsel %vm1169, %v1161, %v1166
  %v1171 = vrsqrt.pop %v929
  %v1172 = vmul.f32 %v1171, %v929
  %v1173 = vmul.f32 %v1172, %v1171
  %v1174 = vmul.f32 0.5, %v1173
  %v1175 = vsub.f32 1.5, %v1174
  %v1176 = vmul.f32 %v1171, %v1175
  %vm1177 = vweird.f32 %v929
  %vm1178 = vweird.f32 %v1171
  %vm1179 = vmor %vm1177, %vm1178
  %v1180 = vsel %vm1179, %v1171, %v1176
  %v1181 = vrsqrt.pop %v930
  %v1182 = vmul.f32 %v1181, %v930
  %v1183 = vmul.f32 %v1182, %v1181
  %v1184 = vmul.f32 0.5, %v1183
  %v1185 = vsub.f32 1.5, %v1184
  %v1186 = vmul.f32 %v1181, %v1185
  %vm1187 = vweird.f32 %v930
  %vm1188 = vweird.f32 %v1181
  %vm1189 = vmor %vm1187, %vm1188
  %v1190 = vsel %vm1189, %v1181, %v1186
  %v1191 = vrsqrt.pop %v931
  %v1192 = vmul.f32 %v1191, %v931
  %v1193 = vmul.f32 %v1192, %v1191
  %v1194 = vmul.f32 0.5, %v1193
  %v1195 = vsub.f32 1.5, %v1194
  %v1196 = vmul.f32 %v1191, %v1195
  %vm1197 = vweird.f32 %v931
  %vm1198 = vweird.f32 %v1191
  %vm1199 = vmor %vm1197, %vm1198
  %v1200 = vsel %vm1199, %v1191, %v1196
  %v1201 = vrsqrt.pop %v932
  %v1202 = vmul.f32 %v1201, %v932
  %v1203 = vmul.f32 %v1202, %v1201
  %v1204 = vmul.f32 0.5, %v1203
  %v1205 = vsub.f32 1.5, %v1204
  %v1206 = vmul.f32 %v1201, %v1205
  %vm1207 = vweird.f32 %v932
  %vm1208 = vweird.f32 %v1201
  %vm1209 = vmor %vm1207, %vm1208
  %v1210 = vsel %vm1209, %v1201, %v1206
  %v1211 = vrsqrt.pop %v933
  %v1212 = vmul.f32 %v1211, %v933
  %v1213 = vmul.f32 %v1212, %v1211
  %v1214 = vmul.f32 0.5, %v1213
  %v1215 = vsub.f32 1.5, %v1214
  %v1216 = vmul.f32 %v1211, %v1215
  %vm1217 = vweird.f32 %v933
  %vm1218 = vweird.f32 %v1211
  %vm1219 = vmor %vm1217, %vm1218
  %v1220 = vsel %vm1219, %v1211, %v1216
  %v1221 = vrsqrt.pop %v934
  %v1222 = vmul.f32 %v1221, %v934
  %v1223 = vmul.f32 %v1222, %v1221
  %v1224 = vmul.f32 0.5, %v1223
  %v1225 = vsub.f32 1.5, %v1224
  %v1226 = vmul.f32 %v1221, %v1225
  %vm1227 = vweird.f32 %v934
  %vm1228 = vweird.f32 %v1221
  %vm1229 = vmor %vm1227, %vm1228
  %v1230 = vsel %vm1229, %v1221, %v1226
  %v1231 = vrsqrt.pop %v935
  %v1232 = vmul.f32 %v1231, %v935
  %v1233 = vmul.f32 %v1232, %v1231
  %v1234 = vmul.f32 0.5, %v1233
  %v1235 = vsub.f32 1.5, %v1234
  %v1236 = vmul.f32 %v1231, %v1235
  %vm1237 = vweird.f32 %v935
  %vm1238 = vweird.f32 %v1231
  %vm1239 = vmor %vm1237, %vm1238
  %v1240 = vsel %vm1239, %v1231, %v1236
  %v1241 = vrsqrt.pop %v936
  %v1242 = vmul.f32 %v1241, %v936
  %v1243 = vmul.f32 %v1242, %v1241
  %v1244 = vmul.f32 0.5, %v1243
  %v1245 = vsub.f32 1.5, %v1244
  %v1246 = vmul.f32 %v1241, %v1245
  %vm1247 = vweird.f32 %v936
  %vm1248 = vweird.f32 %v1241
  %vm1249 = vmor %vm1247, %vm1248
  %v1250 = vsel %vm1249, %v1241, %v1246
  %v1251 = vrsqrt.pop %v937
  %v1252 = vmul.f32 %v1251, %v937
  %v1253 = vmul.f32 %v1252, %v1251
  %v1254 = vmul.f32 0.5, %v1253
  %v1255 = vsub.f32 1.5, %v1254
  %v1256 = vmul.f32 %v1251, %v1255
  %vm1257 = vweird.f32 %v937
  %vm1258 = vweird.f32 %v1251
  %vm1259 = vmor %vm1257, %vm1258
  %v1260 = vsel %vm1259, %v1251, %v1256
  %v1261 = vrsqrt.pop %v938
  %v1262 = vmul.f32 %v1261, %v938
  %v1263 = vmul.f32 %v1262, %v1261
  %v1264 = vmul.f32 0.5, %v1263
  %v1265 = vsub.f32 1.5, %v1264
  %v1266 = vmul.f32 %v1261, %v1265
  %vm1267 = vweird.f32 %v938
  %vm1268 = vweird.f32 %v1261
  %vm1269 = vmor %vm1267, %vm1268
  %v1270 = vsel %vm1269, %v1261, %v1266
  %v1271 = vrsqrt.pop %v939
  %v1272 = vmul.f32 %v1271, %v939
  %v1273 = vmul.f32 %v1272, %v1271
  %v1274 = vmul.f32 0.5, %v1273
  %v1275 = vsub.f32 1.5, %v1274
  %v1276 = vmul.f32 %v1271, %v1275
  %vm1277 = vweird.f32 %v939
  %vm1278 = vweird.f32 %v1271
  %vm1279 = vmor %vm1277, %vm1278
  %v1280 = vsel %vm1279, %v1271, %v1276
  %v1281 = vrsqrt.pop %v940
  %v1282 = vmul.f32 %v1281, %v940
  %v1283 = vmul.f32 %v1282, %v1281
  %v1284 = vmul.f32 0.5, %v1283
  %v1285 = vsub.f32 1.5, %v1284
  %v1286 = vmul.f32 %v1281, %v1285
  %vm1287 = vweird.f32 %v940
  %vm1288 = vweird.f32 %v1281
  %vm1289 = vmor %vm1287, %vm1288
  %v1290 = vsel %vm1289, %v1281, %v1286
  %v1291 = vrsqrt.pop %v941
  %v1292 = vmul.f32 %v1291, %v941
  %v1293 = vmul.f32 %v1292, %v1291
  %v1294 = vmul.f32 0.5, %v1293
  %v1295 = vsub.f32 1.5, %v1294
  %v1296 = vmul.f32 %v1291, %v1295
  %vm1297 = vweird.f32 %v941
  %vm1298 = vweird.f32 %v1291
  %vm1299 = vmor %vm1297, %vm1298
  %v1300 = vsel %vm1299, %v1291, %v1296
  %v1301 = vrsqrt.pop %v942
  %v1302 = vmul.f32 %v1301, %v942
  %v1303 = vmul.f32 %v1302, %v1301
  %v1304 = vmul.f32 0.5, %v1303
  %v1305 = vsub.f32 1.5, %v1304
  %v1306 = vmul.f32 %v1301, %v1305
  %vm1307 = vweird.f32 %v942
  %vm1308 = vweird.f32 %v1301
  %vm1309 = vmor %vm1307, %vm1308
  %v1310 = vsel %vm1309, %v1301, %v1306
  %v1311 = vrsqrt.pop %v943
  %v1312 = vmul.f32 %v1311, %v943
  %v1313 = vmul.f32 %v1312, %v1311
  %v1314 = vmul.f32 0.5, %v1313
  %v1315 = vsub.f32 1.5, %v1314
  %v1316 = vmul.f32 %v1311, %v1315
  %vm1317 = vweird.f32 %v943
  %vm1318 = vweird.f32 %v1311
  %vm1319 = vmor %vm1317, %vm1318
  %v1320 = vsel %vm1319, %v1311, %v1316
  %v1321 = vrsqrt.pop %v944
  %v1322 = vmul.f32 %v1321, %v944
  %v1323 = vmul.f32 %v1322, %v1321
  %v1324 = vmul.f32 0.5, %v1323
  %v1325 = vsub.f32 1.5, %v1324
  %v1326 = vmul.f32 %v1321, %v1325
  %vm1327 = vweird.f32 %v944
  %vm1328 = vweird.f32 %v1321
  %vm1329 = vmor %vm1327, %vm1328
  %v1330 = vsel %vm1329, %v1321, %v1326
  %v1331 = vrsqrt.pop %v945
  %v1332 = vmul.f32 %v1331, %v945
  %v1333 = vmul.f32 %v1332, %v1331
  %v1334 = vmul.f32 0.5, %v1333
  %v1335 = vsub.f32 1.5, %v1334
  %v1336 = vmul.f32 %v1331, %v1335
  %vm1337 = vweird.f32 %v945
  %vm1338 = vweird.f32 %v1331
  %vm1339 = vmor %vm1337, %vm1338
  %v1340 = vsel %vm1339, %v1331, %v1336
  %v1341 = vrsqrt.pop %v946
  %v1342 = vmul.f32 %v1341, %v946
  %v1343 = vmul.f32 %v1342, %v1341
  %v1344 = vmul.f32 0.5, %v1343
  %v1345 = vsub.f32 1.5, %v1344
  %v1346 = vmul.f32 %v1341, %v1345
  %vm1347 = vweird.f32 %v946
  %vm1348 = vweird.f32 %v1341
  %vm1349 = vmor %vm1347, %vm1348
  %v1350 = vsel %vm1349, %v1341, %v1346
  %v1351 = vrsqrt.pop %v947
  %v1352 = vmul.f32 %v1351, %v947
  %v1353 = vmul.f32 %v1352, %v1351
  %v1354 = vmul.f32 0.5, %v1353
  %v1355 = vsub.f32 1.5, %v1354
  %v1356 = vmul.f32 %v1351, %v1355
  %vm1357 = vweird.f32 %v947
  %vm1358 = vweird.f32 %v1351
  %vm1359 = vmor %vm1357, %vm1358
  %v1360 = vsel %vm1359, %v1351, %v1356
  %v1361 = vrsqrt.pop %v948
  %v1362 = vmul.f32 %v1361, %v948
  %v1363 = vmul.f32 %v1362, %v1361
  %v1364 = vmul.f32 0.5, %v1363
  %v1365 = vsub.f32 1.5, %v1364
  %v1366 = vmul.f32 %v1361, %v1365
  %vm1367 = vweird.f32 %v948
  %vm1368 = vweird.f32 %v1361
  %vm1369 = vmor %vm1367, %vm1368
  %v1370 = vsel %vm1369, %v1361, %v1366
  %v1371 = vrsqrt.pop %v949
  %v1372 = vmul.f32 %v1371, %v949
  %v1373 = vmul.f32 %v1372, %v1371
  %v1374 = vmul.f32 0.5, %v1373
  %v1375 = vsub.f32 1.5, %v1374
  %v1376 = vmul.f32 %v1371, %v1375
  %vm1377 = vweird.f32 %v949
  %vm1378 = vweird.f32 %v1371
  %vm1379 = vmor %vm1377, %vm1378
  %v1380 = vsel %vm1379, %v1371, %v1376
  %v1381 = vrsqrt.pop %v950
  %v1382 = vmul.f32 %v1381, %v950
  %v1383 = vmul.f32 %v1382, %v1381
  %v1384 = vmul.f32 0.5, %v1383
  %v1385 = vsub.f32 1.5, %v1384
  %v1386 = vmul.f32 %v1381, %v1385
  %vm1387 = vweird.f32 %v950
  %vm1388 = vweird.f32 %v1381
  %vm1389 = vmor %vm1387, %vm1388
  %v1390 = vsel %vm1389, %v1381, %v1386
  %v1391 = vrsqrt.pop %v951
  %v1392 = vmul.f32 %v1391, %v951
  %v1393 = vmul.f32 %v1392, %v1391
  %v1394 = vmul.f32 0.5, %v1393
  %v1395 = vsub.f32 1.5, %v1394
  %v1396 = vmul.f32 %v1391, %v1395
  %vm1397 = vweird.f32 %v951
  %vm1398 = vweird.f32 %v1391
  %vm1399 = vmor %vm1397, %vm1398
  %v1400 = vsel %vm1399, %v1391, %v1396
  %v1401 = vrsqrt.pop %v952
  %v1402 = vmul.f32 %v1401, %v952
  %v1403 = vmul.f32 %v1402, %v1401
  %v1404 = vmul.f32 0.5, %v1403
  %v1405 = vsub.f32 1.5, %v1404
  %v1406 = vmul.f32 %v1401, %v1405
  %vm1407 = vweird.f32 %v952
  %vm1408 = vweird.f32 %v1401
  %vm1409 = vmor %vm1407, %vm1408
  %v1410 = vsel %vm1409, %v1401, %v1406
  %v1411 = vrsqrt.pop %v953
  %v1412 = vmul.f32 %v1411, %v953
  %v1413 = vmul.f32 %v1412, %v1411
  %v1414 = vmul.f32 0.5, %v1413
  %v1415 = vsub.f32 1.5, %v1414
  %v1416 = vmul.f32 %v1411, %v1415
  %vm1417 = vweird.f32 %v953
  %vm1418 = vweird.f32 %v1411
  %vm1419 = vmor %vm1417, %vm1418
  %v1420 = vsel %vm1419, %v1411, %v1416
  %v1421 = vrsqrt.pop %v954
  %v1422 = vmul.f32 %v1421, %v954
  %v1423 = vmul.f32 %v1422, %v1421
  %v1424 = vmul.f32 0.5, %v1423
  %v1425 = vsub.f32 1.5, %v1424
  %v1426 = vmul.f32 %v1421, %v1425
  %vm1427 = vweird.f32 %v954
  %vm1428 = vweird.f32 %v1421
  %vm1429 = vmor %vm1427, %vm1428
  %v1430 = vsel %vm1429, %v1421, %v1426
  %v1431 = vrsqrt.pop %v955
  %v1432 = vmul.f32 %v1431, %v955
  %v1433 = vmul.f32 %v1432, %v1431
  %v1434 = vmul.f32 0.5, %v1433
  %v1435 = vsub.f32 1.5, %v1434
  %v1436 = vmul.f32 %v1431, %v1435
  %vm1437 = vweird.f32 %v955
  %vm1438 = vweird.f32 %v1431
  %vm1439 = vmor %vm1437, %vm1438
  %v1440 = vsel %vm1439, %v1431, %v1436
  %v1441 = vrsqrt.pop %v956
  %v1442 = vmul.f32 %v1441, %v956
  %v1443 = vmul.f32 %v1442, %v1441
  %v1444 = vmul.f32 0.5, %v1443
  %v1445 = vsub.f32 1.5, %v1444
  %v1446 = vmul.f32 %v1441, %v1445
  %vm1447 = vweird.f32 %v956
  %vm1448 = vweird.f32 %v1441
  %vm1449 = vmor %vm1447, %vm1448
  %v1450 = vsel %vm1449, %v1441, %v1446
  %v1451 = vrsqrt.pop %v957
  %v1452 = vmul.f32 %v1451, %v957
  %v1453 = vmul.f32 %v1452, %v1451
  %v1454 = vmul.f32 0.5, %v1453
  %v1455 = vsub.f32 1.5, %v1454
  %v1456 = vmul.f32 %v1451, %v1455
  %vm1457 = vweird.f32 %v957
  %vm1458 = vweird.f32 %v1451
  %vm1459 = vmor %vm1457, %vm1458
  %v1460 = vsel %vm1459, %v1451, %v1456
  %v1461 = vrsqrt.pop %v958
  %v1462 = vmul.f32 %v1461, %v958
  %v1463 = vmul.f32 %v1462, %v1461
  %v1464 = vmul.f32 0.5, %v1463
  %v1465 = vsub.f32 1.5, %v1464
  %v1466 = vmul.f32 %v1461, %v1465
  %vm1467 = vweird.f32 %v958
  %vm1468 = vweird.f32 %v1461
  %vm1469 = vmor %vm1467, %vm1468
  %v1470 = vsel %vm1469, %v1461, %v1466
  %v1471 = vrsqrt.pop %v959
  %v1472 = vmul.f32 %v1471, %v959
  %v1473 = vmul.f32 %v1472, %v1471
  %v1474 = vmul.f32 0.5, %v1473
  %v1475 = vsub.f32 1.5, %v1474
  %v1476 = vmul.f32 %v1471, %v1475
  %vm1477 = vweird.f32 %v959
  %vm1478 = vweird.f32 %v1471
  %vm1479 = vmor %vm1477, %vm1478
  %v1480 = vsel %vm1479, %v1471, %v1476
  %v1481 = vrsqrt.pop %v960
  %v1482 = vmul.f32 %v1481, %v960
  %v1483 = vmul.f32 %v1482, %v1481
  %v1484 = vmul.f32 0.5, %v1483
  %v1485 = vsub.f32 1.5, %v1484
  %v1486 = vmul.f32 %v1481, %v1485
  %vm1487 = vweird.f32 %v960
  %vm1488 = vweird.f32 %v1481
  %vm1489 = vmor %vm1487, %vm1488
  %v1490 = vsel %vm1489, %v1481, %v1486
  %v1491 = vrsqrt.pop %v961
  %v1492 = vmul.f32 %v1491, %v961
  %v1493 = vmul.f32 %v1492, %v1491
  %v1494 = vmul.f32 0.5, %v1493
  %v1495 = vsub.f32 1.5, %v1494
  %v1496 = vmul.f32 %v1491, %v1495
  %vm1497 = vweird.f32 %v961
  %vm1498 = vweird.f32 %v1491
  %vm1499 = vmor %vm1497, %vm1498
  %v1500 = vsel %vm1499, %v1491, %v1496
  %v1501 = vrsqrt.pop %v962
  %v1502 = vmul.f32 %v1501, %v962
  %v1503 = vmul.f32 %v1502, %v1501
  %v1504 = vmul.f32 0.5, %v1503
  %v1505 = vsub.f32 1.5, %v1504
  %v1506 = vmul.f32 %v1501, %v1505
  %vm1507 = vweird.f32 %v962
  %vm1508 = vweird.f32 %v1501
  %vm1509 = vmor %vm1507, %vm1508
  %v1510 = vsel %vm1509, %v1501, %v1506
  %v1511 = vrsqrt.pop %v963
  %v1512 = vmul.f32 %v1511, %v963
  %v1513 = vmul.f32 %v1512, %v1511
  %v1514 = vmul.f32 0.5, %v1513
  %v1515 = vsub.f32 1.5, %v1514
  %v1516 = vmul.f32 %v1511, %v1515
  %vm1517 = vweird.f32 %v963
  %vm1518 = vweird.f32 %v1511
  %vm1519 = vmor %vm1517, %vm1518
  %v1520 = vsel %vm1519, %v1511, %v1516
  %v1521 = vrsqrt.pop %v964
  %v1522 = vmul.f32 %v1521, %v964
  %v1523 = vmul.f32 %v1522, %v1521
  %v1524 = vmul.f32 0.5, %v1523
  %v1525 = vsub.f32 1.5, %v1524
  %v1526 = vmul.f32 %v1521, %v1525
  %vm1527 = vweird.f32 %v964
  %vm1528 = vweird.f32 %v1521
  %vm1529 = vmor %vm1527, %vm1528
  %v1530 = vsel %vm1529, %v1521, %v1526
  %v1531 = vrsqrt.pop %v965
  %v1532 = vmul.f32 %v1531, %v965
  %v1533 = vmul.f32 %v1532, %v1531
  %v1534 = vmul.f32 0.5, %v1533
  %v1535 = vsub.f32 1.5, %v1534
  %v1536 = vmul.f32 %v1531, %v1535
  %vm1537 = vweird.f32 %v965
  %vm1538 = vweird.f32 %v1531
  %vm1539 = vmor %vm1537, %vm1538
  %v1540 = vsel %vm1539, %v1531, %v1536
  %v1541 = vrsqrt.pop %v966
  %v1542 = vmul.f32 %v1541, %v966
  %v1543 = vmul.f32 %v1542, %v1541
  %v1544 = vmul.f32 0.5, %v1543
  %v1545 = vsub.f32 1.5, %v1544
  %v1546 = vmul.f32 %v1541, %v1545
  %vm1547 = vweird.f32 %v966
  %vm1548 = vweird.f32 %v1541
  %vm1549 = vmor %vm1547, %vm1548
  %v1550 = vsel %vm1549, %v1541, %v1546
  %v1551 = vrsqrt.pop %v967
  %v1552 = vmul.f32 %v1551, %v967
  %v1553 = vmul.f32 %v1552, %v1551
  %v1554 = vmul.f32 0.5, %v1553
  %v1555 = vsub.f32 1.5, %v1554
  %v1556 = vmul.f32 %v1551, %v1555
  %vm1557 = vweird.f32 %v967
  %vm1558 = vweird.f32 %v1551
  %vm1559 = vmor %vm1557, %vm1558
  %v1560 = vsel %vm1559, %v1551, %v1556
  %v1561 = vrsqrt.pop %v968
  %v1562 = vmul.f32 %v1561, %v968
  %v1563 = vmul.f32 %v1562, %v1561
  %v1564 = vmul.f32 0.5, %v1563
  %v1565 = vsub.f32 1.5, %v1564
  %v1566 = vmul.f32 %v1561, %v1565
  %vm1567 = vweird.f32 %v968
  %vm1568 = vweird.f32 %v1561
  %vm1569 = vmor %vm1567, %vm1568
  %v1570 = vsel %vm1569, %v1561, %v1566
  %v1571 = vrsqrt.pop %v969
  %v1572 = vmul.f32 %v1571, %v969
  %v1573 = vmul.f32 %v1572, %v1571
  %v1574 = vmul.f32 0.5, %v1573
  %v1575 = vsub.f32 1.5, %v1574
  %v1576 = vmul.f32 %v1571, %v1575
  %vm1577 = vweird.f32 %v969
  %vm1578 = vweird.f32 %v1571
  %vm1579 = vmor %vm1577, %vm1578
  %v1580 = vsel %vm1579, %v1571, %v1576
  %v1581 = vrsqrt.pop %v970
  %v1582 = vmul.f32 %v1581, %v970
  %v1583 = vmul.f32 %v1582, %v1581
  %v1584 = vmul.f32 0.5, %v1583
  %v1585 = vsub.f32 1.5, %v1584
  %v1586 = vmul.f32 %v1581, %v1585
  %vm1587 = vweird.f32 %v970
  %vm1588 = vweird.f32 %v1581
  %vm1589 = vmor %vm1587, %vm1588
  %v1590 = vsel %vm1589, %v1581, %v1586
  %v1591 = vrsqrt.pop %v971
  %v1592 = vmul.f32 %v1591, %v971
  %v1593 = vmul.f32 %v1592, %v1591
  %v1594 = vmul.f32 0.5, %v1593
  %v1595 = vsub.f32 1.5, %v1594
  %v1596 = vmul.f32 %v1591, %v1595
  %vm1597 = vweird.f32 %v971
  %vm1598 = vweird.f32 %v1591
  %vm1599 = vmor %vm1597, %vm1598
  %v1600 = vsel %vm1599, %v1591, %v1596
  %v1601 = vrsqrt.pop %v972
  %v1602 = vmul.f32 %v1601, %v972
  %v1603 = vmul.f32 %v1602, %v1601
  %v1604 = vmul.f32 0.5, %v1603
  %v1605 = vsub.f32 1.5, %v1604
  %v1606 = vmul.f32 %v1601, %v1605
  %vm1607 = vweird.f32 %v972
  %vm1608 = vweird.f32 %v1601
  %vm1609 = vmor %vm1607, %vm1608
  %v1610 = vsel %vm1609, %v1601, %v1606
  %v1611 = vrsqrt.pop %v973
  %v1612 = vmul.f32 %v1611, %v973
  %v1613 = vmul.f32 %v1612, %v1611
  %v1614 = vmul.f32 0.5, %v1613
  %v1615 = vsub.f32 1.5, %v1614
  %v1616 = vmul.f32 %v1611, %v1615
  %vm1617 = vweird.f32 %v973
  %vm1618 = vweird.f32 %v1611
  %vm1619 = vmor %vm1617, %vm1618
  %v1620 = vsel %vm1619, %v1611, %v1616
  %v1621 = vrsqrt.pop %v974
  %v1622 = vmul.f32 %v1621, %v974
  %v1623 = vmul.f32 %v1622, %v1621
  %v1624 = vmul.f32 0.5, %v1623
  %v1625 = vsub.f32 1.5, %v1624
  %v1626 = vmul.f32 %v1621, %v1625
  %vm1627 = vweird.f32 %v974
  %vm1628 = vweird.f32 %v1621
  %vm1629 = vmor %vm1627, %vm1628
  %v1630 = vsel %vm1629, %v1621, %v1626
  %v1631 = vrsqrt.pop %v975
  %v1632 = vmul.f32 %v1631, %v975
  %v1633 = vmul.f32 %v1632, %v1631
  %v1634 = vmul.f32 0.5, %v1633
  %v1635 = vsub.f32 1.5, %v1634
  %v1636 = vmul.f32 %v1631, %v1635
  %vm1637 = vweird.f32 %v975
  %vm1638 = vweird.f32 %v1631
  %vm1639 = vmor %vm1637, %vm1638
  %v1640 = vsel %vm1639, %v1631, %v1636
  %v1641 = vrsqrt.pop %v976
  %v1642 = vmul.f32 %v1641, %v976
  %v1643 = vmul.f32 %v1642, %v1641
  %v1644 = vmul.f32 0.5, %v1643
  %v1645 = vsub.f32 1.5, %v1644
  %v1646 = vmul.f32 %v1641, %v1645
  %vm1647 = vweird.f32 %v976
  %vm1648 = vweird.f32 %v1641
  %vm1649 = vmor %vm1647, %vm1648
  %v1650 = vsel %vm1649, %v1641, %v1646
  %v1651 = vrsqrt.pop %v977
  %v1652 = vmul.f32 %v1651, %v977
  %v1653 = vmul.f32 %v1652, %v1651
  %v1654 = vmul.f32 0.5, %v1653
  %v1655 = vsub.f32 1.5, %v1654
  %v1656 = vmul.f32 %v1651, %v1655
  %vm1657 = vweird.f32 %v977
  %vm1658 = vweird.f32 %v1651
  %vm1659 = vmor %vm1657, %vm1658
  %v1660 = vsel %vm1659, %v1651, %v1656
  %v1661 = vrsqrt.pop %v978
  %v1662 = vmul.f32 %v1661, %v978
  %v1663 = vmul.f32 %v1662, %v1661
  %v1664 = vmul.f32 0.5, %v1663
  %v1665 = vsub.f32 1.5, %v1664
  %v1666 = vmul.f32 %v1661, %v1665
  %vm1667 = vweird.f32 %v978
  %vm1668 = vweird.f32 %v1661
  %vm1669 = vmor %vm1667, %vm1668
  %v1670 = vsel %vm1669, %v1661, %v1666
  %v1671 = vrsqrt.pop %v979
  %v1672 = vmul.f32 %v1671, %v979
  %v1673 = vmul.f32 %v1672, %v1671
  %v1674 = vmul.f32 0.5, %v1673
  %v1675 = vsub.f32 1.5, %v1674
  %v1676 = vmul.f32 %v1671, %v1675
  %vm1677 = vweird.f32 %v979
  %vm1678 = vweird.f32 %v1671
  %vm1679 = vmor %vm1677, %vm1678
  %v1680 = vsel %vm1679, %v1671, %v1676
  %v1681 = vrsqrt.pop %v980
  %v1682 = vmul.f32 %v1681, %v980
  %v1683 = vmul.f32 %v1682, %v1681
  %v1684 = vmul.f32 0.5, %v1683
  %v1685 = vsub.f32 1.5, %v1684
  %v1686 = vmul.f32 %v1681, %v1685
  %vm1687 = vweird.f32 %v980
  %vm1688 = vweird.f32 %v1681
  %vm1689 = vmor %vm1687, %vm1688
  %v1690 = vsel %vm1689, %v1681, %v1686
  %v1691 = vrsqrt.pop %v981
  %v1692 = vmul.f32 %v1691, %v981
  %v1693 = vmul.f32 %v1692, %v1691
  %v1694 = vmul.f32 0.5, %v1693
  %v1695 = vsub.f32 1.5, %v1694
  %v1696 = vmul.f32 %v1691, %v1695
  %vm1697 = vweird.f32 %v981
  %vm1698 = vweird.f32 %v1691
  %vm1699 = vmor %vm1697, %vm1698
  %v1700 = vsel %vm1699, %v1691, %v1696
  %v1701 = vrsqrt.pop %v982
  %v1702 = vmul.f32 %v1701, %v982
  %v1703 = vmul.f32 %v1702, %v1701
  %v1704 = vmul.f32 0.5, %v1703
  %v1705 = vsub.f32 1.5, %v1704
  %v1706 = vmul.f32 %v1701, %v1705
  %vm1707 = vweird.f32 %v982
  %vm1708 = vweird.f32 %v1701
  %vm1709 = vmor %vm1707, %vm1708
  %v1710 = vsel %vm1709, %v1701, %v1706
  %v1711 = vrsqrt.pop %v983
  %v1712 = vmul.f32 %v1711, %v983
  %v1713 = vmul.f32 %v1712, %v1711
  %v1714 = vmul.f32 0.5, %v1713
  %v1715 = vsub.f32 1.5, %v1714
  %v1716 = vmul.f32 %v1711, %v1715
  %vm1717 = vweird.f32 %v983
  %vm1718 = vweird.f32 %v1711
  %vm1719 = vmor %vm1717, %vm1718
  %v1720 = vsel %vm1719, %v1711, %v1716
  %v1721 = vrsqrt.pop %v984
  %v1722 = vmul.f32 %v1721, %v984
  %v1723 = vmul.f32 %v1722, %v1721
  %v1724 = vmul.f32 0.5, %v1723
  %v1725 = vsub.f32 1.5, %v1724
  %v1726 = vmul.f32 %v1721, %v1725
  %vm1727 = vweird.f32 %v984
  %vm1728 = vweird.f32 %v1721
  %vm1729 = vmor %vm1727, %vm1728
  %v1730 = vsel %vm1729, %v1721, %v1726
  %v1731 = vrsqrt.pop %v985
  %v1732 = vmul.f32 %v1731, %v985
  %v1733 = vmul.f32 %v1732, %v1731
  %v1734 = vmul.f32 0.5, %v1733
  %v1735 = vsub.f32 1.5, %v1734
  %v1736 = vmul.f32 %v1731, %v1735
  %vm1737 = vweird.f32 %v985
  %vm1738 = vweird.f32 %v1731
  %vm1739 = vmor %vm1737, %vm1738
  %v1740 = vsel %vm1739, %v1731, %v1736
  %v1741 = vrsqrt.pop %v986
  %v1742 = vmul.f32 %v1741, %v986
  %v1743 = vmul.f32 %v1742, %v1741
  %v1744 = vmul.f32 0.5, %v1743
  %v1745 = vsub.f32 1.5, %v1744
  %v1746 = vmul.f32 %v1741, %v1745
  %vm1747 = vweird.f32 %v986
  %vm1748 = vweird.f32 %v1741
  %vm1749 = vmor %vm1747, %vm1748
  %v1750 = vsel %vm1749, %v1741, %v1746
  %v1751 = vrsqrt.pop %v987
  %v1752 = vmul.f32 %v1751, %v987
  %v1753 = vmul.f32 %v1752, %v1751
  %v1754 = vmul.f32 0.5, %v1753
  %v1755 = vsub.f32 1.5, %v1754
  %v1756 = vmul.f32 %v1751, %v1755
  %vm1757 = vweird.f32 %v987
  %vm1758 = vweird.f32 %v1751
  %vm1759 = vmor %vm1757, %vm1758
  %v1760 = vsel %vm1759, %v1751, %v1756
  %v1761 = vrsqrt.pop %v988
  %v1762 = vmul.f32 %v1761, %v988
  %v1763 = vmul.f32 %v1762, %v1761
  %v1764 = vmul.f32 0.5, %v1763
  %v1765 = vsub.f32 1.5, %v1764
  %v1766 = vmul.f32 %v1761, %v1765
  %vm1767 = vweird.f32 %v988
  %vm1768 = vweird.f32 %v1761
  %vm1769 = vmor %vm1767, %vm1768
  %v1770 = vsel %vm1769, %v1761, %v1766
  %v1771 = vrsqrt.pop %v989
  %v1772 = vmul.f32 %v1771, %v989
  %v1773 = vmul.f32 %v1772, %v1771
  %v1774 = vmul.f32 0.5, %v1773
  %v1775 = vsub.f32 1.5, %v1774
  %v1776 = vmul.f32 %v1771, %v1775
  %vm1777 = vweird.f32 %v989
  %vm1778 = vweird.f32 %v1771
  %vm1779 = vmor %vm1777, %vm1778
  %v1780 = vsel %vm1779, %v1771, %v1776
  %v1781 = vrsqrt.pop %v990
  %v1782 = vmul.f32 %v1781, %v990
  %v1783 = vmul.f32 %v1782, %v1781
  %v1784 = vmul.f32 0.5, %v1783
  %v1785 = vsub.f32 1.5, %v1784
  %v1786 = vmul.f32 %v1781, %v1785
  %vm1787 = vweird.f32 %v990
  %vm1788 = vweird.f32 %v1781
  %vm1789 = vmor %vm1787, %vm1788
  %v1790 = vsel %vm1789, %v1781, %v1786
  %v1791 = vmul.f32 %v431, %v1000
  %v1792 = vmul.f32 %v432, %v1010
  %v1793 = vmul.f32 %v433, %v1020
  %v1794 = vmul.f32 %v434, %v1030
  %v1795 = vmul.f32 %v435, %v1040
  %v1796 = vmul.f32 %v436, %v1050
  %v1797 = vmul.f32 %v437, %v1060
  %v1798 = vmul.f32 %v438, %v1070
  %v1799 = vmul.f32 %v439, %v1080
  %v1800 = vmul.f32 %v440, %v1090
  %v1801 = vmul.f32 %v441, %v1100
  %v1802 = vmul.f32 %v442, %v1110
  %v1803 = vmul.f32 %v443, %v1120
  %v1804 = vmul.f32 %v444, %v1130
  %v1805 = vmul.f32 %v445, %v1140
  %v1806 = vmul.f32 %v446, %v1150
  %v1807 = vmul.f32 %v447, %v1160
  %v1808 = vmul.f32 %v448, %v1170
  %v1809 = vmul.f32 %v449, %v1180
  %v1810 = vmul.f32 %v450, %v1190
  %v1811 = vmul.f32 %v451, %v1200
  %v1812 = vmul.f32 %v452, %v1210
  %v1813 = vmul.f32 %v453, %v1220
  %v1814 = vmul.f32 %v454, %v1230
  %v1815 = vmul.f32 %v455, %v1240
  %v1816 = vmul.f32 %v456, %v1250
  %v1817 = vmul.f32 %v457, %v1260
  %v1818 = vmul.f32 %v458, %v1270
  %v1819 = vmul.f32 %v459, %v1280
  %v1820 = vmul.f32 %v460, %v1290
  %v1821 = vmul.f32 %v461, %v1300
  %v1822 = vmul.f32 %v462, %v1310
  %v1823 = vmul.f32 %v463, %v1320
  %v1824 = vmul.f32 %v464, %v1330
  %v1825 = vmul.f32 %v465, %v1340
  %v1826 = vmul.f32 %v466, %v1350
  %v1827 = vmul.f32 %v467, %v1360
  %v1828 = vmul.f32 %v468, %v1370
  %v1829 = vmul.f32 %v469, %v1380
  %v1830 = vmul.f32 %v470, %v1390
  %v1831 = vmul.f32 %v471, %v1400
  %v1832 = vmul.f32 %v472, %v1410
  %v1833 = vmul.f32 %v473, %v1420
  %v1834 = vmul.f32 %v474, %v1430
  %v1835 = vmul.f32 %v475, %v1440
  %v1836 = vmul.f32 %v476, %v1450
  %v1837 = vmul.f32 %v477, %v1460
  %v1838 = vmul.f32 %v478, %v1470
  %v1839 = vmul.f32 %v479, %v1480
  %v1840 = vmul.f32 %v480, %v1490
  %v1841 = vmul.f32 %v481, %v1500
  %v1842 = vmul.f32 %v482, %v1510
  %v1843 = vmul.f32 %v483, %v1520
  %v1844 = vmul.f32 %v484, %v1530
  %v1845 = vmul.f32 %v485, %v1540
  %v1846 = vmul.f32 %v486, %v1550
  %v1847 = vmul.f32 %v487, %v1560
  %v1848 = vmul.f32 %v488, %v1570
  %v1849 = vmul.f32 %v489, %v1580
  %v1850 = vmul.f32 %v490, %v1590
  %v1851 = vmul.f32 %v491, %v1600
  %v1852 = vmul.f32 %v492, %v1610
  %v1853 = vmul.f32 %v493, %v1620
  %v1854 = vmul.f32 %v494, %v1630
  %v1855 = vmul.f32 %v495, %v1640
  %v1856 = vmul.f32 %v496, %v1650
  %v1857 = vmul.f32 %v497, %v1660
  %v1858 = vmul.f32 %v498, %v1670
  %v1859 = vmul.f32 %v499, %v1680
  %v1860 = vmul.f32 %v500, %v1690
  %v1861 = vmul.f32 %v501, %v1700
  %v1862 = vmul.f32 %v502, %v1710
  %v1863 = vmul.f32 %v503, %v1720
  %v1864 = vmul.f32 %v504, %v1730
  %v1865 = vmul.f32 %v505, %v1740
  %v1866 = vmul.f32 %v506, %v1750
  %v1867 = vmul.f32 %v507, %v1760
  %v1868 = vmul.f32 %v508, %v1770
  %v1869 = vmul.f32 %v509, %v1780
  %v1870 = vmul.f32 %v510, %v1790
  %v1871 = vld [vmem:[%s1] sm:$0xff]
  %v1872 = vld [vmem:[%s1 + $0x8] sm:$0xff]
  %v1873 = vld [vmem:[%s1 + $0x10] sm:$0xff]
  %v1874 = vld [vmem:[%s1 + $0x18] sm:$0xff]
  %v1875 = vld [vmem:[%s1 + $0x20] sm:$0xff]
  %v1876 = vld [vmem:[%s1 + $0x28] sm:$0xff]
  %v1877 = vld [vmem:[%s2] sm:$0x1]
  %v1879 = vperm.slane %v1877, 0
  %v1882 = vsel %vm103, %v1791, 0
  %v1885 = vsel %vm103, %v1792, 0
  %v1888 = vsel %vm103, %v1793, 0
  %v1891 = vsel %vm103, %v1794, 0
  %v1894 = vsel %vm103, %v1795, 0
  %v1897 = vsel %vm103, %v1796, 0
  %v1900 = vsel %vm103, %v1797, 0
  %v1903 = vsel %vm103, %v1798, 0
  %v1906 = vsel %vm103, %v1799, 0
  %v1909 = vsel %vm103, %v1800, 0
  %v1912 = vsel %vm103, %v1801, 0
  %v1915 = vsel %vm103, %v1802, 0
  %v1918 = vsel %vm103, %v1803, 0
  %v1921 = vsel %vm103, %v1804, 0
  %v1924 = vsel %vm103, %v1805, 0
  %v1927 = vsel %vm103, %v1806, 0
  %v1930 = vsel %vm103, %v1807, 0
  %v1933 = vsel %vm103, %v1808, 0
  %v1936 = vsel %vm103, %v1809, 0
  %v1939 = vsel %vm103, %v1810, 0
  %v1942 = vsel %vm103, %v1811, 0
  %v1945 = vsel %vm103, %v1812, 0
  %v1948 = vsel %vm103, %v1813, 0
  %v1951 = vsel %vm103, %v1814, 0
  %v1954 = vsel %vm103, %v1815, 0
  %v1957 = vsel %vm103, %v1816, 0
  %v1960 = vsel %vm103, %v1817, 0
  %v1963 = vsel %vm103, %v1818, 0
  %v1966 = vsel %vm103, %v1819, 0
  %v1969 = vsel %vm103, %v1820, 0
  %v1972 = vsel %vm103, %v1821, 0
  %v1975 = vsel %vm103, %v1822, 0
  %v1978 = vsel %vm103, %v1823, 0
  %v1981 = vsel %vm103, %v1824, 0
  %v1984 = vsel %vm103, %v1825, 0
  %v1987 = vsel %vm103, %v1826, 0
  %v1990 = vsel %vm103, %v1827, 0
  %v1993 = vsel %vm103, %v1828, 0
  %v1996 = vsel %vm103, %v1829, 0
  %v1999 = vsel %vm103, %v1830, 0
  %v2002 = vsel %vm103, %v1831, 0
  %v2005 = vsel %vm103, %v1832, 0
  %v2008 = vsel %vm103, %v1833, 0
  %v2011 = vsel %vm103, %v1834, 0
  %v2014 = vsel %vm103, %v1835, 0
  %v2017 = vsel %vm103, %v1836, 0
  %v2020 = vsel %vm103, %v1837, 0
  %v2023 = vsel %vm103, %v1838, 0
  %v2026 = vsel %vm103, %v1839, 0
  %v2029 = vsel %vm103, %v1840, 0
  %v2032 = vsel %vm103, %v1841, 0
  %v2035 = vsel %vm103, %v1842, 0
  %v2038 = vsel %vm103, %v1843, 0
  %v2041 = vsel %vm103, %v1844, 0
  %v2044 = vsel %vm103, %v1845, 0
  %v2047 = vsel %vm103, %v1846, 0
  %v2050 = vsel %vm103, %v1847, 0
  %v2053 = vsel %vm103, %v1848, 0
  %v2056 = vsel %vm103, %v1849, 0
  %v2059 = vsel %vm103, %v1850, 0
  %v2062 = vsel %vm103, %v1851, 0
  %v2065 = vsel %vm103, %v1852, 0
  %v2068 = vsel %vm103, %v1853, 0
  %v2071 = vsel %vm103, %v1854, 0
  %v2074 = vsel %vm103, %v1855, 0
  %v2077 = vsel %vm103, %v1856, 0
  %v2080 = vsel %vm103, %v1857, 0
  %v2083 = vsel %vm103, %v1858, 0
  %v2086 = vsel %vm103, %v1859, 0
  %v2089 = vsel %vm103, %v1860, 0
  %v2092 = vsel %vm103, %v1861, 0
  %v2095 = vsel %vm103, %v1862, 0
  %v2098 = vsel %vm103, %v1863, 0
  %v2101 = vsel %vm103, %v1864, 0
  %v2104 = vsel %vm103, %v1865, 0
  %v2107 = vsel %vm103, %v1866, 0
  %v2110 = vsel %vm103, %v1867, 0
  %v2113 = vsel %vm103, %v1868, 0
  %v2116 = vsel %vm103, %v1869, 0
  %v2119 = vsel %vm103, %v1870, 0
  %2121 = vmatpush.msra.mxu0 0.0
  %2122 = vmatpush.msra.mxu0 0.0
  %2123 = vmatpush.msra.mxu0 0.0
  %2124 = vmatpush.msra.mxu0 0.0
  %2125 = vmatpush.msra.mxu0 0.0
  %2126 = vmatpush.msra.mxu0 0.0
  %2127 = vmatpush.msra.mxu0 0.0
  %2128 = vmatpush.msra.mxu0 0.0
  %2129 = vmatpush.msra.mxu0 0.0
  %2130 = vmatpush.msra.mxu0 0.0
  %2131 = vmatpush.msra.mxu0 %v1876
  %2132 = vmatpush.msra.mxu0 %v1875
  %2133 = vmatpush.msra.mxu0 %v1874
  %2134 = vmatpush.msra.mxu0 %v1873
  %2135 = vmatpush.msra.mxu0 %v1872
  %2136 = vmatpush.msra.mxu0 %v1871
  %2137 = vmatmul.f32.gmra.mxu0 %v1882
  %v2138 = vpop.f32.mrf.mxu0
  %v2139 = vadd.f32 %v1879, %v2138
  %2140 = vmatmul.f32.gmra.mxu0 %v1885
  %v2141 = vpop.f32.mrf.mxu0
  %v2142 = vadd.f32 %v1879, %v2141
  %2143 = vmatmul.f32.gmra.mxu0 %v1888
  %v2144 = vpop.f32.mrf.mxu0
  %v2145 = vadd.f32 %v1879, %v2144
  %2146 = vmatmul.f32.gmra.mxu0 %v1891
  %v2147 = vpop.f32.mrf.mxu0
  %v2148 = vadd.f32 %v1879, %v2147
  %2149 = vmatmul.f32.gmra.mxu0 %v1894
  %v2150 = vpop.f32.mrf.mxu0
  %v2151 = vadd.f32 %v1879, %v2150
  %2152 = vmatmul.f32.gmra.mxu0 %v1897
  %v2153 = vpop.f32.mrf.mxu0
  %v2154 = vadd.f32 %v1879, %v2153
  %2155 = vmatmul.f32.gmra.mxu0 %v1900
  %v2156 = vpop.f32.mrf.mxu0
  %v2157 = vadd.f32 %v1879, %v2156
  %2158 = vmatmul.f32.gmra.mxu0 %v1903
  %v2159 = vpop.f32.mrf.mxu0
  %v2160 = vadd.f32 %v1879, %v2159
  %2161 = vmatmul.f32.gmra.mxu0 %v1906
  %v2162 = vpop.f32.mrf.mxu0
  %v2163 = vadd.f32 %v1879, %v2162
  %2164 = vmatmul.f32.gmra.mxu0 %v1909
  %v2165 = vpop.f32.mrf.mxu0
  %v2166 = vadd.f32 %v1879, %v2165
  %2167 = vmatmul.f32.gmra.mxu0 %v1912
  %v2168 = vpop.f32.mrf.mxu0
  %v2169 = vadd.f32 %v1879, %v2168
  %2170 = vmatmul.f32.gmra.mxu0 %v1915
  %v2171 = vpop.f32.mrf.mxu0
  %v2172 = vadd.f32 %v1879, %v2171
  %2173 = vmatmul.f32.gmra.mxu0 %v1918
  %v2174 = vpop.f32.mrf.mxu0
  %v2175 = vadd.f32 %v1879, %v2174
  %2176 = vmatmul.f32.gmra.mxu0 %v1921
  %v2177 = vpop.f32.mrf.mxu0
  %v2178 = vadd.f32 %v1879, %v2177
  %2179 = vmatmul.f32.gmra.mxu0 %v1924
  %v2180 = vpop.f32.mrf.mxu0
  %v2181 = vadd.f32 %v1879, %v2180
  %2182 = vmatmul.f32.gmra.mxu0 %v1927
  %v2183 = vpop.f32.mrf.mxu0
  %v2184 = vadd.f32 %v1879, %v2183
  %2185 = vmatmul.f32.gmra.mxu0 %v1930
  %v2186 = vpop.f32.mrf.mxu0
  %v2187 = vadd.f32 %v1879, %v2186
  %2188 = vmatmul.f32.gmra.mxu0 %v1933
  %v2189 = vpop.f32.mrf.mxu0
  %v2190 = vadd.f32 %v1879, %v2189
  %2191 = vmatmul.f32.gmra.mxu0 %v1936
  %v2192 = vpop.f32.mrf.mxu0
  %v2193 = vadd.f32 %v1879, %v2192
  %2194 = vmatmul.f32.gmra.mxu0 %v1939
  %v2195 = vpop.f32.mrf.mxu0
  %v2196 = vadd.f32 %v1879, %v2195
  %2197 = vmatmul.f32.gmra.mxu0 %v1942
  %v2198 = vpop.f32.mrf.mxu0
  %v2199 = vadd.f32 %v1879, %v2198
  %2200 = vmatmul.f32.gmra.mxu0 %v1945
  %v2201 = vpop.f32.mrf.mxu0
  %v2202 = vadd.f32 %v1879, %v2201
  %2203 = vmatmul.f32.gmra.mxu0 %v1948
  %v2204 = vpop.f32.mrf.mxu0
  %v2205 = vadd.f32 %v1879, %v2204
  %2206 = vmatmul.f32.gmra.mxu0 %v1951
  %v2207 = vpop.f32.mrf.mxu0
  %v2208 = vadd.f32 %v1879, %v2207
  %2209 = vmatmul.f32.gmra.mxu0 %v1954
  %v2210 = vpop.f32.mrf.mxu0
  %v2211 = vadd.f32 %v1879, %v2210
  %2212 = vmatmul.f32.gmra.mxu0 %v1957
  %v2213 = vpop.f32.mrf.mxu0
  %v2214 = vadd.f32 %v1879, %v2213
  %2215 = vmatmul.f32.gmra.mxu0 %v1960
  %v2216 = vpop.f32.mrf.mxu0
  %v2217 = vadd.f32 %v1879, %v2216
  %2218 = vmatmul.f32.gmra.mxu0 %v1963
  %v2219 = vpop.f32.mrf.mxu0
  %v2220 = vadd.f32 %v1879, %v2219
  %2221 = vmatmul.f32.gmra.mxu0 %v1966
  %v2222 = vpop.f32.mrf.mxu0
  %v2223 = vadd.f32 %v1879, %v2222
  %2224 = vmatmul.f32.gmra.mxu0 %v1969
  %v2225 = vpop.f32.mrf.mxu0
  %v2226 = vadd.f32 %v1879, %v2225
  %2227 = vmatmul.f32.gmra.mxu0 %v1972
  %v2228 = vpop.f32.mrf.mxu0
  %v2229 = vadd.f32 %v1879, %v2228
  %2230 = vmatmul.f32.gmra.mxu0 %v1975
  %v2231 = vpop.f32.mrf.mxu0
  %v2232 = vadd.f32 %v1879, %v2231
  %2233 = vmatmul.f32.gmra.mxu0 %v1978
  %v2234 = vpop.f32.mrf.mxu0
  %v2235 = vadd.f32 %v1879, %v2234
  %2236 = vmatmul.f32.gmra.mxu0 %v1981
  %v2237 = vpop.f32.mrf.mxu0
  %v2238 = vadd.f32 %v1879, %v2237
  %2239 = vmatmul.f32.gmra.mxu0 %v1984
  %v2240 = vpop.f32.mrf.mxu0
  %v2241 = vadd.f32 %v1879, %v2240
  %2242 = vmatmul.f32.gmra.mxu0 %v1987
  %v2243 = vpop.f32.mrf.mxu0
  %v2244 = vadd.f32 %v1879, %v2243
  %2245 = vmatmul.f32.gmra.mxu0 %v1990
  %v2246 = vpop.f32.mrf.mxu0
  %v2247 = vadd.f32 %v1879, %v2246
  %2248 = vmatmul.f32.gmra.mxu0 %v1993
  %v2249 = vpop.f32.mrf.mxu0
  %v2250 = vadd.f32 %v1879, %v2249
  %2251 = vmatmul.f32.gmra.mxu0 %v1996
  %v2252 = vpop.f32.mrf.mxu0
  %v2253 = vadd.f32 %v1879, %v2252
  %2254 = vmatmul.f32.gmra.mxu0 %v1999
  %v2255 = vpop.f32.mrf.mxu0
  %v2256 = vadd.f32 %v1879, %v2255
  %2257 = vmatmul.f32.gmra.mxu0 %v2002
  %v2258 = vpop.f32.mrf.mxu0
  %v2259 = vadd.f32 %v1879, %v2258
  %2260 = vmatmul.f32.gmra.mxu0 %v2005
  %v2261 = vpop.f32.mrf.mxu0
  %v2262 = vadd.f32 %v1879, %v2261
  %2263 = vmatmul.f32.gmra.mxu0 %v2008
  %v2264 = vpop.f32.mrf.mxu0
  %v2265 = vadd.f32 %v1879, %v2264
  %2266 = vmatmul.f32.gmra.mxu0 %v2011
  %v2267 = vpop.f32.mrf.mxu0
  %v2268 = vadd.f32 %v1879, %v2267
  %2269 = vmatmul.f32.gmra.mxu0 %v2014
  %v2270 = vpop.f32.mrf.mxu0
  %v2271 = vadd.f32 %v1879, %v2270
  %2272 = vmatmul.f32.gmra.mxu0 %v2017
  %v2273 = vpop.f32.mrf.mxu0
  %v2274 = vadd.f32 %v1879, %v2273
  %2275 = vmatmul.f32.gmra.mxu0 %v2020
  %v2276 = vpop.f32.mrf.mxu0
  %v2277 = vadd.f32 %v1879, %v2276
  %2278 = vmatmul.f32.gmra.mxu0 %v2023
  %v2279 = vpop.f32.mrf.mxu0
  %v2280 = vadd.f32 %v1879, %v2279
  %2281 = vmatmul.f32.gmra.mxu0 %v2026
  %v2282 = vpop.f32.mrf.mxu0
  %v2283 = vadd.f32 %v1879, %v2282
  %2284 = vmatmul.f32.gmra.mxu0 %v2029
  %v2285 = vpop.f32.mrf.mxu0
  %v2286 = vadd.f32 %v1879, %v2285
  %2287 = vmatmul.f32.gmra.mxu0 %v2032
  %v2288 = vpop.f32.mrf.mxu0
  %v2289 = vadd.f32 %v1879, %v2288
  %2290 = vmatmul.f32.gmra.mxu0 %v2035
  %v2291 = vpop.f32.mrf.mxu0
  %v2292 = vadd.f32 %v1879, %v2291
  %2293 = vmatmul.f32.gmra.mxu0 %v2038
  %v2294 = vpop.f32.mrf.mxu0
  %v2295 = vadd.f32 %v1879, %v2294
  %2296 = vmatmul.f32.gmra.mxu0 %v2041
  %v2297 = vpop.f32.mrf.mxu0
  %v2298 = vadd.f32 %v1879, %v2297
  %2299 = vmatmul.f32.gmra.mxu0 %v2044
  %v2300 = vpop.f32.mrf.mxu0
  %v2301 = vadd.f32 %v1879, %v2300
  %2302 = vmatmul.f32.gmra.mxu0 %v2047
  %v2303 = vpop.f32.mrf.mxu0
  %v2304 = vadd.f32 %v1879, %v2303
  %2305 = vmatmul.f32.gmra.mxu0 %v2050
  %v2306 = vpop.f32.mrf.mxu0
  %v2307 = vadd.f32 %v1879, %v2306
  %2308 = vmatmul.f32.gmra.mxu0 %v2053
  %v2309 = vpop.f32.mrf.mxu0
  %v2310 = vadd.f32 %v1879, %v2309
  %2311 = vmatmul.f32.gmra.mxu0 %v2056
  %v2312 = vpop.f32.mrf.mxu0
  %v2313 = vadd.f32 %v1879, %v2312
  %2314 = vmatmul.f32.gmra.mxu0 %v2059
  %v2315 = vpop.f32.mrf.mxu0
  %v2316 = vadd.f32 %v1879, %v2315
  %2317 = vmatmul.f32.gmra.mxu0 %v2062
  %v2318 = vpop.f32.mrf.mxu0
  %v2319 = vadd.f32 %v1879, %v2318
  %2320 = vmatmul.f32.gmra.mxu0 %v2065
  %v2321 = vpop.f32.mrf.mxu0
  %v2322 = vadd.f32 %v1879, %v2321
  %2323 = vmatmul.f32.gmra.mxu0 %v2068
  %v2324 = vpop.f32.mrf.mxu0
  %v2325 = vadd.f32 %v1879, %v2324
  %2326 = vmatmul.f32.gmra.mxu0 %v2071
  %v2327 = vpop.f32.mrf.mxu0
  %v2328 = vadd.f32 %v1879, %v2327
  %2329 = vmatmul.f32.gmra.mxu0 %v2074
  %v2330 = vpop.f32.mrf.mxu0
  %v2331 = vadd.f32 %v1879, %v2330
  %2332 = vmatmul.f32.gmra.mxu0 %v2077
  %v2333 = vpop.f32.mrf.mxu0
  %v2334 = vadd.f32 %v1879, %v2333
  %2335 = vmatmul.f32.gmra.mxu0 %v2080
  %v2336 = vpop.f32.mrf.mxu0
  %v2337 = vadd.f32 %v1879, %v2336
  %2338 = vmatmul.f32.gmra.mxu0 %v2083
  %v2339 = vpop.f32.mrf.mxu0
  %v2340 = vadd.f32 %v1879, %v2339
  %2341 = vmatmul.f32.gmra.mxu0 %v2086
  %v2342 = vpop.f32.mrf.mxu0
  %v2343 = vadd.f32 %v1879, %v2342
  %2344 = vmatmul.f32.gmra.mxu0 %v2089
  %v2345 = vpop.f32.mrf.mxu0
  %v2346 = vadd.f32 %v1879, %v2345
  %2347 = vmatmul.f32.gmra.mxu0 %v2092
  %v2348 = vpop.f32.mrf.mxu0
  %v2349 = vadd.f32 %v1879, %v2348
  %2350 = vmatmul.f32.gmra.mxu0 %v2095
  %v2351 = vpop.f32.mrf.mxu0
  %v2352 = vadd.f32 %v1879, %v2351
  %2353 = vmatmul.f32.gmra.mxu0 %v2098
  %v2354 = vpop.f32.mrf.mxu0
  %v2355 = vadd.f32 %v1879, %v2354
  %2356 = vmatmul.f32.gmra.mxu0 %v2101
  %v2357 = vpop.f32.mrf.mxu0
  %v2358 = vadd.f32 %v1879, %v2357
  %2359 = vmatmul.f32.gmra.mxu0 %v2104
  %v2360 = vpop.f32.mrf.mxu0
  %v2361 = vadd.f32 %v1879, %v2360
  %2362 = vmatmul.f32.gmra.mxu0 %v2107
  %v2363 = vpop.f32.mrf.mxu0
  %v2364 = vadd.f32 %v1879, %v2363
  %2365 = vmatmul.f32.gmra.mxu0 %v2110
  %v2366 = vpop.f32.mrf.mxu0
  %v2367 = vadd.f32 %v1879, %v2366
  %2368 = vmatmul.f32.gmra.mxu0 %v2113
  %v2369 = vpop.f32.mrf.mxu0
  %v2370 = vadd.f32 %v1879, %v2369
  %2371 = vmatmul.f32.gmra.mxu0 %v2116
  %v2372 = vpop.f32.mrf.mxu0
  %v2373 = vadd.f32 %v1879, %v2372
  %2374 = vmatmul.f32.gmra.mxu0 %v2119
  %v2375 = vpop.f32.mrf.mxu0
  %v2376 = vadd.f32 %v1879, %v2375
  %2377 = vdwg.mxu0
  %v2378 = vld [vmem:[%s3] sm:$0xff]
  %v2379 = vld [vmem:[%s3 + $0x8] sm:$0x1]
  %v2380 = vld [vmem:[%s3 + $0x9] sm:$0x1]
  %v2381 = vlaneseq
  %v2382 = vshrl.u32 %v2381, 7
  %v2383 = vadd.s32 %v2382, 8
  %v2384 = vadd.s32 %v2382, 16
  %v2385 = vadd.s32 %v2382, 24
  %v2386 = vadd.s32 %v2382, 32
  %v2387 = vadd.s32 %v2382, 40
  %v2388 = vadd.s32 %v2382, 48
  %v2389 = vadd.s32 %v2382, 56
  %v2390 = vadd.s32 %v2382, 64
  %v2391 = vadd.s32 %v2382, 72
  %v2392 = vadd.s32 %v2382, 80
  %v2393 = vadd.s32 %v2382, 88
  %v2394 = vadd.s32 %v2382, 96
  %v2395 = vadd.s32 %v2382, 104
  %v2396 = vadd.s32 %v2382, 112
  %v2397 = vadd.s32 %v2382, 120
  %v2398 = vadd.s32 %v2382, 128
  %v2399 = vadd.s32 %v2382, 136
  %v2400 = vadd.s32 %v2382, 144
  %v2401 = vadd.s32 %v2382, 152
  %v2402 = vadd.s32 %v2382, 160
  %v2403 = vadd.s32 %v2382, 168
  %v2404 = vadd.s32 %v2382, 176
  %v2405 = vadd.s32 %v2382, 184
  %v2406 = vadd.s32 %v2382, 192
  %v2407 = vadd.s32 %v2382, 200
  %v2408 = vadd.s32 %v2382, 208
  %v2409 = vadd.s32 %v2382, 216
  %v2410 = vadd.s32 %v2382, 224
  %v2411 = vadd.s32 %v2382, 232
  %v2412 = vadd.s32 %v2382, 240
  %v2413 = vadd.s32 %v2382, 248
  %vm2414 = vcmp.lt.s32.totalorder %v2382, 0
  %v2415 = vsub.s32 0, %v2382
  %v2416 = vsel %vm2414, %v2415, %v2382
  %v2417 = vshrl.u32 %v2416, 4
  %v2418 = vand.u32 %v2416, 15
  %v2419 = vsub.s32 0, %v2418
  %v2420 = vsel %vm2414, %v2419, %v2418
  %vm2421 = vcmp.lt.s32.totalorder %v2383, 0
  %v2422 = vsub.s32 0, %v2383
  %v2423 = vsel %vm2421, %v2422, %v2383
  %v2424 = vshrl.u32 %v2423, 4
  %v2425 = vand.u32 %v2423, 15
  %v2426 = vsub.s32 0, %v2425
  %v2427 = vsel %vm2421, %v2426, %v2425
  %vm2428 = vcmp.lt.s32.totalorder %v2384, 0
  %v2429 = vsub.s32 0, %v2384
  %v2430 = vsel %vm2428, %v2429, %v2384
  %v2431 = vshrl.u32 %v2430, 4
  %v2432 = vand.u32 %v2430, 15
  %v2433 = vsub.s32 0, %v2432
  %v2434 = vsel %vm2428, %v2433, %v2432
  %vm2435 = vcmp.lt.s32.totalorder %v2385, 0
  %v2436 = vsub.s32 0, %v2385
  %v2437 = vsel %vm2435, %v2436, %v2385
  %v2438 = vshrl.u32 %v2437, 4
  %v2439 = vand.u32 %v2437, 15
  %v2440 = vsub.s32 0, %v2439
  %v2441 = vsel %vm2435, %v2440, %v2439
  %vm2442 = vcmp.lt.s32.totalorder %v2386, 0
  %v2443 = vsub.s32 0, %v2386
  %v2444 = vsel %vm2442, %v2443, %v2386
  %v2445 = vshrl.u32 %v2444, 4
  %v2446 = vand.u32 %v2444, 15
  %v2447 = vsub.s32 0, %v2446
  %v2448 = vsel %vm2442, %v2447, %v2446
  %vm2449 = vcmp.lt.s32.totalorder %v2387, 0
  %v2450 = vsub.s32 0, %v2387
  %v2451 = vsel %vm2449, %v2450, %v2387
  %v2452 = vshrl.u32 %v2451, 4
  %v2453 = vand.u32 %v2451, 15
  %v2454 = vsub.s32 0, %v2453
  %v2455 = vsel %vm2449, %v2454, %v2453
  %vm2456 = vcmp.lt.s32.totalorder %v2388, 0
  %v2457 = vsub.s32 0, %v2388
  %v2458 = vsel %vm2456, %v2457, %v2388
  %v2459 = vshrl.u32 %v2458, 4
  %v2460 = vand.u32 %v2458, 15
  %v2461 = vsub.s32 0, %v2460
  %v2462 = vsel %vm2456, %v2461, %v2460
  %vm2463 = vcmp.lt.s32.totalorder %v2389, 0
  %v2464 = vsub.s32 0, %v2389
  %v2465 = vsel %vm2463, %v2464, %v2389
  %v2466 = vshrl.u32 %v2465, 4
  %v2467 = vand.u32 %v2465, 15
  %v2468 = vsub.s32 0, %v2467
  %v2469 = vsel %vm2463, %v2468, %v2467
  %vm2470 = vcmp.lt.s32.totalorder %v2390, 0
  %v2471 = vsub.s32 0, %v2390
  %v2472 = vsel %vm2470, %v2471, %v2390
  %v2473 = vshrl.u32 %v2472, 4
  %v2474 = vand.u32 %v2472, 15
  %v2475 = vsub.s32 0, %v2474
  %v2476 = vsel %vm2470, %v2475, %v2474
  %vm2477 = vcmp.lt.s32.totalorder %v2391, 0
  %v2478 = vsub.s32 0, %v2391
  %v2479 = vsel %vm2477, %v2478, %v2391
  %v2480 = vshrl.u32 %v2479, 4
  %v2481 = vand.u32 %v2479, 15
  %v2482 = vsub.s32 0, %v2481
  %v2483 = vsel %vm2477, %v2482, %v2481
  %vm2484 = vcmp.lt.s32.totalorder %v2392, 0
  %v2485 = vsub.s32 0, %v2392
  %v2486 = vsel %vm2484, %v2485, %v2392
  %v2487 = vshrl.u32 %v2486, 4
  %v2488 = vand.u32 %v2486, 15
  %v2489 = vsub.s32 0, %v2488
  %v2490 = vsel %vm2484, %v2489, %v2488
  %vm2491 = vcmp.lt.s32.totalorder %v2393, 0
  %v2492 = vsub.s32 0, %v2393
  %v2493 = vsel %vm2491, %v2492, %v2393
  %v2494 = vshrl.u32 %v2493, 4
  %v2495 = vand.u32 %v2493, 15
  %v2496 = vsub.s32 0, %v2495
  %v2497 = vsel %vm2491, %v2496, %v2495
  %vm2498 = vcmp.lt.s32.totalorder %v2394, 0
  %v2499 = vsub.s32 0, %v2394
  %v2500 = vsel %vm2498, %v2499, %v2394
  %v2501 = vshrl.u32 %v2500, 4
  %v2502 = vand.u32 %v2500, 15
  %v2503 = vsub.s32 0, %v2502
  %v2504 = vsel %vm2498, %v2503, %v2502
  %vm2505 = vcmp.lt.s32.totalorder %v2395, 0
  %v2506 = vsub.s32 0, %v2395
  %v2507 = vsel %vm2505, %v2506, %v2395
  %v2508 = vshrl.u32 %v2507, 4
  %v2509 = vand.u32 %v2507, 15
  %v2510 = vsub.s32 0, %v2509
  %v2511 = vsel %vm2505, %v2510, %v2509
  %vm2512 = vcmp.lt.s32.totalorder %v2396, 0
  %v2513 = vsub.s32 0, %v2396
  %v2514 = vsel %vm2512, %v2513, %v2396
  %v2515 = vshrl.u32 %v2514, 4
  %v2516 = vand.u32 %v2514, 15
  %v2517 = vsub.s32 0, %v2516
  %v2518 = vsel %vm2512, %v2517, %v2516
  %vm2519 = vcmp.lt.s32.totalorder %v2397, 0
  %v2520 = vsub.s32 0, %v2397
  %v2521 = vsel %vm2519, %v2520, %v2397
  %v2522 = vshrl.u32 %v2521, 4
  %v2523 = vand.u32 %v2521, 15
  %v2524 = vsub.s32 0, %v2523
  %v2525 = vsel %vm2519, %v2524, %v2523
  %vm2526 = vcmp.lt.s32.totalorder %v2398, 0
  %v2527 = vsub.s32 0, %v2398
  %v2528 = vsel %vm2526, %v2527, %v2398
  %v2529 = vshrl.u32 %v2528, 4
  %v2530 = vand.u32 %v2528, 15
  %v2531 = vsub.s32 0, %v2530
  %v2532 = vsel %vm2526, %v2531, %v2530
  %vm2533 = vcmp.lt.s32.totalorder %v2399, 0
  %v2534 = vsub.s32 0, %v2399
  %v2535 = vsel %vm2533, %v2534, %v2399
  %v2536 = vshrl.u32 %v2535, 4
  %v2537 = vand.u32 %v2535, 15
  %v2538 = vsub.s32 0, %v2537
  %v2539 = vsel %vm2533, %v2538, %v2537
  %vm2540 = vcmp.lt.s32.totalorder %v2400, 0
  %v2541 = vsub.s32 0, %v2400
  %v2542 = vsel %vm2540, %v2541, %v2400
  %v2543 = vshrl.u32 %v2542, 4
  %v2544 = vand.u32 %v2542, 15
  %v2545 = vsub.s32 0, %v2544
  %v2546 = vsel %vm2540, %v2545, %v2544
  %vm2547 = vcmp.lt.s32.totalorder %v2401, 0
  %v2548 = vsub.s32 0, %v2401
  %v2549 = vsel %vm2547, %v2548, %v2401
  %v2550 = vshrl.u32 %v2549, 4
  %v2551 = vand.u32 %v2549, 15
  %v2552 = vsub.s32 0, %v2551
  %v2553 = vsel %vm2547, %v2552, %v2551
  %vm2554 = vcmp.lt.s32.totalorder %v2402, 0
  %v2555 = vsub.s32 0, %v2402
  %v2556 = vsel %vm2554, %v2555, %v2402
  %v2557 = vshrl.u32 %v2556, 4
  %v2558 = vand.u32 %v2556, 15
  %v2559 = vsub.s32 0, %v2558
  %v2560 = vsel %vm2554, %v2559, %v2558
  %vm2561 = vcmp.lt.s32.totalorder %v2403, 0
  %v2562 = vsub.s32 0, %v2403
  %v2563 = vsel %vm2561, %v2562, %v2403
  %v2564 = vshrl.u32 %v2563, 4
  %v2565 = vand.u32 %v2563, 15
  %v2566 = vsub.s32 0, %v2565
  %v2567 = vsel %vm2561, %v2566, %v2565
  %vm2568 = vcmp.lt.s32.totalorder %v2404, 0
  %v2569 = vsub.s32 0, %v2404
  %v2570 = vsel %vm2568, %v2569, %v2404
  %v2571 = vshrl.u32 %v2570, 4
  %v2572 = vand.u32 %v2570, 15
  %v2573 = vsub.s32 0, %v2572
  %v2574 = vsel %vm2568, %v2573, %v2572
  %vm2575 = vcmp.lt.s32.totalorder %v2405, 0
  %v2576 = vsub.s32 0, %v2405
  %v2577 = vsel %vm2575, %v2576, %v2405
  %v2578 = vshrl.u32 %v2577, 4
  %v2579 = vand.u32 %v2577, 15
  %v2580 = vsub.s32 0, %v2579
  %v2581 = vsel %vm2575, %v2580, %v2579
  %vm2582 = vcmp.lt.s32.totalorder %v2406, 0
  %v2583 = vsub.s32 0, %v2406
  %v2584 = vsel %vm2582, %v2583, %v2406
  %v2585 = vshrl.u32 %v2584, 4
  %v2586 = vand.u32 %v2584, 15
  %v2587 = vsub.s32 0, %v2586
  %v2588 = vsel %vm2582, %v2587, %v2586
  %vm2589 = vcmp.lt.s32.totalorder %v2407, 0
  %v2590 = vsub.s32 0, %v2407
  %v2591 = vsel %vm2589, %v2590, %v2407
  %v2592 = vshrl.u32 %v2591, 4
  %v2593 = vand.u32 %v2591, 15
  %v2594 = vsub.s32 0, %v2593
  %v2595 = vsel %vm2589, %v2594, %v2593
  %vm2596 = vcmp.lt.s32.totalorder %v2408, 0
  %v2597 = vsub.s32 0, %v2408
  %v2598 = vsel %vm2596, %v2597, %v2408
  %v2599 = vshrl.u32 %v2598, 4
  %v2600 = vand.u32 %v2598, 15
  %v2601 = vsub.s32 0, %v2600
  %v2602 = vsel %vm2596, %v2601, %v2600
  %vm2603 = vcmp.lt.s32.totalorder %v2409, 0
  %v2604 = vsub.s32 0, %v2409
  %v2605 = vsel %vm2603, %v2604, %v2409
  %v2606 = vshrl.u32 %v2605, 4
  %v2607 = vand.u32 %v2605, 15
  %v2608 = vsub.s32 0, %v2607
  %v2609 = vsel %vm2603, %v2608, %v2607
  %vm2610 = vcmp.lt.s32.totalorder %v2410, 0
  %v2611 = vsub.s32 0, %v2410
  %v2612 = vsel %vm2610, %v2611, %v2410
  %v2613 = vshrl.u32 %v2612, 4
  %v2614 = vand.u32 %v2612, 15
  %v2615 = vsub.s32 0, %v2614
  %v2616 = vsel %vm2610, %v2615, %v2614
  %vm2617 = vcmp.lt.s32.totalorder %v2411, 0
  %v2618 = vsub.s32 0, %v2411
  %v2619 = vsel %vm2617, %v2618, %v2411
  %v2620 = vshrl.u32 %v2619, 4
  %v2621 = vand.u32 %v2619, 15
  %v2622 = vsub.s32 0, %v2621
  %v2623 = vsel %vm2617, %v2622, %v2621
  %vm2624 = vcmp.lt.s32.totalorder %v2412, 0
  %v2625 = vsub.s32 0, %v2412
  %v2626 = vsel %vm2624, %v2625, %v2412
  %v2627 = vshrl.u32 %v2626, 4
  %v2628 = vand.u32 %v2626, 15
  %v2629 = vsub.s32 0, %v2628
  %v2630 = vsel %vm2624, %v2629, %v2628
  %vm2631 = vcmp.lt.s32.totalorder %v2413, 0
  %v2632 = vsub.s32 0, %v2413
  %v2633 = vsel %vm2631, %v2632, %v2413
  %v2634 = vshrl.u32 %v2633, 4
  %v2635 = vand.u32 %v2633, 15
  %v2636 = vsub.s32 0, %v2635
  %v2637 = vsel %vm2631, %v2636, %v2635
  %vm2638 = vcmp.ne.s32.totalorder %v2420, 0
  %vm2639 = vcmp.ne.s32.totalorder %v2427, 0
  %vm2640 = vcmp.ne.s32.totalorder %v2434, 0
  %vm2641 = vcmp.ne.s32.totalorder %v2441, 0
  %vm2642 = vcmp.ne.s32.totalorder %v2448, 0
  %vm2643 = vcmp.ne.s32.totalorder %v2455, 0
  %vm2644 = vcmp.ne.s32.totalorder %v2462, 0
  %vm2645 = vcmp.ne.s32.totalorder %v2469, 0
  %vm2646 = vcmp.ne.s32.totalorder %v2476, 0
  %vm2647 = vcmp.ne.s32.totalorder %v2483, 0
  %vm2648 = vcmp.ne.s32.totalorder %v2490, 0
  %vm2649 = vcmp.ne.s32.totalorder %v2497, 0
  %vm2650 = vcmp.ne.s32.totalorder %v2504, 0
  %vm2651 = vcmp.ne.s32.totalorder %v2511, 0
  %vm2652 = vcmp.ne.s32.totalorder %v2518, 0
  %vm2653 = vcmp.ne.s32.totalorder %v2525, 0
  %vm2654 = vcmp.ne.s32.totalorder %v2532, 0
  %vm2655 = vcmp.ne.s32.totalorder %v2539, 0
  %vm2656 = vcmp.ne.s32.totalorder %v2546, 0
  %vm2657 = vcmp.ne.s32.totalorder %v2553, 0
  %vm2658 = vcmp.ne.s32.totalorder %v2560, 0
  %vm2659 = vcmp.ne.s32.totalorder %v2567, 0
  %vm2660 = vcmp.ne.s32.totalorder %v2574, 0
  %vm2661 = vcmp.ne.s32.totalorder %v2581, 0
  %vm2662 = vcmp.ne.s32.totalorder %v2588, 0
  %vm2663 = vcmp.ne.s32.totalorder %v2595, 0
  %vm2664 = vcmp.ne.s32.totalorder %v2602, 0
  %vm2665 = vcmp.ne.s32.totalorder %v2609, 0
  %vm2666 = vcmp.ne.s32.totalorder %v2616, 0
  %vm2667 = vcmp.ne.s32.totalorder %v2623, 0
  %vm2668 = vcmp.ne.s32.totalorder %v2630, 0
  %vm2669 = vcmp.ne.s32.totalorder %v2637, 0
  %vm2670 = vcmp.lt.s32.totalorder %v2420, 0
  %vm2671 = vcmp.lt.s32.totalorder %v2427, 0
  %vm2672 = vcmp.lt.s32.totalorder %v2434, 0
  %vm2673 = vcmp.lt.s32.totalorder %v2441, 0
  %vm2674 = vcmp.lt.s32.totalorder %v2448, 0
  %vm2675 = vcmp.lt.s32.totalorder %v2455, 0
  %vm2676 = vcmp.lt.s32.totalorder %v2462, 0
  %vm2677 = vcmp.lt.s32.totalorder %v2469, 0
  %vm2678 = vcmp.lt.s32.totalorder %v2476, 0
  %vm2679 = vcmp.lt.s32.totalorder %v2483, 0
  %vm2680 = vcmp.lt.s32.totalorder %v2490, 0
  %vm2681 = vcmp.lt.s32.totalorder %v2497, 0
  %vm2682 = vcmp.lt.s32.totalorder %v2504, 0
  %vm2683 = vcmp.lt.s32.totalorder %v2511, 0
  %vm2684 = vcmp.lt.s32.totalorder %v2518, 0
  %vm2685 = vcmp.lt.s32.totalorder %v2525, 0
  %vm2686 = vcmp.lt.s32.totalorder %v2532, 0
  %vm2687 = vcmp.lt.s32.totalorder %v2539, 0
  %vm2688 = vcmp.lt.s32.totalorder %v2546, 0
  %vm2689 = vcmp.lt.s32.totalorder %v2553, 0
  %vm2690 = vcmp.lt.s32.totalorder %v2560, 0
  %vm2691 = vcmp.lt.s32.totalorder %v2567, 0
  %vm2692 = vcmp.lt.s32.totalorder %v2574, 0
  %vm2693 = vcmp.lt.s32.totalorder %v2581, 0
  %vm2694 = vcmp.lt.s32.totalorder %v2588, 0
  %vm2695 = vcmp.lt.s32.totalorder %v2595, 0
  %vm2696 = vcmp.lt.s32.totalorder %v2602, 0
  %vm2697 = vcmp.lt.s32.totalorder %v2609, 0
  %vm2698 = vcmp.lt.s32.totalorder %v2616, 0
  %vm2699 = vcmp.lt.s32.totalorder %v2623, 0
  %vm2700 = vcmp.lt.s32.totalorder %v2630, 0
  %vm2701 = vcmp.lt.s32.totalorder %v2637, 0
  %vm2702 = vmand %vm2670, %vm2638
  %vm2703 = vmand %vm2671, %vm2639
  %vm2704 = vmand %vm2672, %vm2640
  %vm2705 = vmand %vm2673, %vm2641
  %vm2706 = vmand %vm2674, %vm2642
  %vm2707 = vmand %vm2675, %vm2643
  %vm2708 = vmand %vm2676, %vm2644
  %vm2709 = vmand %vm2677, %vm2645
  %vm2710 = vmand %vm2678, %vm2646
  %vm2711 = vmand %vm2679, %vm2647
  %vm2712 = vmand %vm2680, %vm2648
  %vm2713 = vmand %vm2681, %vm2649
  %vm2714 = vmand %vm2682, %vm2650
  %vm2715 = vmand %vm2683, %vm2651
  %vm2716 = vmand %vm2684, %vm2652
  %vm2717 = vmand %vm2685, %vm2653
  %vm2718 = vmand %vm2686, %vm2654
  %vm2719 = vmand %vm2687, %vm2655
  %vm2720 = vmand %vm2688, %vm2656
  %vm2721 = vmand %vm2689, %vm2657
  %vm2722 = vmand %vm2690, %vm2658
  %vm2723 = vmand %vm2691, %vm2659
  %vm2724 = vmand %vm2692, %vm2660
  %vm2725 = vmand %vm2693, %vm2661
  %vm2726 = vmand %vm2694, %vm2662
  %vm2727 = vmand %vm2695, %vm2663
  %vm2728 = vmand %vm2696, %vm2664
  %vm2729 = vmand %vm2697, %vm2665
  %vm2730 = vmand %vm2698, %vm2666
  %vm2731 = vmand %vm2699, %vm2667
  %vm2732 = vmand %vm2700, %vm2668
  %vm2733 = vmand %vm2701, %vm2669
  %v2734 = vadd.s32 %v2420, 16
  %v2735 = vadd.s32 %v2427, 16
  %v2736 = vadd.s32 %v2434, 16
  %v2737 = vadd.s32 %v2441, 16
  %v2738 = vadd.s32 %v2448, 16
  %v2739 = vadd.s32 %v2455, 16
  %v2740 = vadd.s32 %v2462, 16
  %v2741 = vadd.s32 %v2469, 16
  %v2742 = vadd.s32 %v2476, 16
  %v2743 = vadd.s32 %v2483, 16
  %v2744 = vadd.s32 %v2490, 16
  %v2745 = vadd.s32 %v2497, 16
  %v2746 = vadd.s32 %v2504, 16
  %v2747 = vadd.s32 %v2511, 16
  %v2748 = vadd.s32 %v2518, 16
  %v2749 = vadd.s32 %v2525, 16
  %v2750 = vadd.s32 %v2532, 16
  %v2751 = vadd.s32 %v2539, 16
  %v2752 = vadd.s32 %v2546, 16
  %v2753 = vadd.s32 %v2553, 16
  %v2754 = vadd.s32 %v2560, 16
  %v2755 = vadd.s32 %v2567, 16
  %v2756 = vadd.s32 %v2574, 16
  %v2757 = vadd.s32 %v2581, 16
  %v2758 = vadd.s32 %v2588, 16
  %v2759 = vadd.s32 %v2595, 16
  %v2760 = vadd.s32 %v2602, 16
  %v2761 = vadd.s32 %v2609, 16
  %v2762 = vadd.s32 %v2616, 16
  %v2763 = vadd.s32 %v2623, 16
  %v2764 = vadd.s32 %v2630, 16
  %v2765 = vadd.s32 %v2637, 16
  %v2766 = vsel %vm2702, %v2734, %v2420
  %v2767 = vsel %vm2703, %v2735, %v2427
  %v2768 = vsel %vm2704, %v2736, %v2434
  %v2769 = vsel %vm2705, %v2737, %v2441
  %v2770 = vsel %vm2706, %v2738, %v2448
  %v2771 = vsel %vm2707, %v2739, %v2455
  %v2772 = vsel %vm2708, %v2740, %v2462
  %v2773 = vsel %vm2709, %v2741, %v2469
  %v2774 = vsel %vm2710, %v2742, %v2476
  %v2775 = vsel %vm2711, %v2743, %v2483
  %v2776 = vsel %vm2712, %v2744, %v2490
  %v2777 = vsel %vm2713, %v2745, %v2497
  %v2778 = vsel %vm2714, %v2746, %v2504
  %v2779 = vsel %vm2715, %v2747, %v2511
  %v2780 = vsel %vm2716, %v2748, %v2518
  %v2781 = vsel %vm2717, %v2749, %v2525
  %v2782 = vsel %vm2718, %v2750, %v2532
  %v2783 = vsel %vm2719, %v2751, %v2539
  %v2784 = vsel %vm2720, %v2752, %v2546
  %v2785 = vsel %vm2721, %v2753, %v2553
  %v2786 = vsel %vm2722, %v2754, %v2560
  %v2787 = vsel %vm2723, %v2755, %v2567
  %v2788 = vsel %vm2724, %v2756, %v2574
  %v2789 = vsel %vm2725, %v2757, %v2581
  %v2790 = vsel %vm2726, %v2758, %v2588
  %v2791 = vsel %vm2727, %v2759, %v2595
  %v2792 = vsel %vm2728, %v2760, %v2602
  %v2793 = vsel %vm2729, %v2761, %v2609
  %v2794 = vsel %vm2730, %v2762, %v2616
  %v2795 = vsel %vm2731, %v2763, %v2623
  %v2796 = vsel %vm2732, %v2764, %v2630
  %v2797 = vsel %vm2733, %v2765, %v2637
  %vm2798 = vcmp.ge.s32.totalorder %v2766, 1
  %vm2799 = vcmp.ge.s32.totalorder %v2767, 1
  %vm2800 = vcmp.ge.s32.totalorder %v2768, 1
  %vm2801 = vcmp.ge.s32.totalorder %v2769, 1
  %vm2802 = vcmp.ge.s32.totalorder %v2770, 1
  %vm2803 = vcmp.ge.s32.totalorder %v2771, 1
  %vm2804 = vcmp.ge.s32.totalorder %v2772, 1
  %vm2805 = vcmp.ge.s32.totalorder %v2773, 1
  %vm2806 = vcmp.ge.s32.totalorder %v2774, 1
  %vm2807 = vcmp.ge.s32.totalorder %v2775, 1
  %vm2808 = vcmp.ge.s32.totalorder %v2776, 1
  %vm2809 = vcmp.ge.s32.totalorder %v2777, 1
  %vm2810 = vcmp.ge.s32.totalorder %v2778, 1
  %vm2811 = vcmp.ge.s32.totalorder %v2779, 1
  %vm2812 = vcmp.ge.s32.totalorder %v2780, 1
  %vm2813 = vcmp.ge.s32.totalorder %v2781, 1
  %vm2814 = vcmp.ge.s32.totalorder %v2782, 1
  %vm2815 = vcmp.ge.s32.totalorder %v2783, 1
  %vm2816 = vcmp.ge.s32.totalorder %v2784, 1
  %vm2817 = vcmp.ge.s32.totalorder %v2785, 1
  %vm2818 = vcmp.ge.s32.totalorder %v2786, 1
  %vm2819 = vcmp.ge.s32.totalorder %v2787, 1
  %vm2820 = vcmp.ge.s32.totalorder %v2788, 1
  %vm2821 = vcmp.ge.s32.totalorder %v2789, 1
  %vm2822 = vcmp.ge.s32.totalorder %v2790, 1
  %vm2823 = vcmp.ge.s32.totalorder %v2791, 1
  %vm2824 = vcmp.ge.s32.totalorder %v2792, 1
  %vm2825 = vcmp.ge.s32.totalorder %v2793, 1
  %vm2826 = vcmp.ge.s32.totalorder %v2794, 1
  %vm2827 = vcmp.ge.s32.totalorder %v2795, 1
  %vm2828 = vcmp.ge.s32.totalorder %v2796, 1
  %vm2829 = vcmp.ge.s32.totalorder %v2797, 1
  %v2830 = vsel %vm2798, 1, 0
  %v2831 = vsel %vm2799, 1, 0
  %v2832 = vsel %vm2800, 1, 0
  %v2833 = vsel %vm2801, 1, 0
  %v2834 = vsel %vm2802, 1, 0
  %v2835 = vsel %vm2803, 1, 0
  %v2836 = vsel %vm2804, 1, 0
  %v2837 = vsel %vm2805, 1, 0
  %v2838 = vsel %vm2806, 1, 0
  %v2839 = vsel %vm2807, 1, 0
  %v2840 = vsel %vm2808, 1, 0
  %v2841 = vsel %vm2809, 1, 0
  %v2842 = vsel %vm2810, 1, 0
  %v2843 = vsel %vm2811, 1, 0
  %v2844 = vsel %vm2812, 1, 0
  %v2845 = vsel %vm2813, 1, 0
  %v2846 = vsel %vm2814, 1, 0
  %v2847 = vsel %vm2815, 1, 0
  %v2848 = vsel %vm2816, 1, 0
  %v2849 = vsel %vm2817, 1, 0
  %v2850 = vsel %vm2818, 1, 0
  %v2851 = vsel %vm2819, 1, 0
  %v2852 = vsel %vm2820, 1, 0
  %v2853 = vsel %vm2821, 1, 0
  %v2854 = vsel %vm2822, 1, 0
  %v2855 = vsel %vm2823, 1, 0
  %v2856 = vsel %vm2824, 1, 0
  %v2857 = vsel %vm2825, 1, 0
  %v2858 = vsel %vm2826, 1, 0
  %v2859 = vsel %vm2827, 1, 0
  %v2860 = vsel %vm2828, 1, 0
  %v2861 = vsel %vm2829, 1, 0
  %v2862 = vcvt.s32.f32 %v2830
  %v2863 = vcvt.s32.f32 %v2831
  %v2864 = vcvt.s32.f32 %v2832
  %v2865 = vcvt.s32.f32 %v2833
  %v2866 = vcvt.s32.f32 %v2834
  %v2867 = vcvt.s32.f32 %v2835
  %v2868 = vcvt.s32.f32 %v2836
  %v2869 = vcvt.s32.f32 %v2837
  %v2870 = vcvt.s32.f32 %v2838
  %v2871 = vcvt.s32.f32 %v2839
  %v2872 = vcvt.s32.f32 %v2840
  %v2873 = vcvt.s32.f32 %v2841
  %v2874 = vcvt.s32.f32 %v2842
  %v2875 = vcvt.s32.f32 %v2843
  %v2876 = vcvt.s32.f32 %v2844
  %v2877 = vcvt.s32.f32 %v2845
  %v2878 = vcvt.s32.f32 %v2846
  %v2879 = vcvt.s32.f32 %v2847
  %v2880 = vcvt.s32.f32 %v2848
  %v2881 = vcvt.s32.f32 %v2849
  %v2882 = vcvt.s32.f32 %v2850
  %v2883 = vcvt.s32.f32 %v2851
  %v2884 = vcvt.s32.f32 %v2852
  %v2885 = vcvt.s32.f32 %v2853
  %v2886 = vcvt.s32.f32 %v2854
  %v2887 = vcvt.s32.f32 %v2855
  %v2888 = vcvt.s32.f32 %v2856
  %v2889 = vcvt.s32.f32 %v2857
  %v2890 = vcvt.s32.f32 %v2858
  %v2891 = vcvt.s32.f32 %v2859
  %v2892 = vcvt.s32.f32 %v2860
  %v2893 = vcvt.s32.f32 %v2861
  %vm2894 = vcmp.le.s32.totalorder %v2766, 14
  %vm2895 = vcmp.le.s32.totalorder %v2767, 14
  %vm2896 = vcmp.le.s32.totalorder %v2768, 14
  %vm2897 = vcmp.le.s32.totalorder %v2769, 14
  %vm2898 = vcmp.le.s32.totalorder %v2770, 14
  %vm2899 = vcmp.le.s32.totalorder %v2771, 14
  %vm2900 = vcmp.le.s32.totalorder %v2772, 14
  %vm2901 = vcmp.le.s32.totalorder %v2773, 14
  %vm2902 = vcmp.le.s32.totalorder %v2774, 14
  %vm2903 = vcmp.le.s32.totalorder %v2775, 14
  %vm2904 = vcmp.le.s32.totalorder %v2776, 14
  %vm2905 = vcmp.le.s32.totalorder %v2777, 14
  %vm2906 = vcmp.le.s32.totalorder %v2778, 14
  %vm2907 = vcmp.le.s32.totalorder %v2779, 14
  %vm2908 = vcmp.le.s32.totalorder %v2780, 14
  %vm2909 = vcmp.le.s32.totalorder %v2781, 14
  %vm2910 = vcmp.le.s32.totalorder %v2782, 14
  %vm2911 = vcmp.le.s32.totalorder %v2783, 14
  %vm2912 = vcmp.le.s32.totalorder %v2784, 14
  %vm2913 = vcmp.le.s32.totalorder %v2785, 14
  %vm2914 = vcmp.le.s32.totalorder %v2786, 14
  %vm2915 = vcmp.le.s32.totalorder %v2787, 14
  %vm2916 = vcmp.le.s32.totalorder %v2788, 14
  %vm2917 = vcmp.le.s32.totalorder %v2789, 14
  %vm2918 = vcmp.le.s32.totalorder %v2790, 14
  %vm2919 = vcmp.le.s32.totalorder %v2791, 14
  %vm2920 = vcmp.le.s32.totalorder %v2792, 14
  %vm2921 = vcmp.le.s32.totalorder %v2793, 14
  %vm2922 = vcmp.le.s32.totalorder %v2794, 14
  %vm2923 = vcmp.le.s32.totalorder %v2795, 14
  %vm2924 = vcmp.le.s32.totalorder %v2796, 14
  %vm2925 = vcmp.le.s32.totalorder %v2797, 14
  %v2926 = vsel %vm2894, 1, 0
  %v2927 = vsel %vm2895, 1, 0
  %v2928 = vsel %vm2896, 1, 0
  %v2929 = vsel %vm2897, 1, 0
  %v2930 = vsel %vm2898, 1, 0
  %v2931 = vsel %vm2899, 1, 0
  %v2932 = vsel %vm2900, 1, 0
  %v2933 = vsel %vm2901, 1, 0
  %v2934 = vsel %vm2902, 1, 0
  %v2935 = vsel %vm2903, 1, 0
  %v2936 = vsel %vm2904, 1, 0
  %v2937 = vsel %vm2905, 1, 0
  %v2938 = vsel %vm2906, 1, 0
  %v2939 = vsel %vm2907, 1, 0
  %v2940 = vsel %vm2908, 1, 0
  %v2941 = vsel %vm2909, 1, 0
  %v2942 = vsel %vm2910, 1, 0
  %v2943 = vsel %vm2911, 1, 0
  %v2944 = vsel %vm2912, 1, 0
  %v2945 = vsel %vm2913, 1, 0
  %v2946 = vsel %vm2914, 1, 0
  %v2947 = vsel %vm2915, 1, 0
  %v2948 = vsel %vm2916, 1, 0
  %v2949 = vsel %vm2917, 1, 0
  %v2950 = vsel %vm2918, 1, 0
  %v2951 = vsel %vm2919, 1, 0
  %v2952 = vsel %vm2920, 1, 0
  %v2953 = vsel %vm2921, 1, 0
  %v2954 = vsel %vm2922, 1, 0
  %v2955 = vsel %vm2923, 1, 0
  %v2956 = vsel %vm2924, 1, 0
  %v2957 = vsel %vm2925, 1, 0
  %v2958 = vcvt.s32.f32 %v2926
  %v2959 = vcvt.s32.f32 %v2927
  %v2960 = vcvt.s32.f32 %v2928
  %v2961 = vcvt.s32.f32 %v2929
  %v2962 = vcvt.s32.f32 %v2930
  %v2963 = vcvt.s32.f32 %v2931
  %v2964 = vcvt.s32.f32 %v2932
  %v2965 = vcvt.s32.f32 %v2933
  %v2966 = vcvt.s32.f32 %v2934
  %v2967 = vcvt.s32.f32 %v2935
  %v2968 = vcvt.s32.f32 %v2936
  %v2969 = vcvt.s32.f32 %v2937
  %v2970 = vcvt.s32.f32 %v2938
  %v2971 = vcvt.s32.f32 %v2939
  %v2972 = vcvt.s32.f32 %v2940
  %v2973 = vcvt.s32.f32 %v2941
  %v2974 = vcvt.s32.f32 %v2942
  %v2975 = vcvt.s32.f32 %v2943
  %v2976 = vcvt.s32.f32 %v2944
  %v2977 = vcvt.s32.f32 %v2945
  %v2978 = vcvt.s32.f32 %v2946
  %v2979 = vcvt.s32.f32 %v2947
  %v2980 = vcvt.s32.f32 %v2948
  %v2981 = vcvt.s32.f32 %v2949
  %v2982 = vcvt.s32.f32 %v2950
  %v2983 = vcvt.s32.f32 %v2951
  %v2984 = vcvt.s32.f32 %v2952
  %v2985 = vcvt.s32.f32 %v2953
  %v2986 = vcvt.s32.f32 %v2954
  %v2987 = vcvt.s32.f32 %v2955
  %v2988 = vcvt.s32.f32 %v2956
  %v2989 = vcvt.s32.f32 %v2957
  %vm2990 = vcmp.lt.s32.totalorder %v2382, 0
  %v2991 = vsub.s32 0, %v2382
  %v2992 = vsel %vm2990, %v2991, %v2382
  %v2993 = vshrl.u32 %v2992, 3
  %v2994 = vand.u32 %v2992, 7
  %v2995 = vsub.s32 0, %v2994
  %v2996 = vsel %vm2990, %v2995, %v2994
  %vm2997 = vcmp.lt.s32.totalorder %v2383, 0
  %v2998 = vsub.s32 0, %v2383
  %v2999 = vsel %vm2997, %v2998, %v2383
  %v3000 = vshrl.u32 %v2999, 3
  %v3001 = vand.u32 %v2999, 7
  %v3002 = vsub.s32 0, %v3001
  %v3003 = vsel %vm2997, %v3002, %v3001
  %vm3004 = vcmp.lt.s32.totalorder %v2384, 0
  %v3005 = vsub.s32 0, %v2384
  %v3006 = vsel %vm3004, %v3005, %v2384
  %v3007 = vshrl.u32 %v3006, 3
  %v3008 = vand.u32 %v3006, 7
  %v3009 = vsub.s32 0, %v3008
  %v3010 = vsel %vm3004, %v3009, %v3008
  %vm3011 = vcmp.lt.s32.totalorder %v2385, 0
  %v3012 = vsub.s32 0, %v2385
  %v3013 = vsel %vm3011, %v3012, %v2385
  %v3014 = vshrl.u32 %v3013, 3
  %v3015 = vand.u32 %v3013, 7
  %v3016 = vsub.s32 0, %v3015
  %v3017 = vsel %vm3011, %v3016, %v3015
  %vm3018 = vcmp.lt.s32.totalorder %v2386, 0
  %v3019 = vsub.s32 0, %v2386
  %v3020 = vsel %vm3018, %v3019, %v2386
  %v3021 = vshrl.u32 %v3020, 3
  %v3022 = vand.u32 %v3020, 7
  %v3023 = vsub.s32 0, %v3022
  %v3024 = vsel %vm3018, %v3023, %v3022
  %vm3025 = vcmp.lt.s32.totalorder %v2387, 0
  %v3026 = vsub.s32 0, %v2387
  %v3027 = vsel %vm3025, %v3026, %v2387
  %v3028 = vshrl.u32 %v3027, 3
  %v3029 = vand.u32 %v3027, 7
  %v3030 = vsub.s32 0, %v3029
  %v3031 = vsel %vm3025, %v3030, %v3029
  %vm3032 = vcmp.lt.s32.totalorder %v2388, 0
  %v3033 = vsub.s32 0, %v2388
  %v3034 = vsel %vm3032, %v3033, %v2388
  %v3035 = vshrl.u32 %v3034, 3
  %v3036 = vand.u32 %v3034, 7
  %v3037 = vsub.s32 0, %v3036
  %v3038 = vsel %vm3032, %v3037, %v3036
  %vm3039 = vcmp.lt.s32.totalorder %v2389, 0
  %v3040 = vsub.s32 0, %v2389
  %v3041 = vsel %vm3039, %v3040, %v2389
  %v3042 = vshrl.u32 %v3041, 3
  %v3043 = vand.u32 %v3041, 7
  %v3044 = vsub.s32 0, %v3043
  %v3045 = vsel %vm3039, %v3044, %v3043
  %vm3046 = vcmp.ne.s32.totalorder %v2996, 0
  %vm3047 = vcmp.ne.s32.totalorder %v3003, 0
  %vm3048 = vcmp.ne.s32.totalorder %v3010, 0
  %vm3049 = vcmp.ne.s32.totalorder %v3017, 0
  %vm3050 = vcmp.ne.s32.totalorder %v3024, 0
  %vm3051 = vcmp.ne.s32.totalorder %v3031, 0
  %vm3052 = vcmp.ne.s32.totalorder %v3038, 0
  %vm3053 = vcmp.ne.s32.totalorder %v3045, 0
  %vm3054 = vcmp.lt.s32.totalorder %v2996, 0
  %vm3055 = vcmp.lt.s32.totalorder %v3003, 0
  %vm3056 = vcmp.lt.s32.totalorder %v3010, 0
  %vm3057 = vcmp.lt.s32.totalorder %v3017, 0
  %vm3058 = vcmp.lt.s32.totalorder %v3024, 0
  %vm3059 = vcmp.lt.s32.totalorder %v3031, 0
  %vm3060 = vcmp.lt.s32.totalorder %v3038, 0
  %vm3061 = vcmp.lt.s32.totalorder %v3045, 0
  %vm3062 = vmand %vm3054, %vm3046
  %vm3063 = vmand %vm3055, %vm3047
  %vm3064 = vmand %vm3056, %vm3048
  %vm3065 = vmand %vm3057, %vm3049
  %vm3066 = vmand %vm3058, %vm3050
  %vm3067 = vmand %vm3059, %vm3051
  %vm3068 = vmand %vm3060, %vm3052
  %vm3069 = vmand %vm3061, %vm3053
  %v3070 = vadd.s32 %v2996, 8
  %v3071 = vadd.s32 %v3003, 8
  %v3072 = vadd.s32 %v3010, 8
  %v3073 = vadd.s32 %v3017, 8
  %v3074 = vadd.s32 %v3024, 8
  %v3075 = vadd.s32 %v3031, 8
  %v3076 = vadd.s32 %v3038, 8
  %v3077 = vadd.s32 %v3045, 8
  %v3078 = vsel %vm3062, %v3070, %v2996
  %v3079 = vsel %vm3063, %v3071, %v3003
  %v3080 = vsel %vm3064, %v3072, %v3010
  %v3081 = vsel %vm3065, %v3073, %v3017
  %v3082 = vsel %vm3066, %v3074, %v3024
  %v3083 = vsel %vm3067, %v3075, %v3031
  %v3084 = vsel %vm3068, %v3076, %v3038
  %v3085 = vsel %vm3069, %v3077, %v3045
  %vm3086 = vcmp.ge.s32.totalorder %v3078, 1
  %vm3087 = vcmp.ge.s32.totalorder %v3079, 1
  %vm3088 = vcmp.ge.s32.totalorder %v3080, 1
  %vm3089 = vcmp.ge.s32.totalorder %v3081, 1
  %vm3090 = vcmp.ge.s32.totalorder %v3082, 1
  %vm3091 = vcmp.ge.s32.totalorder %v3083, 1
  %vm3092 = vcmp.ge.s32.totalorder %v3084, 1
  %vm3093 = vcmp.ge.s32.totalorder %v3085, 1
  %v3094 = vsel %vm3086, 1, 0
  %v3095 = vsel %vm3087, 1, 0
  %v3096 = vsel %vm3088, 1, 0
  %v3097 = vsel %vm3089, 1, 0
  %v3098 = vsel %vm3090, 1, 0
  %v3099 = vsel %vm3091, 1, 0
  %v3100 = vsel %vm3092, 1, 0
  %v3101 = vsel %vm3093, 1, 0
  %v3102 = vcvt.s32.f32 %v3094
  %v3103 = vcvt.s32.f32 %v3095
  %v3104 = vcvt.s32.f32 %v3096
  %v3105 = vcvt.s32.f32 %v3097
  %v3106 = vcvt.s32.f32 %v3098
  %v3107 = vcvt.s32.f32 %v3099
  %v3108 = vcvt.s32.f32 %v3100
  %v3109 = vcvt.s32.f32 %v3101
  %vm3110 = vcmp.le.s32.totalorder %v3078, 6
  %vm3111 = vcmp.le.s32.totalorder %v3079, 6
  %vm3112 = vcmp.le.s32.totalorder %v3080, 6
  %vm3113 = vcmp.le.s32.totalorder %v3081, 6
  %vm3114 = vcmp.le.s32.totalorder %v3082, 6
  %vm3115 = vcmp.le.s32.totalorder %v3083, 6
  %vm3116 = vcmp.le.s32.totalorder %v3084, 6
  %vm3117 = vcmp.le.s32.totalorder %v3085, 6
  %v3118 = vsel %vm3110, 1, 0
  %v3119 = vsel %vm3111, 1, 0
  %v3120 = vsel %vm3112, 1, 0
  %v3121 = vsel %vm3113, 1, 0
  %v3122 = vsel %vm3114, 1, 0
  %v3123 = vsel %vm3115, 1, 0
  %v3124 = vsel %vm3116, 1, 0
  %v3125 = vsel %vm3117, 1, 0
  %v3126 = vcvt.s32.f32 %v3118
  %v3127 = vcvt.s32.f32 %v3119
  %v3128 = vcvt.s32.f32 %v3120
  %v3129 = vcvt.s32.f32 %v3121
  %v3130 = vcvt.s32.f32 %v3122
  %v3131 = vcvt.s32.f32 %v3123
  %v3132 = vcvt.s32.f32 %v3124
  %v3133 = vcvt.s32.f32 %v3125
  %vm3142 = vcmask 1040384
  %v3143 = vrot.slane %v2163, 7
  %v3144 = vrot.slane %v2166, 7
  %v3145 = vsel %vm3142, %v3143, %v3144
  %v3146 = vrot.slane %v2169, 7
  %v3147 = vsel %vm3142, %v3144, %v3146
  %v3148 = vrot.slane %v2172, 7
  %v3149 = vsel %vm3142, %v3146, %v3148
  %v3150 = vrot.slane %v2175, 7
  %v3151 = vsel %vm3142, %v3148, %v3150
  %v3152 = vrot.slane %v2178, 7
  %v3153 = vsel %vm3142, %v3150, %v3152
  %v3154 = vrot.slane %v2181, 7
  %v3155 = vsel %vm3142, %v3152, %v3154
  %v3156 = vrot.slane %v2184, 7
  %v3157 = vsel %vm3142, %v3154, %v3156
  %v3167 = vsel %vm3142, 0.0, %v3143
  %v3168 = vsel %vm3142, %v3156, 0.0
  %v3169 = vmul.f32 %v3102, 0.0
  %v3170 = vmul.f32 %v3167, %v3103
  %v3171 = vmul.f32 %v3145, %v3104
  %v3172 = vmul.f32 %v3147, %v3105
  %v3173 = vmul.f32 %v3149, %v3106
  %v3174 = vmul.f32 %v3151, %v3107
  %v3175 = vmul.f32 %v3153, %v3108
  %v3176 = vmul.f32 %v3155, %v3109
  %v3177 = vperm.slane %v2378, 0
  %v3178 = vmul.f32 %v3169, %v3177
  %v3179 = vmul.f32 %v3170, %v3177
  %v3180 = vmul.f32 %v3171, %v3177
  %v3181 = vmul.f32 %v3172, %v3177
  %v3182 = vmul.f32 %v3173, %v3177
  %v3183 = vmul.f32 %v3174, %v3177
  %v3184 = vmul.f32 %v3175, %v3177
  %v3185 = vmul.f32 %v3176, %v3177
  %v3186 = vadd.f32 %v3178, 0.0
  %v3187 = vadd.f32 %v3179, 0.0
  %v3188 = vadd.f32 %v3180, 0.0
  %v3189 = vadd.f32 %v3181, 0.0
  %v3190 = vadd.f32 %v3182, 0.0
  %v3191 = vadd.f32 %v3183, 0.0
  %v3192 = vadd.f32 %v3184, 0.0
  %v3193 = vadd.f32 %v3185, 0.0
  %v3194 = vperm.slane %v2378, 1
  %v3195 = vmul.f32 %v3194, 0.0
  %v3196 = vmul.f32 %v3167, %v3194
  %v3197 = vmul.f32 %v3145, %v3194
  %v3198 = vmul.f32 %v3147, %v3194
  %v3199 = vmul.f32 %v3149, %v3194
  %v3200 = vmul.f32 %v3151, %v3194
  %v3201 = vmul.f32 %v3153, %v3194
  %v3202 = vmul.f32 %v3155, %v3194
  %v3203 = vmul.f32 %v3157, %v3194
  %vm3213 = vcmask 1046528
  %v3214 = vrot.slane %v3195, 1
  %v3215 = vrot.slane %v3196, 1
  %v3216 = vsel %vm3213, %v3214, %v3215
  %v3217 = vrot.slane %v3197, 1
  %v3218 = vsel %vm3213, %v3215, %v3217
  %v3219 = vrot.slane %v3198, 1
  %v3220 = vsel %vm3213, %v3217, %v3219
  %v3221 = vrot.slane %v3199, 1
  %v3222 = vsel %vm3213, %v3219, %v3221
  %v3223 = vrot.slane %v3200, 1
  %v3224 = vsel %vm3213, %v3221, %v3223
  %v3225 = vrot.slane %v3201, 1
  %v3226 = vsel %vm3213, %v3223, %v3225
  %v3227 = vrot.slane %v3202, 1
  %v3228 = vsel %vm3213, %v3225, %v3227
  %v3229 = vrot.slane %v3203, 1
  %v3230 = vsel %vm3213, %v3227, %v3229
  %v3239 = vadd.f32 %v3186, %v3216
  %v3240 = vadd.f32 %v3187, %v3218
  %v3241 = vadd.f32 %v3188, %v3220
  %v3242 = vadd.f32 %v3189, %v3222
  %v3243 = vadd.f32 %v3190, %v3224
  %v3244 = vadd.f32 %v3191, %v3226
  %v3245 = vadd.f32 %v3192, %v3228
  %v3246 = vadd.f32 %v3193, %v3230
  %vm3255 = vcmask 1041408
  %v3256 = vrot.slane %v3126, 6
  %v3257 = vrot.slane %v3127, 6
  %v3258 = vsel %vm3255, %v3256, %v3257
  %v3259 = vrot.slane %v3128, 6
  %v3260 = vsel %vm3255, %v3257, %v3259
  %v3261 = vrot.slane %v3129, 6
  %v3262 = vsel %vm3255, %v3259, %v3261
  %v3263 = vrot.slane %v3130, 6
  %v3264 = vsel %vm3255, %v3261, %v3263
  %v3265 = vrot.slane %v3131, 6
  %v3266 = vsel %vm3255, %v3263, %v3265
  %v3267 = vrot.slane %v3132, 6
  %v3268 = vsel %vm3255, %v3265, %v3267
  %v3269 = vrot.slane %v3133, 6
  %v3270 = vsel %vm3255, %v3267, %v3269
  %v3280 = vmul.f32 %v3256, 0.0
  %v3281 = vmul.f32 %v3167, %v3258
  %v3282 = vmul.f32 %v3145, %v3260
  %v3283 = vmul.f32 %v3147, %v3262
  %v3284 = vmul.f32 %v3149, %v3264
  %v3285 = vmul.f32 %v3151, %v3266
  %v3286 = vmul.f32 %v3153, %v3268
  %v3287 = vmul.f32 %v3155, %v3270
  %v3288 = vmul.f32 %v3157, %v3269
  %v3289 = vperm.slane %v2378, 2
  %v3290 = vmul.f32 %v3280, %v3289
  %v3291 = vmul.f32 %v3281, %v3289
  %v3292 = vmul.f32 %v3282, %v3289
  %v3293 = vmul.f32 %v3283, %v3289
  %v3294 = vmul.f32 %v3284, %v3289
  %v3295 = vmul.f32 %v3285, %v3289
  %v3296 = vmul.f32 %v3286, %v3289
  %v3297 = vmul.f32 %v3287, %v3289
  %v3298 = vmul.f32 %v3288, %v3289
  %vm3308 = vcmask 1045504
  %v3309 = vrot.slane %v3290, 2
  %v3310 = vrot.slane %v3291, 2
  %v3311 = vsel %vm3308, %v3309, %v3310
  %v3312 = vrot.slane %v3292, 2
  %v3313 = vsel %vm3308, %v3310, %v3312
  %v3314 = vrot.slane %v3293, 2
  %v3315 = vsel %vm3308, %v3312, %v3314
  %v3316 = vrot.slane %v3294, 2
  %v3317 = vsel %vm3308, %v3314, %v3316
  %v3318 = vrot.slane %v3295, 2
  %v3319 = vsel %vm3308, %v3316, %v3318
  %v3320 = vrot.slane %v3296, 2
  %v3321 = vsel %vm3308, %v3318, %v3320
  %v3322 = vrot.slane %v3297, 2
  %v3323 = vsel %vm3308, %v3320, %v3322
  %v3324 = vrot.slane %v3298, 2
  %v3325 = vsel %vm3308, %v3322, %v3324
  %v3334 = vadd.f32 %v3239, %v3311
  %v3335 = vadd.f32 %v3240, %v3313
  %v3336 = vadd.f32 %v3241, %v3315
  %v3337 = vadd.f32 %v3242, %v3317
  %v3338 = vadd.f32 %v3243, %v3319
  %v3339 = vadd.f32 %v3244, %v3321
  %v3340 = vadd.f32 %v3245, %v3323
  %v3341 = vadd.f32 %v3246, %v3325
  %v3342 = vmul.f32 %v3167, %v3102
  %v3343 = vmul.f32 %v3145, %v3103
  %v3344 = vmul.f32 %v3147, %v3104
  %v3345 = vmul.f32 %v3149, %v3105
  %v3346 = vmul.f32 %v3151, %v3106
  %v3347 = vmul.f32 %v3153, %v3107
  %v3348 = vmul.f32 %v3155, %v3108
  %v3349 = vmul.f32 %v3157, %v3109
  %v3350 = vperm.slane %v2378, 3
  %v3351 = vmul.f32 %v3342, %v3350
  %v3352 = vmul.f32 %v3343, %v3350
  %v3353 = vmul.f32 %v3344, %v3350
  %v3354 = vmul.f32 %v3345, %v3350
  %v3355 = vmul.f32 %v3346, %v3350
  %v3356 = vmul.f32 %v3347, %v3350
  %v3357 = vmul.f32 %v3348, %v3350
  %v3358 = vmul.f32 %v3349, %v3350
  %v3359 = vadd.f32 %v3334, %v3351
  %v3360 = vadd.f32 %v3335, %v3352
  %v3361 = vadd.f32 %v3336, %v3353
  %v3362 = vadd.f32 %v3337, %v3354
  %v3363 = vadd.f32 %v3338, %v3355
  %v3364 = vadd.f32 %v3339, %v3356
  %v3365 = vadd.f32 %v3340, %v3357
  %v3366 = vadd.f32 %v3341, %v3358
  %v3367 = vperm.slane %v2378, 4
  %v3368 = vmul.f32 %v3167, %v3367
  %v3369 = vmul.f32 %v3145, %v3367
  %v3370 = vmul.f32 %v3147, %v3367
  %v3371 = vmul.f32 %v3149, %v3367
  %v3372 = vmul.f32 %v3151, %v3367
  %v3373 = vmul.f32 %v3153, %v3367
  %v3374 = vmul.f32 %v3155, %v3367
  %v3375 = vmul.f32 %v3157, %v3367
  %v3376 = vmul.f32 %v3168, %v3367
  %v3386 = vrot.slane %v3368, 1
  %v3387 = vrot.slane %v3369, 1
  %v3388 = vsel %vm3213, %v3386, %v3387
  %v3389 = vrot.slane %v3370, 1
  %v3390 = vsel %vm3213, %v3387, %v3389
  %v3391 = vrot.slane %v3371, 1
  %v3392 = vsel %vm3213, %v3389, %v3391
  %v3393 = vrot.slane %v3372, 1
  %v3394 = vsel %vm3213, %v3391, %v3393
  %v3395 = vrot.slane %v3373, 1
  %v3396 = vsel %vm3213, %v3393, %v3395
  %v3397 = vrot.slane %v3374, 1
  %v3398 = vsel %vm3213, %v3395, %v3397
  %v3399 = vrot.slane %v3375, 1
  %v3400 = vsel %vm3213, %v3397, %v3399
  %v3401 = vrot.slane %v3376, 1
  %v3402 = vsel %vm3213, %v3399, %v3401
  %v3411 = vadd.f32 %v3359, %v3388
  %v3412 = vadd.f32 %v3360, %v3390
  %v3413 = vadd.f32 %v3361, %v3392
  %v3414 = vadd.f32 %v3362, %v3394
  %v3415 = vadd.f32 %v3363, %v3396
  %v3416 = vadd.f32 %v3364, %v3398
  %v3417 = vadd.f32 %v3365, %v3400
  %v3418 = vadd.f32 %v3366, %v3402
  %v3419 = vmul.f32 %v3167, %v3256
  %v3420 = vmul.f32 %v3145, %v3258
  %v3421 = vmul.f32 %v3147, %v3260
  %v3422 = vmul.f32 %v3149, %v3262
  %v3423 = vmul.f32 %v3151, %v3264
  %v3424 = vmul.f32 %v3153, %v3266
  %v3425 = vmul.f32 %v3155, %v3268
  %v3426 = vmul.f32 %v3157, %v3270
  %v3427 = vmul.f32 %v3168, %v3269
  %v3428 = vperm.slane %v2378, 5
  %v3429 = vmul.f32 %v3419, %v3428
  %v3430 = vmul.f32 %v3420, %v3428
  %v3431 = vmul.f32 %v3421, %v3428
  %v3432 = vmul.f32 %v3422, %v3428
  %v3433 = vmul.f32 %v3423, %v3428
  %v3434 = vmul.f32 %v3424, %v3428
  %v3435 = vmul.f32 %v3425, %v3428
  %v3436 = vmul.f32 %v3426, %v3428
  %v3437 = vmul.f32 %v3427, %v3428
  %v3447 = vrot.slane %v3429, 2
  %v3448 = vrot.slane %v3430, 2
  %v3449 = vsel %vm3308, %v3447, %v3448
  %v3450 = vrot.slane %v3431, 2
  %v3451 = vsel %vm3308, %v3448, %v3450
  %v3452 = vrot.slane %v3432, 2
  %v3453 = vsel %vm3308, %v3450, %v3452
  %v3454 = vrot.slane %v3433, 2
  %v3455 = vsel %vm3308, %v3452, %v3454
  %v3456 = vrot.slane %v3434, 2
  %v3457 = vsel %vm3308, %v3454, %v3456
  %v3458 = vrot.slane %v3435, 2
  %v3459 = vsel %vm3308, %v3456, %v3458
  %v3460 = vrot.slane %v3436, 2
  %v3461 = vsel %vm3308, %v3458, %v3460
  %v3462 = vrot.slane %v3437, 2
  %v3463 = vsel %vm3308, %v3460, %v3462
  %v3472 = vadd.f32 %v3411, %v3449
  %v3473 = vadd.f32 %v3412, %v3451
  %v3474 = vadd.f32 %v3413, %v3453
  %v3475 = vadd.f32 %v3414, %v3455
  %v3476 = vadd.f32 %v3415, %v3457
  %v3477 = vadd.f32 %v3416, %v3459
  %v3478 = vadd.f32 %v3417, %v3461
  %v3479 = vadd.f32 %v3418, %v3463
  %v3480 = vmul.f32 %v3145, %v3102
  %v3481 = vmul.f32 %v3147, %v3103
  %v3482 = vmul.f32 %v3149, %v3104
  %v3483 = vmul.f32 %v3151, %v3105
  %v3484 = vmul.f32 %v3153, %v3106
  %v3485 = vmul.f32 %v3155, %v3107
  %v3486 = vmul.f32 %v3157, %v3108
  %v3487 = vmul.f32 %v3168, %v3109
  %v3488 = vperm.slane %v2378, 6
  %v3489 = vmul.f32 %v3480, %v3488
  %v3490 = vmul.f32 %v3481, %v3488
  %v3491 = vmul.f32 %v3482, %v3488
  %v3492 = vmul.f32 %v3483, %v3488
  %v3493 = vmul.f32 %v3484, %v3488
  %v3494 = vmul.f32 %v3485, %v3488
  %v3495 = vmul.f32 %v3486, %v3488
  %v3496 = vmul.f32 %v3487, %v3488
  %v3497 = vadd.f32 %v3472, %v3489
  %v3498 = vadd.f32 %v3473, %v3490
  %v3499 = vadd.f32 %v3474, %v3491
  %v3500 = vadd.f32 %v3475, %v3492
  %v3501 = vadd.f32 %v3476, %v3493
  %v3502 = vadd.f32 %v3477, %v3494
  %v3503 = vadd.f32 %v3478, %v3495
  %v3504 = vadd.f32 %v3479, %v3496
  %v3505 = vperm.slane %v2378, 7
  %v3506 = vmul.f32 %v3145, %v3505
  %v3507 = vmul.f32 %v3147, %v3505
  %v3508 = vmul.f32 %v3149, %v3505
  %v3509 = vmul.f32 %v3151, %v3505
  %v3510 = vmul.f32 %v3153, %v3505
  %v3511 = vmul.f32 %v3155, %v3505
  %v3512 = vmul.f32 %v3157, %v3505
  %v3513 = vmul.f32 %v3168, %v3505
  %v3514 = vmul.f32 %v3505, 0.0
  %v3524 = vrot.slane %v3506, 1
  %v3525 = vrot.slane %v3507, 1
  %v3526 = vsel %vm3213, %v3524, %v3525
  %v3527 = vrot.slane %v3508, 1
  %v3528 = vsel %vm3213, %v3525, %v3527
  %v3529 = vrot.slane %v3509, 1
  %v3530 = vsel %vm3213, %v3527, %v3529
  %v3531 = vrot.slane %v3510, 1
  %v3532 = vsel %vm3213, %v3529, %v3531
  %v3533 = vrot.slane %v3511, 1
  %v3534 = vsel %vm3213, %v3531, %v3533
  %v3535 = vrot.slane %v3512, 1
  %v3536 = vsel %vm3213, %v3533, %v3535
  %v3537 = vrot.slane %v3513, 1
  %v3538 = vsel %vm3213, %v3535, %v3537
  %v3539 = vrot.slane %v3514, 1
  %v3540 = vsel %vm3213, %v3537, %v3539
  %v3549 = vadd.f32 %v3497, %v3526
  %v3550 = vadd.f32 %v3498, %v3528
  %v3551 = vadd.f32 %v3499, %v3530
  %v3552 = vadd.f32 %v3500, %v3532
  %v3553 = vadd.f32 %v3501, %v3534
  %v3554 = vadd.f32 %v3502, %v3536
  %v3555 = vadd.f32 %v3503, %v3538
  %v3556 = vadd.f32 %v3504, %v3540
  %v3557 = vmul.f32 %v3145, %v3256
  %v3558 = vmul.f32 %v3147, %v3258
  %v3559 = vmul.f32 %v3149, %v3260
  %v3560 = vmul.f32 %v3151, %v3262
  %v3561 = vmul.f32 %v3153, %v3264
  %v3562 = vmul.f32 %v3155, %v3266
  %v3563 = vmul.f32 %v3157, %v3268
  %v3564 = vmul.f32 %v3168, %v3270
  %v3565 = vmul.f32 %v3269, 0.0
  %v3566 = vperm.slane %v2379, 0
  %v3567 = vmul.f32 %v3557, %v3566
  %v3568 = vmul.f32 %v3558, %v3566
  %v3569 = vmul.f32 %v3559, %v3566
  %v3570 = vmul.f32 %v3560, %v3566
  %v3571 = vmul.f32 %v3561, %v3566
  %v3572 = vmul.f32 %v3562, %v3566
  %v3573 = vmul.f32 %v3563, %v3566
  %v3574 = vmul.f32 %v3564, %v3566
  %v3575 = vmul.f32 %v3565, %v3566
  %v3585 = vrot.slane %v3567, 2
  %v3586 = vrot.slane %v3568, 2
  %v3587 = vsel %vm3308, %v3585, %v3586
  %v3588 = vrot.slane %v3569, 2
  %v3589 = vsel %vm3308, %v3586, %v3588
  %v3590 = vrot.slane %v3570, 2
  %v3591 = vsel %vm3308, %v3588, %v3590
  %v3592 = vrot.slane %v3571, 2
  %v3593 = vsel %vm3308, %v3590, %v3592
  %v3594 = vrot.slane %v3572, 2
  %v3595 = vsel %vm3308, %v3592, %v3594
  %v3596 = vrot.slane %v3573, 2
  %v3597 = vsel %vm3308, %v3594, %v3596
  %v3598 = vrot.slane %v3574, 2
  %v3599 = vsel %vm3308, %v3596, %v3598
  %v3600 = vrot.slane %v3575, 2
  %v3601 = vsel %vm3308, %v3598, %v3600
  %v3610 = vadd.f32 %v3549, %v3587
  %v3611 = vadd.f32 %v3550, %v3589
  %v3612 = vadd.f32 %v3551, %v3591
  %v3613 = vadd.f32 %v3552, %v3593
  %v3614 = vadd.f32 %v3553, %v3595
  %v3615 = vadd.f32 %v3554, %v3597
  %v3616 = vadd.f32 %v3555, %v3599
  %v3617 = vadd.f32 %v3556, %v3601
  %v3618 = vperm.slane %v2380, 0
  %v3619 = vadd.f32 %v3610, %v3618
  %v3620 = vadd.f32 %v3611, %v3618
  %v3621 = vadd.f32 %v3612, %v3618
  %v3622 = vadd.f32 %v3613, %v3618
  %v3623 = vadd.f32 %v3614, %v3618
  %v3624 = vadd.f32 %v3615, %v3618
  %v3625 = vadd.f32 %v3616, %v3618
  %v3626 = vadd.f32 %v3617, %v3618
  %v3651 = vrot.slane %v2187, 7
  %v3652 = vsel %vm3142, %v3156, %v3651
  %v3653 = vrot.slane %v2190, 7
  %v3654 = vsel %vm3142, %v3651, %v3653
  %v3655 = vrot.slane %v2193, 7
  %v3656 = vsel %vm3142, %v3653, %v3655
  %v3657 = vrot.slane %v2196, 7
  %v3658 = vsel %vm3142, %v3655, %v3657
  %v3659 = vrot.slane %v2199, 7
  %v3660 = vsel %vm3142, %v3657, %v3659
  %v3661 = vrot.slane %v2202, 7
  %v3662 = vsel %vm3142, %v3659, %v3661
  %v3663 = vrot.slane %v2205, 7
  %v3664 = vsel %vm3142, %v3661, %v3663
  %v3665 = vrot.slane %v2208, 7
  %v3666 = vsel %vm3142, %v3663, %v3665
  %v3667 = vrot.slane %v2211, 7
  %v3668 = vsel %vm3142, %v3665, %v3667
  %v3669 = vrot.slane %v2214, 7
  %v3670 = vsel %vm3142, %v3667, %v3669
  %v3671 = vrot.slane %v2217, 7
  %v3672 = vsel %vm3142, %v3669, %v3671
  %v3673 = vrot.slane %v2220, 7
  %v3674 = vsel %vm3142, %v3671, %v3673
  %v3675 = vrot.slane %v2223, 7
  %v3676 = vsel %vm3142, %v3673, %v3675
  %v3677 = vrot.slane %v2226, 7
  %v3678 = vsel %vm3142, %v3675, %v3677
  %v3679 = vrot.slane %v2229, 7
  %v3680 = vsel %vm3142, %v3677, %v3679
  %v3681 = vrot.slane %v2232, 7
  %v3682 = vsel %vm3142, %v3679, %v3681
  %v3683 = vrot.slane %v2235, 7
  %v3684 = vsel %vm3142, %v3681, %v3683
  %v3685 = vrot.slane %v2238, 7
  %v3686 = vsel %vm3142, %v3683, %v3685
  %v3687 = vrot.slane %v2241, 7
  %v3688 = vsel %vm3142, %v3685, %v3687
  %v3689 = vrot.slane %v2244, 7
  %v3690 = vsel %vm3142, %v3687, %v3689
  %v3691 = vrot.slane %v2247, 7
  %v3692 = vsel %vm3142, %v3689, %v3691
  %v3693 = vrot.slane %v2250, 7
  %v3694 = vsel %vm3142, %v3691, %v3693
  %v3695 = vrot.slane %v2253, 7
  %v3696 = vsel %vm3142, %v3693, %v3695
  %v3697 = vrot.slane %v2256, 7
  %v3698 = vsel %vm3142, %v3695, %v3697
  %v3724 = vsel %vm3142, %v3697, 0.0
  %v3725 = vmul.f32 %v2862, 0.0
  %v3726 = vmul.f32 %v2863, 0.0
  %v3727 = vmul.f32 %v3167, %v2864
  %v3728 = vmul.f32 %v3145, %v2865
  %v3729 = vmul.f32 %v3147, %v2866
  %v3730 = vmul.f32 %v3149, %v2867
  %v3731 = vmul.f32 %v3151, %v2868
  %v3732 = vmul.f32 %v3153, %v2869
  %v3733 = vmul.f32 %v3155, %v2870
  %v3734 = vmul.f32 %v3157, %v2871
  %v3735 = vmul.f32 %v3652, %v2872
  %v3736 = vmul.f32 %v3654, %v2873
  %v3737 = vmul.f32 %v3656, %v2874
  %v3738 = vmul.f32 %v3658, %v2875
  %v3739 = vmul.f32 %v3660, %v2876
  %v3740 = vmul.f32 %v3662, %v2877
  %v3741 = vmul.f32 %v3664, %v2878
  %v3742 = vmul.f32 %v3666, %v2879
  %v3743 = vmul.f32 %v3668, %v2880
  %v3744 = vmul.f32 %v3670, %v2881
  %v3745 = vmul.f32 %v3672, %v2882
  %v3746 = vmul.f32 %v3674, %v2883
  %v3747 = vmul.f32 %v3676, %v2884
  %v3748 = vmul.f32 %v3678, %v2885
  %v3749 = vmul.f32 %v3680, %v2886
  %v3750 = vmul.f32 %v3682, %v2887
  %v3751 = vmul.f32 %v3684, %v2888
  %v3752 = vmul.f32 %v3686, %v2889
  %v3753 = vmul.f32 %v3688, %v2890
  %v3754 = vmul.f32 %v3690, %v2891
  %v3755 = vmul.f32 %v3692, %v2892
  %v3756 = vmul.f32 %v3694, %v2893
  %v3757 = vmul.f32 %v3725, %v3177
  %v3758 = vmul.f32 %v3726, %v3177
  %v3759 = vmul.f32 %v3727, %v3177
  %v3760 = vmul.f32 %v3728, %v3177
  %v3761 = vmul.f32 %v3729, %v3177
  %v3762 = vmul.f32 %v3730, %v3177
  %v3763 = vmul.f32 %v3731, %v3177
  %v3764 = vmul.f32 %v3732, %v3177
  %v3765 = vmul.f32 %v3733, %v3177
  %v3766 = vmul.f32 %v3734, %v3177
  %v3767 = vmul.f32 %v3735, %v3177
  %v3768 = vmul.f32 %v3736, %v3177
  %v3769 = vmul.f32 %v3737, %v3177
  %v3770 = vmul.f32 %v3738, %v3177
  %v3771 = vmul.f32 %v3739, %v3177
  %v3772 = vmul.f32 %v3740, %v3177
  %v3773 = vmul.f32 %v3741, %v3177
  %v3774 = vmul.f32 %v3742, %v3177
  %v3775 = vmul.f32 %v3743, %v3177
  %v3776 = vmul.f32 %v3744, %v3177
  %v3777 = vmul.f32 %v3745, %v3177
  %v3778 = vmul.f32 %v3746, %v3177
  %v3779 = vmul.f32 %v3747, %v3177
  %v3780 = vmul.f32 %v3748, %v3177
  %v3781 = vmul.f32 %v3749, %v3177
  %v3782 = vmul.f32 %v3750, %v3177
  %v3783 = vmul.f32 %v3751, %v3177
  %v3784 = vmul.f32 %v3752, %v3177
  %v3785 = vmul.f32 %v3753, %v3177
  %v3786 = vmul.f32 %v3754, %v3177
  %v3787 = vmul.f32 %v3755, %v3177
  %v3788 = vmul.f32 %v3756, %v3177
  %v3789 = vadd.f32 %v3757, 0.0
  %v3790 = vadd.f32 %v3758, 0.0
  %v3791 = vadd.f32 %v3759, 0.0
  %v3792 = vadd.f32 %v3760, 0.0
  %v3793 = vadd.f32 %v3761, 0.0
  %v3794 = vadd.f32 %v3762, 0.0
  %v3795 = vadd.f32 %v3763, 0.0
  %v3796 = vadd.f32 %v3764, 0.0
  %v3797 = vadd.f32 %v3765, 0.0
  %v3798 = vadd.f32 %v3766, 0.0
  %v3799 = vadd.f32 %v3767, 0.0
  %v3800 = vadd.f32 %v3768, 0.0
  %v3801 = vadd.f32 %v3769, 0.0
  %v3802 = vadd.f32 %v3770, 0.0
  %v3803 = vadd.f32 %v3771, 0.0
  %v3804 = vadd.f32 %v3772, 0.0
  %v3805 = vadd.f32 %v3773, 0.0
  %v3806 = vadd.f32 %v3774, 0.0
  %v3807 = vadd.f32 %v3775, 0.0
  %v3808 = vadd.f32 %v3776, 0.0
  %v3809 = vadd.f32 %v3777, 0.0
  %v3810 = vadd.f32 %v3778, 0.0
  %v3811 = vadd.f32 %v3779, 0.0
  %v3812 = vadd.f32 %v3780, 0.0
  %v3813 = vadd.f32 %v3781, 0.0
  %v3814 = vadd.f32 %v3782, 0.0
  %v3815 = vadd.f32 %v3783, 0.0
  %v3816 = vadd.f32 %v3784, 0.0
  %v3817 = vadd.f32 %v3785, 0.0
  %v3818 = vadd.f32 %v3786, 0.0
  %v3819 = vadd.f32 %v3787, 0.0
  %v3820 = vadd.f32 %v3788, 0.0
  %v3821 = vmul.f32 %v3652, %v3194
  %v3822 = vmul.f32 %v3654, %v3194
  %v3823 = vmul.f32 %v3656, %v3194
  %v3824 = vmul.f32 %v3658, %v3194
  %v3825 = vmul.f32 %v3660, %v3194
  %v3826 = vmul.f32 %v3662, %v3194
  %v3827 = vmul.f32 %v3664, %v3194
  %v3828 = vmul.f32 %v3666, %v3194
  %v3829 = vmul.f32 %v3668, %v3194
  %v3830 = vmul.f32 %v3670, %v3194
  %v3831 = vmul.f32 %v3672, %v3194
  %v3832 = vmul.f32 %v3674, %v3194
  %v3833 = vmul.f32 %v3676, %v3194
  %v3834 = vmul.f32 %v3678, %v3194
  %v3835 = vmul.f32 %v3680, %v3194
  %v3836 = vmul.f32 %v3682, %v3194
  %v3837 = vmul.f32 %v3684, %v3194
  %v3838 = vmul.f32 %v3686, %v3194
  %v3839 = vmul.f32 %v3688, %v3194
  %v3840 = vmul.f32 %v3690, %v3194
  %v3841 = vmul.f32 %v3692, %v3194
  %v3842 = vmul.f32 %v3694, %v3194
  %v3843 = vmul.f32 %v3696, %v3194
  %v3867 = vsel %vm3213, %v3214, %v3214
  %v3868 = vrot.slane %v3821, 1
  %v3869 = vsel %vm3213, %v3229, %v3868
  %v3870 = vrot.slane %v3822, 1
  %v3871 = vsel %vm3213, %v3868, %v3870
  %v3872 = vrot.slane %v3823, 1
  %v3873 = vsel %vm3213, %v3870, %v3872
  %v3874 = vrot.slane %v3824, 1
  %v3875 = vsel %vm3213, %v3872, %v3874
  %v3876 = vrot.slane %v3825, 1
  %v3877 = vsel %vm3213, %v3874, %v3876
  %v3878 = vrot.slane %v3826, 1
  %v3879 = vsel %vm3213, %v3876, %v3878
  %v3880 = vrot.slane %v3827, 1
  %v3881 = vsel %vm3213, %v3878, %v3880
  %v3882 = vrot.slane %v3828, 1
  %v3883 = vsel %vm3213, %v3880, %v3882
  %v3884 = vrot.slane %v3829, 1
  %v3885 = vsel %vm3213, %v3882, %v3884
  %v3886 = vrot.slane %v3830, 1
  %v3887 = vsel %vm3213, %v3884, %v3886
  %v3888 = vrot.slane %v3831, 1
  %v3889 = vsel %vm3213, %v3886, %v3888
  %v3890 = vrot.slane %v3832, 1
  %v3891 = vsel %vm3213, %v3888, %v3890
  %v3892 = vrot.slane %v3833, 1
  %v3893 = vsel %vm3213, %v3890, %v3892
  %v3894 = vrot.slane %v3834, 1
  %v3895 = vsel %vm3213, %v3892, %v3894
  %v3896 = vrot.slane %v3835, 1
  %v3897 = vsel %vm3213, %v3894, %v3896
  %v3898 = vrot.slane %v3836, 1
  %v3899 = vsel %vm3213, %v3896, %v3898
  %v3900 = vrot.slane %v3837, 1
  %v3901 = vsel %vm3213, %v3898, %v3900
  %v3902 = vrot.slane %v3838, 1
  %v3903 = vsel %vm3213, %v3900, %v3902
  %v3904 = vrot.slane %v3839, 1
  %v3905 = vsel %vm3213, %v3902, %v3904
  %v3906 = vrot.slane %v3840, 1
  %v3907 = vsel %vm3213, %v3904, %v3906
  %v3908 = vrot.slane %v3841, 1
  %v3909 = vsel %vm3213, %v3906, %v3908
  %v3910 = vrot.slane %v3842, 1
  %v3911 = vsel %vm3213, %v3908, %v3910
  %v3912 = vrot.slane %v3843, 1
  %v3913 = vsel %vm3213, %v3910, %v3912
  %v3938 = vadd.f32 %v3789, %v3867
  %v3939 = vadd.f32 %v3790, %v3216
  %v3940 = vadd.f32 %v3791, %v3218
  %v3941 = vadd.f32 %v3792, %v3220
  %v3942 = vadd.f32 %v3793, %v3222
  %v3943 = vadd.f32 %v3794, %v3224
  %v3944 = vadd.f32 %v3795, %v3226
  %v3945 = vadd.f32 %v3796, %v3228
  %v3946 = vadd.f32 %v3797, %v3230
  %v3947 = vadd.f32 %v3798, %v3869
  %v3948 = vadd.f32 %v3799, %v3871
  %v3949 = vadd.f32 %v3800, %v3873
  %v3950 = vadd.f32 %v3801, %v3875
  %v3951 = vadd.f32 %v3802, %v3877
  %v3952 = vadd.f32 %v3803, %v3879
  %v3953 = vadd.f32 %v3804, %v3881
  %v3954 = vadd.f32 %v3805, %v3883
  %v3955 = vadd.f32 %v3806, %v3885
  %v3956 = vadd.f32 %v3807, %v3887
  %v3957 = vadd.f32 %v3808, %v3889
  %v3958 = vadd.f32 %v3809, %v3891
  %v3959 = vadd.f32 %v3810, %v3893
  %v3960 = vadd.f32 %v3811, %v3895
  %v3961 = vadd.f32 %v3812, %v3897
  %v3962 = vadd.f32 %v3813, %v3899
  %v3963 = vadd.f32 %v3814, %v3901
  %v3964 = vadd.f32 %v3815, %v3903
  %v3965 = vadd.f32 %v3816, %v3905
  %v3966 = vadd.f32 %v3817, %v3907
  %v3967 = vadd.f32 %v3818, %v3909
  %v3968 = vadd.f32 %v3819, %v3911
  %v3969 = vadd.f32 %v3820, %v3913
  %v4002 = vrot.slane %v2958, 6
  %v4003 = vrot.slane %v2959, 6
  %v4004 = vsel %vm3255, %v4002, %v4003
  %v4005 = vrot.slane %v2960, 6
  %v4006 = vsel %vm3255, %v4003, %v4005
  %v4007 = vrot.slane %v2961, 6
  %v4008 = vsel %vm3255, %v4005, %v4007
  %v4009 = vrot.slane %v2962, 6
  %v4010 = vsel %vm3255, %v4007, %v4009
  %v4011 = vrot.slane %v2963, 6
  %v4012 = vsel %vm3255, %v4009, %v4011
  %v4013 = vrot.slane %v2964, 6
  %v4014 = vsel %vm3255, %v4011, %v4013
  %v4015 = vrot.slane %v2965, 6
  %v4016 = vsel %vm3255, %v4013, %v4015
  %v4017 = vrot.slane %v2966, 6
  %v4018 = vsel %vm3255, %v4015, %v4017
  %v4019 = vrot.slane %v2967, 6
  %v4020 = vsel %vm3255, %v4017, %v4019
  %v4021 = vrot.slane %v2968, 6
  %v4022 = vsel %vm3255, %v4019, %v4021
  %v4023 = vrot.slane %v2969, 6
  %v4024 = vsel %vm3255, %v4021, %v4023
  %v4025 = vrot.slane %v2970, 6
  %v4026 = vsel %vm3255, %v4023, %v4025
  %v4027 = vrot.slane %v2971, 6
  %v4028 = vsel %vm3255, %v4025, %v4027
  %v4029 = vrot.slane %v2972, 6
  %v4030 = vsel %vm3255, %v4027, %v4029
  %v4031 = vrot.slane %v2973, 6
  %v4032 = vsel %vm3255, %v4029, %v4031
  %v4033 = vrot.slane %v2974, 6
  %v4034 = vsel %vm3255, %v4031, %v4033
  %v4035 = vrot.slane %v2975, 6
  %v4036 = vsel %vm3255, %v4033, %v4035
  %v4037 = vrot.slane %v2976, 6
  %v4038 = vsel %vm3255, %v4035, %v4037
  %v4039 = vrot.slane %v2977, 6
  %v4040 = vsel %vm3255, %v4037, %v4039
  %v4041 = vrot.slane %v2978, 6
  %v4042 = vsel %vm3255, %v4039, %v4041
  %v4043 = vrot.slane %v2979, 6
  %v4044 = vsel %vm3255, %v4041, %v4043
  %v4045 = vrot.slane %v2980, 6
  %v4046 = vsel %vm3255, %v4043, %v4045
  %v4047 = vrot.slane %v2981, 6
  %v4048 = vsel %vm3255, %v4045, %v4047
  %v4049 = vrot.slane %v2982, 6
  %v4050 = vsel %vm3255, %v4047, %v4049
  %v4051 = vrot.slane %v2983, 6
  %v4052 = vsel %vm3255, %v4049, %v4051
  %v4053 = vrot.slane %v2984, 6
  %v4054 = vsel %vm3255, %v4051, %v4053
  %v4055 = vrot.slane %v2985, 6
  %v4056 = vsel %vm3255, %v4053, %v4055
  %v4057 = vrot.slane %v2986, 6
  %v4058 = vsel %vm3255, %v4055, %v4057
  %v4059 = vrot.slane %v2987, 6
  %v4060 = vsel %vm3255, %v4057, %v4059
  %v4061 = vrot.slane %v2988, 6
  %v4062 = vsel %vm3255, %v4059, %v4061
  %v4063 = vrot.slane %v2989, 6
  %v4064 = vsel %vm3255, %v4061, %v4063
  %v4098 = vmul.f32 %v4002, 0.0
  %v4099 = vmul.f32 %v4004, 0.0
  %v4100 = vmul.f32 %v3167, %v4006
  %v4101 = vmul.f32 %v3145, %v4008
  %v4102 = vmul.f32 %v3147, %v4010
  %v4103 = vmul.f32 %v3149, %v4012
  %v4104 = vmul.f32 %v3151, %v4014
  %v4105 = vmul.f32 %v3153, %v4016
  %v4106 = vmul.f32 %v3155, %v4018
  %v4107 = vmul.f32 %v3157, %v4020
  %v4108 = vmul.f32 %v3652, %v4022
  %v4109 = vmul.f32 %v3654, %v4024
  %v4110 = vmul.f32 %v3656, %v4026
  %v4111 = vmul.f32 %v3658, %v4028
  %v4112 = vmul.f32 %v3660, %v4030
  %v4113 = vmul.f32 %v3662, %v4032
  %v4114 = vmul.f32 %v3664, %v4034
  %v4115 = vmul.f32 %v3666, %v4036
  %v4116 = vmul.f32 %v3668, %v4038
  %v4117 = vmul.f32 %v3670, %v4040
  %v4118 = vmul.f32 %v3672, %v4042
  %v4119 = vmul.f32 %v3674, %v4044
  %v4120 = vmul.f32 %v3676, %v4046
  %v4121 = vmul.f32 %v3678, %v4048
  %v4122 = vmul.f32 %v3680, %v4050
  %v4123 = vmul.f32 %v3682, %v4052
  %v4124 = vmul.f32 %v3684, %v4054
  %v4125 = vmul.f32 %v3686, %v4056
  %v4126 = vmul.f32 %v3688, %v4058
  %v4127 = vmul.f32 %v3690, %v4060
  %v4128 = vmul.f32 %v3692, %v4062
  %v4129 = vmul.f32 %v3694, %v4064
  %v4130 = vmul.f32 %v3696, %v4063
  %v4131 = vmul.f32 %v4098, %v3289
  %v4132 = vmul.f32 %v4099, %v3289
  %v4133 = vmul.f32 %v4100, %v3289
  %v4134 = vmul.f32 %v4101, %v3289
  %v4135 = vmul.f32 %v4102, %v3289
  %v4136 = vmul.f32 %v4103, %v3289
  %v4137 = vmul.f32 %v4104, %v3289
  %v4138 = vmul.f32 %v4105, %v3289
  %v4139 = vmul.f32 %v4106, %v3289
  %v4140 = vmul.f32 %v4107, %v3289
  %v4141 = vmul.f32 %v4108, %v3289
  %v4142 = vmul.f32 %v4109, %v3289
  %v4143 = vmul.f32 %v4110, %v3289
  %v4144 = vmul.f32 %v4111, %v3289
  %v4145 = vmul.f32 %v4112, %v3289
  %v4146 = vmul.f32 %v4113, %v3289
  %v4147 = vmul.f32 %v4114, %v3289
  %v4148 = vmul.f32 %v4115, %v3289
  %v4149 = vmul.f32 %v4116, %v3289
  %v4150 = vmul.f32 %v4117, %v3289
  %v4151 = vmul.f32 %v4118, %v3289
  %v4152 = vmul.f32 %v4119, %v3289
  %v4153 = vmul.f32 %v4120, %v3289
  %v4154 = vmul.f32 %v4121, %v3289
  %v4155 = vmul.f32 %v4122, %v3289
  %v4156 = vmul.f32 %v4123, %v3289
  %v4157 = vmul.f32 %v4124, %v3289
  %v4158 = vmul.f32 %v4125, %v3289
  %v4159 = vmul.f32 %v4126, %v3289
  %v4160 = vmul.f32 %v4127, %v3289
  %v4161 = vmul.f32 %v4128, %v3289
  %v4162 = vmul.f32 %v4129, %v3289
  %v4163 = vmul.f32 %v4130, %v3289
  %v4197 = vrot.slane %v4131, 2
  %v4198 = vrot.slane %v4132, 2
  %v4199 = vsel %vm3308, %v4197, %v4198
  %v4200 = vrot.slane %v4133, 2
  %v4201 = vsel %vm3308, %v4198, %v4200
  %v4202 = vrot.slane %v4134, 2
  %v4203 = vsel %vm3308, %v4200, %v4202
  %v4204 = vrot.slane %v4135, 2
  %v4205 = vsel %vm3308, %v4202, %v4204
  %v4206 = vrot.slane %v4136, 2
  %v4207 = vsel %vm3308, %v4204, %v4206
  %v4208 = vrot.slane %v4137, 2
  %v4209 = vsel %vm3308, %v4206, %v4208
  %v4210 = vrot.slane %v4138, 2
  %v4211 = vsel %vm3308, %v4208, %v4210
  %v4212 = vrot.slane %v4139, 2
  %v4213 = vsel %vm3308, %v4210, %v4212
  %v4214 = vrot.slane %v4140, 2
  %v4215 = vsel %vm3308, %v4212, %v4214
  %v4216 = vrot.slane %v4141, 2
  %v4217 = vsel %vm3308, %v4214, %v4216
  %v4218 = vrot.slane %v4142, 2
  %v4219 = vsel %vm3308, %v4216, %v4218
  %v4220 = vrot.slane %v4143, 2
  %v4221 = vsel %vm3308, %v4218, %v4220
  %v4222 = vrot.slane %v4144, 2
  %v4223 = vsel %vm3308, %v4220, %v4222
  %v4224 = vrot.slane %v4145, 2
  %v4225 = vsel %vm3308, %v4222, %v4224
  %v4226 = vrot.slane %v4146, 2
  %v4227 = vsel %vm3308, %v4224, %v4226
  %v4228 = vrot.slane %v4147, 2
  %v4229 = vsel %vm3308, %v4226, %v4228
  %v4230 = vrot.slane %v4148, 2
  %v4231 = vsel %vm3308, %v4228, %v4230
  %v4232 = vrot.slane %v4149, 2
  %v4233 = vsel %vm3308, %v4230, %v4232
  %v4234 = vrot.slane %v4150, 2
  %v4235 = vsel %vm3308, %v4232, %v4234
  %v4236 = vrot.slane %v4151, 2
  %v4237 = vsel %vm3308, %v4234, %v4236
  %v4238 = vrot.slane %v4152, 2
  %v4239 = vsel %vm3308, %v4236, %v4238
  %v4240 = vrot.slane %v4153, 2
  %v4241 = vsel %vm3308, %v4238, %v4240
  %v4242 = vrot.slane %v4154, 2
  %v4243 = vsel %vm3308, %v4240, %v4242
  %v4244 = vrot.slane %v4155, 2
  %v4245 = vsel %vm3308, %v4242, %v4244
  %v4246 = vrot.slane %v4156, 2
  %v4247 = vsel %vm3308, %v4244, %v4246
  %v4248 = vrot.slane %v4157, 2
  %v4249 = vsel %vm3308, %v4246, %v4248
  %v4250 = vrot.slane %v4158, 2
  %v4251 = vsel %vm3308, %v4248, %v4250
  %v4252 = vrot.slane %v4159, 2
  %v4253 = vsel %vm3308, %v4250, %v4252
  %v4254 = vrot.slane %v4160, 2
  %v4255 = vsel %vm3308, %v4252, %v4254
  %v4256 = vrot.slane %v4161, 2
  %v4257 = vsel %vm3308, %v4254, %v4256
  %v4258 = vrot.slane %v4162, 2
  %v4259 = vsel %vm3308, %v4256, %v4258
  %v4260 = vrot.slane %v4163, 2
  %v4261 = vsel %vm3308, %v4258, %v4260
  %v4294 = vadd.f32 %v3938, %v4199
  %v4295 = vadd.f32 %v3939, %v4201
  %v4296 = vadd.f32 %v3940, %v4203
  %v4297 = vadd.f32 %v3941, %v4205
  %v4298 = vadd.f32 %v3942, %v4207
  %v4299 = vadd.f32 %v3943, %v4209
  %v4300 = vadd.f32 %v3944, %v4211
  %v4301 = vadd.f32 %v3945, %v4213
  %v4302 = vadd.f32 %v3946, %v4215
  %v4303 = vadd.f32 %v3947, %v4217
  %v4304 = vadd.f32 %v3948, %v4219
  %v4305 = vadd.f32 %v3949, %v4221
  %v4306 = vadd.f32 %v3950, %v4223
  %v4307 = vadd.f32 %v3951, %v4225
  %v4308 = vadd.f32 %v3952, %v4227
  %v4309 = vadd.f32 %v3953, %v4229
  %v4310 = vadd.f32 %v3954, %v4231
  %v4311 = vadd.f32 %v3955, %v4233
  %v4312 = vadd.f32 %v3956, %v4235
  %v4313 = vadd.f32 %v3957, %v4237
  %v4314 = vadd.f32 %v3958, %v4239
  %v4315 = vadd.f32 %v3959, %v4241
  %v4316 = vadd.f32 %v3960, %v4243
  %v4317 = vadd.f32 %v3961, %v4245
  %v4318 = vadd.f32 %v3962, %v4247
  %v4319 = vadd.f32 %v3963, %v4249
  %v4320 = vadd.f32 %v3964, %v4251
  %v4321 = vadd.f32 %v3965, %v4253
  %v4322 = vadd.f32 %v3966, %v4255
  %v4323 = vadd.f32 %v3967, %v4257
  %v4324 = vadd.f32 %v3968, %v4259
  %v4325 = vadd.f32 %v3969, %v4261
  %v4326 = vmul.f32 %v3167, %v2862
  %v4327 = vmul.f32 %v3145, %v2863
  %v4328 = vmul.f32 %v3147, %v2864
  %v4329 = vmul.f32 %v3149, %v2865
  %v4330 = vmul.f32 %v3151, %v2866
  %v4331 = vmul.f32 %v3153, %v2867
  %v4332 = vmul.f32 %v3155, %v2868
  %v4333 = vmul.f32 %v3157, %v2869
  %v4334 = vmul.f32 %v3652, %v2870
  %v4335 = vmul.f32 %v3654, %v2871
  %v4336 = vmul.f32 %v3656, %v2872
  %v4337 = vmul.f32 %v3658, %v2873
  %v4338 = vmul.f32 %v3660, %v2874
  %v4339 = vmul.f32 %v3662, %v2875
  %v4340 = vmul.f32 %v3664, %v2876
  %v4341 = vmul.f32 %v3666, %v2877
  %v4342 = vmul.f32 %v3668, %v2878
  %v4343 = vmul.f32 %v3670, %v2879
  %v4344 = vmul.f32 %v3672, %v2880
  %v4345 = vmul.f32 %v3674, %v2881
  %v4346 = vmul.f32 %v3676, %v2882
  %v4347 = vmul.f32 %v3678, %v2883
  %v4348 = vmul.f32 %v3680, %v2884
  %v4349 = vmul.f32 %v3682, %v2885
  %v4350 = vmul.f32 %v3684, %v2886
  %v4351 = vmul.f32 %v3686, %v2887
  %v4352 = vmul.f32 %v3688, %v2888
  %v4353 = vmul.f32 %v3690, %v2889
  %v4354 = vmul.f32 %v3692, %v2890
  %v4355 = vmul.f32 %v3694, %v2891
  %v4356 = vmul.f32 %v3696, %v2892
  %v4357 = vmul.f32 %v3698, %v2893
  %v4358 = vmul.f32 %v4326, %v3350
  %v4359 = vmul.f32 %v4327, %v3350
  %v4360 = vmul.f32 %v4328, %v3350
  %v4361 = vmul.f32 %v4329, %v3350
  %v4362 = vmul.f32 %v4330, %v3350
  %v4363 = vmul.f32 %v4331, %v3350
  %v4364 = vmul.f32 %v4332, %v3350
  %v4365 = vmul.f32 %v4333, %v3350
  %v4366 = vmul.f32 %v4334, %v3350
  %v4367 = vmul.f32 %v4335, %v3350
  %v4368 = vmul.f32 %v4336, %v3350
  %v4369 = vmul.f32 %v4337, %v3350
  %v4370 = vmul.f32 %v4338, %v3350
  %v4371 = vmul.f32 %v4339, %v3350
  %v4372 = vmul.f32 %v4340, %v3350
  %v4373 = vmul.f32 %v4341, %v3350
  %v4374 = vmul.f32 %v4342, %v3350
  %v4375 = vmul.f32 %v4343, %v3350
  %v4376 = vmul.f32 %v4344, %v3350
  %v4377 = vmul.f32 %v4345, %v3350
  %v4378 = vmul.f32 %v4346, %v3350
  %v4379 = vmul.f32 %v4347, %v3350
  %v4380 = vmul.f32 %v4348, %v3350
  %v4381 = vmul.f32 %v4349, %v3350
  %v4382 = vmul.f32 %v4350, %v3350
  %v4383 = vmul.f32 %v4351, %v3350
  %v4384 = vmul.f32 %v4352, %v3350
  %v4385 = vmul.f32 %v4353, %v3350
  %v4386 = vmul.f32 %v4354, %v3350
  %v4387 = vmul.f32 %v4355, %v3350
  %v4388 = vmul.f32 %v4356, %v3350
  %v4389 = vmul.f32 %v4357, %v3350
  %v4390 = vadd.f32 %v4294, %v4358
  %v4391 = vadd.f32 %v4295, %v4359
  %v4392 = vadd.f32 %v4296, %v4360
  %v4393 = vadd.f32 %v4297, %v4361
  %v4394 = vadd.f32 %v4298, %v4362
  %v4395 = vadd.f32 %v4299, %v4363
  %v4396 = vadd.f32 %v4300, %v4364
  %v4397 = vadd.f32 %v4301, %v4365
  %v4398 = vadd.f32 %v4302, %v4366
  %v4399 = vadd.f32 %v4303, %v4367
  %v4400 = vadd.f32 %v4304, %v4368
  %v4401 = vadd.f32 %v4305, %v4369
  %v4402 = vadd.f32 %v4306, %v4370
  %v4403 = vadd.f32 %v4307, %v4371
  %v4404 = vadd.f32 %v4308, %v4372
  %v4405 = vadd.f32 %v4309, %v4373
  %v4406 = vadd.f32 %v4310, %v4374
  %v4407 = vadd.f32 %v4311, %v4375
  %v4408 = vadd.f32 %v4312, %v4376
  %v4409 = vadd.f32 %v4313, %v4377
  %v4410 = vadd.f32 %v4314, %v4378
  %v4411 = vadd.f32 %v4315, %v4379
  %v4412 = vadd.f32 %v4316, %v4380
  %v4413 = vadd.f32 %v4317, %v4381
  %v4414 = vadd.f32 %v4318, %v4382
  %v4415 = vadd.f32 %v4319, %v4383
  %v4416 = vadd.f32 %v4320, %v4384
  %v4417 = vadd.f32 %v4321, %v4385
  %v4418 = vadd.f32 %v4322, %v4386
  %v4419 = vadd.f32 %v4323, %v4387
  %v4420 = vadd.f32 %v4324, %v4388
  %v4421 = vadd.f32 %v4325, %v4389
  %v4422 = vmul.f32 %v3652, %v3367
  %v4423 = vmul.f32 %v3654, %v3367
  %v4424 = vmul.f32 %v3656, %v3367
  %v4425 = vmul.f32 %v3658, %v3367
  %v4426 = vmul.f32 %v3660, %v3367
  %v4427 = vmul.f32 %v3662, %v3367
  %v4428 = vmul.f32 %v3664, %v3367
  %v4429 = vmul.f32 %v3666, %v3367
  %v4430 = vmul.f32 %v3668, %v3367
  %v4431 = vmul.f32 %v3670, %v3367
  %v4432 = vmul.f32 %v3672, %v3367
  %v4433 = vmul.f32 %v3674, %v3367
  %v4434 = vmul.f32 %v3676, %v3367
  %v4435 = vmul.f32 %v3678, %v3367
  %v4436 = vmul.f32 %v3680, %v3367
  %v4437 = vmul.f32 %v3682, %v3367
  %v4438 = vmul.f32 %v3684, %v3367
  %v4439 = vmul.f32 %v3686, %v3367
  %v4440 = vmul.f32 %v3688, %v3367
  %v4441 = vmul.f32 %v3690, %v3367
  %v4442 = vmul.f32 %v3692, %v3367
  %v4443 = vmul.f32 %v3694, %v3367
  %v4444 = vmul.f32 %v3696, %v3367
  %v4445 = vmul.f32 %v3698, %v3367
  %v4446 = vmul.f32 %v3724, %v3367
  %v4472 = vrot.slane %v4422, 1
  %v4473 = vsel %vm3213, %v3399, %v4472
  %v4474 = vrot.slane %v4423, 1
  %v4475 = vsel %vm3213, %v4472, %v4474
  %v4476 = vrot.slane %v4424, 1
  %v4477 = vsel %vm3213, %v4474, %v4476
  %v4478 = vrot.slane %v4425, 1
  %v4479 = vsel %vm3213, %v4476, %v4478
  %v4480 = vrot.slane %v4426, 1
  %v4481 = vsel %vm3213, %v4478, %v4480
  %v4482 = vrot.slane %v4427, 1
  %v4483 = vsel %vm3213, %v4480, %v4482
  %v4484 = vrot.slane %v4428, 1
  %v4485 = vsel %vm3213, %v4482, %v4484
  %v4486 = vrot.slane %v4429, 1
  %v4487 = vsel %vm3213, %v4484, %v4486
  %v4488 = vrot.slane %v4430, 1
  %v4489 = vsel %vm3213, %v4486, %v4488
  %v4490 = vrot.slane %v4431, 1
  %v4491 = vsel %vm3213, %v4488, %v4490
  %v4492 = vrot.slane %v4432, 1
  %v4493 = vsel %vm3213, %v4490, %v4492
  %v4494 = vrot.slane %v4433, 1
  %v4495 = vsel %vm3213, %v4492, %v4494
  %v4496 = vrot.slane %v4434, 1
  %v4497 = vsel %vm3213, %v4494, %v4496
  %v4498 = vrot.slane %v4435, 1
  %v4499 = vsel %vm3213, %v4496, %v4498
  %v4500 = vrot.slane %v4436, 1
  %v4501 = vsel %vm3213, %v4498, %v4500
  %v4502 = vrot.slane %v4437, 1
  %v4503 = vsel %vm3213, %v4500, %v4502
  %v4504 = vrot.slane %v4438, 1
  %v4505 = vsel %vm3213, %v4502, %v4504
  %v4506 = vrot.slane %v4439, 1
  %v4507 = vsel %vm3213, %v4504, %v4506
  %v4508 = vrot.slane %v4440, 1
  %v4509 = vsel %vm3213, %v4506, %v4508
  %v4510 = vrot.slane %v4441, 1
  %v4511 = vsel %vm3213, %v4508, %v4510
  %v4512 = vrot.slane %v4442, 1
  %v4513 = vsel %vm3213, %v4510, %v4512
  %v4514 = vrot.slane %v4443, 1
  %v4515 = vsel %vm3213, %v4512, %v4514
  %v4516 = vrot.slane %v4444, 1
  %v4517 = vsel %vm3213, %v4514, %v4516
  %v4518 = vrot.slane %v4445, 1
  %v4519 = vsel %vm3213, %v4516, %v4518
  %v4520 = vrot.slane %v4446, 1
  %v4521 = vsel %vm3213, %v4518, %v4520
  %v4547 = vadd.f32 %v4390, %v3388
  %v4548 = vadd.f32 %v4391, %v3390
  %v4549 = vadd.f32 %v4392, %v3392
  %v4550 = vadd.f32 %v4393, %v3394
  %v4551 = vadd.f32 %v4394, %v3396
  %v4552 = vadd.f32 %v4395, %v3398
  %v4553 = vadd.f32 %v4396, %v3400
  %v4554 = vadd.f32 %v4397, %v4473
  %v4555 = vadd.f32 %v4398, %v4475
  %v4556 = vadd.f32 %v4399, %v4477
  %v4557 = vadd.f32 %v4400, %v4479
  %v4558 = vadd.f32 %v4401, %v4481
  %v4559 = vadd.f32 %v4402, %v4483
  %v4560 = vadd.f32 %v4403, %v4485
  %v4561 = vadd.f32 %v4404, %v4487
  %v4562 = vadd.f32 %v4405, %v4489
  %v4563 = vadd.f32 %v4406, %v4491
  %v4564 = vadd.f32 %v4407, %v4493
  %v4565 = vadd.f32 %v4408, %v4495
  %v4566 = vadd.f32 %v4409, %v4497
  %v4567 = vadd.f32 %v4410, %v4499
  %v4568 = vadd.f32 %v4411, %v4501
  %v4569 = vadd.f32 %v4412, %v4503
  %v4570 = vadd.f32 %v4413, %v4505
  %v4571 = vadd.f32 %v4414, %v4507
  %v4572 = vadd.f32 %v4415, %v4509
  %v4573 = vadd.f32 %v4416, %v4511
  %v4574 = vadd.f32 %v4417, %v4513
  %v4575 = vadd.f32 %v4418, %v4515
  %v4576 = vadd.f32 %v4419, %v4517
  %v4577 = vadd.f32 %v4420, %v4519
  %v4578 = vadd.f32 %v4421, %v4521
  %v4579 = vmul.f32 %v3167, %v4002
  %v4580 = vmul.f32 %v3145, %v4004
  %v4581 = vmul.f32 %v3147, %v4006
  %v4582 = vmul.f32 %v3149, %v4008
  %v4583 = vmul.f32 %v3151, %v4010
  %v4584 = vmul.f32 %v3153, %v4012
  %v4585 = vmul.f32 %v3155, %v4014
  %v4586 = vmul.f32 %v3157, %v4016
  %v4587 = vmul.f32 %v3652, %v4018
  %v4588 = vmul.f32 %v3654, %v4020
  %v4589 = vmul.f32 %v3656, %v4022
  %v4590 = vmul.f32 %v3658, %v4024
  %v4591 = vmul.f32 %v3660, %v4026
  %v4592 = vmul.f32 %v3662, %v4028
  %v4593 = vmul.f32 %v3664, %v4030
  %v4594 = vmul.f32 %v3666, %v4032
  %v4595 = vmul.f32 %v3668, %v4034
  %v4596 = vmul.f32 %v3670, %v4036
  %v4597 = vmul.f32 %v3672, %v4038
  %v4598 = vmul.f32 %v3674, %v4040
  %v4599 = vmul.f32 %v3676, %v4042
  %v4600 = vmul.f32 %v3678, %v4044
  %v4601 = vmul.f32 %v3680, %v4046
  %v4602 = vmul.f32 %v3682, %v4048
  %v4603 = vmul.f32 %v3684, %v4050
  %v4604 = vmul.f32 %v3686, %v4052
  %v4605 = vmul.f32 %v3688, %v4054
  %v4606 = vmul.f32 %v3690, %v4056
  %v4607 = vmul.f32 %v3692, %v4058
  %v4608 = vmul.f32 %v3694, %v4060
  %v4609 = vmul.f32 %v3696, %v4062
  %v4610 = vmul.f32 %v3698, %v4064
  %v4611 = vmul.f32 %v3724, %v4063
  %v4612 = vmul.f32 %v4579, %v3428
  %v4613 = vmul.f32 %v4580, %v3428
  %v4614 = vmul.f32 %v4581, %v3428
  %v4615 = vmul.f32 %v4582, %v3428
  %v4616 = vmul.f32 %v4583, %v3428
  %v4617 = vmul.f32 %v4584, %v3428
  %v4618 = vmul.f32 %v4585, %v3428
  %v4619 = vmul.f32 %v4586, %v3428
  %v4620 = vmul.f32 %v4587, %v3428
  %v4621 = vmul.f32 %v4588, %v3428
  %v4622 = vmul.f32 %v4589, %v3428
  %v4623 = vmul.f32 %v4590, %v3428
  %v4624 = vmul.f32 %v4591, %v3428
  %v4625 = vmul.f32 %v4592, %v3428
  %v4626 = vmul.f32 %v4593, %v3428
  %v4627 = vmul.f32 %v4594, %v3428
  %v4628 = vmul.f32 %v4595, %v3428
  %v4629 = vmul.f32 %v4596, %v3428
  %v4630 = vmul.f32 %v4597, %v3428
  %v4631 = vmul.f32 %v4598, %v3428
  %v4632 = vmul.f32 %v4599, %v3428
  %v4633 = vmul.f32 %v4600, %v3428
  %v4634 = vmul.f32 %v4601, %v3428
  %v4635 = vmul.f32 %v4602, %v3428
  %v4636 = vmul.f32 %v4603, %v3428
  %v4637 = vmul.f32 %v4604, %v3428
  %v4638 = vmul.f32 %v4605, %v3428
  %v4639 = vmul.f32 %v4606, %v3428
  %v4640 = vmul.f32 %v4607, %v3428
  %v4641 = vmul.f32 %v4608, %v3428
  %v4642 = vmul.f32 %v4609, %v3428
  %v4643 = vmul.f32 %v4610, %v3428
  %v4644 = vmul.f32 %v4611, %v3428
  %v4678 = vrot.slane %v4612, 2
  %v4679 = vrot.slane %v4613, 2
  %v4680 = vsel %vm3308, %v4678, %v4679
  %v4681 = vrot.slane %v4614, 2
  %v4682 = vsel %vm3308, %v4679, %v4681
  %v4683 = vrot.slane %v4615, 2
  %v4684 = vsel %vm3308, %v4681, %v4683
  %v4685 = vrot.slane %v4616, 2
  %v4686 = vsel %vm3308, %v4683, %v4685
  %v4687 = vrot.slane %v4617, 2
  %v4688 = vsel %vm3308, %v4685, %v4687
  %v4689 = vrot.slane %v4618, 2
  %v4690 = vsel %vm3308, %v4687, %v4689
  %v4691 = vrot.slane %v4619, 2
  %v4692 = vsel %vm3308, %v4689, %v4691
  %v4693 = vrot.slane %v4620, 2
  %v4694 = vsel %vm3308, %v4691, %v4693
  %v4695 = vrot.slane %v4621, 2
  %v4696 = vsel %vm3308, %v4693, %v4695
  %v4697 = vrot.slane %v4622, 2
  %v4698 = vsel %vm3308, %v4695, %v4697
  %v4699 = vrot.slane %v4623, 2
  %v4700 = vsel %vm3308, %v4697, %v4699
  %v4701 = vrot.slane %v4624, 2
  %v4702 = vsel %vm3308, %v4699, %v4701
  %v4703 = vrot.slane %v4625, 2
  %v4704 = vsel %vm3308, %v4701, %v4703
  %v4705 = vrot.slane %v4626, 2
  %v4706 = vsel %vm3308, %v4703, %v4705
  %v4707 = vrot.slane %v4627, 2
  %v4708 = vsel %vm3308, %v4705, %v4707
  %v4709 = vrot.slane %v4628, 2
  %v4710 = vsel %vm3308, %v4707, %v4709
  %v4711 = vrot.slane %v4629, 2
  %v4712 = vsel %vm3308, %v4709, %v4711
  %v4713 = vrot.slane %v4630, 2
  %v4714 = vsel %vm3308, %v4711, %v4713
  %v4715 = vrot.slane %v4631, 2
  %v4716 = vsel %vm3308, %v4713, %v4715
  %v4717 = vrot.slane %v4632, 2
  %v4718 = vsel %vm3308, %v4715, %v4717
  %v4719 = vrot.slane %v4633, 2
  %v4720 = vsel %vm3308, %v4717, %v4719
  %v4721 = vrot.slane %v4634, 2
  %v4722 = vsel %vm3308, %v4719, %v4721
  %v4723 = vrot.slane %v4635, 2
  %v4724 = vsel %vm3308, %v4721, %v4723
  %v4725 = vrot.slane %v4636, 2
  %v4726 = vsel %vm3308, %v4723, %v4725
  %v4727 = vrot.slane %v4637, 2
  %v4728 = vsel %vm3308, %v4725, %v4727
  %v4729 = vrot.slane %v4638, 2
  %v4730 = vsel %vm3308, %v4727, %v4729
  %v4731 = vrot.slane %v4639, 2
  %v4732 = vsel %vm3308, %v4729, %v4731
  %v4733 = vrot.slane %v4640, 2
  %v4734 = vsel %vm3308, %v4731, %v4733
  %v4735 = vrot.slane %v4641, 2
  %v4736 = vsel %vm3308, %v4733, %v4735
  %v4737 = vrot.slane %v4642, 2
  %v4738 = vsel %vm3308, %v4735, %v4737
  %v4739 = vrot.slane %v4643, 2
  %v4740 = vsel %vm3308, %v4737, %v4739
  %v4741 = vrot.slane %v4644, 2
  %v4742 = vsel %vm3308, %v4739, %v4741
  %v4775 = vadd.f32 %v4547, %v4680
  %v4776 = vadd.f32 %v4548, %v4682
  %v4777 = vadd.f32 %v4549, %v4684
  %v4778 = vadd.f32 %v4550, %v4686
  %v4779 = vadd.f32 %v4551, %v4688
  %v4780 = vadd.f32 %v4552, %v4690
  %v4781 = vadd.f32 %v4553, %v4692
  %v4782 = vadd.f32 %v4554, %v4694
  %v4783 = vadd.f32 %v4555, %v4696
  %v4784 = vadd.f32 %v4556, %v4698
  %v4785 = vadd.f32 %v4557, %v4700
  %v4786 = vadd.f32 %v4558, %v4702
  %v4787 = vadd.f32 %v4559, %v4704
  %v4788 = vadd.f32 %v4560, %v4706
  %v4789 = vadd.f32 %v4561, %v4708
  %v4790 = vadd.f32 %v4562, %v4710
  %v4791 = vadd.f32 %v4563, %v4712
  %v4792 = vadd.f32 %v4564, %v4714
  %v4793 = vadd.f32 %v4565, %v4716
  %v4794 = vadd.f32 %v4566, %v4718
  %v4795 = vadd.f32 %v4567, %v4720
  %v4796 = vadd.f32 %v4568, %v4722
  %v4797 = vadd.f32 %v4569, %v4724
  %v4798 = vadd.f32 %v4570, %v4726
  %v4799 = vadd.f32 %v4571, %v4728
  %v4800 = vadd.f32 %v4572, %v4730
  %v4801 = vadd.f32 %v4573, %v4732
  %v4802 = vadd.f32 %v4574, %v4734
  %v4803 = vadd.f32 %v4575, %v4736
  %v4804 = vadd.f32 %v4576, %v4738
  %v4805 = vadd.f32 %v4577, %v4740
  %v4806 = vadd.f32 %v4578, %v4742
  %v4807 = vmul.f32 %v3147, %v2862
  %v4808 = vmul.f32 %v3149, %v2863
  %v4809 = vmul.f32 %v3151, %v2864
  %v4810 = vmul.f32 %v3153, %v2865
  %v4811 = vmul.f32 %v3155, %v2866
  %v4812 = vmul.f32 %v3157, %v2867
  %v4813 = vmul.f32 %v3652, %v2868
  %v4814 = vmul.f32 %v3654, %v2869
  %v4815 = vmul.f32 %v3656, %v2870
  %v4816 = vmul.f32 %v3658, %v2871
  %v4817 = vmul.f32 %v3660, %v2872
  %v4818 = vmul.f32 %v3662, %v2873
  %v4819 = vmul.f32 %v3664, %v2874
  %v4820 = vmul.f32 %v3666, %v2875
  %v4821 = vmul.f32 %v3668, %v2876
  %v4822 = vmul.f32 %v3670, %v2877
  %v4823 = vmul.f32 %v3672, %v2878
  %v4824 = vmul.f32 %v3674, %v2879
  %v4825 = vmul.f32 %v3676, %v2880
  %v4826 = vmul.f32 %v3678, %v2881
  %v4827 = vmul.f32 %v3680, %v2882
  %v4828 = vmul.f32 %v3682, %v2883
  %v4829 = vmul.f32 %v3684, %v2884
  %v4830 = vmul.f32 %v3686, %v2885
  %v4831 = vmul.f32 %v3688, %v2886
  %v4832 = vmul.f32 %v3690, %v2887
  %v4833 = vmul.f32 %v3692, %v2888
  %v4834 = vmul.f32 %v3694, %v2889
  %v4835 = vmul.f32 %v3696, %v2890
  %v4836 = vmul.f32 %v3698, %v2891
  %v4837 = vmul.f32 %v3724, %v2892
  %v4838 = vmul.f32 %v2893, 0.0
  %v4839 = vmul.f32 %v4807, %v3488
  %v4840 = vmul.f32 %v4808, %v3488
  %v4841 = vmul.f32 %v4809, %v3488
  %v4842 = vmul.f32 %v4810, %v3488
  %v4843 = vmul.f32 %v4811, %v3488
  %v4844 = vmul.f32 %v4812, %v3488
  %v4845 = vmul.f32 %v4813, %v3488
  %v4846 = vmul.f32 %v4814, %v3488
  %v4847 = vmul.f32 %v4815, %v3488
  %v4848 = vmul.f32 %v4816, %v3488
  %v4849 = vmul.f32 %v4817, %v3488
  %v4850 = vmul.f32 %v4818, %v3488
  %v4851 = vmul.f32 %v4819, %v3488
  %v4852 = vmul.f32 %v4820, %v3488
  %v4853 = vmul.f32 %v4821, %v3488
  %v4854 = vmul.f32 %v4822, %v3488
  %v4855 = vmul.f32 %v4823, %v3488
  %v4856 = vmul.f32 %v4824, %v3488
  %v4857 = vmul.f32 %v4825, %v3488
  %v4858 = vmul.f32 %v4826, %v3488
  %v4859 = vmul.f32 %v4827, %v3488
  %v4860 = vmul.f32 %v4828, %v3488
  %v4861 = vmul.f32 %v4829, %v3488
  %v4862 = vmul.f32 %v4830, %v3488
  %v4863 = vmul.f32 %v4831, %v3488
  %v4864 = vmul.f32 %v4832, %v3488
  %v4865 = vmul.f32 %v4833, %v3488
  %v4866 = vmul.f32 %v4834, %v3488
  %v4867 = vmul.f32 %v4835, %v3488
  %v4868 = vmul.f32 %v4836, %v3488
  %v4869 = vmul.f32 %v4837, %v3488
  %v4870 = vmul.f32 %v4838, %v3488
  %v4871 = vadd.f32 %v4775, %v4839
  %v4872 = vadd.f32 %v4776, %v4840
  %v4873 = vadd.f32 %v4777, %v4841
  %v4874 = vadd.f32 %v4778, %v4842
  %v4875 = vadd.f32 %v4779, %v4843
  %v4876 = vadd.f32 %v4780, %v4844
  %v4877 = vadd.f32 %v4781, %v4845
  %v4878 = vadd.f32 %v4782, %v4846
  %v4879 = vadd.f32 %v4783, %v4847
  %v4880 = vadd.f32 %v4784, %v4848
  %v4881 = vadd.f32 %v4785, %v4849
  %v4882 = vadd.f32 %v4786, %v4850
  %v4883 = vadd.f32 %v4787, %v4851
  %v4884 = vadd.f32 %v4788, %v4852
  %v4885 = vadd.f32 %v4789, %v4853
  %v4886 = vadd.f32 %v4790, %v4854
  %v4887 = vadd.f32 %v4791, %v4855
  %v4888 = vadd.f32 %v4792, %v4856
  %v4889 = vadd.f32 %v4793, %v4857
  %v4890 = vadd.f32 %v4794, %v4858
  %v4891 = vadd.f32 %v4795, %v4859
  %v4892 = vadd.f32 %v4796, %v4860
  %v4893 = vadd.f32 %v4797, %v4861
  %v4894 = vadd.f32 %v4798, %v4862
  %v4895 = vadd.f32 %v4799, %v4863
  %v4896 = vadd.f32 %v4800, %v4864
  %v4897 = vadd.f32 %v4801, %v4865
  %v4898 = vadd.f32 %v4802, %v4866
  %v4899 = vadd.f32 %v4803, %v4867
  %v4900 = vadd.f32 %v4804, %v4868
  %v4901 = vadd.f32 %v4805, %v4869
  %v4902 = vadd.f32 %v4806, %v4870
  %v4903 = vmul.f32 %v3652, %v3505
  %v4904 = vmul.f32 %v3654, %v3505
  %v4905 = vmul.f32 %v3656, %v3505
  %v4906 = vmul.f32 %v3658, %v3505
  %v4907 = vmul.f32 %v3660, %v3505
  %v4908 = vmul.f32 %v3662, %v3505
  %v4909 = vmul.f32 %v3664, %v3505
  %v4910 = vmul.f32 %v3666, %v3505
  %v4911 = vmul.f32 %v3668, %v3505
  %v4912 = vmul.f32 %v3670, %v3505
  %v4913 = vmul.f32 %v3672, %v3505
  %v4914 = vmul.f32 %v3674, %v3505
  %v4915 = vmul.f32 %v3676, %v3505
  %v4916 = vmul.f32 %v3678, %v3505
  %v4917 = vmul.f32 %v3680, %v3505
  %v4918 = vmul.f32 %v3682, %v3505
  %v4919 = vmul.f32 %v3684, %v3505
  %v4920 = vmul.f32 %v3686, %v3505
  %v4921 = vmul.f32 %v3688, %v3505
  %v4922 = vmul.f32 %v3690, %v3505
  %v4923 = vmul.f32 %v3692, %v3505
  %v4924 = vmul.f32 %v3694, %v3505
  %v4925 = vmul.f32 %v3696, %v3505
  %v4926 = vmul.f32 %v3698, %v3505
  %v4927 = vmul.f32 %v3724, %v3505
  %v4953 = vrot.slane %v4903, 1
  %v4954 = vsel %vm3213, %v3535, %v4953
  %v4955 = vrot.slane %v4904, 1
  %v4956 = vsel %vm3213, %v4953, %v4955
  %v4957 = vrot.slane %v4905, 1
  %v4958 = vsel %vm3213, %v4955, %v4957
  %v4959 = vrot.slane %v4906, 1
  %v4960 = vsel %vm3213, %v4957, %v4959
  %v4961 = vrot.slane %v4907, 1
  %v4962 = vsel %vm3213, %v4959, %v4961
  %v4963 = vrot.slane %v4908, 1
  %v4964 = vsel %vm3213, %v4961, %v4963
  %v4965 = vrot.slane %v4909, 1
  %v4966 = vsel %vm3213, %v4963, %v4965
  %v4967 = vrot.slane %v4910, 1
  %v4968 = vsel %vm3213, %v4965, %v4967
  %v4969 = vrot.slane %v4911, 1
  %v4970 = vsel %vm3213, %v4967, %v4969
  %v4971 = vrot.slane %v4912, 1
  %v4972 = vsel %vm3213, %v4969, %v4971
  %v4973 = vrot.slane %v4913, 1
  %v4974 = vsel %vm3213, %v4971, %v4973
  %v4975 = vrot.slane %v4914, 1
  %v4976 = vsel %vm3213, %v4973, %v4975
  %v4977 = vrot.slane %v4915, 1
  %v4978 = vsel %vm3213, %v4975, %v4977
  %v4979 = vrot.slane %v4916, 1
  %v4980 = vsel %vm3213, %v4977, %v4979
  %v4981 = vrot.slane %v4917, 1
  %v4982 = vsel %vm3213, %v4979, %v4981
  %v4983 = vrot.slane %v4918, 1
  %v4984 = vsel %vm3213, %v4981, %v4983
  %v4985 = vrot.slane %v4919, 1
  %v4986 = vsel %vm3213, %v4983, %v4985
  %v4987 = vrot.slane %v4920, 1
  %v4988 = vsel %vm3213, %v4985, %v4987
  %v4989 = vrot.slane %v4921, 1
  %v4990 = vsel %vm3213, %v4987, %v4989
  %v4991 = vrot.slane %v4922, 1
  %v4992 = vsel %vm3213, %v4989, %v4991
  %v4993 = vrot.slane %v4923, 1
  %v4994 = vsel %vm3213, %v4991, %v4993
  %v4995 = vrot.slane %v4924, 1
  %v4996 = vsel %vm3213, %v4993, %v4995
  %v4997 = vrot.slane %v4925, 1
  %v4998 = vsel %vm3213, %v4995, %v4997
  %v4999 = vrot.slane %v4926, 1
  %v5000 = vsel %vm3213, %v4997, %v4999
  %v5001 = vrot.slane %v4927, 1
  %v5002 = vsel %vm3213, %v4999, %v5001
  %v5003 = vsel %vm3213, %v5001, %v3539
  %v5004 = vsel %vm3213, %v3539, %v3539
  %v5032 = vadd.f32 %v4871, %v3528
  %v5033 = vadd.f32 %v4872, %v3530
  %v5034 = vadd.f32 %v4873, %v3532
  %v5035 = vadd.f32 %v4874, %v3534
  %v5036 = vadd.f32 %v4875, %v3536
  %v5037 = vadd.f32 %v4876, %v4954
  %v5038 = vadd.f32 %v4877, %v4956
  %v5039 = vadd.f32 %v4878, %v4958
  %v5040 = vadd.f32 %v4879, %v4960
  %v5041 = vadd.f32 %v4880, %v4962
  %v5042 = vadd.f32 %v4881, %v4964
  %v5043 = vadd.f32 %v4882, %v4966
  %v5044 = vadd.f32 %v4883, %v4968
  %v5045 = vadd.f32 %v4884, %v4970
  %v5046 = vadd.f32 %v4885, %v4972
  %v5047 = vadd.f32 %v4886, %v4974
  %v5048 = vadd.f32 %v4887, %v4976
  %v5049 = vadd.f32 %v4888, %v4978
  %v5050 = vadd.f32 %v4889, %v4980
  %v5051 = vadd.f32 %v4890, %v4982
  %v5052 = vadd.f32 %v4891, %v4984
  %v5053 = vadd.f32 %v4892, %v4986
  %v5054 = vadd.f32 %v4893, %v4988
  %v5055 = vadd.f32 %v4894, %v4990
  %v5056 = vadd.f32 %v4895, %v4992
  %v5057 = vadd.f32 %v4896, %v4994
  %v5058 = vadd.f32 %v4897, %v4996
  %v5059 = vadd.f32 %v4898, %v4998
  %v5060 = vadd.f32 %v4899, %v5000
  %v5061 = vadd.f32 %v4900, %v5002
  %v5062 = vadd.f32 %v4901, %v5003
  %v5063 = vadd.f32 %v4902, %v5004
  %v5064 = vmul.f32 %v3147, %v4002
  %v5065 = vmul.f32 %v3149, %v4004
  %v5066 = vmul.f32 %v3151, %v4006
  %v5067 = vmul.f32 %v3153, %v4008
  %v5068 = vmul.f32 %v3155, %v4010
  %v5069 = vmul.f32 %v3157, %v4012
  %v5070 = vmul.f32 %v3652, %v4014
  %v5071 = vmul.f32 %v3654, %v4016
  %v5072 = vmul.f32 %v3656, %v4018
  %v5073 = vmul.f32 %v3658, %v4020
  %v5074 = vmul.f32 %v3660, %v4022
  %v5075 = vmul.f32 %v3662, %v4024
  %v5076 = vmul.f32 %v3664, %v4026
  %v5077 = vmul.f32 %v3666, %v4028
  %v5078 = vmul.f32 %v3668, %v4030
  %v5079 = vmul.f32 %v3670, %v4032
  %v5080 = vmul.f32 %v3672, %v4034
  %v5081 = vmul.f32 %v3674, %v4036
  %v5082 = vmul.f32 %v3676, %v4038
  %v5083 = vmul.f32 %v3678, %v4040
  %v5084 = vmul.f32 %v3680, %v4042
  %v5085 = vmul.f32 %v3682, %v4044
  %v5086 = vmul.f32 %v3684, %v4046
  %v5087 = vmul.f32 %v3686, %v4048
  %v5088 = vmul.f32 %v3688, %v4050
  %v5089 = vmul.f32 %v3690, %v4052
  %v5090 = vmul.f32 %v3692, %v4054
  %v5091 = vmul.f32 %v3694, %v4056
  %v5092 = vmul.f32 %v3696, %v4058
  %v5093 = vmul.f32 %v3698, %v4060
  %v5094 = vmul.f32 %v3724, %v4062
  %v5095 = vmul.f32 %v4064, 0.0
  %v5096 = vmul.f32 %v4063, 0.0
  %v5097 = vmul.f32 %v5064, %v3566
  %v5098 = vmul.f32 %v5065, %v3566
  %v5099 = vmul.f32 %v5066, %v3566
  %v5100 = vmul.f32 %v5067, %v3566
  %v5101 = vmul.f32 %v5068, %v3566
  %v5102 = vmul.f32 %v5069, %v3566
  %v5103 = vmul.f32 %v5070, %v3566
  %v5104 = vmul.f32 %v5071, %v3566
  %v5105 = vmul.f32 %v5072, %v3566
  %v5106 = vmul.f32 %v5073, %v3566
  %v5107 = vmul.f32 %v5074, %v3566
  %v5108 = vmul.f32 %v5075, %v3566
  %v5109 = vmul.f32 %v5076, %v3566
  %v5110 = vmul.f32 %v5077, %v3566
  %v5111 = vmul.f32 %v5078, %v3566
  %v5112 = vmul.f32 %v5079, %v3566
  %v5113 = vmul.f32 %v5080, %v3566
  %v5114 = vmul.f32 %v5081, %v3566
  %v5115 = vmul.f32 %v5082, %v3566
  %v5116 = vmul.f32 %v5083, %v3566
  %v5117 = vmul.f32 %v5084, %v3566
  %v5118 = vmul.f32 %v5085, %v3566
  %v5119 = vmul.f32 %v5086, %v3566
  %v5120 = vmul.f32 %v5087, %v3566
  %v5121 = vmul.f32 %v5088, %v3566
  %v5122 = vmul.f32 %v5089, %v3566
  %v5123 = vmul.f32 %v5090, %v3566
  %v5124 = vmul.f32 %v5091, %v3566
  %v5125 = vmul.f32 %v5092, %v3566
  %v5126 = vmul.f32 %v5093, %v3566
  %v5127 = vmul.f32 %v5094, %v3566
  %v5128 = vmul.f32 %v5095, %v3566
  %v5129 = vmul.f32 %v5096, %v3566
  %v5163 = vrot.slane %v5097, 2
  %v5164 = vrot.slane %v5098, 2
  %v5165 = vsel %vm3308, %v5163, %v5164
  %v5166 = vrot.slane %v5099, 2
  %v5167 = vsel %vm3308, %v5164, %v5166
  %v5168 = vrot.slane %v5100, 2
  %v5169 = vsel %vm3308, %v5166, %v5168
  %v5170 = vrot.slane %v5101, 2
  %v5171 = vsel %vm3308, %v5168, %v5170
  %v5172 = vrot.slane %v5102, 2
  %v5173 = vsel %vm3308, %v5170, %v5172
  %v5174 = vrot.slane %v5103, 2
  %v5175 = vsel %vm3308, %v5172, %v5174
  %v5176 = vrot.slane %v5104, 2
  %v5177 = vsel %vm3308, %v5174, %v5176
  %v5178 = vrot.slane %v5105, 2
  %v5179 = vsel %vm3308, %v5176, %v5178
  %v5180 = vrot.slane %v5106, 2
  %v5181 = vsel %vm3308, %v5178, %v5180
  %v5182 = vrot.slane %v5107, 2
  %v5183 = vsel %vm3308, %v5180, %v5182
  %v5184 = vrot.slane %v5108, 2
  %v5185 = vsel %vm3308, %v5182, %v5184
  %v5186 = vrot.slane %v5109, 2
  %v5187 = vsel %vm3308, %v5184, %v5186
  %v5188 = vrot.slane %v5110, 2
  %v5189 = vsel %vm3308, %v5186, %v5188
  %v5190 = vrot.slane %v5111, 2
  %v5191 = vsel %vm3308, %v5188, %v5190
  %v5192 = vrot.slane %v5112, 2
  %v5193 = vsel %vm3308, %v5190, %v5192
  %v5194 = vrot.slane %v5113, 2
  %v5195 = vsel %vm3308, %v5192, %v5194
  %v5196 = vrot.slane %v5114, 2
  %v5197 = vsel %vm3308, %v5194, %v5196
  %v5198 = vrot.slane %v5115, 2
  %v5199 = vsel %vm3308, %v5196, %v5198
  %v5200 = vrot.slane %v5116, 2
  %v5201 = vsel %vm3308, %v5198, %v5200
  %v5202 = vrot.slane %v5117, 2
  %v5203 = vsel %vm3308, %v5200, %v5202
  %v5204 = vrot.slane %v5118, 2
  %v5205 = vsel %vm3308, %v5202, %v5204
  %v5206 = vrot.slane %v5119, 2
  %v5207 = vsel %vm3308, %v5204, %v5206
  %v5208 = vrot.slane %v5120, 2
  %v5209 = vsel %vm3308, %v5206, %v5208
  %v5210 = vrot.slane %v5121, 2
  %v5211 = vsel %vm3308, %v5208, %v5210
  %v5212 = vrot.slane %v5122, 2
  %v5213 = vsel %vm3308, %v5210, %v5212
  %v5214 = vrot.slane %v5123, 2
  %v5215 = vsel %vm3308, %v5212, %v5214
  %v5216 = vrot.slane %v5124, 2
  %v5217 = vsel %vm3308, %v5214, %v5216
  %v5218 = vrot.slane %v5125, 2
  %v5219 = vsel %vm3308, %v5216, %v5218
  %v5220 = vrot.slane %v5126, 2
  %v5221 = vsel %vm3308, %v5218, %v5220
  %v5222 = vrot.slane %v5127, 2
  %v5223 = vsel %vm3308, %v5220, %v5222
  %v5224 = vrot.slane %v5128, 2
  %v5225 = vsel %vm3308, %v5222, %v5224
  %v5226 = vrot.slane %v5129, 2
  %v5227 = vsel %vm3308, %v5224, %v5226
  %v5260 = vadd.f32 %v5032, %v5165
  %v5261 = vadd.f32 %v5033, %v5167
  %v5262 = vadd.f32 %v5034, %v5169
  %v5263 = vadd.f32 %v5035, %v5171
  %v5264 = vadd.f32 %v5036, %v5173
  %v5265 = vadd.f32 %v5037, %v5175
  %v5266 = vadd.f32 %v5038, %v5177
  %v5267 = vadd.f32 %v5039, %v5179
  %v5268 = vadd.f32 %v5040, %v5181
  %v5269 = vadd.f32 %v5041, %v5183
  %v5270 = vadd.f32 %v5042, %v5185
  %v5271 = vadd.f32 %v5043, %v5187
  %v5272 = vadd.f32 %v5044, %v5189
  %v5273 = vadd.f32 %v5045, %v5191
  %v5274 = vadd.f32 %v5046, %v5193
  %v5275 = vadd.f32 %v5047, %v5195
  %v5276 = vadd.f32 %v5048, %v5197
  %v5277 = vadd.f32 %v5049, %v5199
  %v5278 = vadd.f32 %v5050, %v5201
  %v5279 = vadd.f32 %v5051, %v5203
  %v5280 = vadd.f32 %v5052, %v5205
  %v5281 = vadd.f32 %v5053, %v5207
  %v5282 = vadd.f32 %v5054, %v5209
  %v5283 = vadd.f32 %v5055, %v5211
  %v5284 = vadd.f32 %v5056, %v5213
  %v5285 = vadd.f32 %v5057, %v5215
  %v5286 = vadd.f32 %v5058, %v5217
  %v5287 = vadd.f32 %v5059, %v5219
  %v5288 = vadd.f32 %v5060, %v5221
  %v5289 = vadd.f32 %v5061, %v5223
  %v5290 = vadd.f32 %v5062, %v5225
  %v5291 = vadd.f32 %v5063, %v5227
  %v5292 = vadd.f32 %v5260, %v3618
  %v5293 = vadd.f32 %v5261, %v3618
  %v5294 = vadd.f32 %v5262, %v3618
  %v5295 = vadd.f32 %v5263, %v3618
  %v5296 = vadd.f32 %v5264, %v3618
  %v5297 = vadd.f32 %v5265, %v3618
  %v5298 = vadd.f32 %v5266, %v3618
  %v5299 = vadd.f32 %v5267, %v3618
  %v5300 = vadd.f32 %v5268, %v3618
  %v5301 = vadd.f32 %v5269, %v3618
  %v5302 = vadd.f32 %v5270, %v3618
  %v5303 = vadd.f32 %v5271, %v3618
  %v5304 = vadd.f32 %v5272, %v3618
  %v5305 = vadd.f32 %v5273, %v3618
  %v5306 = vadd.f32 %v5274, %v3618
  %v5307 = vadd.f32 %v5275, %v3618
  %v5308 = vadd.f32 %v5276, %v3618
  %v5309 = vadd.f32 %v5277, %v3618
  %v5310 = vadd.f32 %v5278, %v3618
  %v5311 = vadd.f32 %v5279, %v3618
  %v5312 = vadd.f32 %v5280, %v3618
  %v5313 = vadd.f32 %v5281, %v3618
  %v5314 = vadd.f32 %v5282, %v3618
  %v5315 = vadd.f32 %v5283, %v3618
  %v5316 = vadd.f32 %v5284, %v3618
  %v5317 = vadd.f32 %v5285, %v3618
  %v5318 = vadd.f32 %v5286, %v3618
  %v5319 = vadd.f32 %v5287, %v3618
  %v5320 = vadd.f32 %v5288, %v3618
  %v5321 = vadd.f32 %v5289, %v3618
  %v5322 = vadd.f32 %v5290, %v3618
  %v5323 = vadd.f32 %v5291, %v3618
  %v5332 = vrot.slane %v2283, 7
  %v5333 = vrot.slane %v2286, 7
  %v5334 = vsel %vm3142, %v5332, %v5333
  %v5335 = vrot.slane %v2289, 7
  %v5336 = vsel %vm3142, %v5333, %v5335
  %v5337 = vrot.slane %v2292, 7
  %v5338 = vsel %vm3142, %v5335, %v5337
  %v5339 = vrot.slane %v2295, 7
  %v5340 = vsel %vm3142, %v5337, %v5339
  %v5341 = vrot.slane %v2298, 7
  %v5342 = vsel %vm3142, %v5339, %v5341
  %v5343 = vrot.slane %v2301, 7
  %v5344 = vsel %vm3142, %v5341, %v5343
  %v5345 = vrot.slane %v2304, 7
  %v5346 = vsel %vm3142, %v5343, %v5345
  %v5356 = vsel %vm3142, 0.0, %v5332
  %v5357 = vsel %vm3142, %v5345, 0.0
  %v5358 = vmul.f32 %v5356, %v3103
  %v5359 = vmul.f32 %v5334, %v3104
  %v5360 = vmul.f32 %v5336, %v3105
  %v5361 = vmul.f32 %v5338, %v3106
  %v5362 = vmul.f32 %v5340, %v3107
  %v5363 = vmul.f32 %v5342, %v3108
  %v5364 = vmul.f32 %v5344, %v3109
  %v5365 = vmul.f32 %v5358, %v3177
  %v5366 = vmul.f32 %v5359, %v3177
  %v5367 = vmul.f32 %v5360, %v3177
  %v5368 = vmul.f32 %v5361, %v3177
  %v5369 = vmul.f32 %v5362, %v3177
  %v5370 = vmul.f32 %v5363, %v3177
  %v5371 = vmul.f32 %v5364, %v3177
  %v5372 = vadd.f32 %v5365, 0.0
  %v5373 = vadd.f32 %v5366, 0.0
  %v5374 = vadd.f32 %v5367, 0.0
  %v5375 = vadd.f32 %v5368, 0.0
  %v5376 = vadd.f32 %v5369, 0.0
  %v5377 = vadd.f32 %v5370, 0.0
  %v5378 = vadd.f32 %v5371, 0.0
  %v5379 = vmul.f32 %v5356, %v3194
  %v5380 = vmul.f32 %v5334, %v3194
  %v5381 = vmul.f32 %v5336, %v3194
  %v5382 = vmul.f32 %v5338, %v3194
  %v5383 = vmul.f32 %v5340, %v3194
  %v5384 = vmul.f32 %v5342, %v3194
  %v5385 = vmul.f32 %v5344, %v3194
  %v5386 = vmul.f32 %v5346, %v3194
  %v5395 = vrot.slane %v5379, 1
  %v5396 = vsel %vm3213, %v3214, %v5395
  %v5397 = vrot.slane %v5380, 1
  %v5398 = vsel %vm3213, %v5395, %v5397
  %v5399 = vrot.slane %v5381, 1
  %v5400 = vsel %vm3213, %v5397, %v5399
  %v5401 = vrot.slane %v5382, 1
  %v5402 = vsel %vm3213, %v5399, %v5401
  %v5403 = vrot.slane %v5383, 1
  %v5404 = vsel %vm3213, %v5401, %v5403
  %v5405 = vrot.slane %v5384, 1
  %v5406 = vsel %vm3213, %v5403, %v5405
  %v5407 = vrot.slane %v5385, 1
  %v5408 = vsel %vm3213, %v5405, %v5407
  %v5409 = vrot.slane %v5386, 1
  %v5410 = vsel %vm3213, %v5407, %v5409
  %v5419 = vadd.f32 %v3186, %v5396
  %v5420 = vadd.f32 %v5372, %v5398
  %v5421 = vadd.f32 %v5373, %v5400
  %v5422 = vadd.f32 %v5374, %v5402
  %v5423 = vadd.f32 %v5375, %v5404
  %v5424 = vadd.f32 %v5376, %v5406
  %v5425 = vadd.f32 %v5377, %v5408
  %v5426 = vadd.f32 %v5378, %v5410
  %v5427 = vmul.f32 %v5356, %v3258
  %v5428 = vmul.f32 %v5334, %v3260
  %v5429 = vmul.f32 %v5336, %v3262
  %v5430 = vmul.f32 %v5338, %v3264
  %v5431 = vmul.f32 %v5340, %v3266
  %v5432 = vmul.f32 %v5342, %v3268
  %v5433 = vmul.f32 %v5344, %v3270
  %v5434 = vmul.f32 %v5346, %v3269
  %v5435 = vmul.f32 %v5427, %v3289
  %v5436 = vmul.f32 %v5428, %v3289
  %v5437 = vmul.f32 %v5429, %v3289
  %v5438 = vmul.f32 %v5430, %v3289
  %v5439 = vmul.f32 %v5431, %v3289
  %v5440 = vmul.f32 %v5432, %v3289
  %v5441 = vmul.f32 %v5433, %v3289
  %v5442 = vmul.f32 %v5434, %v3289
  %v5451 = vrot.slane %v5435, 2
  %v5452 = vsel %vm3308, %v3309, %v5451
  %v5453 = vrot.slane %v5436, 2
  %v5454 = vsel %vm3308, %v5451, %v5453
  %v5455 = vrot.slane %v5437, 2
  %v5456 = vsel %vm3308, %v5453, %v5455
  %v5457 = vrot.slane %v5438, 2
  %v5458 = vsel %vm3308, %v5455, %v5457
  %v5459 = vrot.slane %v5439, 2
  %v5460 = vsel %vm3308, %v5457, %v5459
  %v5461 = vrot.slane %v5440, 2
  %v5462 = vsel %vm3308, %v5459, %v5461
  %v5463 = vrot.slane %v5441, 2
  %v5464 = vsel %vm3308, %v5461, %v5463
  %v5465 = vrot.slane %v5442, 2
  %v5466 = vsel %vm3308, %v5463, %v5465
  %v5475 = vadd.f32 %v5419, %v5452
  %v5476 = vadd.f32 %v5420, %v5454
  %v5477 = vadd.f32 %v5421, %v5456
  %v5478 = vadd.f32 %v5422, %v5458
  %v5479 = vadd.f32 %v5423, %v5460
  %v5480 = vadd.f32 %v5424, %v5462
  %v5481 = vadd.f32 %v5425, %v5464
  %v5482 = vadd.f32 %v5426, %v5466
  %v5483 = vmul.f32 %v5356, %v3102
  %v5484 = vmul.f32 %v5334, %v3103
  %v5485 = vmul.f32 %v5336, %v3104
  %v5486 = vmul.f32 %v5338, %v3105
  %v5487 = vmul.f32 %v5340, %v3106
  %v5488 = vmul.f32 %v5342, %v3107
  %v5489 = vmul.f32 %v5344, %v3108
  %v5490 = vmul.f32 %v5346, %v3109
  %v5491 = vmul.f32 %v5483, %v3350
  %v5492 = vmul.f32 %v5484, %v3350
  %v5493 = vmul.f32 %v5485, %v3350
  %v5494 = vmul.f32 %v5486, %v3350
  %v5495 = vmul.f32 %v5487, %v3350
  %v5496 = vmul.f32 %v5488, %v3350
  %v5497 = vmul.f32 %v5489, %v3350
  %v5498 = vmul.f32 %v5490, %v3350
  %v5499 = vadd.f32 %v5475, %v5491
  %v5500 = vadd.f32 %v5476, %v5492
  %v5501 = vadd.f32 %v5477, %v5493
  %v5502 = vadd.f32 %v5478, %v5494
  %v5503 = vadd.f32 %v5479, %v5495
  %v5504 = vadd.f32 %v5480, %v5496
  %v5505 = vadd.f32 %v5481, %v5497
  %v5506 = vadd.f32 %v5482, %v5498
  %v5507 = vmul.f32 %v5356, %v3367
  %v5508 = vmul.f32 %v5334, %v3367
  %v5509 = vmul.f32 %v5336, %v3367
  %v5510 = vmul.f32 %v5338, %v3367
  %v5511 = vmul.f32 %v5340, %v3367
  %v5512 = vmul.f32 %v5342, %v3367
  %v5513 = vmul.f32 %v5344, %v3367
  %v5514 = vmul.f32 %v5346, %v3367
  %v5515 = vmul.f32 %v5357, %v3367
  %v5525 = vrot.slane %v5507, 1
  %v5526 = vrot.slane %v5508, 1
  %v5527 = vsel %vm3213, %v5525, %v5526
  %v5528 = vrot.slane %v5509, 1
  %v5529 = vsel %vm3213, %v5526, %v5528
  %v5530 = vrot.slane %v5510, 1
  %v5531 = vsel %vm3213, %v5528, %v5530
  %v5532 = vrot.slane %v5511, 1
  %v5533 = vsel %vm3213, %v5530, %v5532
  %v5534 = vrot.slane %v5512, 1
  %v5535 = vsel %vm3213, %v5532, %v5534
  %v5536 = vrot.slane %v5513, 1
  %v5537 = vsel %vm3213, %v5534, %v5536
  %v5538 = vrot.slane %v5514, 1
  %v5539 = vsel %vm3213, %v5536, %v5538
  %v5540 = vrot.slane %v5515, 1
  %v5541 = vsel %vm3213, %v5538, %v5540
  %v5550 = vadd.f32 %v5499, %v5527
  %v5551 = vadd.f32 %v5500, %v5529
  %v5552 = vadd.f32 %v5501, %v5531
  %v5553 = vadd.f32 %v5502, %v5533
  %v5554 = vadd.f32 %v5503, %v5535
  %v5555 = vadd.f32 %v5504, %v5537
  %v5556 = vadd.f32 %v5505, %v5539
  %v5557 = vadd.f32 %v5506, %v5541
  %v5558 = vmul.f32 %v5356, %v3256
  %v5559 = vmul.f32 %v5334, %v3258
  %v5560 = vmul.f32 %v5336, %v3260
  %v5561 = vmul.f32 %v5338, %v3262
  %v5562 = vmul.f32 %v5340, %v3264
  %v5563 = vmul.f32 %v5342, %v3266
  %v5564 = vmul.f32 %v5344, %v3268
  %v5565 = vmul.f32 %v5346, %v3270
  %v5566 = vmul.f32 %v5357, %v3269
  %v5567 = vmul.f32 %v5558, %v3428
  %v5568 = vmul.f32 %v5559, %v3428
  %v5569 = vmul.f32 %v5560, %v3428
  %v5570 = vmul.f32 %v5561, %v3428
  %v5571 = vmul.f32 %v5562, %v3428
  %v5572 = vmul.f32 %v5563, %v3428
  %v5573 = vmul.f32 %v5564, %v3428
  %v5574 = vmul.f32 %v5565, %v3428
  %v5575 = vmul.f32 %v5566, %v3428
  %v5585 = vrot.slane %v5567, 2
  %v5586 = vrot.slane %v5568, 2
  %v5587 = vsel %vm3308, %v5585, %v5586
  %v5588 = vrot.slane %v5569, 2
  %v5589 = vsel %vm3308, %v5586, %v5588
  %v5590 = vrot.slane %v5570, 2
  %v5591 = vsel %vm3308, %v5588, %v5590
  %v5592 = vrot.slane %v5571, 2
  %v5593 = vsel %vm3308, %v5590, %v5592
  %v5594 = vrot.slane %v5572, 2
  %v5595 = vsel %vm3308, %v5592, %v5594
  %v5596 = vrot.slane %v5573, 2
  %v5597 = vsel %vm3308, %v5594, %v5596
  %v5598 = vrot.slane %v5574, 2
  %v5599 = vsel %vm3308, %v5596, %v5598
  %v5600 = vrot.slane %v5575, 2
  %v5601 = vsel %vm3308, %v5598, %v5600
  %v5610 = vadd.f32 %v5550, %v5587
  %v5611 = vadd.f32 %v5551, %v5589
  %v5612 = vadd.f32 %v5552, %v5591
  %v5613 = vadd.f32 %v5553, %v5593
  %v5614 = vadd.f32 %v5554, %v5595
  %v5615 = vadd.f32 %v5555, %v5597
  %v5616 = vadd.f32 %v5556, %v5599
  %v5617 = vadd.f32 %v5557, %v5601
  %v5618 = vmul.f32 %v5334, %v3102
  %v5619 = vmul.f32 %v5336, %v3103
  %v5620 = vmul.f32 %v5338, %v3104
  %v5621 = vmul.f32 %v5340, %v3105
  %v5622 = vmul.f32 %v5342, %v3106
  %v5623 = vmul.f32 %v5344, %v3107
  %v5624 = vmul.f32 %v5346, %v3108
  %v5625 = vmul.f32 %v5357, %v3109
  %v5626 = vmul.f32 %v5618, %v3488
  %v5627 = vmul.f32 %v5619, %v3488
  %v5628 = vmul.f32 %v5620, %v3488
  %v5629 = vmul.f32 %v5621, %v3488
  %v5630 = vmul.f32 %v5622, %v3488
  %v5631 = vmul.f32 %v5623, %v3488
  %v5632 = vmul.f32 %v5624, %v3488
  %v5633 = vmul.f32 %v5625, %v3488
  %v5634 = vadd.f32 %v5610, %v5626
  %v5635 = vadd.f32 %v5611, %v5627
  %v5636 = vadd.f32 %v5612, %v5628
  %v5637 = vadd.f32 %v5613, %v5629
  %v5638 = vadd.f32 %v5614, %v5630
  %v5639 = vadd.f32 %v5615, %v5631
  %v5640 = vadd.f32 %v5616, %v5632
  %v5641 = vadd.f32 %v5617, %v5633
  %v5642 = vmul.f32 %v5334, %v3505
  %v5643 = vmul.f32 %v5336, %v3505
  %v5644 = vmul.f32 %v5338, %v3505
  %v5645 = vmul.f32 %v5340, %v3505
  %v5646 = vmul.f32 %v5342, %v3505
  %v5647 = vmul.f32 %v5344, %v3505
  %v5648 = vmul.f32 %v5346, %v3505
  %v5649 = vmul.f32 %v5357, %v3505
  %v5658 = vrot.slane %v5642, 1
  %v5659 = vrot.slane %v5643, 1
  %v5660 = vsel %vm3213, %v5658, %v5659
  %v5661 = vrot.slane %v5644, 1
  %v5662 = vsel %vm3213, %v5659, %v5661
  %v5663 = vrot.slane %v5645, 1
  %v5664 = vsel %vm3213, %v5661, %v5663
  %v5665 = vrot.slane %v5646, 1
  %v5666 = vsel %vm3213, %v5663, %v5665
  %v5667 = vrot.slane %v5647, 1
  %v5668 = vsel %vm3213, %v5665, %v5667
  %v5669 = vrot.slane %v5648, 1
  %v5670 = vsel %vm3213, %v5667, %v5669
  %v5671 = vrot.slane %v5649, 1
  %v5672 = vsel %vm3213, %v5669, %v5671
  %v5673 = vsel %vm3213, %v5671, %v3539
  %v5682 = vadd.f32 %v5634, %v5660
  %v5683 = vadd.f32 %v5635, %v5662
  %v5684 = vadd.f32 %v5636, %v5664
  %v5685 = vadd.f32 %v5637, %v5666
  %v5686 = vadd.f32 %v5638, %v5668
  %v5687 = vadd.f32 %v5639, %v5670
  %v5688 = vadd.f32 %v5640, %v5672
  %v5689 = vadd.f32 %v5641, %v5673
  %v5690 = vmul.f32 %v5334, %v3256
  %v5691 = vmul.f32 %v5336, %v3258
  %v5692 = vmul.f32 %v5338, %v3260
  %v5693 = vmul.f32 %v5340, %v3262
  %v5694 = vmul.f32 %v5342, %v3264
  %v5695 = vmul.f32 %v5344, %v3266
  %v5696 = vmul.f32 %v5346, %v3268
  %v5697 = vmul.f32 %v5357, %v3270
  %v5698 = vmul.f32 %v5690, %v3566
  %v5699 = vmul.f32 %v5691, %v3566
  %v5700 = vmul.f32 %v5692, %v3566
  %v5701 = vmul.f32 %v5693, %v3566
  %v5702 = vmul.f32 %v5694, %v3566
  %v5703 = vmul.f32 %v5695, %v3566
  %v5704 = vmul.f32 %v5696, %v3566
  %v5705 = vmul.f32 %v5697, %v3566
  %v5714 = vrot.slane %v5698, 2
  %v5715 = vrot.slane %v5699, 2
  %v5716 = vsel %vm3308, %v5714, %v5715
  %v5717 = vrot.slane %v5700, 2
  %v5718 = vsel %vm3308, %v5715, %v5717
  %v5719 = vrot.slane %v5701, 2
  %v5720 = vsel %vm3308, %v5717, %v5719
  %v5721 = vrot.slane %v5702, 2
  %v5722 = vsel %vm3308, %v5719, %v5721
  %v5723 = vrot.slane %v5703, 2
  %v5724 = vsel %vm3308, %v5721, %v5723
  %v5725 = vrot.slane %v5704, 2
  %v5726 = vsel %vm3308, %v5723, %v5725
  %v5727 = vrot.slane %v5705, 2
  %v5728 = vsel %vm3308, %v5725, %v5727
  %v5729 = vsel %vm3308, %v5727, %v3600
  %v5738 = vadd.f32 %v5682, %v5716
  %v5739 = vadd.f32 %v5683, %v5718
  %v5740 = vadd.f32 %v5684, %v5720
  %v5741 = vadd.f32 %v5685, %v5722
  %v5742 = vadd.f32 %v5686, %v5724
  %v5743 = vadd.f32 %v5687, %v5726
  %v5744 = vadd.f32 %v5688, %v5728
  %v5745 = vadd.f32 %v5689, %v5729
  %v5746 = vadd.f32 %v5738, %v3618
  %v5747 = vadd.f32 %v5739, %v3618
  %v5748 = vadd.f32 %v5740, %v3618
  %v5749 = vadd.f32 %v5741, %v3618
  %v5750 = vadd.f32 %v5742, %v3618
  %v5751 = vadd.f32 %v5743, %v3618
  %v5752 = vadd.f32 %v5744, %v3618
  %v5753 = vadd.f32 %v5745, %v3618
  %v5778 = vrot.slane %v2307, 7
  %v5779 = vsel %vm3142, %v5345, %v5778
  %v5780 = vrot.slane %v2310, 7
  %v5781 = vsel %vm3142, %v5778, %v5780
  %v5782 = vrot.slane %v2313, 7
  %v5783 = vsel %vm3142, %v5780, %v5782
  %v5784 = vrot.slane %v2316, 7
  %v5785 = vsel %vm3142, %v5782, %v5784
  %v5786 = vrot.slane %v2319, 7
  %v5787 = vsel %vm3142, %v5784, %v5786
  %v5788 = vrot.slane %v2322, 7
  %v5789 = vsel %vm3142, %v5786, %v5788
  %v5790 = vrot.slane %v2325, 7
  %v5791 = vsel %vm3142, %v5788, %v5790
  %v5792 = vrot.slane %v2328, 7
  %v5793 = vsel %vm3142, %v5790, %v5792
  %v5794 = vrot.slane %v2331, 7
  %v5795 = vsel %vm3142, %v5792, %v5794
  %v5796 = vrot.slane %v2334, 7
  %v5797 = vsel %vm3142, %v5794, %v5796
  %v5798 = vrot.slane %v2337, 7
  %v5799 = vsel %vm3142, %v5796, %v5798
  %v5800 = vrot.slane %v2340, 7
  %v5801 = vsel %vm3142, %v5798, %v5800
  %v5802 = vrot.slane %v2343, 7
  %v5803 = vsel %vm3142, %v5800, %v5802
  %v5804 = vrot.slane %v2346, 7
  %v5805 = vsel %vm3142, %v5802, %v5804
  %v5806 = vrot.slane %v2349, 7
  %v5807 = vsel %vm3142, %v5804, %v5806
  %v5808 = vrot.slane %v2352, 7
  %v5809 = vsel %vm3142, %v5806, %v5808
  %v5810 = vrot.slane %v2355, 7
  %v5811 = vsel %vm3142, %v5808, %v5810
  %v5812 = vrot.slane %v2358, 7
  %v5813 = vsel %vm3142, %v5810, %v5812
  %v5814 = vrot.slane %v2361, 7
  %v5815 = vsel %vm3142, %v5812, %v5814
  %v5816 = vrot.slane %v2364, 7
  %v5817 = vsel %vm3142, %v5814, %v5816
  %v5818 = vrot.slane %v2367, 7
  %v5819 = vsel %vm3142, %v5816, %v5818
  %v5820 = vrot.slane %v2370, 7
  %v5821 = vsel %vm3142, %v5818, %v5820
  %v5822 = vrot.slane %v2373, 7
  %v5823 = vsel %vm3142, %v5820, %v5822
  %v5824 = vrot.slane %v2376, 7
  %v5825 = vsel %vm3142, %v5822, %v5824
  %v5851 = vsel %vm3142, %v5824, 0.0
  %v5852 = vmul.f32 %v5356, %v2864
  %v5853 = vmul.f32 %v5334, %v2865
  %v5854 = vmul.f32 %v5336, %v2866
  %v5855 = vmul.f32 %v5338, %v2867
  %v5856 = vmul.f32 %v5340, %v2868
  %v5857 = vmul.f32 %v5342, %v2869
  %v5858 = vmul.f32 %v5344, %v2870
  %v5859 = vmul.f32 %v5346, %v2871
  %v5860 = vmul.f32 %v5779, %v2872
  %v5861 = vmul.f32 %v5781, %v2873
  %v5862 = vmul.f32 %v5783, %v2874
  %v5863 = vmul.f32 %v5785, %v2875
  %v5864 = vmul.f32 %v5787, %v2876
  %v5865 = vmul.f32 %v5789, %v2877
  %v5866 = vmul.f32 %v5791, %v2878
  %v5867 = vmul.f32 %v5793, %v2879
  %v5868 = vmul.f32 %v5795, %v2880
  %v5869 = vmul.f32 %v5797, %v2881
  %v5870 = vmul.f32 %v5799, %v2882
  %v5871 = vmul.f32 %v5801, %v2883
  %v5872 = vmul.f32 %v5803, %v2884
  %v5873 = vmul.f32 %v5805, %v2885
  %v5874 = vmul.f32 %v5807, %v2886
  %v5875 = vmul.f32 %v5809, %v2887
  %v5876 = vmul.f32 %v5811, %v2888
  %v5877 = vmul.f32 %v5813, %v2889
  %v5878 = vmul.f32 %v5815, %v2890
  %v5879 = vmul.f32 %v5817, %v2891
  %v5880 = vmul.f32 %v5819, %v2892
  %v5881 = vmul.f32 %v5821, %v2893
  %v5882 = vmul.f32 %v5852, %v3177
  %v5883 = vmul.f32 %v5853, %v3177
  %v5884 = vmul.f32 %v5854, %v3177
  %v5885 = vmul.f32 %v5855, %v3177
  %v5886 = vmul.f32 %v5856, %v3177
  %v5887 = vmul.f32 %v5857, %v3177
  %v5888 = vmul.f32 %v5858, %v3177
  %v5889 = vmul.f32 %v5859, %v3177
  %v5890 = vmul.f32 %v5860, %v3177
  %v5891 = vmul.f32 %v5861, %v3177
  %v5892 = vmul.f32 %v5862, %v3177
  %v5893 = vmul.f32 %v5863, %v3177
  %v5894 = vmul.f32 %v5864, %v3177
  %v5895 = vmul.f32 %v5865, %v3177
  %v5896 = vmul.f32 %v5866, %v3177
  %v5897 = vmul.f32 %v5867, %v3177
  %v5898 = vmul.f32 %v5868, %v3177
  %v5899 = vmul.f32 %v5869, %v3177
  %v5900 = vmul.f32 %v5870, %v3177
  %v5901 = vmul.f32 %v5871, %v3177
  %v5902 = vmul.f32 %v5872, %v3177
  %v5903 = vmul.f32 %v5873, %v3177
  %v5904 = vmul.f32 %v5874, %v3177
  %v5905 = vmul.f32 %v5875, %v3177
  %v5906 = vmul.f32 %v5876, %v3177
  %v5907 = vmul.f32 %v5877, %v3177
  %v5908 = vmul.f32 %v5878, %v3177
  %v5909 = vmul.f32 %v5879, %v3177
  %v5910 = vmul.f32 %v5880, %v3177
  %v5911 = vmul.f32 %v5881, %v3177
  %v5912 = vadd.f32 %v5882, 0.0
  %v5913 = vadd.f32 %v5883, 0.0
  %v5914 = vadd.f32 %v5884, 0.0
  %v5915 = vadd.f32 %v5885, 0.0
  %v5916 = vadd.f32 %v5886, 0.0
  %v5917 = vadd.f32 %v5887, 0.0
  %v5918 = vadd.f32 %v5888, 0.0
  %v5919 = vadd.f32 %v5889, 0.0
  %v5920 = vadd.f32 %v5890, 0.0
  %v5921 = vadd.f32 %v5891, 0.0
  %v5922 = vadd.f32 %v5892, 0.0
  %v5923 = vadd.f32 %v5893, 0.0
  %v5924 = vadd.f32 %v5894, 0.0
  %v5925 = vadd.f32 %v5895, 0.0
  %v5926 = vadd.f32 %v5896, 0.0
  %v5927 = vadd.f32 %v5897, 0.0
  %v5928 = vadd.f32 %v5898, 0.0
  %v5929 = vadd.f32 %v5899, 0.0
  %v5930 = vadd.f32 %v5900, 0.0
  %v5931 = vadd.f32 %v5901, 0.0
  %v5932 = vadd.f32 %v5902, 0.0
  %v5933 = vadd.f32 %v5903, 0.0
  %v5934 = vadd.f32 %v5904, 0.0
  %v5935 = vadd.f32 %v5905, 0.0
  %v5936 = vadd.f32 %v5906, 0.0
  %v5937 = vadd.f32 %v5907, 0.0
  %v5938 = vadd.f32 %v5908, 0.0
  %v5939 = vadd.f32 %v5909, 0.0
  %v5940 = vadd.f32 %v5910, 0.0
  %v5941 = vadd.f32 %v5911, 0.0
  %v5942 = vmul.f32 %v5779, %v3194
  %v5943 = vmul.f32 %v5781, %v3194
  %v5944 = vmul.f32 %v5783, %v3194
  %v5945 = vmul.f32 %v5785, %v3194
  %v5946 = vmul.f32 %v5787, %v3194
  %v5947 = vmul.f32 %v5789, %v3194
  %v5948 = vmul.f32 %v5791, %v3194
  %v5949 = vmul.f32 %v5793, %v3194
  %v5950 = vmul.f32 %v5795, %v3194
  %v5951 = vmul.f32 %v5797, %v3194
  %v5952 = vmul.f32 %v5799, %v3194
  %v5953 = vmul.f32 %v5801, %v3194
  %v5954 = vmul.f32 %v5803, %v3194
  %v5955 = vmul.f32 %v5805, %v3194
  %v5956 = vmul.f32 %v5807, %v3194
  %v5957 = vmul.f32 %v5809, %v3194
  %v5958 = vmul.f32 %v5811, %v3194
  %v5959 = vmul.f32 %v5813, %v3194
  %v5960 = vmul.f32 %v5815, %v3194
  %v5961 = vmul.f32 %v5817, %v3194
  %v5962 = vmul.f32 %v5819, %v3194
  %v5963 = vmul.f32 %v5821, %v3194
  %v5964 = vmul.f32 %v5823, %v3194
  %v5988 = vrot.slane %v5942, 1
  %v5989 = vsel %vm3213, %v5409, %v5988
  %v5990 = vrot.slane %v5943, 1
  %v5991 = vsel %vm3213, %v5988, %v5990
  %v5992 = vrot.slane %v5944, 1
  %v5993 = vsel %vm3213, %v5990, %v5992
  %v5994 = vrot.slane %v5945, 1
  %v5995 = vsel %vm3213, %v5992, %v5994
  %v5996 = vrot.slane %v5946, 1
  %v5997 = vsel %vm3213, %v5994, %v5996
  %v5998 = vrot.slane %v5947, 1
  %v5999 = vsel %vm3213, %v5996, %v5998
  %v6000 = vrot.slane %v5948, 1
  %v6001 = vsel %vm3213, %v5998, %v6000
  %v6002 = vrot.slane %v5949, 1
  %v6003 = vsel %vm3213, %v6000, %v6002
  %v6004 = vrot.slane %v5950, 1
  %v6005 = vsel %vm3213, %v6002, %v6004
  %v6006 = vrot.slane %v5951, 1
  %v6007 = vsel %vm3213, %v6004, %v6006
  %v6008 = vrot.slane %v5952, 1
  %v6009 = vsel %vm3213, %v6006, %v6008
  %v6010 = vrot.slane %v5953, 1
  %v6011 = vsel %vm3213, %v6008, %v6010
  %v6012 = vrot.slane %v5954, 1
  %v6013 = vsel %vm3213, %v6010, %v6012
  %v6014 = vrot.slane %v5955, 1
  %v6015 = vsel %vm3213, %v6012, %v6014
  %v6016 = vrot.slane %v5956, 1
  %v6017 = vsel %vm3213, %v6014, %v6016
  %v6018 = vrot.slane %v5957, 1
  %v6019 = vsel %vm3213, %v6016, %v6018
  %v6020 = vrot.slane %v5958, 1
  %v6021 = vsel %vm3213, %v6018, %v6020
  %v6022 = vrot.slane %v5959, 1
  %v6023 = vsel %vm3213, %v6020, %v6022
  %v6024 = vrot.slane %v5960, 1
  %v6025 = vsel %vm3213, %v6022, %v6024
  %v6026 = vrot.slane %v5961, 1
  %v6027 = vsel %vm3213, %v6024, %v6026
  %v6028 = vrot.slane %v5962, 1
  %v6029 = vsel %vm3213, %v6026, %v6028
  %v6030 = vrot.slane %v5963, 1
  %v6031 = vsel %vm3213, %v6028, %v6030
  %v6032 = vrot.slane %v5964, 1
  %v6033 = vsel %vm3213, %v6030, %v6032
  %v6057 = vadd.f32 %v3790, %v5396
  %v6058 = vadd.f32 %v5912, %v5398
  %v6059 = vadd.f32 %v5913, %v5400
  %v6060 = vadd.f32 %v5914, %v5402
  %v6061 = vadd.f32 %v5915, %v5404
  %v6062 = vadd.f32 %v5916, %v5406
  %v6063 = vadd.f32 %v5917, %v5408
  %v6064 = vadd.f32 %v5918, %v5410
  %v6065 = vadd.f32 %v5919, %v5989
  %v6066 = vadd.f32 %v5920, %v5991
  %v6067 = vadd.f32 %v5921, %v5993
  %v6068 = vadd.f32 %v5922, %v5995
  %v6069 = vadd.f32 %v5923, %v5997
  %v6070 = vadd.f32 %v5924, %v5999
  %v6071 = vadd.f32 %v5925, %v6001
  %v6072 = vadd.f32 %v5926, %v6003
  %v6073 = vadd.f32 %v5927, %v6005
  %v6074 = vadd.f32 %v5928, %v6007
  %v6075 = vadd.f32 %v5929, %v6009
  %v6076 = vadd.f32 %v5930, %v6011
  %v6077 = vadd.f32 %v5931, %v6013
  %v6078 = vadd.f32 %v5932, %v6015
  %v6079 = vadd.f32 %v5933, %v6017
  %v6080 = vadd.f32 %v5934, %v6019
  %v6081 = vadd.f32 %v5935, %v6021
  %v6082 = vadd.f32 %v5936, %v6023
  %v6083 = vadd.f32 %v5937, %v6025
  %v6084 = vadd.f32 %v5938, %v6027
  %v6085 = vadd.f32 %v5939, %v6029
  %v6086 = vadd.f32 %v5940, %v6031
  %v6087 = vadd.f32 %v5941, %v6033
  %v6088 = vmul.f32 %v5356, %v4006
  %v6089 = vmul.f32 %v5334, %v4008
  %v6090 = vmul.f32 %v5336, %v4010
  %v6091 = vmul.f32 %v5338, %v4012
  %v6092 = vmul.f32 %v5340, %v4014
  %v6093 = vmul.f32 %v5342, %v4016
  %v6094 = vmul.f32 %v5344, %v4018
  %v6095 = vmul.f32 %v5346, %v4020
  %v6096 = vmul.f32 %v5779, %v4022
  %v6097 = vmul.f32 %v5781, %v4024
  %v6098 = vmul.f32 %v5783, %v4026
  %v6099 = vmul.f32 %v5785, %v4028
  %v6100 = vmul.f32 %v5787, %v4030
  %v6101 = vmul.f32 %v5789, %v4032
  %v6102 = vmul.f32 %v5791, %v4034
  %v6103 = vmul.f32 %v5793, %v4036
  %v6104 = vmul.f32 %v5795, %v4038
  %v6105 = vmul.f32 %v5797, %v4040
  %v6106 = vmul.f32 %v5799, %v4042
  %v6107 = vmul.f32 %v5801, %v4044
  %v6108 = vmul.f32 %v5803, %v4046
  %v6109 = vmul.f32 %v5805, %v4048
  %v6110 = vmul.f32 %v5807, %v4050
  %v6111 = vmul.f32 %v5809, %v4052
  %v6112 = vmul.f32 %v5811, %v4054
  %v6113 = vmul.f32 %v5813, %v4056
  %v6114 = vmul.f32 %v5815, %v4058
  %v6115 = vmul.f32 %v5817, %v4060
  %v6116 = vmul.f32 %v5819, %v4062
  %v6117 = vmul.f32 %v5821, %v4064
  %v6118 = vmul.f32 %v5823, %v4063
  %v6119 = vmul.f32 %v6088, %v3289
  %v6120 = vmul.f32 %v6089, %v3289
  %v6121 = vmul.f32 %v6090, %v3289
  %v6122 = vmul.f32 %v6091, %v3289
  %v6123 = vmul.f32 %v6092, %v3289
  %v6124 = vmul.f32 %v6093, %v3289
  %v6125 = vmul.f32 %v6094, %v3289
  %v6126 = vmul.f32 %v6095, %v3289
  %v6127 = vmul.f32 %v6096, %v3289
  %v6128 = vmul.f32 %v6097, %v3289
  %v6129 = vmul.f32 %v6098, %v3289
  %v6130 = vmul.f32 %v6099, %v3289
  %v6131 = vmul.f32 %v6100, %v3289
  %v6132 = vmul.f32 %v6101, %v3289
  %v6133 = vmul.f32 %v6102, %v3289
  %v6134 = vmul.f32 %v6103, %v3289
  %v6135 = vmul.f32 %v6104, %v3289
  %v6136 = vmul.f32 %v6105, %v3289
  %v6137 = vmul.f32 %v6106, %v3289
  %v6138 = vmul.f32 %v6107, %v3289
  %v6139 = vmul.f32 %v6108, %v3289
  %v6140 = vmul.f32 %v6109, %v3289
  %v6141 = vmul.f32 %v6110, %v3289
  %v6142 = vmul.f32 %v6111, %v3289
  %v6143 = vmul.f32 %v6112, %v3289
  %v6144 = vmul.f32 %v6113, %v3289
  %v6145 = vmul.f32 %v6114, %v3289
  %v6146 = vmul.f32 %v6115, %v3289
  %v6147 = vmul.f32 %v6116, %v3289
  %v6148 = vmul.f32 %v6117, %v3289
  %v6149 = vmul.f32 %v6118, %v3289
  %v6181 = vrot.slane %v6119, 2
  %v6182 = vsel %vm3308, %v4198, %v6181
  %v6183 = vrot.slane %v6120, 2
  %v6184 = vsel %vm3308, %v6181, %v6183
  %v6185 = vrot.slane %v6121, 2
  %v6186 = vsel %vm3308, %v6183, %v6185
  %v6187 = vrot.slane %v6122, 2
  %v6188 = vsel %vm3308, %v6185, %v6187
  %v6189 = vrot.slane %v6123, 2
  %v6190 = vsel %vm3308, %v6187, %v6189
  %v6191 = vrot.slane %v6124, 2
  %v6192 = vsel %vm3308, %v6189, %v6191
  %v6193 = vrot.slane %v6125, 2
  %v6194 = vsel %vm3308, %v6191, %v6193
  %v6195 = vrot.slane %v6126, 2
  %v6196 = vsel %vm3308, %v6193, %v6195
  %v6197 = vrot.slane %v6127, 2
  %v6198 = vsel %vm3308, %v6195, %v6197
  %v6199 = vrot.slane %v6128, 2
  %v6200 = vsel %vm3308, %v6197, %v6199
  %v6201 = vrot.slane %v6129, 2
  %v6202 = vsel %vm3308, %v6199, %v6201
  %v6203 = vrot.slane %v6130, 2
  %v6204 = vsel %vm3308, %v6201, %v6203
  %v6205 = vrot.slane %v6131, 2
  %v6206 = vsel %vm3308, %v6203, %v6205
  %v6207 = vrot.slane %v6132, 2
  %v6208 = vsel %vm3308, %v6205, %v6207
  %v6209 = vrot.slane %v6133, 2
  %v6210 = vsel %vm3308, %v6207, %v6209
  %v6211 = vrot.slane %v6134, 2
  %v6212 = vsel %vm3308, %v6209, %v6211
  %v6213 = vrot.slane %v6135, 2
  %v6214 = vsel %vm3308, %v6211, %v6213
  %v6215 = vrot.slane %v6136, 2
  %v6216 = vsel %vm3308, %v6213, %v6215
  %v6217 = vrot.slane %v6137, 2
  %v6218 = vsel %vm3308, %v6215, %v6217
  %v6219 = vrot.slane %v6138, 2
  %v6220 = vsel %vm3308, %v6217, %v6219
  %v6221 = vrot.slane %v6139, 2
  %v6222 = vsel %vm3308, %v6219, %v6221
  %v6223 = vrot.slane %v6140, 2
  %v6224 = vsel %vm3308, %v6221, %v6223
  %v6225 = vrot.slane %v6141, 2
  %v6226 = vsel %vm3308, %v6223, %v6225
  %v6227 = vrot.slane %v6142, 2
  %v6228 = vsel %vm3308, %v6225, %v6227
  %v6229 = vrot.slane %v6143, 2
  %v6230 = vsel %vm3308, %v6227, %v6229
  %v6231 = vrot.slane %v6144, 2
  %v6232 = vsel %vm3308, %v6229, %v6231
  %v6233 = vrot.slane %v6145, 2
  %v6234 = vsel %vm3308, %v6231, %v6233
  %v6235 = vrot.slane %v6146, 2
  %v6236 = vsel %vm3308, %v6233, %v6235
  %v6237 = vrot.slane %v6147, 2
  %v6238 = vsel %vm3308, %v6235, %v6237
  %v6239 = vrot.slane %v6148, 2
  %v6240 = vsel %vm3308, %v6237, %v6239
  %v6241 = vrot.slane %v6149, 2
  %v6242 = vsel %vm3308, %v6239, %v6241
  %v6274 = vadd.f32 %v6057, %v6182
  %v6275 = vadd.f32 %v6058, %v6184
  %v6276 = vadd.f32 %v6059, %v6186
  %v6277 = vadd.f32 %v6060, %v6188
  %v6278 = vadd.f32 %v6061, %v6190
  %v6279 = vadd.f32 %v6062, %v6192
  %v6280 = vadd.f32 %v6063, %v6194
  %v6281 = vadd.f32 %v6064, %v6196
  %v6282 = vadd.f32 %v6065, %v6198
  %v6283 = vadd.f32 %v6066, %v6200
  %v6284 = vadd.f32 %v6067, %v6202
  %v6285 = vadd.f32 %v6068, %v6204
  %v6286 = vadd.f32 %v6069, %v6206
  %v6287 = vadd.f32 %v6070, %v6208
  %v6288 = vadd.f32 %v6071, %v6210
  %v6289 = vadd.f32 %v6072, %v6212
  %v6290 = vadd.f32 %v6073, %v6214
  %v6291 = vadd.f32 %v6074, %v6216
  %v6292 = vadd.f32 %v6075, %v6218
  %v6293 = vadd.f32 %v6076, %v6220
  %v6294 = vadd.f32 %v6077, %v6222
  %v6295 = vadd.f32 %v6078, %v6224
  %v6296 = vadd.f32 %v6079, %v6226
  %v6297 = vadd.f32 %v6080, %v6228
  %v6298 = vadd.f32 %v6081, %v6230
  %v6299 = vadd.f32 %v6082, %v6232
  %v6300 = vadd.f32 %v6083, %v6234
  %v6301 = vadd.f32 %v6084, %v6236
  %v6302 = vadd.f32 %v6085, %v6238
  %v6303 = vadd.f32 %v6086, %v6240
  %v6304 = vadd.f32 %v6087, %v6242
  %v6305 = vmul.f32 %v5356, %v2862
  %v6306 = vmul.f32 %v5334, %v2863
  %v6307 = vmul.f32 %v5336, %v2864
  %v6308 = vmul.f32 %v5338, %v2865
  %v6309 = vmul.f32 %v5340, %v2866
  %v6310 = vmul.f32 %v5342, %v2867
  %v6311 = vmul.f32 %v5344, %v2868
  %v6312 = vmul.f32 %v5346, %v2869
  %v6313 = vmul.f32 %v5779, %v2870
  %v6314 = vmul.f32 %v5781, %v2871
  %v6315 = vmul.f32 %v5783, %v2872
  %v6316 = vmul.f32 %v5785, %v2873
  %v6317 = vmul.f32 %v5787, %v2874
  %v6318 = vmul.f32 %v5789, %v2875
  %v6319 = vmul.f32 %v5791, %v2876
  %v6320 = vmul.f32 %v5793, %v2877
  %v6321 = vmul.f32 %v5795, %v2878
  %v6322 = vmul.f32 %v5797, %v2879
  %v6323 = vmul.f32 %v5799, %v2880
  %v6324 = vmul.f32 %v5801, %v2881
  %v6325 = vmul.f32 %v5803, %v2882
  %v6326 = vmul.f32 %v5805, %v2883
  %v6327 = vmul.f32 %v5807, %v2884
  %v6328 = vmul.f32 %v5809, %v2885
  %v6329 = vmul.f32 %v5811, %v2886
  %v6330 = vmul.f32 %v5813, %v2887
  %v6331 = vmul.f32 %v5815, %v2888
  %v6332 = vmul.f32 %v5817, %v2889
  %v6333 = vmul.f32 %v5819, %v2890
  %v6334 = vmul.f32 %v5821, %v2891
  %v6335 = vmul.f32 %v5823, %v2892
  %v6336 = vmul.f32 %v5825, %v2893
  %v6337 = vmul.f32 %v6305, %v3350
  %v6338 = vmul.f32 %v6306, %v3350
  %v6339 = vmul.f32 %v6307, %v3350
  %v6340 = vmul.f32 %v6308, %v3350
  %v6341 = vmul.f32 %v6309, %v3350
  %v6342 = vmul.f32 %v6310, %v3350
  %v6343 = vmul.f32 %v6311, %v3350
  %v6344 = vmul.f32 %v6312, %v3350
  %v6345 = vmul.f32 %v6313, %v3350
  %v6346 = vmul.f32 %v6314, %v3350
  %v6347 = vmul.f32 %v6315, %v3350
  %v6348 = vmul.f32 %v6316, %v3350
  %v6349 = vmul.f32 %v6317, %v3350
  %v6350 = vmul.f32 %v6318, %v3350
  %v6351 = vmul.f32 %v6319, %v3350
  %v6352 = vmul.f32 %v6320, %v3350
  %v6353 = vmul.f32 %v6321, %v3350
  %v6354 = vmul.f32 %v6322, %v3350
  %v6355 = vmul.f32 %v6323, %v3350
  %v6356 = vmul.f32 %v6324, %v3350
  %v6357 = vmul.f32 %v6325, %v3350
  %v6358 = vmul.f32 %v6326, %v3350
  %v6359 = vmul.f32 %v6327, %v3350
  %v6360 = vmul.f32 %v6328, %v3350
  %v6361 = vmul.f32 %v6329, %v3350
  %v6362 = vmul.f32 %v6330, %v3350
  %v6363 = vmul.f32 %v6331, %v3350
  %v6364 = vmul.f32 %v6332, %v3350
  %v6365 = vmul.f32 %v6333, %v3350
  %v6366 = vmul.f32 %v6334, %v3350
  %v6367 = vmul.f32 %v6335, %v3350
  %v6368 = vmul.f32 %v6336, %v3350
  %v6369 = vadd.f32 %v4294, %v6337
  %v6370 = vadd.f32 %v6274, %v6338
  %v6371 = vadd.f32 %v6275, %v6339
  %v6372 = vadd.f32 %v6276, %v6340
  %v6373 = vadd.f32 %v6277, %v6341
  %v6374 = vadd.f32 %v6278, %v6342
  %v6375 = vadd.f32 %v6279, %v6343
  %v6376 = vadd.f32 %v6280, %v6344
  %v6377 = vadd.f32 %v6281, %v6345
  %v6378 = vadd.f32 %v6282, %v6346
  %v6379 = vadd.f32 %v6283, %v6347
  %v6380 = vadd.f32 %v6284, %v6348
  %v6381 = vadd.f32 %v6285, %v6349
  %v6382 = vadd.f32 %v6286, %v6350
  %v6383 = vadd.f32 %v6287, %v6351
  %v6384 = vadd.f32 %v6288, %v6352
  %v6385 = vadd.f32 %v6289, %v6353
  %v6386 = vadd.f32 %v6290, %v6354
  %v6387 = vadd.f32 %v6291, %v6355
  %v6388 = vadd.f32 %v6292, %v6356
  %v6389 = vadd.f32 %v6293, %v6357
  %v6390 = vadd.f32 %v6294, %v6358
  %v6391 = vadd.f32 %v6295, %v6359
  %v6392 = vadd.f32 %v6296, %v6360
  %v6393 = vadd.f32 %v6297, %v6361
  %v6394 = vadd.f32 %v6298, %v6362
  %v6395 = vadd.f32 %v6299, %v6363
  %v6396 = vadd.f32 %v6300, %v6364
  %v6397 = vadd.f32 %v6301, %v6365
  %v6398 = vadd.f32 %v6302, %v6366
  %v6399 = vadd.f32 %v6303, %v6367
  %v6400 = vadd.f32 %v6304, %v6368
  %v6401 = vmul.f32 %v5779, %v3367
  %v6402 = vmul.f32 %v5781, %v3367
  %v6403 = vmul.f32 %v5783, %v3367
  %v6404 = vmul.f32 %v5785, %v3367
  %v6405 = vmul.f32 %v5787, %v3367
  %v6406 = vmul.f32 %v5789, %v3367
  %v6407 = vmul.f32 %v5791, %v3367
  %v6408 = vmul.f32 %v5793, %v3367
  %v6409 = vmul.f32 %v5795, %v3367
  %v6410 = vmul.f32 %v5797, %v3367
  %v6411 = vmul.f32 %v5799, %v3367
  %v6412 = vmul.f32 %v5801, %v3367
  %v6413 = vmul.f32 %v5803, %v3367
  %v6414 = vmul.f32 %v5805, %v3367
  %v6415 = vmul.f32 %v5807, %v3367
  %v6416 = vmul.f32 %v5809, %v3367
  %v6417 = vmul.f32 %v5811, %v3367
  %v6418 = vmul.f32 %v5813, %v3367
  %v6419 = vmul.f32 %v5815, %v3367
  %v6420 = vmul.f32 %v5817, %v3367
  %v6421 = vmul.f32 %v5819, %v3367
  %v6422 = vmul.f32 %v5821, %v3367
  %v6423 = vmul.f32 %v5823, %v3367
  %v6424 = vmul.f32 %v5825, %v3367
  %v6425 = vmul.f32 %v5851, %v3367
  %v6451 = vrot.slane %v6401, 1
  %v6452 = vsel %vm3213, %v5538, %v6451
  %v6453 = vrot.slane %v6402, 1
  %v6454 = vsel %vm3213, %v6451, %v6453
  %v6455 = vrot.slane %v6403, 1
  %v6456 = vsel %vm3213, %v6453, %v6455
  %v6457 = vrot.slane %v6404, 1
  %v6458 = vsel %vm3213, %v6455, %v6457
  %v6459 = vrot.slane %v6405, 1
  %v6460 = vsel %vm3213, %v6457, %v6459
  %v6461 = vrot.slane %v6406, 1
  %v6462 = vsel %vm3213, %v6459, %v6461
  %v6463 = vrot.slane %v6407, 1
  %v6464 = vsel %vm3213, %v6461, %v6463
  %v6465 = vrot.slane %v6408, 1
  %v6466 = vsel %vm3213, %v6463, %v6465
  %v6467 = vrot.slane %v6409, 1
  %v6468 = vsel %vm3213, %v6465, %v6467
  %v6469 = vrot.slane %v6410, 1
  %v6470 = vsel %vm3213, %v6467, %v6469
  %v6471 = vrot.slane %v6411, 1
  %v6472 = vsel %vm3213, %v6469, %v6471
  %v6473 = vrot.slane %v6412, 1
  %v6474 = vsel %vm3213, %v6471, %v6473
  %v6475 = vrot.slane %v6413, 1
  %v6476 = vsel %vm3213, %v6473, %v6475
  %v6477 = vrot.slane %v6414, 1
  %v6478 = vsel %vm3213, %v6475, %v6477
  %v6479 = vrot.slane %v6415, 1
  %v6480 = vsel %vm3213, %v6477, %v6479
  %v6481 = vrot.slane %v6416, 1
  %v6482 = vsel %vm3213, %v6479, %v6481
  %v6483 = vrot.slane %v6417, 1
  %v6484 = vsel %vm3213, %v6481, %v6483
  %v6485 = vrot.slane %v6418, 1
  %v6486 = vsel %vm3213, %v6483, %v6485
  %v6487 = vrot.slane %v6419, 1
  %v6488 = vsel %vm3213, %v6485, %v6487
  %v6489 = vrot.slane %v6420, 1
  %v6490 = vsel %vm3213, %v6487, %v6489
  %v6491 = vrot.slane %v6421, 1
  %v6492 = vsel %vm3213, %v6489, %v6491
  %v6493 = vrot.slane %v6422, 1
  %v6494 = vsel %vm3213, %v6491, %v6493
  %v6495 = vrot.slane %v6423, 1
  %v6496 = vsel %vm3213, %v6493, %v6495
  %v6497 = vrot.slane %v6424, 1
  %v6498 = vsel %vm3213, %v6495, %v6497
  %v6499 = vrot.slane %v6425, 1
  %v6500 = vsel %vm3213, %v6497, %v6499
  %v6526 = vadd.f32 %v6369, %v5527
  %v6527 = vadd.f32 %v6370, %v5529
  %v6528 = vadd.f32 %v6371, %v5531
  %v6529 = vadd.f32 %v6372, %v5533
  %v6530 = vadd.f32 %v6373, %v5535
  %v6531 = vadd.f32 %v6374, %v5537
  %v6532 = vadd.f32 %v6375, %v5539
  %v6533 = vadd.f32 %v6376, %v6452
  %v6534 = vadd.f32 %v6377, %v6454
  %v6535 = vadd.f32 %v6378, %v6456
  %v6536 = vadd.f32 %v6379, %v6458
  %v6537 = vadd.f32 %v6380, %v6460
  %v6538 = vadd.f32 %v6381, %v6462
  %v6539 = vadd.f32 %v6382, %v6464
  %v6540 = vadd.f32 %v6383, %v6466
  %v6541 = vadd.f32 %v6384, %v6468
  %v6542 = vadd.f32 %v6385, %v6470
  %v6543 = vadd.f32 %v6386, %v6472
  %v6544 = vadd.f32 %v6387, %v6474
  %v6545 = vadd.f32 %v6388, %v6476
  %v6546 = vadd.f32 %v6389, %v6478
  %v6547 = vadd.f32 %v6390, %v6480
  %v6548 = vadd.f32 %v6391, %v6482
  %v6549 = vadd.f32 %v6392, %v6484
  %v6550 = vadd.f32 %v6393, %v6486
  %v6551 = vadd.f32 %v6394, %v6488
  %v6552 = vadd.f32 %v6395, %v6490
  %v6553 = vadd.f32 %v6396, %v6492
  %v6554 = vadd.f32 %v6397, %v6494
  %v6555 = vadd.f32 %v6398, %v6496
  %v6556 = vadd.f32 %v6399, %v6498
  %v6557 = vadd.f32 %v6400, %v6500
  %v6558 = vmul.f32 %v5356, %v4002
  %v6559 = vmul.f32 %v5334, %v4004
  %v6560 = vmul.f32 %v5336, %v4006
  %v6561 = vmul.f32 %v5338, %v4008
  %v6562 = vmul.f32 %v5340, %v4010
  %v6563 = vmul.f32 %v5342, %v4012
  %v6564 = vmul.f32 %v5344, %v4014
  %v6565 = vmul.f32 %v5346, %v4016
  %v6566 = vmul.f32 %v5779, %v4018
  %v6567 = vmul.f32 %v5781, %v4020
  %v6568 = vmul.f32 %v5783, %v4022
  %v6569 = vmul.f32 %v5785, %v4024
  %v6570 = vmul.f32 %v5787, %v4026
  %v6571 = vmul.f32 %v5789, %v4028
  %v6572 = vmul.f32 %v5791, %v4030
  %v6573 = vmul.f32 %v5793, %v4032
  %v6574 = vmul.f32 %v5795, %v4034
  %v6575 = vmul.f32 %v5797, %v4036
  %v6576 = vmul.f32 %v5799, %v4038
  %v6577 = vmul.f32 %v5801, %v4040
  %v6578 = vmul.f32 %v5803, %v4042
  %v6579 = vmul.f32 %v5805, %v4044
  %v6580 = vmul.f32 %v5807, %v4046
  %v6581 = vmul.f32 %v5809, %v4048
  %v6582 = vmul.f32 %v5811, %v4050
  %v6583 = vmul.f32 %v5813, %v4052
  %v6584 = vmul.f32 %v5815, %v4054
  %v6585 = vmul.f32 %v5817, %v4056
  %v6586 = vmul.f32 %v5819, %v4058
  %v6587 = vmul.f32 %v5821, %v4060
  %v6588 = vmul.f32 %v5823, %v4062
  %v6589 = vmul.f32 %v5825, %v4064
  %v6590 = vmul.f32 %v5851, %v4063
  %v6591 = vmul.f32 %v6558, %v3428
  %v6592 = vmul.f32 %v6559, %v3428
  %v6593 = vmul.f32 %v6560, %v3428
  %v6594 = vmul.f32 %v6561, %v3428
  %v6595 = vmul.f32 %v6562, %v3428
  %v6596 = vmul.f32 %v6563, %v3428
  %v6597 = vmul.f32 %v6564, %v3428
  %v6598 = vmul.f32 %v6565, %v3428
  %v6599 = vmul.f32 %v6566, %v3428
  %v6600 = vmul.f32 %v6567, %v3428
  %v6601 = vmul.f32 %v6568, %v3428
  %v6602 = vmul.f32 %v6569, %v3428
  %v6603 = vmul.f32 %v6570, %v3428
  %v6604 = vmul.f32 %v6571, %v3428
  %v6605 = vmul.f32 %v6572, %v3428
  %v6606 = vmul.f32 %v6573, %v3428
  %v6607 = vmul.f32 %v6574, %v3428
  %v6608 = vmul.f32 %v6575, %v3428
  %v6609 = vmul.f32 %v6576, %v3428
  %v6610 = vmul.f32 %v6577, %v3428
  %v6611 = vmul.f32 %v6578, %v3428
  %v6612 = vmul.f32 %v6579, %v3428
  %v6613 = vmul.f32 %v6580, %v3428
  %v6614 = vmul.f32 %v6581, %v3428
  %v6615 = vmul.f32 %v6582, %v3428
  %v6616 = vmul.f32 %v6583, %v3428
  %v6617 = vmul.f32 %v6584, %v3428
  %v6618 = vmul.f32 %v6585, %v3428
  %v6619 = vmul.f32 %v6586, %v3428
  %v6620 = vmul.f32 %v6587, %v3428
  %v6621 = vmul.f32 %v6588, %v3428
  %v6622 = vmul.f32 %v6589, %v3428
  %v6623 = vmul.f32 %v6590, %v3428
  %v6657 = vrot.slane %v6591, 2
  %v6658 = vrot.slane %v6592, 2
  %v6659 = vsel %vm3308, %v6657, %v6658
  %v6660 = vrot.slane %v6593, 2
  %v6661 = vsel %vm3308, %v6658, %v6660
  %v6662 = vrot.slane %v6594, 2
  %v6663 = vsel %vm3308, %v6660, %v6662
  %v6664 = vrot.slane %v6595, 2
  %v6665 = vsel %vm3308, %v6662, %v6664
  %v6666 = vrot.slane %v6596, 2
  %v6667 = vsel %vm3308, %v6664, %v6666
  %v6668 = vrot.slane %v6597, 2
  %v6669 = vsel %vm3308, %v6666, %v6668
  %v6670 = vrot.slane %v6598, 2
  %v6671 = vsel %vm3308, %v6668, %v6670
  %v6672 = vrot.slane %v6599, 2
  %v6673 = vsel %vm3308, %v6670, %v6672
  %v6674 = vrot.slane %v6600, 2
  %v6675 = vsel %vm3308, %v6672, %v6674
  %v6676 = vrot.slane %v6601, 2
  %v6677 = vsel %vm3308, %v6674, %v6676
  %v6678 = vrot.slane %v6602, 2
  %v6679 = vsel %vm3308, %v6676, %v6678
  %v6680 = vrot.slane %v6603, 2
  %v6681 = vsel %vm3308, %v6678, %v6680
  %v6682 = vrot.slane %v6604, 2
  %v6683 = vsel %vm3308, %v6680, %v6682
  %v6684 = vrot.slane %v6605, 2
  %v6685 = vsel %vm3308, %v6682, %v6684
  %v6686 = vrot.slane %v6606, 2
  %v6687 = vsel %vm3308, %v6684, %v6686
  %v6688 = vrot.slane %v6607, 2
  %v6689 = vsel %vm3308, %v6686, %v6688
  %v6690 = vrot.slane %v6608, 2
  %v6691 = vsel %vm3308, %v6688, %v6690
  %v6692 = vrot.slane %v6609, 2
  %v6693 = vsel %vm3308, %v6690, %v6692
  %v6694 = vrot.slane %v6610, 2
  %v6695 = vsel %vm3308, %v6692, %v6694
  %v6696 = vrot.slane %v6611, 2
  %v6697 = vsel %vm3308, %v6694, %v6696
  %v6698 = vrot.slane %v6612, 2
  %v6699 = vsel %vm3308, %v6696, %v6698
  %v6700 = vrot.slane %v6613, 2
  %v6701 = vsel %vm3308, %v6698, %v6700
  %v6702 = vrot.slane %v6614, 2
  %v6703 = vsel %vm3308, %v6700, %v6702
  %v6704 = vrot.slane %v6615, 2
  %v6705 = vsel %vm3308, %v6702, %v6704
  %v6706 = vrot.slane %v6616, 2
  %v6707 = vsel %vm3308, %v6704, %v6706
  %v6708 = vrot.slane %v6617, 2
  %v6709 = vsel %vm3308, %v6706, %v6708
  %v6710 = vrot.slane %v6618, 2
  %v6711 = vsel %vm3308, %v6708, %v6710
  %v6712 = vrot.slane %v6619, 2
  %v6713 = vsel %vm3308, %v6710, %v6712
  %v6714 = vrot.slane %v6620, 2
  %v6715 = vsel %vm3308, %v6712, %v6714
  %v6716 = vrot.slane %v6621, 2
  %v6717 = vsel %vm3308, %v6714, %v6716
  %v6718 = vrot.slane %v6622, 2
  %v6719 = vsel %vm3308, %v6716, %v6718
  %v6720 = vrot.slane %v6623, 2
  %v6721 = vsel %vm3308, %v6718, %v6720
  %v6754 = vadd.f32 %v6526, %v6659
  %v6755 = vadd.f32 %v6527, %v6661
  %v6756 = vadd.f32 %v6528, %v6663
  %v6757 = vadd.f32 %v6529, %v6665
  %v6758 = vadd.f32 %v6530, %v6667
  %v6759 = vadd.f32 %v6531, %v6669
  %v6760 = vadd.f32 %v6532, %v6671
  %v6761 = vadd.f32 %v6533, %v6673
  %v6762 = vadd.f32 %v6534, %v6675
  %v6763 = vadd.f32 %v6535, %v6677
  %v6764 = vadd.f32 %v6536, %v6679
  %v6765 = vadd.f32 %v6537, %v6681
  %v6766 = vadd.f32 %v6538, %v6683
  %v6767 = vadd.f32 %v6539, %v6685
  %v6768 = vadd.f32 %v6540, %v6687
  %v6769 = vadd.f32 %v6541, %v6689
  %v6770 = vadd.f32 %v6542, %v6691
  %v6771 = vadd.f32 %v6543, %v6693
  %v6772 = vadd.f32 %v6544, %v6695
  %v6773 = vadd.f32 %v6545, %v6697
  %v6774 = vadd.f32 %v6546, %v6699
  %v6775 = vadd.f32 %v6547, %v6701
  %v6776 = vadd.f32 %v6548, %v6703
  %v6777 = vadd.f32 %v6549, %v6705
  %v6778 = vadd.f32 %v6550, %v6707
  %v6779 = vadd.f32 %v6551, %v6709
  %v6780 = vadd.f32 %v6552, %v6711
  %v6781 = vadd.f32 %v6553, %v6713
  %v6782 = vadd.f32 %v6554, %v6715
  %v6783 = vadd.f32 %v6555, %v6717
  %v6784 = vadd.f32 %v6556, %v6719
  %v6785 = vadd.f32 %v6557, %v6721
  %v6786 = vmul.f32 %v5336, %v2862
  %v6787 = vmul.f32 %v5338, %v2863
  %v6788 = vmul.f32 %v5340, %v2864
  %v6789 = vmul.f32 %v5342, %v2865
  %v6790 = vmul.f32 %v5344, %v2866
  %v6791 = vmul.f32 %v5346, %v2867
  %v6792 = vmul.f32 %v5779, %v2868
  %v6793 = vmul.f32 %v5781, %v2869
  %v6794 = vmul.f32 %v5783, %v2870
  %v6795 = vmul.f32 %v5785, %v2871
  %v6796 = vmul.f32 %v5787, %v2872
  %v6797 = vmul.f32 %v5789, %v2873
  %v6798 = vmul.f32 %v5791, %v2874
  %v6799 = vmul.f32 %v5793, %v2875
  %v6800 = vmul.f32 %v5795, %v2876
  %v6801 = vmul.f32 %v5797, %v2877
  %v6802 = vmul.f32 %v5799, %v2878
  %v6803 = vmul.f32 %v5801, %v2879
  %v6804 = vmul.f32 %v5803, %v2880
  %v6805 = vmul.f32 %v5805, %v2881
  %v6806 = vmul.f32 %v5807, %v2882
  %v6807 = vmul.f32 %v5809, %v2883
  %v6808 = vmul.f32 %v5811, %v2884
  %v6809 = vmul.f32 %v5813, %v2885
  %v6810 = vmul.f32 %v5815, %v2886
  %v6811 = vmul.f32 %v5817, %v2887
  %v6812 = vmul.f32 %v5819, %v2888
  %v6813 = vmul.f32 %v5821, %v2889
  %v6814 = vmul.f32 %v5823, %v2890
  %v6815 = vmul.f32 %v5825, %v2891
  %v6816 = vmul.f32 %v5851, %v2892
  %v6817 = vmul.f32 %v6786, %v3488
  %v6818 = vmul.f32 %v6787, %v3488
  %v6819 = vmul.f32 %v6788, %v3488
  %v6820 = vmul.f32 %v6789, %v3488
  %v6821 = vmul.f32 %v6790, %v3488
  %v6822 = vmul.f32 %v6791, %v3488
  %v6823 = vmul.f32 %v6792, %v3488
  %v6824 = vmul.f32 %v6793, %v3488
  %v6825 = vmul.f32 %v6794, %v3488
  %v6826 = vmul.f32 %v6795, %v3488
  %v6827 = vmul.f32 %v6796, %v3488
  %v6828 = vmul.f32 %v6797, %v3488
  %v6829 = vmul.f32 %v6798, %v3488
  %v6830 = vmul.f32 %v6799, %v3488
  %v6831 = vmul.f32 %v6800, %v3488
  %v6832 = vmul.f32 %v6801, %v3488
  %v6833 = vmul.f32 %v6802, %v3488
  %v6834 = vmul.f32 %v6803, %v3488
  %v6835 = vmul.f32 %v6804, %v3488
  %v6836 = vmul.f32 %v6805, %v3488
  %v6837 = vmul.f32 %v6806, %v3488
  %v6838 = vmul.f32 %v6807, %v3488
  %v6839 = vmul.f32 %v6808, %v3488
  %v6840 = vmul.f32 %v6809, %v3488
  %v6841 = vmul.f32 %v6810, %v3488
  %v6842 = vmul.f32 %v6811, %v3488
  %v6843 = vmul.f32 %v6812, %v3488
  %v6844 = vmul.f32 %v6813, %v3488
  %v6845 = vmul.f32 %v6814, %v3488
  %v6846 = vmul.f32 %v6815, %v3488
  %v6847 = vmul.f32 %v6816, %v3488
  %v6848 = vadd.f32 %v6754, %v6817
  %v6849 = vadd.f32 %v6755, %v6818
  %v6850 = vadd.f32 %v6756, %v6819
  %v6851 = vadd.f32 %v6757, %v6820
  %v6852 = vadd.f32 %v6758, %v6821
  %v6853 = vadd.f32 %v6759, %v6822
  %v6854 = vadd.f32 %v6760, %v6823
  %v6855 = vadd.f32 %v6761, %v6824
  %v6856 = vadd.f32 %v6762, %v6825
  %v6857 = vadd.f32 %v6763, %v6826
  %v6858 = vadd.f32 %v6764, %v6827
  %v6859 = vadd.f32 %v6765, %v6828
  %v6860 = vadd.f32 %v6766, %v6829
  %v6861 = vadd.f32 %v6767, %v6830
  %v6862 = vadd.f32 %v6768, %v6831
  %v6863 = vadd.f32 %v6769, %v6832
  %v6864 = vadd.f32 %v6770, %v6833
  %v6865 = vadd.f32 %v6771, %v6834
  %v6866 = vadd.f32 %v6772, %v6835
  %v6867 = vadd.f32 %v6773, %v6836
  %v6868 = vadd.f32 %v6774, %v6837
  %v6869 = vadd.f32 %v6775, %v6838
  %v6870 = vadd.f32 %v6776, %v6839
  %v6871 = vadd.f32 %v6777, %v6840
  %v6872 = vadd.f32 %v6778, %v6841
  %v6873 = vadd.f32 %v6779, %v6842
  %v6874 = vadd.f32 %v6780, %v6843
  %v6875 = vadd.f32 %v6781, %v6844
  %v6876 = vadd.f32 %v6782, %v6845
  %v6877 = vadd.f32 %v6783, %v6846
  %v6878 = vadd.f32 %v6784, %v6847
  %v6879 = vadd.f32 %v6785, %v4870
  %v6880 = vmul.f32 %v5779, %v3505
  %v6881 = vmul.f32 %v5781, %v3505
  %v6882 = vmul.f32 %v5783, %v3505
  %v6883 = vmul.f32 %v5785, %v3505
  %v6884 = vmul.f32 %v5787, %v3505
  %v6885 = vmul.f32 %v5789, %v3505
  %v6886 = vmul.f32 %v5791, %v3505
  %v6887 = vmul.f32 %v5793, %v3505
  %v6888 = vmul.f32 %v5795, %v3505
  %v6889 = vmul.f32 %v5797, %v3505
  %v6890 = vmul.f32 %v5799, %v3505
  %v6891 = vmul.f32 %v5801, %v3505
  %v6892 = vmul.f32 %v5803, %v3505
  %v6893 = vmul.f32 %v5805, %v3505
  %v6894 = vmul.f32 %v5807, %v3505
  %v6895 = vmul.f32 %v5809, %v3505
  %v6896 = vmul.f32 %v5811, %v3505
  %v6897 = vmul.f32 %v5813, %v3505
  %v6898 = vmul.f32 %v5815, %v3505
  %v6899 = vmul.f32 %v5817, %v3505
  %v6900 = vmul.f32 %v5819, %v3505
  %v6901 = vmul.f32 %v5821, %v3505
  %v6902 = vmul.f32 %v5823, %v3505
  %v6903 = vmul.f32 %v5825, %v3505
  %v6904 = vmul.f32 %v5851, %v3505
  %v6930 = vrot.slane %v6880, 1
  %v6931 = vsel %vm3213, %v5669, %v6930
  %v6932 = vrot.slane %v6881, 1
  %v6933 = vsel %vm3213, %v6930, %v6932
  %v6934 = vrot.slane %v6882, 1
  %v6935 = vsel %vm3213, %v6932, %v6934
  %v6936 = vrot.slane %v6883, 1
  %v6937 = vsel %vm3213, %v6934, %v6936
  %v6938 = vrot.slane %v6884, 1
  %v6939 = vsel %vm3213, %v6936, %v6938
  %v6940 = vrot.slane %v6885, 1
  %v6941 = vsel %vm3213, %v6938, %v6940
  %v6942 = vrot.slane %v6886, 1
  %v6943 = vsel %vm3213, %v6940, %v6942
  %v6944 = vrot.slane %v6887, 1
  %v6945 = vsel %vm3213, %v6942, %v6944
  %v6946 = vrot.slane %v6888, 1
  %v6947 = vsel %vm3213, %v6944, %v6946
  %v6948 = vrot.slane %v6889, 1
  %v6949 = vsel %vm3213, %v6946, %v6948
  %v6950 = vrot.slane %v6890, 1
  %v6951 = vsel %vm3213, %v6948, %v6950
  %v6952 = vrot.slane %v6891, 1
  %v6953 = vsel %vm3213, %v6950, %v6952
  %v6954 = vrot.slane %v6892, 1
  %v6955 = vsel %vm3213, %v6952, %v6954
  %v6956 = vrot.slane %v6893, 1
  %v6957 = vsel %vm3213, %v6954, %v6956
  %v6958 = vrot.slane %v6894, 1
  %v6959 = vsel %vm3213, %v6956, %v6958
  %v6960 = vrot.slane %v6895, 1
  %v6961 = vsel %vm3213, %v6958, %v6960
  %v6962 = vrot.slane %v6896, 1
  %v6963 = vsel %vm3213, %v6960, %v6962
  %v6964 = vrot.slane %v6897, 1
  %v6965 = vsel %vm3213, %v6962, %v6964
  %v6966 = vrot.slane %v6898, 1
  %v6967 = vsel %vm3213, %v6964, %v6966
  %v6968 = vrot.slane %v6899, 1
  %v6969 = vsel %vm3213, %v6966, %v6968
  %v6970 = vrot.slane %v6900, 1
  %v6971 = vsel %vm3213, %v6968, %v6970
  %v6972 = vrot.slane %v6901, 1
  %v6973 = vsel %vm3213, %v6970, %v6972
  %v6974 = vrot.slane %v6902, 1
  %v6975 = vsel %vm3213, %v6972, %v6974
  %v6976 = vrot.slane %v6903, 1
  %v6977 = vsel %vm3213, %v6974, %v6976
  %v6978 = vrot.slane %v6904, 1
  %v6979 = vsel %vm3213, %v6976, %v6978
  %v6980 = vsel %vm3213, %v6978, %v3539
  %v7007 = vadd.f32 %v6848, %v5662
  %v7008 = vadd.f32 %v6849, %v5664
  %v7009 = vadd.f32 %v6850, %v5666
  %v7010 = vadd.f32 %v6851, %v5668
  %v7011 = vadd.f32 %v6852, %v5670
  %v7012 = vadd.f32 %v6853, %v6931
  %v7013 = vadd.f32 %v6854, %v6933
  %v7014 = vadd.f32 %v6855, %v6935
  %v7015 = vadd.f32 %v6856, %v6937
  %v7016 = vadd.f32 %v6857, %v6939
  %v7017 = vadd.f32 %v6858, %v6941
  %v7018 = vadd.f32 %v6859, %v6943
  %v7019 = vadd.f32 %v6860, %v6945
  %v7020 = vadd.f32 %v6861, %v6947
  %v7021 = vadd.f32 %v6862, %v6949
  %v7022 = vadd.f32 %v6863, %v6951
  %v7023 = vadd.f32 %v6864, %v6953
  %v7024 = vadd.f32 %v6865, %v6955
  %v7025 = vadd.f32 %v6866, %v6957
  %v7026 = vadd.f32 %v6867, %v6959
  %v7027 = vadd.f32 %v6868, %v6961
  %v7028 = vadd.f32 %v6869, %v6963
  %v7029 = vadd.f32 %v6870, %v6965
  %v7030 = vadd.f32 %v6871, %v6967
  %v7031 = vadd.f32 %v6872, %v6969
  %v7032 = vadd.f32 %v6873, %v6971
  %v7033 = vadd.f32 %v6874, %v6973
  %v7034 = vadd.f32 %v6875, %v6975
  %v7035 = vadd.f32 %v6876, %v6977
  %v7036 = vadd.f32 %v6877, %v6979
  %v7037 = vadd.f32 %v6878, %v6980
  %v7038 = vadd.f32 %v6879, %v5004
  %v7039 = vmul.f32 %v5336, %v4002
  %v7040 = vmul.f32 %v5338, %v4004
  %v7041 = vmul.f32 %v5340, %v4006
  %v7042 = vmul.f32 %v5342, %v4008
  %v7043 = vmul.f32 %v5344, %v4010
  %v7044 = vmul.f32 %v5346, %v4012
  %v7045 = vmul.f32 %v5779, %v4014
  %v7046 = vmul.f32 %v5781, %v4016
  %v7047 = vmul.f32 %v5783, %v4018
  %v7048 = vmul.f32 %v5785, %v4020
  %v7049 = vmul.f32 %v5787, %v4022
  %v7050 = vmul.f32 %v5789, %v4024
  %v7051 = vmul.f32 %v5791, %v4026
  %v7052 = vmul.f32 %v5793, %v4028
  %v7053 = vmul.f32 %v5795, %v4030
  %v7054 = vmul.f32 %v5797, %v4032
  %v7055 = vmul.f32 %v5799, %v4034
  %v7056 = vmul.f32 %v5801, %v4036
  %v7057 = vmul.f32 %v5803, %v4038
  %v7058 = vmul.f32 %v5805, %v4040
  %v7059 = vmul.f32 %v5807, %v4042
  %v7060 = vmul.f32 %v5809, %v4044
  %v7061 = vmul.f32 %v5811, %v4046
  %v7062 = vmul.f32 %v5813, %v4048
  %v7063 = vmul.f32 %v5815, %v4050
  %v7064 = vmul.f32 %v5817, %v4052
  %v7065 = vmul.f32 %v5819, %v4054
  %v7066 = vmul.f32 %v5821, %v4056
  %v7067 = vmul.f32 %v5823, %v4058
  %v7068 = vmul.f32 %v5825, %v4060
  %v7069 = vmul.f32 %v5851, %v4062
  %v7070 = vmul.f32 %v7039, %v3566
  %v7071 = vmul.f32 %v7040, %v3566
  %v7072 = vmul.f32 %v7041, %v3566
  %v7073 = vmul.f32 %v7042, %v3566
  %v7074 = vmul.f32 %v7043, %v3566
  %v7075 = vmul.f32 %v7044, %v3566
  %v7076 = vmul.f32 %v7045, %v3566
  %v7077 = vmul.f32 %v7046, %v3566
  %v7078 = vmul.f32 %v7047, %v3566
  %v7079 = vmul.f32 %v7048, %v3566
  %v7080 = vmul.f32 %v7049, %v3566
  %v7081 = vmul.f32 %v7050, %v3566
  %v7082 = vmul.f32 %v7051, %v3566
  %v7083 = vmul.f32 %v7052, %v3566
  %v7084 = vmul.f32 %v7053, %v3566
  %v7085 = vmul.f32 %v7054, %v3566
  %v7086 = vmul.f32 %v7055, %v3566
  %v7087 = vmul.f32 %v7056, %v3566
  %v7088 = vmul.f32 %v7057, %v3566
  %v7089 = vmul.f32 %v7058, %v3566
  %v7090 = vmul.f32 %v7059, %v3566
  %v7091 = vmul.f32 %v7060, %v3566
  %v7092 = vmul.f32 %v7061, %v3566
  %v7093 = vmul.f32 %v7062, %v3566
  %v7094 = vmul.f32 %v7063, %v3566
  %v7095 = vmul.f32 %v7064, %v3566
  %v7096 = vmul.f32 %v7065, %v3566
  %v7097 = vmul.f32 %v7066, %v3566
  %v7098 = vmul.f32 %v7067, %v3566
  %v7099 = vmul.f32 %v7068, %v3566
  %v7100 = vmul.f32 %v7069, %v3566
  %v7132 = vrot.slane %v7070, 2
  %v7133 = vrot.slane %v7071, 2
  %v7134 = vsel %vm3308, %v7132, %v7133
  %v7135 = vrot.slane %v7072, 2
  %v7136 = vsel %vm3308, %v7133, %v7135
  %v7137 = vrot.slane %v7073, 2
  %v7138 = vsel %vm3308, %v7135, %v7137
  %v7139 = vrot.slane %v7074, 2
  %v7140 = vsel %vm3308, %v7137, %v7139
  %v7141 = vrot.slane %v7075, 2
  %v7142 = vsel %vm3308, %v7139, %v7141
  %v7143 = vrot.slane %v7076, 2
  %v7144 = vsel %vm3308, %v7141, %v7143
  %v7145 = vrot.slane %v7077, 2
  %v7146 = vsel %vm3308, %v7143, %v7145
  %v7147 = vrot.slane %v7078, 2
  %v7148 = vsel %vm3308, %v7145, %v7147
  %v7149 = vrot.slane %v7079, 2
  %v7150 = vsel %vm3308, %v7147, %v7149
  %v7151 = vrot.slane %v7080, 2
  %v7152 = vsel %vm3308, %v7149, %v7151
  %v7153 = vrot.slane %v7081, 2
  %v7154 = vsel %vm3308, %v7151, %v7153
  %v7155 = vrot.slane %v7082, 2
  %v7156 = vsel %vm3308, %v7153, %v7155
  %v7157 = vrot.slane %v7083, 2
  %v7158 = vsel %vm3308, %v7155, %v7157
  %v7159 = vrot.slane %v7084, 2
  %v7160 = vsel %vm3308, %v7157, %v7159
  %v7161 = vrot.slane %v7085, 2
  %v7162 = vsel %vm3308, %v7159, %v7161
  %v7163 = vrot.slane %v7086, 2
  %v7164 = vsel %vm3308, %v7161, %v7163
  %v7165 = vrot.slane %v7087, 2
  %v7166 = vsel %vm3308, %v7163, %v7165
  %v7167 = vrot.slane %v7088, 2
  %v7168 = vsel %vm3308, %v7165, %v7167
  %v7169 = vrot.slane %v7089, 2
  %v7170 = vsel %vm3308, %v7167, %v7169
  %v7171 = vrot.slane %v7090, 2
  %v7172 = vsel %vm3308, %v7169, %v7171
  %v7173 = vrot.slane %v7091, 2
  %v7174 = vsel %vm3308, %v7171, %v7173
  %v7175 = vrot.slane %v7092, 2
  %v7176 = vsel %vm3308, %v7173, %v7175
  %v7177 = vrot.slane %v7093, 2
  %v7178 = vsel %vm3308, %v7175, %v7177
  %v7179 = vrot.slane %v7094, 2
  %v7180 = vsel %vm3308, %v7177, %v7179
  %v7181 = vrot.slane %v7095, 2
  %v7182 = vsel %vm3308, %v7179, %v7181
  %v7183 = vrot.slane %v7096, 2
  %v7184 = vsel %vm3308, %v7181, %v7183
  %v7185 = vrot.slane %v7097, 2
  %v7186 = vsel %vm3308, %v7183, %v7185
  %v7187 = vrot.slane %v7098, 2
  %v7188 = vsel %vm3308, %v7185, %v7187
  %v7189 = vrot.slane %v7099, 2
  %v7190 = vsel %vm3308, %v7187, %v7189
  %v7191 = vrot.slane %v7100, 2
  %v7192 = vsel %vm3308, %v7189, %v7191
  %v7193 = vsel %vm3308, %v7191, %v5224
  %v7225 = vadd.f32 %v7007, %v7134
  %v7226 = vadd.f32 %v7008, %v7136
  %v7227 = vadd.f32 %v7009, %v7138
  %v7228 = vadd.f32 %v7010, %v7140
  %v7229 = vadd.f32 %v7011, %v7142
  %v7230 = vadd.f32 %v7012, %v7144
  %v7231 = vadd.f32 %v7013, %v7146
  %v7232 = vadd.f32 %v7014, %v7148
  %v7233 = vadd.f32 %v7015, %v7150
  %v7234 = vadd.f32 %v7016, %v7152
  %v7235 = vadd.f32 %v7017, %v7154
  %v7236 = vadd.f32 %v7018, %v7156
  %v7237 = vadd.f32 %v7019, %v7158
  %v7238 = vadd.f32 %v7020, %v7160
  %v7239 = vadd.f32 %v7021, %v7162
  %v7240 = vadd.f32 %v7022, %v7164
  %v7241 = vadd.f32 %v7023, %v7166
  %v7242 = vadd.f32 %v7024, %v7168
  %v7243 = vadd.f32 %v7025, %v7170
  %v7244 = vadd.f32 %v7026, %v7172
  %v7245 = vadd.f32 %v7027, %v7174
  %v7246 = vadd.f32 %v7028, %v7176
  %v7247 = vadd.f32 %v7029, %v7178
  %v7248 = vadd.f32 %v7030, %v7180
  %v7249 = vadd.f32 %v7031, %v7182
  %v7250 = vadd.f32 %v7032, %v7184
  %v7251 = vadd.f32 %v7033, %v7186
  %v7252 = vadd.f32 %v7034, %v7188
  %v7253 = vadd.f32 %v7035, %v7190
  %v7254 = vadd.f32 %v7036, %v7192
  %v7255 = vadd.f32 %v7037, %v7193
  %v7256 = vadd.f32 %v7038, %v5227
  %v7257 = vadd.f32 %v7225, %v3618
  %v7258 = vadd.f32 %v7226, %v3618
  %v7259 = vadd.f32 %v7227, %v3618
  %v7260 = vadd.f32 %v7228, %v3618
  %v7261 = vadd.f32 %v7229, %v3618
  %v7262 = vadd.f32 %v7230, %v3618
  %v7263 = vadd.f32 %v7231, %v3618
  %v7264 = vadd.f32 %v7232, %v3618
  %v7265 = vadd.f32 %v7233, %v3618
  %v7266 = vadd.f32 %v7234, %v3618
  %v7267 = vadd.f32 %v7235, %v3618
  %v7268 = vadd.f32 %v7236, %v3618
  %v7269 = vadd.f32 %v7237, %v3618
  %v7270 = vadd.f32 %v7238, %v3618
  %v7271 = vadd.f32 %v7239, %v3618
  %v7272 = vadd.f32 %v7240, %v3618
  %v7273 = vadd.f32 %v7241, %v3618
  %v7274 = vadd.f32 %v7242, %v3618
  %v7275 = vadd.f32 %v7243, %v3618
  %v7276 = vadd.f32 %v7244, %v3618
  %v7277 = vadd.f32 %v7245, %v3618
  %v7278 = vadd.f32 %v7246, %v3618
  %v7279 = vadd.f32 %v7247, %v3618
  %v7280 = vadd.f32 %v7248, %v3618
  %v7281 = vadd.f32 %v7249, %v3618
  %v7282 = vadd.f32 %v7250, %v3618
  %v7283 = vadd.f32 %v7251, %v3618
  %v7284 = vadd.f32 %v7252, %v3618
  %v7285 = vadd.f32 %v7253, %v3618
  %v7286 = vadd.f32 %v7254, %v3618
  %v7287 = vadd.f32 %v7255, %v3618
  %v7288 = vadd.f32 %v7256, %v3618
  %v7289 = vmul.f32 %v3619, 0.5
  %v7290 = vmul.f32 %v3620, 0.5
  %v7291 = vmul.f32 %v3621, 0.5
  %v7292 = vmul.f32 %v3622, 0.5
  %v7293 = vmul.f32 %v3623, 0.5
  %v7294 = vmul.f32 %v3624, 0.5
  %v7295 = vmul.f32 %v3625, 0.5
  %v7296 = vmul.f32 %v3626, 0.5
  %v7297 = vmul.f32 %v5292, 0.5
  %v7298 = vmul.f32 %v5293, 0.5
  %v7299 = vmul.f32 %v5294, 0.5
  %v7300 = vmul.f32 %v5295, 0.5
  %v7301 = vmul.f32 %v5296, 0.5
  %v7302 = vmul.f32 %v5297, 0.5
  %v7303 = vmul.f32 %v5298, 0.5
  %v7304 = vmul.f32 %v5299, 0.5
  %v7305 = vmul.f32 %v5300, 0.5
  %v7306 = vmul.f32 %v5301, 0.5
  %v7307 = vmul.f32 %v5302, 0.5
  %v7308 = vmul.f32 %v5303, 0.5
  %v7309 = vmul.f32 %v5304, 0.5
  %v7310 = vmul.f32 %v5305, 0.5
  %v7311 = vmul.f32 %v5306, 0.5
  %v7312 = vmul.f32 %v5307, 0.5
  %v7313 = vmul.f32 %v5308, 0.5
  %v7314 = vmul.f32 %v5309, 0.5
  %v7315 = vmul.f32 %v5310, 0.5
  %v7316 = vmul.f32 %v5311, 0.5
  %v7317 = vmul.f32 %v5312, 0.5
  %v7318 = vmul.f32 %v5313, 0.5
  %v7319 = vmul.f32 %v5314, 0.5
  %v7320 = vmul.f32 %v5315, 0.5
  %v7321 = vmul.f32 %v5316, 0.5
  %v7322 = vmul.f32 %v5317, 0.5
  %v7323 = vmul.f32 %v5318, 0.5
  %v7324 = vmul.f32 %v5319, 0.5
  %v7325 = vmul.f32 %v5320, 0.5
  %v7326 = vmul.f32 %v5321, 0.5
  %v7327 = vmul.f32 %v5322, 0.5
  %v7328 = vmul.f32 %v5323, 0.5
  %v7329 = vmul.f32 %v5746, 0.5
  %v7330 = vmul.f32 %v5747, 0.5
  %v7331 = vmul.f32 %v5748, 0.5
  %v7332 = vmul.f32 %v5749, 0.5
  %v7333 = vmul.f32 %v5750, 0.5
  %v7334 = vmul.f32 %v5751, 0.5
  %v7335 = vmul.f32 %v5752, 0.5
  %v7336 = vmul.f32 %v5753, 0.5
  %v7337 = vmul.f32 %v7257, 0.5
  %v7338 = vmul.f32 %v7258, 0.5
  %v7339 = vmul.f32 %v7259, 0.5
  %v7340 = vmul.f32 %v7260, 0.5
  %v7341 = vmul.f32 %v7261, 0.5
  %v7342 = vmul.f32 %v7262, 0.5
  %v7343 = vmul.f32 %v7263, 0.5
  %v7344 = vmul.f32 %v7264, 0.5
  %v7345 = vmul.f32 %v7265, 0.5
  %v7346 = vmul.f32 %v7266, 0.5
  %v7347 = vmul.f32 %v7267, 0.5
  %v7348 = vmul.f32 %v7268, 0.5
  %v7349 = vmul.f32 %v7269, 0.5
  %v7350 = vmul.f32 %v7270, 0.5
  %v7351 = vmul.f32 %v7271, 0.5
  %v7352 = vmul.f32 %v7272, 0.5
  %v7353 = vmul.f32 %v7273, 0.5
  %v7354 = vmul.f32 %v7274, 0.5
  %v7355 = vmul.f32 %v7275, 0.5
  %v7356 = vmul.f32 %v7276, 0.5
  %v7357 = vmul.f32 %v7277, 0.5
  %v7358 = vmul.f32 %v7278, 0.5
  %v7359 = vmul.f32 %v7279, 0.5
  %v7360 = vmul.f32 %v7280, 0.5
  %v7361 = vmul.f32 %v7281, 0.5
  %v7362 = vmul.f32 %v7282, 0.5
  %v7363 = vmul.f32 %v7283, 0.5
  %v7364 = vmul.f32 %v7284, 0.5
  %v7365 = vmul.f32 %v7285, 0.5
  %v7366 = vmul.f32 %v7286, 0.5
  %v7367 = vmul.f32 %v7287, 0.5
  %v7368 = vmul.f32 %v7288, 0.5
  %v7369 = vmul.f32 %v3619, 0.044715
  %v7370 = vmul.f32 %v3620, 0.044715
  %v7371 = vmul.f32 %v3621, 0.044715
  %v7372 = vmul.f32 %v3622, 0.044715
  %v7373 = vmul.f32 %v3623, 0.044715
  %v7374 = vmul.f32 %v3624, 0.044715
  %v7375 = vmul.f32 %v3625, 0.044715
  %v7376 = vmul.f32 %v3626, 0.044715
  %v7377 = vmul.f32 %v5292, 0.044715
  %v7378 = vmul.f32 %v5293, 0.044715
  %v7379 = vmul.f32 %v5294, 0.044715
  %v7380 = vmul.f32 %v5295, 0.044715
  %v7381 = vmul.f32 %v5296, 0.044715
  %v7382 = vmul.f32 %v5297, 0.044715
  %v7383 = vmul.f32 %v5298, 0.044715
  %v7384 = vmul.f32 %v5299, 0.044715
  %v7385 = vmul.f32 %v5300, 0.044715
  %v7386 = vmul.f32 %v5301, 0.044715
  %v7387 = vmul.f32 %v5302, 0.044715
  %v7388 = vmul.f32 %v5303, 0.044715
  %v7389 = vmul.f32 %v5304, 0.044715
  %v7390 = vmul.f32 %v5305, 0.044715
  %v7391 = vmul.f32 %v5306, 0.044715
  %v7392 = vmul.f32 %v5307, 0.044715
  %v7393 = vmul.f32 %v5308, 0.044715
  %v7394 = vmul.f32 %v5309, 0.044715
  %v7395 = vmul.f32 %v5310, 0.044715
  %v7396 = vmul.f32 %v5311, 0.044715
  %v7397 = vmul.f32 %v5312, 0.044715
  %v7398 = vmul.f32 %v5313, 0.044715
  %v7399 = vmul.f32 %v5314, 0.044715
  %v7400 = vmul.f32 %v5315, 0.044715
  %v7401 = vmul.f32 %v5316, 0.044715
  %v7402 = vmul.f32 %v5317, 0.044715
  %v7403 = vmul.f32 %v5318, 0.044715
  %v7404 = vmul.f32 %v5319, 0.044715
  %v7405 = vmul.f32 %v5320, 0.044715
  %v7406 = vmul.f32 %v5321, 0.044715
  %v7407 = vmul.f32 %v5322, 0.044715
  %v7408 = vmul.f32 %v5323, 0.044715
  %v7409 = vmul.f32 %v5746, 0.044715
  %v7410 = vmul.f32 %v5747, 0.044715
  %v7411 = vmul.f32 %v5748, 0.044715
  %v7412 = vmul.f32 %v5749, 0.044715
  %v7413 = vmul.f32 %v5750, 0.044715
  %v7414 = vmul.f32 %v5751, 0.044715
  %v7415 = vmul.f32 %v5752, 0.044715
  %v7416 = vmul.f32 %v5753, 0.044715
  %v7417 = vmul.f32 %v7257, 0.044715
  %v7418 = vmul.f32 %v7258, 0.044715
  %v7419 = vmul.f32 %v7259, 0.044715
  %v7420 = vmul.f32 %v7260, 0.044715
  %v7421 = vmul.f32 %v7261, 0.044715
  %v7422 = vmul.f32 %v7262, 0.044715
  %v7423 = vmul.f32 %v7263, 0.044715
  %v7424 = vmul.f32 %v7264, 0.044715
  %v7425 = vmul.f32 %v7265, 0.044715
  %v7426 = vmul.f32 %v7266, 0.044715
  %v7427 = vmul.f32 %v7267, 0.044715
  %v7428 = vmul.f32 %v7268, 0.044715
  %v7429 = vmul.f32 %v7269, 0.044715
  %v7430 = vmul.f32 %v7270, 0.044715
  %v7431 = vmul.f32 %v7271, 0.044715
  %v7432 = vmul.f32 %v7272, 0.044715
  %v7433 = vmul.f32 %v7273, 0.044715
  %v7434 = vmul.f32 %v7274, 0.044715
  %v7435 = vmul.f32 %v7275, 0.044715
  %v7436 = vmul.f32 %v7276, 0.044715
  %v7437 = vmul.f32 %v7277, 0.044715
  %v7438 = vmul.f32 %v7278, 0.044715
  %v7439 = vmul.f32 %v7279, 0.044715
  %v7440 = vmul.f32 %v7280, 0.044715
  %v7441 = vmul.f32 %v7281, 0.044715
  %v7442 = vmul.f32 %v7282, 0.044715
  %v7443 = vmul.f32 %v7283, 0.044715
  %v7444 = vmul.f32 %v7284, 0.044715
  %v7445 = vmul.f32 %v7285, 0.044715
  %v7446 = vmul.f32 %v7286, 0.044715
  %v7447 = vmul.f32 %v7287, 0.044715
  %v7448 = vmul.f32 %v7288, 0.044715
  %v7449 = vmul.f32 %v7369, %v3619
  %v7450 = vmul.f32 %v7370, %v3620
  %v7451 = vmul.f32 %v7371, %v3621
  %v7452 = vmul.f32 %v7372, %v3622
  %v7453 = vmul.f32 %v7373, %v3623
  %v7454 = vmul.f32 %v7374, %v3624
  %v7455 = vmul.f32 %v7375, %v3625
  %v7456 = vmul.f32 %v7376, %v3626
  %v7457 = vmul.f32 %v7377, %v5292
  %v7458 = vmul.f32 %v7378, %v5293
  %v7459 = vmul.f32 %v7379, %v5294
  %v7460 = vmul.f32 %v7380, %v5295
  %v7461 = vmul.f32 %v7381, %v5296
  %v7462 = vmul.f32 %v7382, %v5297
  %v7463 = vmul.f32 %v7383, %v5298
  %v7464 = vmul.f32 %v7384, %v5299
  %v7465 = vmul.f32 %v7385, %v5300
  %v7466 = vmul.f32 %v7386, %v5301
  %v7467 = vmul.f32 %v7387, %v5302
  %v7468 = vmul.f32 %v7388, %v5303
  %v7469 = vmul.f32 %v7389, %v5304
  %v7470 = vmul.f32 %v7390, %v5305
  %v7471 = vmul.f32 %v7391, %v5306
  %v7472 = vmul.f32 %v7392, %v5307
  %v7473 = vmul.f32 %v7393, %v5308
  %v7474 = vmul.f32 %v7394, %v5309
  %v7475 = vmul.f32 %v7395, %v5310
  %v7476 = vmul.f32 %v7396, %v5311
  %v7477 = vmul.f32 %v7397, %v5312
  %v7478 = vmul.f32 %v7398, %v5313
  %v7479 = vmul.f32 %v7399, %v5314
  %v7480 = vmul.f32 %v7400, %v5315
  %v7481 = vmul.f32 %v7401, %v5316
  %v7482 = vmul.f32 %v7402, %v5317
  %v7483 = vmul.f32 %v7403, %v5318
  %v7484 = vmul.f32 %v7404, %v5319
  %v7485 = vmul.f32 %v7405, %v5320
  %v7486 = vmul.f32 %v7406, %v5321
  %v7487 = vmul.f32 %v7407, %v5322
  %v7488 = vmul.f32 %v7408, %v5323
  %v7489 = vmul.f32 %v7409, %v5746
  %v7490 = vmul.f32 %v7410, %v5747
  %v7491 = vmul.f32 %v7411, %v5748
  %v7492 = vmul.f32 %v7412, %v5749
  %v7493 = vmul.f32 %v7413, %v5750
  %v7494 = vmul.f32 %v7414, %v5751
  %v7495 = vmul.f32 %v7415, %v5752
  %v7496 = vmul.f32 %v7416, %v5753
  %v7497 = vmul.f32 %v7417, %v7257
  %v7498 = vmul.f32 %v7418, %v7258
  %v7499 = vmul.f32 %v7419, %v7259
  %v7500 = vmul.f32 %v7420, %v7260
  %v7501 = vmul.f32 %v7421, %v7261
  %v7502 = vmul.f32 %v7422, %v7262
  %v7503 = vmul.f32 %v7423, %v7263
  %v7504 = vmul.f32 %v7424, %v7264
  %v7505 = vmul.f32 %v7425, %v7265
  %v7506 = vmul.f32 %v7426, %v7266
  %v7507 = vmul.f32 %v7427, %v7267
  %v7508 = vmul.f32 %v7428, %v7268
  %v7509 = vmul.f32 %v7429, %v7269
  %v7510 = vmul.f32 %v7430, %v7270
  %v7511 = vmul.f32 %v7431, %v7271
  %v7512 = vmul.f32 %v7432, %v7272
  %v7513 = vmul.f32 %v7433, %v7273
  %v7514 = vmul.f32 %v7434, %v7274
  %v7515 = vmul.f32 %v7435, %v7275
  %v7516 = vmul.f32 %v7436, %v7276
  %v7517 = vmul.f32 %v7437, %v7277
  %v7518 = vmul.f32 %v7438, %v7278
  %v7519 = vmul.f32 %v7439, %v7279
  %v7520 = vmul.f32 %v7440, %v7280
  %v7521 = vmul.f32 %v7441, %v7281
  %v7522 = vmul.f32 %v7442, %v7282
  %v7523 = vmul.f32 %v7443, %v7283
  %v7524 = vmul.f32 %v7444, %v7284
  %v7525 = vmul.f32 %v7445, %v7285
  %v7526 = vmul.f32 %v7446, %v7286
  %v7527 = vmul.f32 %v7447, %v7287
  %v7528 = vmul.f32 %v7448, %v7288
  %v7529 = vmul.f32 %v7449, %v3619
  %v7530 = vmul.f32 %v7450, %v3620
  %v7531 = vmul.f32 %v7451, %v3621
  %v7532 = vmul.f32 %v7452, %v3622
  %v7533 = vmul.f32 %v7453, %v3623
  %v7534 = vmul.f32 %v7454, %v3624
  %v7535 = vmul.f32 %v7455, %v3625
  %v7536 = vmul.f32 %v7456, %v3626
  %v7537 = vmul.f32 %v7457, %v5292
  %v7538 = vmul.f32 %v7458, %v5293
  %v7539 = vmul.f32 %v7459, %v5294
  %v7540 = vmul.f32 %v7460, %v5295
  %v7541 = vmul.f32 %v7461, %v5296
  %v7542 = vmul.f32 %v7462, %v5297
  %v7543 = vmul.f32 %v7463, %v5298
  %v7544 = vmul.f32 %v7464, %v5299
  %v7545 = vmul.f32 %v7465, %v5300
  %v7546 = vmul.f32 %v7466, %v5301
  %v7547 = vmul.f32 %v7467, %v5302
  %v7548 = vmul.f32 %v7468, %v5303
  %v7549 = vmul.f32 %v7469, %v5304
  %v7550 = vmul.f32 %v7470, %v5305
  %v7551 = vmul.f32 %v7471, %v5306
  %v7552 = vmul.f32 %v7472, %v5307
  %v7553 = vmul.f32 %v7473, %v5308
  %v7554 = vmul.f32 %v7474, %v5309
  %v7555 = vmul.f32 %v7475, %v5310
  %v7556 = vmul.f32 %v7476, %v5311
  %v7557 = vmul.f32 %v7477, %v5312
  %v7558 = vmul.f32 %v7478, %v5313
  %v7559 = vmul.f32 %v7479, %v5314
  %v7560 = vmul.f32 %v7480, %v5315
  %v7561 = vmul.f32 %v7481, %v5316
  %v7562 = vmul.f32 %v7482, %v5317
  %v7563 = vmul.f32 %v7483, %v5318
  %v7564 = vmul.f32 %v7484, %v5319
  %v7565 = vmul.f32 %v7485, %v5320
  %v7566 = vmul.f32 %v7486, %v5321
  %v7567 = vmul.f32 %v7487, %v5322
  %v7568 = vmul.f32 %v7488, %v5323
  %v7569 = vmul.f32 %v7489, %v5746
  %v7570 = vmul.f32 %v7490, %v5747
  %v7571 = vmul.f32 %v7491, %v5748
  %v7572 = vmul.f32 %v7492, %v5749
  %v7573 = vmul.f32 %v7493, %v5750
  %v7574 = vmul.f32 %v7494, %v5751
  %v7575 = vmul.f32 %v7495, %v5752
  %v7576 = vmul.f32 %v7496, %v5753
  %v7577 = vmul.f32 %v7497, %v7257
  %v7578 = vmul.f32 %v7498, %v7258
  %v7579 = vmul.f32 %v7499, %v7259
  %v7580 = vmul.f32 %v7500, %v7260
  %v7581 = vmul.f32 %v7501, %v7261
  %v7582 = vmul.f32 %v7502, %v7262
  %v7583 = vmul.f32 %v7503, %v7263
  %v7584 = vmul.f32 %v7504, %v7264
  %v7585 = vmul.f32 %v7505, %v7265
  %v7586 = vmul.f32 %v7506, %v7266
  %v7587 = vmul.f32 %v7507, %v7267
  %v7588 = vmul.f32 %v7508, %v7268
  %v7589 = vmul.f32 %v7509, %v7269
  %v7590 = vmul.f32 %v7510, %v7270
  %v7591 = vmul.f32 %v7511, %v7271
  %v7592 = vmul.f32 %v7512, %v7272
  %v7593 = vmul.f32 %v7513, %v7273
  %v7594 = vmul.f32 %v7514, %v7274
  %v7595 = vmul.f32 %v7515, %v7275
  %v7596 = vmul.f32 %v7516, %v7276
  %v7597 = vmul.f32 %v7517, %v7277
  %v7598 = vmul.f32 %v7518, %v7278
  %v7599 = vmul.f32 %v7519, %v7279
  %v7600 = vmul.f32 %v7520, %v7280
  %v7601 = vmul.f32 %v7521, %v7281
  %v7602 = vmul.f32 %v7522, %v7282
  %v7603 = vmul.f32 %v7523, %v7283
  %v7604 = vmul.f32 %v7524, %v7284
  %v7605 = vmul.f32 %v7525, %v7285
  %v7606 = vmul.f32 %v7526, %v7286
  %v7607 = vmul.f32 %v7527, %v7287
  %v7608 = vmul.f32 %v7528, %v7288
  %v7609 = vadd.f32 %v3619, %v7529
  %v7610 = vadd.f32 %v3620, %v7530
  %v7611 = vadd.f32 %v3621, %v7531
  %v7612 = vadd.f32 %v3622, %v7532
  %v7613 = vadd.f32 %v3623, %v7533
  %v7614 = vadd.f32 %v3624, %v7534
  %v7615 = vadd.f32 %v3625, %v7535
  %v7616 = vadd.f32 %v3626, %v7536
  %v7617 = vadd.f32 %v5292, %v7537
  %v7618 = vadd.f32 %v5293, %v7538
  %v7619 = vadd.f32 %v5294, %v7539
  %v7620 = vadd.f32 %v5295, %v7540
  %v7621 = vadd.f32 %v5296, %v7541
  %v7622 = vadd.f32 %v5297, %v7542
  %v7623 = vadd.f32 %v5298, %v7543
  %v7624 = vadd.f32 %v5299, %v7544
  %v7625 = vadd.f32 %v5300, %v7545
  %v7626 = vadd.f32 %v5301, %v7546
  %v7627 = vadd.f32 %v5302, %v7547
  %v7628 = vadd.f32 %v5303, %v7548
  %v7629 = vadd.f32 %v5304, %v7549
  %v7630 = vadd.f32 %v5305, %v7550
  %v7631 = vadd.f32 %v5306, %v7551
  %v7632 = vadd.f32 %v5307, %v7552
  %v7633 = vadd.f32 %v5308, %v7553
  %v7634 = vadd.f32 %v5309, %v7554
  %v7635 = vadd.f32 %v5310, %v7555
  %v7636 = vadd.f32 %v5311, %v7556
  %v7637 = vadd.f32 %v5312, %v7557
  %v7638 = vadd.f32 %v5313, %v7558
  %v7639 = vadd.f32 %v5314, %v7559
  %v7640 = vadd.f32 %v5315, %v7560
  %v7641 = vadd.f32 %v5316, %v7561
  %v7642 = vadd.f32 %v5317, %v7562
  %v7643 = vadd.f32 %v5318, %v7563
  %v7644 = vadd.f32 %v5319, %v7564
  %v7645 = vadd.f32 %v5320, %v7565
  %v7646 = vadd.f32 %v5321, %v7566
  %v7647 = vadd.f32 %v5322, %v7567
  %v7648 = vadd.f32 %v5323, %v7568
  %v7649 = vadd.f32 %v5746, %v7569
  %v7650 = vadd.f32 %v5747, %v7570
  %v7651 = vadd.f32 %v5748, %v7571
  %v7652 = vadd.f32 %v5749, %v7572
  %v7653 = vadd.f32 %v5750, %v7573
  %v7654 = vadd.f32 %v5751, %v7574
  %v7655 = vadd.f32 %v5752, %v7575
  %v7656 = vadd.f32 %v5753, %v7576
  %v7657 = vadd.f32 %v7257, %v7577
  %v7658 = vadd.f32 %v7258, %v7578
  %v7659 = vadd.f32 %v7259, %v7579
  %v7660 = vadd.f32 %v7260, %v7580
  %v7661 = vadd.f32 %v7261, %v7581
  %v7662 = vadd.f32 %v7262, %v7582
  %v7663 = vadd.f32 %v7263, %v7583
  %v7664 = vadd.f32 %v7264, %v7584
  %v7665 = vadd.f32 %v7265, %v7585
  %v7666 = vadd.f32 %v7266, %v7586
  %v7667 = vadd.f32 %v7267, %v7587
  %v7668 = vadd.f32 %v7268, %v7588
  %v7669 = vadd.f32 %v7269, %v7589
  %v7670 = vadd.f32 %v7270, %v7590
  %v7671 = vadd.f32 %v7271, %v7591
  %v7672 = vadd.f32 %v7272, %v7592
  %v7673 = vadd.f32 %v7273, %v7593
  %v7674 = vadd.f32 %v7274, %v7594
  %v7675 = vadd.f32 %v7275, %v7595
  %v7676 = vadd.f32 %v7276, %v7596
  %v7677 = vadd.f32 %v7277, %v7597
  %v7678 = vadd.f32 %v7278, %v7598
  %v7679 = vadd.f32 %v7279, %v7599
  %v7680 = vadd.f32 %v7280, %v7600
  %v7681 = vadd.f32 %v7281, %v7601
  %v7682 = vadd.f32 %v7282, %v7602
  %v7683 = vadd.f32 %v7283, %v7603
  %v7684 = vadd.f32 %v7284, %v7604
  %v7685 = vadd.f32 %v7285, %v7605
  %v7686 = vadd.f32 %v7286, %v7606
  %v7687 = vadd.f32 %v7287, %v7607
  %v7688 = vadd.f32 %v7288, %v7608
  %v7689 = vmul.f32 %v7609, 0.7978846
  %v7690 = vmul.f32 %v7610, 0.7978846
  %v7691 = vmul.f32 %v7611, 0.7978846
  %v7692 = vmul.f32 %v7612, 0.7978846
  %v7693 = vmul.f32 %v7613, 0.7978846
  %v7694 = vmul.f32 %v7614, 0.7978846
  %v7695 = vmul.f32 %v7615, 0.7978846
  %v7696 = vmul.f32 %v7616, 0.7978846
  %v7697 = vmul.f32 %v7617, 0.7978846
  %v7698 = vmul.f32 %v7618, 0.7978846
  %v7699 = vmul.f32 %v7619, 0.7978846
  %v7700 = vmul.f32 %v7620, 0.7978846
  %v7701 = vmul.f32 %v7621, 0.7978846
  %v7702 = vmul.f32 %v7622, 0.7978846
  %v7703 = vmul.f32 %v7623, 0.7978846
  %v7704 = vmul.f32 %v7624, 0.7978846
  %v7705 = vmul.f32 %v7625, 0.7978846
  %v7706 = vmul.f32 %v7626, 0.7978846
  %v7707 = vmul.f32 %v7627, 0.7978846
  %v7708 = vmul.f32 %v7628, 0.7978846
  %v7709 = vmul.f32 %v7629, 0.7978846
  %v7710 = vmul.f32 %v7630, 0.7978846
  %v7711 = vmul.f32 %v7631, 0.7978846
  %v7712 = vmul.f32 %v7632, 0.7978846
  %v7713 = vmul.f32 %v7633, 0.7978846
  %v7714 = vmul.f32 %v7634, 0.7978846
  %v7715 = vmul.f32 %v7635, 0.7978846
  %v7716 = vmul.f32 %v7636, 0.7978846
  %v7717 = vmul.f32 %v7637, 0.7978846
  %v7718 = vmul.f32 %v7638, 0.7978846
  %v7719 = vmul.f32 %v7639, 0.7978846
  %v7720 = vmul.f32 %v7640, 0.7978846
  %v7721 = vmul.f32 %v7641, 0.7978846
  %v7722 = vmul.f32 %v7642, 0.7978846
  %v7723 = vmul.f32 %v7643, 0.7978846
  %v7724 = vmul.f32 %v7644, 0.7978846
  %v7725 = vmul.f32 %v7645, 0.7978846
  %v7726 = vmul.f32 %v7646, 0.7978846
  %v7727 = vmul.f32 %v7647, 0.7978846
  %v7728 = vmul.f32 %v7648, 0.7978846
  %v7729 = vmul.f32 %v7649, 0.7978846
  %v7730 = vmul.f32 %v7650, 0.7978846
  %v7731 = vmul.f32 %v7651, 0.7978846
  %v7732 = vmul.f32 %v7652, 0.7978846
  %v7733 = vmul.f32 %v7653, 0.7978846
  %v7734 = vmul.f32 %v7654, 0.7978846
  %v7735 = vmul.f32 %v7655, 0.7978846
  %v7736 = vmul.f32 %v7656, 0.7978846
  %v7737 = vmul.f32 %v7657, 0.7978846
  %v7738 = vmul.f32 %v7658, 0.7978846
  %v7739 = vmul.f32 %v7659, 0.7978846
  %v7740 = vmul.f32 %v7660, 0.7978846
  %v7741 = vmul.f32 %v7661, 0.7978846
  %v7742 = vmul.f32 %v7662, 0.7978846
  %v7743 = vmul.f32 %v7663, 0.7978846
  %v7744 = vmul.f32 %v7664, 0.7978846
  %v7745 = vmul.f32 %v7665, 0.7978846
  %v7746 = vmul.f32 %v7666, 0.7978846
  %v7747 = vmul.f32 %v7667, 0.7978846
  %v7748 = vmul.f32 %v7668, 0.7978846
  %v7749 = vmul.f32 %v7669, 0.7978846
  %v7750 = vmul.f32 %v7670, 0.7978846
  %v7751 = vmul.f32 %v7671, 0.7978846
  %v7752 = vmul.f32 %v7672, 0.7978846
  %v7753 = vmul.f32 %v7673, 0.7978846
  %v7754 = vmul.f32 %v7674, 0.7978846
  %v7755 = vmul.f32 %v7675, 0.7978846
  %v7756 = vmul.f32 %v7676, 0.7978846
  %v7757 = vmul.f32 %v7677, 0.7978846
  %v7758 = vmul.f32 %v7678, 0.7978846
  %v7759 = vmul.f32 %v7679, 0.7978846
  %v7760 = vmul.f32 %v7680, 0.7978846
  %v7761 = vmul.f32 %v7681, 0.7978846
  %v7762 = vmul.f32 %v7682, 0.7978846
  %v7763 = vmul.f32 %v7683, 0.7978846
  %v7764 = vmul.f32 %v7684, 0.7978846
  %v7765 = vmul.f32 %v7685, 0.7978846
  %v7766 = vmul.f32 %v7686, 0.7978846
  %v7767 = vmul.f32 %v7687, 0.7978846
  %v7768 = vmul.f32 %v7688, 0.7978846
  %v7769 = vtanh.pop %v7689
  %v7770 = vtanh.pop %v7690
  %v7771 = vtanh.pop %v7691
  %v7772 = vtanh.pop %v7692
  %v7773 = vtanh.pop %v7693
  %v7774 = vtanh.pop %v7694
  %v7775 = vtanh.pop %v7695
  %v7776 = vtanh.pop %v7696
  %v7777 = vtanh.pop %v7697
  %v7778 = vtanh.pop %v7698
  %v7779 = vtanh.pop %v7699
  %v7780 = vtanh.pop %v7700
  %v7781 = vtanh.pop %v7701
  %v7782 = vtanh.pop %v7702
  %v7783 = vtanh.pop %v7703
  %v7784 = vtanh.pop %v7704
  %v7785 = vtanh.pop %v7705
  %v7786 = vtanh.pop %v7706
  %v7787 = vtanh.pop %v7707
  %v7788 = vtanh.pop %v7708
  %v7789 = vtanh.pop %v7709
  %v7790 = vtanh.pop %v7710
  %v7791 = vtanh.pop %v7711
  %v7792 = vtanh.pop %v7712
  %v7793 = vtanh.pop %v7713
  %v7794 = vtanh.pop %v7714
  %v7795 = vtanh.pop %v7715
  %v7796 = vtanh.pop %v7716
  %v7797 = vtanh.pop %v7717
  %v7798 = vtanh.pop %v7718
  %v7799 = vtanh.pop %v7719
  %v7800 = vtanh.pop %v7720
  %v7801 = vtanh.pop %v7721
  %v7802 = vtanh.pop %v7722
  %v7803 = vtanh.pop %v7723
  %v7804 = vtanh.pop %v7724
  %v7805 = vtanh.pop %v7725
  %v7806 = vtanh.pop %v7726
  %v7807 = vtanh.pop %v7727
  %v7808 = vtanh.pop %v7728
  %v7809 = vtanh.pop %v7729
  %v7810 = vtanh.pop %v7730
  %v7811 = vtanh.pop %v7731
  %v7812 = vtanh.pop %v7732
  %v7813 = vtanh.pop %v7733
  %v7814 = vtanh.pop %v7734
  %v7815 = vtanh.pop %v7735
  %v7816 = vtanh.pop %v7736
  %v7817 = vtanh.pop %v7737
  %v7818 = vtanh.pop %v7738
  %v7819 = vtanh.pop %v7739
  %v7820 = vtanh.pop %v7740
  %v7821 = vtanh.pop %v7741
  %v7822 = vtanh.pop %v7742
  %v7823 = vtanh.pop %v7743
  %v7824 = vtanh.pop %v7744
  %v7825 = vtanh.pop %v7745
  %v7826 = vtanh.pop %v7746
  %v7827 = vtanh.pop %v7747
  %v7828 = vtanh.pop %v7748
  %v7829 = vtanh.pop %v7749
  %v7830 = vtanh.pop %v7750
  %v7831 = vtanh.pop %v7751
  %v7832 = vtanh.pop %v7752
  %v7833 = vtanh.pop %v7753
  %v7834 = vtanh.pop %v7754
  %v7835 = vtanh.pop %v7755
  %v7836 = vtanh.pop %v7756
  %v7837 = vtanh.pop %v7757
  %v7838 = vtanh.pop %v7758
  %v7839 = vtanh.pop %v7759
  %v7840 = vtanh.pop %v7760
  %v7841 = vtanh.pop %v7761
  %v7842 = vtanh.pop %v7762
  %v7843 = vtanh.pop %v7763
  %v7844 = vtanh.pop %v7764
  %v7845 = vtanh.pop %v7765
  %v7846 = vtanh.pop %v7766
  %v7847 = vtanh.pop %v7767
  %v7848 = vtanh.pop %v7768
  %v7849 = vadd.f32 %v7769, 1.0
  %v7850 = vadd.f32 %v7770, 1.0
  %v7851 = vadd.f32 %v7771, 1.0
  %v7852 = vadd.f32 %v7772, 1.0
  %v7853 = vadd.f32 %v7773, 1.0
  %v7854 = vadd.f32 %v7774, 1.0
  %v7855 = vadd.f32 %v7775, 1.0
  %v7856 = vadd.f32 %v7776, 1.0
  %v7857 = vadd.f32 %v7777, 1.0
  %v7858 = vadd.f32 %v7778, 1.0
  %v7859 = vadd.f32 %v7779, 1.0
  %v7860 = vadd.f32 %v7780, 1.0
  %v7861 = vadd.f32 %v7781, 1.0
  %v7862 = vadd.f32 %v7782, 1.0
  %v7863 = vadd.f32 %v7783, 1.0
  %v7864 = vadd.f32 %v7784, 1.0
  %v7865 = vadd.f32 %v7785, 1.0
  %v7866 = vadd.f32 %v7786, 1.0
  %v7867 = vadd.f32 %v7787, 1.0
  %v7868 = vadd.f32 %v7788, 1.0
  %v7869 = vadd.f32 %v7789, 1.0
  %v7870 = vadd.f32 %v7790, 1.0
  %v7871 = vadd.f32 %v7791, 1.0
  %v7872 = vadd.f32 %v7792, 1.0
  %v7873 = vadd.f32 %v7793, 1.0
  %v7874 = vadd.f32 %v7794, 1.0
  %v7875 = vadd.f32 %v7795, 1.0
  %v7876 = vadd.f32 %v7796, 1.0
  %v7877 = vadd.f32 %v7797, 1.0
  %v7878 = vadd.f32 %v7798, 1.0
  %v7879 = vadd.f32 %v7799, 1.0
  %v7880 = vadd.f32 %v7800, 1.0
  %v7881 = vadd.f32 %v7801, 1.0
  %v7882 = vadd.f32 %v7802, 1.0
  %v7883 = vadd.f32 %v7803, 1.0
  %v7884 = vadd.f32 %v7804, 1.0
  %v7885 = vadd.f32 %v7805, 1.0
  %v7886 = vadd.f32 %v7806, 1.0
  %v7887 = vadd.f32 %v7807, 1.0
  %v7888 = vadd.f32 %v7808, 1.0
  %v7889 = vadd.f32 %v7809, 1.0
  %v7890 = vadd.f32 %v7810, 1.0
  %v7891 = vadd.f32 %v7811, 1.0
  %v7892 = vadd.f32 %v7812, 1.0
  %v7893 = vadd.f32 %v7813, 1.0
  %v7894 = vadd.f32 %v7814, 1.0
  %v7895 = vadd.f32 %v7815, 1.0
  %v7896 = vadd.f32 %v7816, 1.0
  %v7897 = vadd.f32 %v7817, 1.0
  %v7898 = vadd.f32 %v7818, 1.0
  %v7899 = vadd.f32 %v7819, 1.0
  %v7900 = vadd.f32 %v7820, 1.0
  %v7901 = vadd.f32 %v7821, 1.0
  %v7902 = vadd.f32 %v7822, 1.0
  %v7903 = vadd.f32 %v7823, 1.0
  %v7904 = vadd.f32 %v7824, 1.0
  %v7905 = vadd.f32 %v7825, 1.0
  %v7906 = vadd.f32 %v7826, 1.0
  %v7907 = vadd.f32 %v7827, 1.0
  %v7908 = vadd.f32 %v7828, 1.0
  %v7909 = vadd.f32 %v7829, 1.0
  %v7910 = vadd.f32 %v7830, 1.0
  %v7911 = vadd.f32 %v7831, 1.0
  %v7912 = vadd.f32 %v7832, 1.0
  %v7913 = vadd.f32 %v7833, 1.0
  %v7914 = vadd.f32 %v7834, 1.0
  %v7915 = vadd.f32 %v7835, 1.0
  %v7916 = vadd.f32 %v7836, 1.0
  %v7917 = vadd.f32 %v7837, 1.0
  %v7918 = vadd.f32 %v7838, 1.0
  %v7919 = vadd.f32 %v7839, 1.0
  %v7920 = vadd.f32 %v7840, 1.0
  %v7921 = vadd.f32 %v7841, 1.0
  %v7922 = vadd.f32 %v7842, 1.0
  %v7923 = vadd.f32 %v7843, 1.0
  %v7924 = vadd.f32 %v7844, 1.0
  %v7925 = vadd.f32 %v7845, 1.0
  %v7926 = vadd.f32 %v7846, 1.0
  %v7927 = vadd.f32 %v7847, 1.0
  %v7928 = vadd.f32 %v7848, 1.0
  %v7929 = vmul.f32 %v7289, %v7849
  %v7930 = vmul.f32 %v7290, %v7850
  %v7931 = vmul.f32 %v7291, %v7851
  %v7932 = vmul.f32 %v7292, %v7852
  %v7933 = vmul.f32 %v7293, %v7853
  %v7934 = vmul.f32 %v7294, %v7854
  %v7935 = vmul.f32 %v7295, %v7855
  %v7936 = vmul.f32 %v7296, %v7856
  %v7937 = vmul.f32 %v7297, %v7857
  %v7938 = vmul.f32 %v7298, %v7858
  %v7939 = vmul.f32 %v7299, %v7859
  %v7940 = vmul.f32 %v7300, %v7860
  %v7941 = vmul.f32 %v7301, %v7861
  %v7942 = vmul.f32 %v7302, %v7862
  %v7943 = vmul.f32 %v7303, %v7863
  %v7944 = vmul.f32 %v7304, %v7864
  %v7945 = vmul.f32 %v7305, %v7865
  %v7946 = vmul.f32 %v7306, %v7866
  %v7947 = vmul.f32 %v7307, %v7867
  %v7948 = vmul.f32 %v7308, %v7868
  %v7949 = vmul.f32 %v7309, %v7869
  %v7950 = vmul.f32 %v7310, %v7870
  %v7951 = vmul.f32 %v7311, %v7871
  %v7952 = vmul.f32 %v7312, %v7872
  %v7953 = vmul.f32 %v7313, %v7873
  %v7954 = vmul.f32 %v7314, %v7874
  %v7955 = vmul.f32 %v7315, %v7875
  %v7956 = vmul.f32 %v7316, %v7876
  %v7957 = vmul.f32 %v7317, %v7877
  %v7958 = vmul.f32 %v7318, %v7878
  %v7959 = vmul.f32 %v7319, %v7879
  %v7960 = vmul.f32 %v7320, %v7880
  %v7961 = vmul.f32 %v7321, %v7881
  %v7962 = vmul.f32 %v7322, %v7882
  %v7963 = vmul.f32 %v7323, %v7883
  %v7964 = vmul.f32 %v7324, %v7884
  %v7965 = vmul.f32 %v7325, %v7885
  %v7966 = vmul.f32 %v7326, %v7886
  %v7967 = vmul.f32 %v7327, %v7887
  %v7968 = vmul.f32 %v7328, %v7888
  %v7969 = vmul.f32 %v7329, %v7889
  %v7970 = vmul.f32 %v7330, %v7890
  %v7971 = vmul.f32 %v7331, %v7891
  %v7972 = vmul.f32 %v7332, %v7892
  %v7973 = vmul.f32 %v7333, %v7893
  %v7974 = vmul.f32 %v7334, %v7894
  %v7975 = vmul.f32 %v7335, %v7895
  %v7976 = vmul.f32 %v7336, %v7896
  %v7977 = vmul.f32 %v7337, %v7897
  %v7978 = vmul.f32 %v7338, %v7898
  %v7979 = vmul.f32 %v7339, %v7899
  %v7980 = vmul.f32 %v7340, %v7900
  %v7981 = vmul.f32 %v7341, %v7901
  %v7982 = vmul.f32 %v7342, %v7902
  %v7983 = vmul.f32 %v7343, %v7903
  %v7984 = vmul.f32 %v7344, %v7904
  %v7985 = vmul.f32 %v7345, %v7905
  %v7986 = vmul.f32 %v7346, %v7906
  %v7987 = vmul.f32 %v7347, %v7907
  %v7988 = vmul.f32 %v7348, %v7908
  %v7989 = vmul.f32 %v7349, %v7909
  %v7990 = vmul.f32 %v7350, %v7910
  %v7991 = vmul.f32 %v7351, %v7911
  %v7992 = vmul.f32 %v7352, %v7912
  %v7993 = vmul.f32 %v7353, %v7913
  %v7994 = vmul.f32 %v7354, %v7914
  %v7995 = vmul.f32 %v7355, %v7915
  %v7996 = vmul.f32 %v7356, %v7916
  %v7997 = vmul.f32 %v7357, %v7917
  %v7998 = vmul.f32 %v7358, %v7918
  %v7999 = vmul.f32 %v7359, %v7919
  %v8000 = vmul.f32 %v7360, %v7920
  %v8001 = vmul.f32 %v7361, %v7921
  %v8002 = vmul.f32 %v7362, %v7922
  %v8003 = vmul.f32 %v7363, %v7923
  %v8004 = vmul.f32 %v7364, %v7924
  %v8005 = vmul.f32 %v7365, %v7925
  %v8006 = vmul.f32 %v7366, %v7926
  %v8007 = vmul.f32 %v7367, %v7927
  %v8008 = vmul.f32 %v7368, %v7928
  %8025 = vrot.lane.b32.xlu0 %v2139, 96
  %v8026 = vpop.permute.xlu0 %8025
  %8027 = vrot.lane.b32.xlu0 %v2142, 96
  %v8028 = vpop.permute.xlu0 %8027
  %8029 = vrot.lane.b32.xlu0 %v2145, 96
  %v8030 = vpop.permute.xlu0 %8029
  %8031 = vrot.lane.b32.xlu0 %v2148, 96
  %v8032 = vpop.permute.xlu0 %8031
  %8033 = vrot.lane.b32.xlu0 %v2151, 96
  %v8034 = vpop.permute.xlu0 %8033
  %8035 = vrot.lane.b32.xlu0 %v2154, 96
  %v8036 = vpop.permute.xlu0 %8035
  %8037 = vrot.lane.b32.xlu0 %v2157, 96
  %v8038 = vpop.permute.xlu0 %8037
  %8039 = vrot.lane.b32.xlu0 %v2160, 96
  %v8040 = vpop.permute.xlu0 %8039
  %8041 = vrot.lane.b32.xlu0 %v2163, 96
  %v8042 = vpop.permute.xlu0 %8041
  %8043 = vrot.lane.b32.xlu0 %v2166, 96
  %v8044 = vpop.permute.xlu0 %8043
  %8045 = vrot.lane.b32.xlu0 %v2169, 96
  %v8046 = vpop.permute.xlu0 %8045
  %8047 = vrot.lane.b32.xlu0 %v2172, 96
  %v8048 = vpop.permute.xlu0 %8047
  %8049 = vrot.lane.b32.xlu0 %v2175, 96
  %v8050 = vpop.permute.xlu0 %8049
  %8051 = vrot.lane.b32.xlu0 %v2178, 96
  %v8052 = vpop.permute.xlu0 %8051
  %8053 = vrot.lane.b32.xlu0 %v2181, 96
  %v8054 = vpop.permute.xlu0 %8053
  %8055 = vrot.lane.b32.xlu0 %v2184, 96
  %v8056 = vpop.permute.xlu0 %8055
  %8057 = vrot.lane.b32.xlu0 %v2187, 96
  %v8058 = vpop.permute.xlu0 %8057
  %8059 = vrot.lane.b32.xlu0 %v2190, 96
  %v8060 = vpop.permute.xlu0 %8059
  %8061 = vrot.lane.b32.xlu0 %v2193, 96
  %v8062 = vpop.permute.xlu0 %8061
  %8063 = vrot.lane.b32.xlu0 %v2196, 96
  %v8064 = vpop.permute.xlu0 %8063
  %8065 = vrot.lane.b32.xlu0 %v2199, 96
  %v8066 = vpop.permute.xlu0 %8065
  %8067 = vrot.lane.b32.xlu0 %v2202, 96
  %v8068 = vpop.permute.xlu0 %8067
  %8069 = vrot.lane.b32.xlu0 %v2205, 96
  %v8070 = vpop.permute.xlu0 %8069
  %8071 = vrot.lane.b32.xlu0 %v2208, 96
  %v8072 = vpop.permute.xlu0 %8071
  %8073 = vrot.lane.b32.xlu0 %v2211, 96
  %v8074 = vpop.permute.xlu0 %8073
  %8075 = vrot.lane.b32.xlu0 %v2214, 96
  %v8076 = vpop.permute.xlu0 %8075
  %8077 = vrot.lane.b32.xlu0 %v2217, 96
  %v8078 = vpop.permute.xlu0 %8077
  %8079 = vrot.lane.b32.xlu0 %v2220, 96
  %v8080 = vpop.permute.xlu0 %8079
  %8081 = vrot.lane.b32.xlu0 %v2223, 96
  %v8082 = vpop.permute.xlu0 %8081
  %8083 = vrot.lane.b32.xlu0 %v2226, 96
  %v8084 = vpop.permute.xlu0 %8083
  %8085 = vrot.lane.b32.xlu0 %v2229, 96
  %v8086 = vpop.permute.xlu0 %8085
  %8087 = vrot.lane.b32.xlu0 %v2232, 96
  %v8088 = vpop.permute.xlu0 %8087
  %8089 = vrot.lane.b32.xlu0 %v2235, 96
  %v8090 = vpop.permute.xlu0 %8089
  %8091 = vrot.lane.b32.xlu0 %v2238, 96
  %v8092 = vpop.permute.xlu0 %8091
  %8093 = vrot.lane.b32.xlu0 %v2241, 96
  %v8094 = vpop.permute.xlu0 %8093
  %8095 = vrot.lane.b32.xlu0 %v2244, 96
  %v8096 = vpop.permute.xlu0 %8095
  %8097 = vrot.lane.b32.xlu0 %v2247, 96
  %v8098 = vpop.permute.xlu0 %8097
  %8099 = vrot.lane.b32.xlu0 %v2250, 96
  %v8100 = vpop.permute.xlu0 %8099
  %8101 = vrot.lane.b32.xlu0 %v2253, 96
  %v8102 = vpop.permute.xlu0 %8101
  %8103 = vrot.lane.b32.xlu0 %v2256, 96
  %v8104 = vpop.permute.xlu0 %8103
  %8105 = vrot.lane.b32.xlu0 %v2259, 96
  %v8106 = vpop.permute.xlu0 %8105
  %8107 = vrot.lane.b32.xlu0 %v2262, 96
  %v8108 = vpop.permute.xlu0 %8107
  %8109 = vrot.lane.b32.xlu0 %v2265, 96
  %v8110 = vpop.permute.xlu0 %8109
  %8111 = vrot.lane.b32.xlu0 %v2268, 96
  %v8112 = vpop.permute.xlu0 %8111
  %8113 = vrot.lane.b32.xlu0 %v2271, 96
  %v8114 = vpop.permute.xlu0 %8113
  %8115 = vrot.lane.b32.xlu0 %v2274, 96
  %v8116 = vpop.permute.xlu0 %8115
  %8117 = vrot.lane.b32.xlu0 %v2277, 96
  %v8118 = vpop.permute.xlu0 %8117
  %8119 = vrot.lane.b32.xlu0 %v2280, 96
  %v8120 = vpop.permute.xlu0 %8119
  %8121 = vrot.lane.b32.xlu0 %v2283, 96
  %v8122 = vpop.permute.xlu0 %8121
  %8123 = vrot.lane.b32.xlu0 %v2286, 96
  %v8124 = vpop.permute.xlu0 %8123
  %8125 = vrot.lane.b32.xlu0 %v2289, 96
  %v8126 = vpop.permute.xlu0 %8125
  %8127 = vrot.lane.b32.xlu0 %v2292, 96
  %v8128 = vpop.permute.xlu0 %8127
  %8129 = vrot.lane.b32.xlu0 %v2295, 96
  %v8130 = vpop.permute.xlu0 %8129
  %8131 = vrot.lane.b32.xlu0 %v2298, 96
  %v8132 = vpop.permute.xlu0 %8131
  %8133 = vrot.lane.b32.xlu0 %v2301, 96
  %v8134 = vpop.permute.xlu0 %8133
  %8135 = vrot.lane.b32.xlu0 %v2304, 96
  %v8136 = vpop.permute.xlu0 %8135
  %8137 = vrot.lane.b32.xlu0 %v2307, 96
  %v8138 = vpop.permute.xlu0 %8137
  %8139 = vrot.lane.b32.xlu0 %v2310, 96
  %v8140 = vpop.permute.xlu0 %8139
  %8141 = vrot.lane.b32.xlu0 %v2313, 96
  %v8142 = vpop.permute.xlu0 %8141
  %8143 = vrot.lane.b32.xlu0 %v2316, 96
  %v8144 = vpop.permute.xlu0 %8143
  %8145 = vrot.lane.b32.xlu0 %v2319, 96
  %v8146 = vpop.permute.xlu0 %8145
  %8147 = vrot.lane.b32.xlu0 %v2322, 96
  %v8148 = vpop.permute.xlu0 %8147
  %8149 = vrot.lane.b32.xlu0 %v2325, 96
  %v8150 = vpop.permute.xlu0 %8149
  %8151 = vrot.lane.b32.xlu0 %v2328, 96
  %v8152 = vpop.permute.xlu0 %8151
  %8153 = vrot.lane.b32.xlu0 %v2331, 96
  %v8154 = vpop.permute.xlu0 %8153
  %8155 = vrot.lane.b32.xlu0 %v2334, 96
  %v8156 = vpop.permute.xlu0 %8155
  %8157 = vrot.lane.b32.xlu0 %v2337, 96
  %v8158 = vpop.permute.xlu0 %8157
  %8159 = vrot.lane.b32.xlu0 %v2340, 96
  %v8160 = vpop.permute.xlu0 %8159
  %8161 = vrot.lane.b32.xlu0 %v2343, 96
  %v8162 = vpop.permute.xlu0 %8161
  %8163 = vrot.lane.b32.xlu0 %v2346, 96
  %v8164 = vpop.permute.xlu0 %8163
  %8165 = vrot.lane.b32.xlu0 %v2349, 96
  %v8166 = vpop.permute.xlu0 %8165
  %8167 = vrot.lane.b32.xlu0 %v2352, 96
  %v8168 = vpop.permute.xlu0 %8167
  %8169 = vrot.lane.b32.xlu0 %v2355, 96
  %v8170 = vpop.permute.xlu0 %8169
  %8171 = vrot.lane.b32.xlu0 %v2358, 96
  %v8172 = vpop.permute.xlu0 %8171
  %8173 = vrot.lane.b32.xlu0 %v2361, 96
  %v8174 = vpop.permute.xlu0 %8173
  %8175 = vrot.lane.b32.xlu0 %v2364, 96
  %v8176 = vpop.permute.xlu0 %8175
  %8177 = vrot.lane.b32.xlu0 %v2367, 96
  %v8178 = vpop.permute.xlu0 %8177
  %8179 = vrot.lane.b32.xlu0 %v2370, 96
  %v8180 = vpop.permute.xlu0 %8179
  %8181 = vrot.lane.b32.xlu0 %v2373, 96
  %v8182 = vpop.permute.xlu0 %8181
  %8183 = vrot.lane.b32.xlu0 %v2376, 96
  %v8184 = vpop.permute.xlu0 %8183
  %v8265 = vmul.f32 %v7929, %v8026
  %v8266 = vmul.f32 %v7930, %v8028
  %v8267 = vmul.f32 %v7931, %v8030
  %v8268 = vmul.f32 %v7932, %v8032
  %v8269 = vmul.f32 %v7933, %v8034
  %v8270 = vmul.f32 %v7934, %v8036
  %v8271 = vmul.f32 %v7935, %v8038
  %v8272 = vmul.f32 %v7936, %v8040
  %v8273 = vmul.f32 %v7937, %v8042
  %v8274 = vmul.f32 %v7938, %v8044
  %v8275 = vmul.f32 %v7939, %v8046
  %v8276 = vmul.f32 %v7940, %v8048
  %v8277 = vmul.f32 %v7941, %v8050
  %v8278 = vmul.f32 %v7942, %v8052
  %v8279 = vmul.f32 %v7943, %v8054
  %v8280 = vmul.f32 %v7944, %v8056
  %v8281 = vmul.f32 %v7945, %v8058
  %v8282 = vmul.f32 %v7946, %v8060
  %v8283 = vmul.f32 %v7947, %v8062
  %v8284 = vmul.f32 %v7948, %v8064
  %v8285 = vmul.f32 %v7949, %v8066
  %v8286 = vmul.f32 %v7950, %v8068
  %v8287 = vmul.f32 %v7951, %v8070
  %v8288 = vmul.f32 %v7952, %v8072
  %v8289 = vmul.f32 %v7953, %v8074
  %v8290 = vmul.f32 %v7954, %v8076
  %v8291 = vmul.f32 %v7955, %v8078
  %v8292 = vmul.f32 %v7956, %v8080
  %v8293 = vmul.f32 %v7957, %v8082
  %v8294 = vmul.f32 %v7958, %v8084
  %v8295 = vmul.f32 %v7959, %v8086
  %v8296 = vmul.f32 %v7960, %v8088
  %v8297 = vmul.f32 %v7961, %v8090
  %v8298 = vmul.f32 %v7962, %v8092
  %v8299 = vmul.f32 %v7963, %v8094
  %v8300 = vmul.f32 %v7964, %v8096
  %v8301 = vmul.f32 %v7965, %v8098
  %v8302 = vmul.f32 %v7966, %v8100
  %v8303 = vmul.f32 %v7967, %v8102
  %v8304 = vmul.f32 %v7968, %v8104
  %v8305 = vmul.f32 %v7969, %v8106
  %v8306 = vmul.f32 %v7970, %v8108
  %v8307 = vmul.f32 %v7971, %v8110
  %v8308 = vmul.f32 %v7972, %v8112
  %v8309 = vmul.f32 %v7973, %v8114
  %v8310 = vmul.f32 %v7974, %v8116
  %v8311 = vmul.f32 %v7975, %v8118
  %v8312 = vmul.f32 %v7976, %v8120
  %v8313 = vmul.f32 %v7977, %v8122
  %v8314 = vmul.f32 %v7978, %v8124
  %v8315 = vmul.f32 %v7979, %v8126
  %v8316 = vmul.f32 %v7980, %v8128
  %v8317 = vmul.f32 %v7981, %v8130
  %v8318 = vmul.f32 %v7982, %v8132
  %v8319 = vmul.f32 %v7983, %v8134
  %v8320 = vmul.f32 %v7984, %v8136
  %v8321 = vmul.f32 %v7985, %v8138
  %v8322 = vmul.f32 %v7986, %v8140
  %v8323 = vmul.f32 %v7987, %v8142
  %v8324 = vmul.f32 %v7988, %v8144
  %v8325 = vmul.f32 %v7989, %v8146
  %v8326 = vmul.f32 %v7990, %v8148
  %v8327 = vmul.f32 %v7991, %v8150
  %v8328 = vmul.f32 %v7992, %v8152
  %v8329 = vmul.f32 %v7993, %v8154
  %v8330 = vmul.f32 %v7994, %v8156
  %v8331 = vmul.f32 %v7995, %v8158
  %v8332 = vmul.f32 %v7996, %v8160
  %v8333 = vmul.f32 %v7997, %v8162
  %v8334 = vmul.f32 %v7998, %v8164
  %v8335 = vmul.f32 %v7999, %v8166
  %v8336 = vmul.f32 %v8000, %v8168
  %v8337 = vmul.f32 %v8001, %v8170
  %v8338 = vmul.f32 %v8002, %v8172
  %v8339 = vmul.f32 %v8003, %v8174
  %v8340 = vmul.f32 %v8004, %v8176
  %v8341 = vmul.f32 %v8005, %v8178
  %v8342 = vmul.f32 %v8006, %v8180
  %v8343 = vmul.f32 %v8007, %v8182
  %v8344 = vmul.f32 %v8008, %v8184
  %v8345 = vld [vmem:[%s4] sm:$0xff]
  %v8346 = vld [vmem:[%s4 + $0x8] sm:$0xff]
  %v8347 = vld [vmem:[%s4 + $0x10] sm:$0xff]
  %v8348 = vld [vmem:[%s4 + $0x18] sm:$0xff]
  %v8349 = vld [vmem:[%s5] sm:$0x1]
  %v8351 = vperm.slane %v8349, 0
  %vm8353 = vcmask 261120
  %v8355 = vsel %vm8353, %v8265, 0
  %v8358 = vsel %vm8353, %v8266, 0
  %v8361 = vsel %vm8353, %v8267, 0
  %v8364 = vsel %vm8353, %v8268, 0
  %v8367 = vsel %vm8353, %v8269, 0
  %v8370 = vsel %vm8353, %v8270, 0
  %v8373 = vsel %vm8353, %v8271, 0
  %v8376 = vsel %vm8353, %v8272, 0
  %v8379 = vsel %vm8353, %v8273, 0
  %v8382 = vsel %vm8353, %v8274, 0
  %v8385 = vsel %vm8353, %v8275, 0
  %v8388 = vsel %vm8353, %v8276, 0
  %v8391 = vsel %vm8353, %v8277, 0
  %v8394 = vsel %vm8353, %v8278, 0
  %v8397 = vsel %vm8353, %v8279, 0
  %v8400 = vsel %vm8353, %v8280, 0
  %v8403 = vsel %vm8353, %v8281, 0
  %v8406 = vsel %vm8353, %v8282, 0
  %v8409 = vsel %vm8353, %v8283, 0
  %v8412 = vsel %vm8353, %v8284, 0
  %v8415 = vsel %vm8353, %v8285, 0
  %v8418 = vsel %vm8353, %v8286, 0
  %v8421 = vsel %vm8353, %v8287, 0
  %v8424 = vsel %vm8353, %v8288, 0
  %v8427 = vsel %vm8353, %v8289, 0
  %v8430 = vsel %vm8353, %v8290, 0
  %v8433 = vsel %vm8353, %v8291, 0
  %v8436 = vsel %vm8353, %v8292, 0
  %v8439 = vsel %vm8353, %v8293, 0
  %v8442 = vsel %vm8353, %v8294, 0
  %v8445 = vsel %vm8353, %v8295, 0
  %v8448 = vsel %vm8353, %v8296, 0
  %v8451 = vsel %vm8353, %v8297, 0
  %v8454 = vsel %vm8353, %v8298, 0
  %v8457 = vsel %vm8353, %v8299, 0
  %v8460 = vsel %vm8353, %v8300, 0
  %v8463 = vsel %vm8353, %v8301, 0
  %v8466 = vsel %vm8353, %v8302, 0
  %v8469 = vsel %vm8353, %v8303, 0
  %v8472 = vsel %vm8353, %v8304, 0
  %v8475 = vsel %vm8353, %v8305, 0
  %v8478 = vsel %vm8353, %v8306, 0
  %v8481 = vsel %vm8353, %v8307, 0
  %v8484 = vsel %vm8353, %v8308, 0
  %v8487 = vsel %vm8353, %v8309, 0
  %v8490 = vsel %vm8353, %v8310, 0
  %v8493 = vsel %vm8353, %v8311, 0
  %v8496 = vsel %vm8353, %v8312, 0
  %v8499 = vsel %vm8353, %v8313, 0
  %v8502 = vsel %vm8353, %v8314, 0
  %v8505 = vsel %vm8353, %v8315, 0
  %v8508 = vsel %vm8353, %v8316, 0
  %v8511 = vsel %vm8353, %v8317, 0
  %v8514 = vsel %vm8353, %v8318, 0
  %v8517 = vsel %vm8353, %v8319, 0
  %v8520 = vsel %vm8353, %v8320, 0
  %v8523 = vsel %vm8353, %v8321, 0
  %v8526 = vsel %vm8353, %v8322, 0
  %v8529 = vsel %vm8353, %v8323, 0
  %v8532 = vsel %vm8353, %v8324, 0
  %v8535 = vsel %vm8353, %v8325, 0
  %v8538 = vsel %vm8353, %v8326, 0
  %v8541 = vsel %vm8353, %v8327, 0
  %v8544 = vsel %vm8353, %v8328, 0
  %v8547 = vsel %vm8353, %v8329, 0
  %v8550 = vsel %vm8353, %v8330, 0
  %v8553 = vsel %vm8353, %v8331, 0
  %v8556 = vsel %vm8353, %v8332, 0
  %v8559 = vsel %vm8353, %v8333, 0
  %v8562 = vsel %vm8353, %v8334, 0
  %v8565 = vsel %vm8353, %v8335, 0
  %v8568 = vsel %vm8353, %v8336, 0
  %v8571 = vsel %vm8353, %v8337, 0
  %v8574 = vsel %vm8353, %v8338, 0
  %v8577 = vsel %vm8353, %v8339, 0
  %v8580 = vsel %vm8353, %v8340, 0
  %v8583 = vsel %vm8353, %v8341, 0
  %v8586 = vsel %vm8353, %v8342, 0
  %v8589 = vsel %vm8353, %v8343, 0
  %v8592 = vsel %vm8353, %v8344, 0
  %8594 = vmatpush.msra.mxu0 0.0
  %8595 = vmatpush.msra.mxu0 0.0
  %8596 = vmatpush.msra.mxu0 0.0
  %8597 = vmatpush.msra.mxu0 0.0
  %8598 = vmatpush.msra.mxu0 0.0
  %8599 = vmatpush.msra.mxu0 0.0
  %8600 = vmatpush.msra.mxu0 0.0
  %8601 = vmatpush.msra.mxu0 0.0
  %8602 = vmatpush.msra.mxu0 0.0
  %8603 = vmatpush.msra.mxu0 0.0
  %8604 = vmatpush.msra.mxu0 0.0
  %8605 = vmatpush.msra.mxu0 0.0
  %8606 = vmatpush.msra.mxu0 %v8348
  %8607 = vmatpush.msra.mxu0 %v8347
  %8608 = vmatpush.msra.mxu0 %v8346
  %8609 = vmatpush.msra.mxu0 %v8345
  %8610 = vmatmul.f32.gmra.mxu0 %v8355
  %v8611 = vpop.f32.mrf.mxu0
  %v8612 = vadd.f32 %v8351, %v8611
  %8613 = vmatmul.f32.gmra.mxu0 %v8358
  %v8614 = vpop.f32.mrf.mxu0
  %v8615 = vadd.f32 %v8351, %v8614
  %8616 = vmatmul.f32.gmra.mxu0 %v8361
  %v8617 = vpop.f32.mrf.mxu0
  %v8618 = vadd.f32 %v8351, %v8617
  %8619 = vmatmul.f32.gmra.mxu0 %v8364
  %v8620 = vpop.f32.mrf.mxu0
  %v8621 = vadd.f32 %v8351, %v8620
  %8622 = vmatmul.f32.gmra.mxu0 %v8367
  %v8623 = vpop.f32.mrf.mxu0
  %v8624 = vadd.f32 %v8351, %v8623
  %8625 = vmatmul.f32.gmra.mxu0 %v8370
  %v8626 = vpop.f32.mrf.mxu0
  %v8627 = vadd.f32 %v8351, %v8626
  %8628 = vmatmul.f32.gmra.mxu0 %v8373
  %v8629 = vpop.f32.mrf.mxu0
  %v8630 = vadd.f32 %v8351, %v8629
  %8631 = vmatmul.f32.gmra.mxu0 %v8376
  %v8632 = vpop.f32.mrf.mxu0
  %v8633 = vadd.f32 %v8351, %v8632
  %8634 = vmatmul.f32.gmra.mxu0 %v8379
  %v8635 = vpop.f32.mrf.mxu0
  %v8636 = vadd.f32 %v8351, %v8635
  %8637 = vmatmul.f32.gmra.mxu0 %v8382
  %v8638 = vpop.f32.mrf.mxu0
  %v8639 = vadd.f32 %v8351, %v8638
  %8640 = vmatmul.f32.gmra.mxu0 %v8385
  %v8641 = vpop.f32.mrf.mxu0
  %v8642 = vadd.f32 %v8351, %v8641
  %8643 = vmatmul.f32.gmra.mxu0 %v8388
  %v8644 = vpop.f32.mrf.mxu0
  %v8645 = vadd.f32 %v8351, %v8644
  %8646 = vmatmul.f32.gmra.mxu0 %v8391
  %v8647 = vpop.f32.mrf.mxu0
  %v8648 = vadd.f32 %v8351, %v8647
  %8649 = vmatmul.f32.gmra.mxu0 %v8394
  %v8650 = vpop.f32.mrf.mxu0
  %v8651 = vadd.f32 %v8351, %v8650
  %8652 = vmatmul.f32.gmra.mxu0 %v8397
  %v8653 = vpop.f32.mrf.mxu0
  %v8654 = vadd.f32 %v8351, %v8653
  %8655 = vmatmul.f32.gmra.mxu0 %v8400
  %v8656 = vpop.f32.mrf.mxu0
  %v8657 = vadd.f32 %v8351, %v8656
  %8658 = vmatmul.f32.gmra.mxu0 %v8403
  %v8659 = vpop.f32.mrf.mxu0
  %v8660 = vadd.f32 %v8351, %v8659
  %8661 = vmatmul.f32.gmra.mxu0 %v8406
  %v8662 = vpop.f32.mrf.mxu0
  %v8663 = vadd.f32 %v8351, %v8662
  %8664 = vmatmul.f32.gmra.mxu0 %v8409
  %v8665 = vpop.f32.mrf.mxu0
  %v8666 = vadd.f32 %v8351, %v8665
  %8667 = vmatmul.f32.gmra.mxu0 %v8412
  %v8668 = vpop.f32.mrf.mxu0
  %v8669 = vadd.f32 %v8351, %v8668
  %8670 = vmatmul.f32.gmra.mxu0 %v8415
  %v8671 = vpop.f32.mrf.mxu0
  %v8672 = vadd.f32 %v8351, %v8671
  %8673 = vmatmul.f32.gmra.mxu0 %v8418
  %v8674 = vpop.f32.mrf.mxu0
  %v8675 = vadd.f32 %v8351, %v8674
  %8676 = vmatmul.f32.gmra.mxu0 %v8421
  %v8677 = vpop.f32.mrf.mxu0
  %v8678 = vadd.f32 %v8351, %v8677
  %8679 = vmatmul.f32.gmra.mxu0 %v8424
  %v8680 = vpop.f32.mrf.mxu0
  %v8681 = vadd.f32 %v8351, %v8680
  %8682 = vmatmul.f32.gmra.mxu0 %v8427
  %v8683 = vpop.f32.mrf.mxu0
  %v8684 = vadd.f32 %v8351, %v8683
  %8685 = vmatmul.f32.gmra.mxu0 %v8430
  %v8686 = vpop.f32.mrf.mxu0
  %v8687 = vadd.f32 %v8351, %v8686
  %8688 = vmatmul.f32.gmra.mxu0 %v8433
  %v8689 = vpop.f32.mrf.mxu0
  %v8690 = vadd.f32 %v8351, %v8689
  %8691 = vmatmul.f32.gmra.mxu0 %v8436
  %v8692 = vpop.f32.mrf.mxu0
  %v8693 = vadd.f32 %v8351, %v8692
  %8694 = vmatmul.f32.gmra.mxu0 %v8439
  %v8695 = vpop.f32.mrf.mxu0
  %v8696 = vadd.f32 %v8351, %v8695
  %8697 = vmatmul.f32.gmra.mxu0 %v8442
  %v8698 = vpop.f32.mrf.mxu0
  %v8699 = vadd.f32 %v8351, %v8698
  %8700 = vmatmul.f32.gmra.mxu0 %v8445
  %v8701 = vpop.f32.mrf.mxu0
  %v8702 = vadd.f32 %v8351, %v8701
  %8703 = vmatmul.f32.gmra.mxu0 %v8448
  %v8704 = vpop.f32.mrf.mxu0
  %v8705 = vadd.f32 %v8351, %v8704
  %8706 = vmatmul.f32.gmra.mxu0 %v8451
  %v8707 = vpop.f32.mrf.mxu0
  %v8708 = vadd.f32 %v8351, %v8707
  %8709 = vmatmul.f32.gmra.mxu0 %v8454
  %v8710 = vpop.f32.mrf.mxu0
  %v8711 = vadd.f32 %v8351, %v8710
  %8712 = vmatmul.f32.gmra.mxu0 %v8457
  %v8713 = vpop.f32.mrf.mxu0
  %v8714 = vadd.f32 %v8351, %v8713
  %8715 = vmatmul.f32.gmra.mxu0 %v8460
  %v8716 = vpop.f32.mrf.mxu0
  %v8717 = vadd.f32 %v8351, %v8716
  %8718 = vmatmul.f32.gmra.mxu0 %v8463
  %v8719 = vpop.f32.mrf.mxu0
  %v8720 = vadd.f32 %v8351, %v8719
  %8721 = vmatmul.f32.gmra.mxu0 %v8466
  %v8722 = vpop.f32.mrf.mxu0
  %v8723 = vadd.f32 %v8351, %v8722
  %8724 = vmatmul.f32.gmra.mxu0 %v8469
  %v8725 = vpop.f32.mrf.mxu0
  %v8726 = vadd.f32 %v8351, %v8725
  %8727 = vmatmul.f32.gmra.mxu0 %v8472
  %v8728 = vpop.f32.mrf.mxu0
  %v8729 = vadd.f32 %v8351, %v8728
  %8730 = vmatmul.f32.gmra.mxu0 %v8475
  %v8731 = vpop.f32.mrf.mxu0
  %v8732 = vadd.f32 %v8351, %v8731
  %8733 = vmatmul.f32.gmra.mxu0 %v8478
  %v8734 = vpop.f32.mrf.mxu0
  %v8735 = vadd.f32 %v8351, %v8734
  %8736 = vmatmul.f32.gmra.mxu0 %v8481
  %v8737 = vpop.f32.mrf.mxu0
  %v8738 = vadd.f32 %v8351, %v8737
  %8739 = vmatmul.f32.gmra.mxu0 %v8484
  %v8740 = vpop.f32.mrf.mxu0
  %v8741 = vadd.f32 %v8351, %v8740
  %8742 = vmatmul.f32.gmra.mxu0 %v8487
  %v8743 = vpop.f32.mrf.mxu0
  %v8744 = vadd.f32 %v8351, %v8743
  %8745 = vmatmul.f32.gmra.mxu0 %v8490
  %v8746 = vpop.f32.mrf.mxu0
  %v8747 = vadd.f32 %v8351, %v8746
  %8748 = vmatmul.f32.gmra.mxu0 %v8493
  %v8749 = vpop.f32.mrf.mxu0
  %v8750 = vadd.f32 %v8351, %v8749
  %8751 = vmatmul.f32.gmra.mxu0 %v8496
  %v8752 = vpop.f32.mrf.mxu0
  %v8753 = vadd.f32 %v8351, %v8752
  %8754 = vmatmul.f32.gmra.mxu0 %v8499
  %v8755 = vpop.f32.mrf.mxu0
  %v8756 = vadd.f32 %v8351, %v8755
  %8757 = vmatmul.f32.gmra.mxu0 %v8502
  %v8758 = vpop.f32.mrf.mxu0
  %v8759 = vadd.f32 %v8351, %v8758
  %8760 = vmatmul.f32.gmra.mxu0 %v8505
  %v8761 = vpop.f32.mrf.mxu0
  %v8762 = vadd.f32 %v8351, %v8761
  %8763 = vmatmul.f32.gmra.mxu0 %v8508
  %v8764 = vpop.f32.mrf.mxu0
  %v8765 = vadd.f32 %v8351, %v8764
  %8766 = vmatmul.f32.gmra.mxu0 %v8511
  %v8767 = vpop.f32.mrf.mxu0
  %v8768 = vadd.f32 %v8351, %v8767
  %8769 = vmatmul.f32.gmra.mxu0 %v8514
  %v8770 = vpop.f32.mrf.mxu0
  %v8771 = vadd.f32 %v8351, %v8770
  %8772 = vmatmul.f32.gmra.mxu0 %v8517
  %v8773 = vpop.f32.mrf.mxu0
  %v8774 = vadd.f32 %v8351, %v8773
  %8775 = vmatmul.f32.gmra.mxu0 %v8520
  %v8776 = vpop.f32.mrf.mxu0
  %v8777 = vadd.f32 %v8351, %v8776
  %8778 = vmatmul.f32.gmra.mxu0 %v8523
  %v8779 = vpop.f32.mrf.mxu0
  %v8780 = vadd.f32 %v8351, %v8779
  %8781 = vmatmul.f32.gmra.mxu0 %v8526
  %v8782 = vpop.f32.mrf.mxu0
  %v8783 = vadd.f32 %v8351, %v8782
  %8784 = vmatmul.f32.gmra.mxu0 %v8529
  %v8785 = vpop.f32.mrf.mxu0
  %v8786 = vadd.f32 %v8351, %v8785
  %8787 = vmatmul.f32.gmra.mxu0 %v8532
  %v8788 = vpop.f32.mrf.mxu0
  %v8789 = vadd.f32 %v8351, %v8788
  %8790 = vmatmul.f32.gmra.mxu0 %v8535
  %v8791 = vpop.f32.mrf.mxu0
  %v8792 = vadd.f32 %v8351, %v8791
  %8793 = vmatmul.f32.gmra.mxu0 %v8538
  %v8794 = vpop.f32.mrf.mxu0
  %v8795 = vadd.f32 %v8351, %v8794
  %8796 = vmatmul.f32.gmra.mxu0 %v8541
  %v8797 = vpop.f32.mrf.mxu0
  %v8798 = vadd.f32 %v8351, %v8797
  %8799 = vmatmul.f32.gmra.mxu0 %v8544
  %v8800 = vpop.f32.mrf.mxu0
  %v8801 = vadd.f32 %v8351, %v8800
  %8802 = vmatmul.f32.gmra.mxu0 %v8547
  %v8803 = vpop.f32.mrf.mxu0
  %v8804 = vadd.f32 %v8351, %v8803
  %8805 = vmatmul.f32.gmra.mxu0 %v8550
  %v8806 = vpop.f32.mrf.mxu0
  %v8807 = vadd.f32 %v8351, %v8806
  %8808 = vmatmul.f32.gmra.mxu0 %v8553
  %v8809 = vpop.f32.mrf.mxu0
  %v8810 = vadd.f32 %v8351, %v8809
  %8811 = vmatmul.f32.gmra.mxu0 %v8556
  %v8812 = vpop.f32.mrf.mxu0
  %v8813 = vadd.f32 %v8351, %v8812
  %8814 = vmatmul.f32.gmra.mxu0 %v8559
  %v8815 = vpop.f32.mrf.mxu0
  %v8816 = vadd.f32 %v8351, %v8815
  %8817 = vmatmul.f32.gmra.mxu0 %v8562
  %v8818 = vpop.f32.mrf.mxu0
  %v8819 = vadd.f32 %v8351, %v8818
  %8820 = vmatmul.f32.gmra.mxu0 %v8565
  %v8821 = vpop.f32.mrf.mxu0
  %v8822 = vadd.f32 %v8351, %v8821
  %8823 = vmatmul.f32.gmra.mxu0 %v8568
  %v8824 = vpop.f32.mrf.mxu0
  %v8825 = vadd.f32 %v8351, %v8824
  %8826 = vmatmul.f32.gmra.mxu0 %v8571
  %v8827 = vpop.f32.mrf.mxu0
  %v8828 = vadd.f32 %v8351, %v8827
  %8829 = vmatmul.f32.gmra.mxu0 %v8574
  %v8830 = vpop.f32.mrf.mxu0
  %v8831 = vadd.f32 %v8351, %v8830
  %8832 = vmatmul.f32.gmra.mxu0 %v8577
  %v8833 = vpop.f32.mrf.mxu0
  %v8834 = vadd.f32 %v8351, %v8833
  %8835 = vmatmul.f32.gmra.mxu0 %v8580
  %v8836 = vpop.f32.mrf.mxu0
  %v8837 = vadd.f32 %v8351, %v8836
  %8838 = vmatmul.f32.gmra.mxu0 %v8583
  %v8839 = vpop.f32.mrf.mxu0
  %v8840 = vadd.f32 %v8351, %v8839
  %8841 = vmatmul.f32.gmra.mxu0 %v8586
  %v8842 = vpop.f32.mrf.mxu0
  %v8843 = vadd.f32 %v8351, %v8842
  %8844 = vmatmul.f32.gmra.mxu0 %v8589
  %v8845 = vpop.f32.mrf.mxu0
  %v8846 = vadd.f32 %v8351, %v8845
  %8847 = vmatmul.f32.gmra.mxu0 %v8592
  %v8848 = vpop.f32.mrf.mxu0
  %v8849 = vadd.f32 %v8351, %v8848
  %8850 = vdwg.mxu0
  %v8851 = vadd.f32 %v23, %v8612
  %v8852 = vadd.f32 %v24, %v8615
  %v8853 = vadd.f32 %v25, %v8618
  %v8854 = vadd.f32 %v26, %v8621
  %v8855 = vadd.f32 %v27, %v8624
  %v8856 = vadd.f32 %v28, %v8627
  %v8857 = vadd.f32 %v29, %v8630
  %v8858 = vadd.f32 %v30, %v8633
  %v8859 = vadd.f32 %v31, %v8636
  %v8860 = vadd.f32 %v32, %v8639
  %v8861 = vadd.f32 %v33, %v8642
  %v8862 = vadd.f32 %v34, %v8645
  %v8863 = vadd.f32 %v35, %v8648
  %v8864 = vadd.f32 %v36, %v8651
  %v8865 = vadd.f32 %v37, %v8654
  %v8866 = vadd.f32 %v38, %v8657
  %v8867 = vadd.f32 %v39, %v8660
  %v8868 = vadd.f32 %v40, %v8663
  %v8869 = vadd.f32 %v41, %v8666
  %v8870 = vadd.f32 %v42, %v8669
  %v8871 = vadd.f32 %v43, %v8672
  %v8872 = vadd.f32 %v44, %v8675
  %v8873 = vadd.f32 %v45, %v8678
  %v8874 = vadd.f32 %v46, %v8681
  %v8875 = vadd.f32 %v47, %v8684
  %v8876 = vadd.f32 %v48, %v8687
  %v8877 = vadd.f32 %v49, %v8690
  %v8878 = vadd.f32 %v50, %v8693
  %v8879 = vadd.f32 %v51, %v8696
  %v8880 = vadd.f32 %v52, %v8699
  %v8881 = vadd.f32 %v53, %v8702
  %v8882 = vadd.f32 %v54, %v8705
  %v8883 = vadd.f32 %v55, %v8708
  %v8884 = vadd.f32 %v56, %v8711
  %v8885 = vadd.f32 %v57, %v8714
  %v8886 = vadd.f32 %v58, %v8717
  %v8887 = vadd.f32 %v59, %v8720
  %v8888 = vadd.f32 %v60, %v8723
  %v8889 = vadd.f32 %v61, %v8726
  %v8890 = vadd.f32 %v62, %v8729
  %v8891 = vadd.f32 %v63, %v8732
  %v8892 = vadd.f32 %v64, %v8735
  %v8893 = vadd.f32 %v65, %v8738
  %v8894 = vadd.f32 %v66, %v8741
  %v8895 = vadd.f32 %v67, %v8744
  %v8896 = vadd.f32 %v68, %v8747
  %v8897 = vadd.f32 %v69, %v8750
  %v8898 = vadd.f32 %v70, %v8753
  %v8899 = vadd.f32 %v71, %v8756
  %v8900 = vadd.f32 %v72, %v8759
  %v8901 = vadd.f32 %v73, %v8762
  %v8902 = vadd.f32 %v74, %v8765
  %v8903 = vadd.f32 %v75, %v8768
  %v8904 = vadd.f32 %v76, %v8771
  %v8905 = vadd.f32 %v77, %v8774
  %v8906 = vadd.f32 %v78, %v8777
  %v8907 = vadd.f32 %v79, %v8780
  %v8908 = vadd.f32 %v80, %v8783
  %v8909 = vadd.f32 %v81, %v8786
  %v8910 = vadd.f32 %v82, %v8789
  %v8911 = vadd.f32 %v83, %v8792
  %v8912 = vadd.f32 %v84, %v8795
  %v8913 = vadd.f32 %v85, %v8798
  %v8914 = vadd.f32 %v86, %v8801
  %v8915 = vadd.f32 %v87, %v8804
  %v8916 = vadd.f32 %v88, %v8807
  %v8917 = vadd.f32 %v89, %v8810
  %v8918 = vadd.f32 %v90, %v8813
  %v8919 = vadd.f32 %v91, %v8816
  %v8920 = vadd.f32 %v92, %v8819
  %v8921 = vadd.f32 %v93, %v8822
  %v8922 = vadd.f32 %v94, %v8825
  %v8923 = vadd.f32 %v95, %v8828
  %v8924 = vadd.f32 %v96, %v8831
  %v8925 = vadd.f32 %v97, %v8834
  %v8926 = vadd.f32 %v98, %v8837
  %v8927 = vadd.f32 %v99, %v8840
  %v8928 = vadd.f32 %v100, %v8843
  %v8929 = vadd.f32 %v101, %v8846
  %v8930 = vadd.f32 %v102, %v8849
  %8931 = vst.msk [vmem:[%s6] sm:$0xff] %vm103, %v8851
  %8932 = vst.msk [vmem:[%s6 + $0x8] sm:$0xff] %vm103, %v8852
  %8933 = vst.msk [vmem:[%s6 + $0x10] sm:$0xff] %vm103, %v8853
  %8934 = vst.msk [vmem:[%s6 + $0x18] sm:$0xff] %vm103, %v8854
  %8935 = vst.msk [vmem:[%s6 + $0x20] sm:$0xff] %vm103, %v8855
  %8936 = vst.msk [vmem:[%s6 + $0x28] sm:$0xff] %vm103, %v8856
  %8937 = vst.msk [vmem:[%s6 + $0x30] sm:$0xff] %vm103, %v8857
  %8938 = vst.msk [vmem:[%s6 + $0x38] sm:$0xff] %vm103, %v8858
  %8939 = vst.msk [vmem:[%s6 + $0x40] sm:$0xff] %vm103, %v8859
  %8940 = vst.msk [vmem:[%s6 + $0x48] sm:$0xff] %vm103, %v8860
  %8941 = vst.msk [vmem:[%s6 + $0x50] sm:$0xff] %vm103, %v8861
  %8942 = vst.msk [vmem:[%s6 + $0x58] sm:$0xff] %vm103, %v8862
  %8943 = vst.msk [vmem:[%s6 + $0x60] sm:$0xff] %vm103, %v8863
  %8944 = vst.msk [vmem:[%s6 + $0x68] sm:$0xff] %vm103, %v8864
  %8945 = vst.msk [vmem:[%s6 + $0x70] sm:$0xff] %vm103, %v8865
  %8946 = vst.msk [vmem:[%s6 + $0x78] sm:$0xff] %vm103, %v8866
  %8947 = vst.msk [vmem:[%s6 + $0x80] sm:$0xff] %vm103, %v8867
  %8948 = vst.msk [vmem:[%s6 + $0x88] sm:$0xff] %vm103, %v8868
  %8949 = vst.msk [vmem:[%s6 + $0x90] sm:$0xff] %vm103, %v8869
  %8950 = vst.msk [vmem:[%s6 + $0x98] sm:$0xff] %vm103, %v8870
  %8951 = vst.msk [vmem:[%s6 + $0xa0] sm:$0xff] %vm103, %v8871
  %8952 = vst.msk [vmem:[%s6 + $0xa8] sm:$0xff] %vm103, %v8872
  %8953 = vst.msk [vmem:[%s6 + $0xb0] sm:$0xff] %vm103, %v8873
  %8954 = vst.msk [vmem:[%s6 + $0xb8] sm:$0xff] %vm103, %v8874
  %8955 = vst.msk [vmem:[%s6 + $0xc0] sm:$0xff] %vm103, %v8875
  %8956 = vst.msk [vmem:[%s6 + $0xc8] sm:$0xff] %vm103, %v8876
  %8957 = vst.msk [vmem:[%s6 + $0xd0] sm:$0xff] %vm103, %v8877
  %8958 = vst.msk [vmem:[%s6 + $0xd8] sm:$0xff] %vm103, %v8878
  %8959 = vst.msk [vmem:[%s6 + $0xe0] sm:$0xff] %vm103, %v8879
  %8960 = vst.msk [vmem:[%s6 + $0xe8] sm:$0xff] %vm103, %v8880
  %8961 = vst.msk [vmem:[%s6 + $0xf0] sm:$0xff] %vm103, %v8881
  %8962 = vst.msk [vmem:[%s6 + $0xf8] sm:$0xff] %vm103, %v8882
  %8963 = vst.msk [vmem:[%s6 + $0x100] sm:$0xff] %vm103, %v8883
  %8964 = vst.msk [vmem:[%s6 + $0x108] sm:$0xff] %vm103, %v8884
  %8965 = vst.msk [vmem:[%s6 + $0x110] sm:$0xff] %vm103, %v8885
  %8966 = vst.msk [vmem:[%s6 + $0x118] sm:$0xff] %vm103, %v8886
  %8967 = vst.msk [vmem:[%s6 + $0x120] sm:$0xff] %vm103, %v8887
  %8968 = vst.msk [vmem:[%s6 + $0x128] sm:$0xff] %vm103, %v8888
  %8969 = vst.msk [vmem:[%s6 + $0x130] sm:$0xff] %vm103, %v8889
  %8970 = vst.msk [vmem:[%s6 + $0x138] sm:$0xff] %vm103, %v8890
  %8971 = vst.msk [vmem:[%s6 + $0x140] sm:$0xff] %vm103, %v8891
  %8972 = vst.msk [vmem:[%s6 + $0x148] sm:$0xff] %vm103, %v8892
  %8973 = vst.msk [vmem:[%s6 + $0x150] sm:$0xff] %vm103, %v8893
  %8974 = vst.msk [vmem:[%s6 + $0x158] sm:$0xff] %vm103, %v8894
  %8975 = vst.msk [vmem:[%s6 + $0x160] sm:$0xff] %vm103, %v8895
  %8976 = vst.msk [vmem:[%s6 + $0x168] sm:$0xff] %vm103, %v8896
  %8977 = vst.msk [vmem:[%s6 + $0x170] sm:$0xff] %vm103, %v8897
  %8978 = vst.msk [vmem:[%s6 + $0x178] sm:$0xff] %vm103, %v8898
  %8979 = vst.msk [vmem:[%s6 + $0x180] sm:$0xff] %vm103, %v8899
  %8980 = vst.msk [vmem:[%s6 + $0x188] sm:$0xff] %vm103, %v8900
  %8981 = vst.msk [vmem:[%s6 + $0x190] sm:$0xff] %vm103, %v8901
  %8982 = vst.msk [vmem:[%s6 + $0x198] sm:$0xff] %vm103, %v8902
  %8983 = vst.msk [vmem:[%s6 + $0x1a0] sm:$0xff] %vm103, %v8903
  %8984 = vst.msk [vmem:[%s6 + $0x1a8] sm:$0xff] %vm103, %v8904
  %8985 = vst.msk [vmem:[%s6 + $0x1b0] sm:$0xff] %vm103, %v8905
  %8986 = vst.msk [vmem:[%s6 + $0x1b8] sm:$0xff] %vm103, %v8906
  %8987 = vst.msk [vmem:[%s6 + $0x1c0] sm:$0xff] %vm103, %v8907
  %8988 = vst.msk [vmem:[%s6 + $0x1c8] sm:$0xff] %vm103, %v8908
  %8989 = vst.msk [vmem:[%s6 + $0x1d0] sm:$0xff] %vm103, %v8909
  %8990 = vst.msk [vmem:[%s6 + $0x1d8] sm:$0xff] %vm103, %v8910
  %8991 = vst.msk [vmem:[%s6 + $0x1e0] sm:$0xff] %vm103, %v8911
  %8992 = vst.msk [vmem:[%s6 + $0x1e8] sm:$0xff] %vm103, %v8912
  %8993 = vst.msk [vmem:[%s6 + $0x1f0] sm:$0xff] %vm103, %v8913
  %8994 = vst.msk [vmem:[%s6 + $0x1f8] sm:$0xff] %vm103, %v8914
  %8995 = vst.msk [vmem:[%s6 + $0x200] sm:$0xff] %vm103, %v8915
  %8996 = vst.msk [vmem:[%s6 + $0x208] sm:$0xff] %vm103, %v8916
  %8997 = vst.msk [vmem:[%s6 + $0x210] sm:$0xff] %vm103, %v8917
  %8998 = vst.msk [vmem:[%s6 + $0x218] sm:$0xff] %vm103, %v8918
  %8999 = vst.msk [vmem:[%s6 + $0x220] sm:$0xff] %vm103, %v8919
  %9000 = vst.msk [vmem:[%s6 + $0x228] sm:$0xff] %vm103, %v8920
  %9001 = vst.msk [vmem:[%s6 + $0x230] sm:$0xff] %vm103, %v8921
  %9002 = vst.msk [vmem:[%s6 + $0x238] sm:$0xff] %vm103, %v8922
  %9003 = vst.msk [vmem:[%s6 + $0x240] sm:$0xff] %vm103, %v8923
  %9004 = vst.msk [vmem:[%s6 + $0x248] sm:$0xff] %vm103, %v8924
  %9005 = vst.msk [vmem:[%s6 + $0x250] sm:$0xff] %vm103, %v8925
  %9006 = vst.msk [vmem:[%s6 + $0x258] sm:$0xff] %vm103, %v8926
  %9007 = vst.msk [vmem:[%s6 + $0x260] sm:$0xff] %vm103, %v8927
  %9008 = vst.msk [vmem:[%s6 + $0x268] sm:$0xff] %vm103, %v8928
  %9009 = vst.msk [vmem:[%s6 + $0x270] sm:$0xff] %vm103, %v8929
  %9010 = vst.msk [vmem:[%s6 + $0x278] sm:$0xff] %vm103, %v8930
  // Predicated region
  $region26: #{tpu_custom_call.1} parent=0 // pred_check
    _
  $region27: #{tpu_custom_call.1} parent=0 // pred_check_branch
    %9012 = sbr.rel (0) target = $region29
  $region28: #{tpu_custom_call.1} parent=0 // pred_region
    _
  $region29: #{tpu_custom_call.1} parent=0 // pred_fallthru
    _
  // Predicated region
  $region30: #{tpu_custom_call.1} parent=0 // pred_check
    _
  $region31: #{tpu_custom_call.1} parent=0 // pred_check_branch
    %9014 = sbr.rel (0) target = $region33
  $region32: #{tpu_custom_call.1} parent=0 // pred_region
    _
  $region33: #{tpu_custom_call.1} parent=0 // pred_fallthru
    _

</llo_original>
